<compile_context>
chip_gen: v6e
topology: v6e:2x2x1
jax: 0.10.0
libtpu: 0.0.40
codegen_flags: <defaults>
</compile_context>

<pallas_src>
import jax
import jax.numpy as jnp
from jax import lax
from jax.experimental import pallas as pl
from jax.experimental.pallas import tpu as pltpu


# ----------------------------- Pallas kernel --------------------------------
def sentiment_lstm_kernel(
    embeds_ref,   # (S*B, E)  time-major embeddings; row t*B + b is step t, batch b
    h_init_ref,   # (2, B, H) initial hidden state
    c_init_ref,   # (2, B, H) initial cell state
    w_ih0_ref,    # (E, 4H)   layer-0 input weights (transposed)
    w_hh0_ref,    # (H, 4H)   layer-0 recurrent weights (transposed)
    b0_ref,       # (1, 4H)   layer-0 combined bias (b_ih + b_hh)
    w_cat1_ref,   # (2H, 4H)  layer-1 fused [W_ih^T ; W_hh^T]
    b1_ref,       # (1, 4H)   layer-1 combined bias
    w_fc_ref,     # (1, H)    fc weight as a row
    b_fc_ref,     # (1, 1)    fc bias
    sig_ref,      # out (B, 1)    sigmoid(fc(h_last))
    h_n_ref,      # out (2, B, H) final hidden state
    c_n_ref,      # out (2, B, H) final cell state
    g0_ref,       # VMEM scratch (S*B, 4H): precomputed layer-0 input gates
):
    B = h_init_ref.shape[1]
    H = h_init_ref.shape[2]
    S = embeds_ref.shape[0] // B

    # ---- Phase 1 (non-recurrent): layer-0 input projection for ALL steps ----
    # One big GEMM fills the MXU instead of S tiny (B, E) matmuls in the loop.
    g0_ref[...] = (
        jnp.dot(embeds_ref[...], w_ih0_ref[...],
                preferred_element_type=jnp.float32)
        + b0_ref[...])

    # Hoisted, loop-invariant bias broadcast (JAX does not CSE broadcasts).
    b1b = jnp.broadcast_to(b1_ref[...], (B, 4 * H))

    def gates_to_hc(gates, c_prev):
        # PyTorch gate order: i, f, g, o. H is a multiple of 128, so every
        # slice below is lane-aligned (no masked/relayout ops on the VPU path).
        i = jax.nn.sigmoid(gates[:, 0 * H:1 * H])
        f = jax.nn.sigmoid(gates[:, 1 * H:2 * H])
        g = jnp.tanh(gates[:, 2 * H:3 * H])
        o = jax.nn.sigmoid(gates[:, 3 * H:4 * H])
        c_new = f * c_prev + i * g
        h_new = o * jnp.tanh(c_new)
        return h_new, c_new

    # ---- Phase 2: the serial recurrence (state lives in vregs) -------------
    def step(t, carry):
        h0, c0, h1, c1 = carry
        row = pl.multiple_of(t * B, B)                 # aligned sublane offset
        # Layer 0: only the recurrent matmul remains inside the loop.
        g_l0 = g0_ref[pl.ds(row, B), :] + jnp.dot(
            h0, w_hh0_ref[...], preferred_element_type=jnp.float32)
        h0, c0 = gates_to_hc(g_l0, c0)
        # TODO(synk): inter-layer LSTM dropout (p=0.5) and nn.Dropout(0.3) are
        # identity in eval/inference mode, so they are intentionally omitted.
        # Layer 1: single fused matmul over concatenated [h0, h1].
        x1 = jnp.concatenate([h0, h1], axis=-1)        # (B, 2H)
        g_l1 = jnp.dot(x1, w_cat1_ref[...],
                       preferred_element_type=jnp.float32) + b1b
        h1, c1 = gates_to_hc(g_l1, c1)
        return h0, c0, h1, c1

    h0, c0, h1, c1 = lax.fori_loop(
        0, S, step,
        (h_init_ref[0], c_init_ref[0], h_init_ref[1], c_init_ref[1]),
        unroll=True)   # S is small & static here; use partial unroll for long S

    # ---- Finalize -----------------------------------------------------------
    h_n_ref[0] = h0
    h_n_ref[1] = h1
    c_n_ref[0] = c0
    c_n_ref[1] = c1
    # fc has a single output column -> keep it off the MXU: VPU mul + lane sum.
    logits = jnp.sum(h1 * w_fc_ref[...], axis=-1, keepdims=True) + b_fc_ref[...]
    sig_ref[...] = jax.nn.sigmoid(logits)


# ------------------------------ wrapper --------------------------------------
def sentiment_rnn_forward(x_tokens, hidden, params):
    """Mirrors SentimentRNN.forward (eval mode). Returns (sig_out[B], (h_n, c_n))."""
    h_init, c_init = hidden                     # each (2, B, H)
    B, S = x_tokens.shape
    E = params["embedding"].shape[1]
    H = h_init.shape[-1]

    # Embedding gather (glue) + time-major flatten: row t*B + b holds step t.
    embeds = jnp.take(params["embedding"], x_tokens, axis=0)   # (B, S, E)
    embeds_tm = jnp.transpose(embeds, (1, 0, 2)).reshape(S * B, E)

    # Pre-transpose weights, combine biases (exactly equivalent to PyTorch).
    w_ih0_t = params["w_ih0"].T                                # (E, 4H)
    w_hh0_t = params["w_hh0"].T                                # (H, 4H)
    b0 = (params["b_ih0"] + params["b_hh0"]).reshape(1, 4 * H)
    w_cat1 = jnp.concatenate([params["w_ih1"].T,
                              params["w_hh1"].T], axis=0)      # (2H, 4H)
    b1 = (params["b_ih1"] + params["b_hh1"]).reshape(1, 4 * H)
    w_fc_row = params["w_fc"].reshape(1, H)                    # (1, H)
    b_fc = params["b_fc"].reshape(1, 1)

    vmem = pl.BlockSpec(memory_space=pltpu.MemorySpace.VMEM)

    out_shapes = (
        jax.ShapeDtypeStruct((B, 1), jnp.float32),      # sigmoid output (last step)
        jax.ShapeDtypeStruct((2, B, H), jnp.float32),   # h_n
        jax.ShapeDtypeStruct((2, B, H), jnp.float32),   # c_n
    )

    sig, h_n, c_n = pl.pallas_call(
        sentiment_lstm_kernel,
        out_shape=out_shapes,
        in_specs=[vmem] * 10,
        out_specs=(vmem, vmem, vmem),
        scratch_shapes=[pltpu.VMEM((S * B, 4 * H), jnp.float32)],
        # TODO(synk): at production shapes (S~200, B~50, E=400, H=256) stream
        # the embeds / precomputed-gates buffers in chunks (v5e 16 MiB scoped
        # VMEM default, v7x 64 MiB VMEM) and shard the batch over v7x's two
        # TensorCores; not needed at demo size (everything fits in VMEM).
    )(embeds_tm, h_init, c_init, w_ih0_t, w_hh0_t, b0,
      w_cat1, b1, w_fc_row, b_fc)

    sig_out = sig[:, 0]              # == sig_out[:, -1] in the PyTorch forward
    return sig_out, (h_n, c_n)


# ------------------------- pure-JAX reference --------------------------------
def sentiment_rnn_reference(x_tokens, hidden, params):
    h_init, c_init = hidden
    B, S = x_tokens.shape
    H = h_init.shape[-1]
    embeds = jnp.take(params["embedding"], x_tokens, axis=0)   # (B, S, E)

    def cell(x, h, c, w_ih, w_hh, b_ih, b_hh):
        gates = x @ w_ih.T + b_ih + h @ w_hh.T + b_hh
        i = jax.nn.sigmoid(gates[:, 0 * H:1 * H])
        f = jax.nn.sigmoid(gates[:, 1 * H:2 * H])
        g = jnp.tanh(gates[:, 2 * H:3 * H])
        o = jax.nn.sigmoid(gates[:, 3 * H:4 * H])
        c_new = f * c + i * g
        return o * jnp.tanh(c_new), c_new

    h0, c0 = h_init[0], c_init[0]
    h1, c1 = h_init[1], c_init[1]
    outs = []
    for t in range(S):
        x_t = embeds[:, t, :]
        h0, c0 = cell(x_t, h0, c0, params["w_ih0"], params["w_hh0"],
                      params["b_ih0"], params["b_hh0"])
        h1, c1 = cell(h0, h1, c1, params["w_ih1"], params["w_hh1"],
                      params["b_ih1"], params["b_hh1"])
        outs.append(h1)
    lstm_out = jnp.stack(outs, axis=1)                         # (B, S, H)
    flat = lstm_out.reshape(-1, H)
    logits = flat @ params["w_fc"].T + params["b_fc"]
    sig = jax.nn.sigmoid(logits).reshape(B, -1)
    return sig[:, -1], (jnp.stack([h0, h1]), jnp.stack([c0, c1]))


# ------------------------------ main ------------------------------------------
if __name__ == "__main__":
    # Small shapes consistent with the module (scaled down from 400/256),
    # chosen lane-aligned (E, H multiples of 128) per the perf review.
    VOCAB = 256
    B, S = 8, 16
    E, H = 128, 128
    N_LAYERS = 2

    key = jax.random.PRNGKey(0)
    ks = jax.random.split(key, 12)
    k_inv = 1.0 / jnp.sqrt(H)

    def uni(k, shape):
        return jax.random.uniform(k, shape, jnp.float32, -k_inv, k_inv)

    params = {
        "embedding": jax.random.normal(ks[0], (VOCAB, E), jnp.float32),
        "w_ih0": uni(ks[1], (4 * H, E)),
        "w_hh0": uni(ks[2], (4 * H, H)),
        "b_ih0": uni(ks[3], (4 * H,)),
        "b_hh0": uni(ks[4], (4 * H,)),
        "w_ih1": uni(ks[5], (4 * H, H)),
        "w_hh1": uni(ks[6], (4 * H, H)),
        "b_ih1": uni(ks[7], (4 * H,)),
        "b_hh1": uni(ks[8], (4 * H,)),
        "w_fc": uni(ks[9], (1, H)),
        "b_fc": uni(ks[10], (1,)),
    }

    x_tokens = jax.random.randint(ks[11], (B, S), 0, VOCAB, jnp.int32)
    hidden = (jnp.zeros((N_LAYERS, B, H), jnp.float32),
              jnp.zeros((N_LAYERS, B, H), jnp.float32))   # init_hidden()

    sig_out, (h_n, c_n) = sentiment_rnn_forward(x_tokens, hidden, params)
    jax.block_until_ready((sig_out, h_n, c_n))

    with jax.default_matmul_precision("float32"):
        ref_sig, (ref_h, ref_c) = sentiment_rnn_reference(x_tokens, hidden, params)

    assert jnp.allclose(sig_out, ref_sig, atol=2e-4, rtol=2e-4)
    assert jnp.allclose(h_n, ref_h, atol=2e-4, rtol=2e-4)
    assert jnp.allclose(c_n, ref_c, atol=2e-4, rtol=2e-4)

    print("KERNEL_OK")
</pallas_src>

<mosaic_0001>
module attributes {stable_mosaic.version = 11 : i64} {
  func.func @sentiment_lstm_kernel(%arg0: memref<128x128xf32, #tpu.memory_space<vmem>>, %arg1: memref<2x8x128xf32, #tpu.memory_space<vmem>>, %arg2: memref<2x8x128xf32, #tpu.memory_space<vmem>>, %arg3: memref<128x512xf32, #tpu.memory_space<vmem>>, %arg4: memref<128x512xf32, #tpu.memory_space<vmem>>, %arg5: memref<1x512xf32, #tpu.memory_space<vmem>>, %arg6: memref<256x512xf32, #tpu.memory_space<vmem>>, %arg7: memref<1x512xf32, #tpu.memory_space<vmem>>, %arg8: memref<1x128xf32, #tpu.memory_space<vmem>>, %arg9: memref<1x1xf32, #tpu.memory_space<vmem>>, %arg10: memref<8x1xf32, #tpu.memory_space<vmem>>, %arg11: memref<2x8x128xf32, #tpu.memory_space<vmem>>, %arg12: memref<2x8x128xf32, #tpu.memory_space<vmem>>, %arg13: memref<128x512xf32, #tpu.memory_space<vmem>>) attributes {dimension_semantics = [], scalar_prefetch = 0 : i64, scratch_operands = 1 : i64, tpu.core_type = #tpu.core_type<tc>} {
    %c0 = arith.constant 0 : index
    %c0_0 = arith.constant 0 : index
    %0 = vector.load %arg0[%c0, %c0_0] : memref<128x128xf32, #tpu.memory_space<vmem>>, vector<128x128xf32>
    %c0_1 = arith.constant 0 : index
    %c0_2 = arith.constant 0 : index
    %1 = vector.load %arg3[%c0_1, %c0_2] : memref<128x512xf32, #tpu.memory_space<vmem>>, vector<128x512xf32>
    %cst = arith.constant dense<0.000000e+00> : vector<128x512xf32>
    %2 = tpu.matmul %0, %1, %cst {dimension_numbers = #tpu.dot_dimension_numbers<[1], [0], [0], [1], [0, 0, 1, 1], [], []>} : vector<128x128xf32>, vector<128x512xf32>, vector<128x512xf32> -> vector<128x512xf32>
    %c0_3 = arith.constant 0 : index
    %c0_4 = arith.constant 0 : index
    %3 = vector.load %arg5[%c0_3, %c0_4] : memref<1x512xf32, #tpu.memory_space<vmem>>, vector<1x512xf32>
    %4 = vector.broadcast %3 : vector<1x512xf32> to vector<128x512xf32>
    %5 = arith.addf %2, %4 : vector<128x512xf32>
    %c0_5 = arith.constant 0 : index
    %c0_6 = arith.constant 0 : index
    %6 = vector.load %arg13[%c0_5, %c0_6] : memref<128x512xf32, #tpu.memory_space<vmem>>, vector<128x512xf32>
    tpu.vector_store %arg13[%c0_5, %c0_6], %5 {strides = array<i32>} : memref<128x512xf32, #tpu.memory_space<vmem>>, vector<128x512xf32>,
    %c0_7 = arith.constant 0 : index
    %c0_8 = arith.constant 0 : index
    %7 = vector.load %arg7[%c0_7, %c0_8] : memref<1x512xf32, #tpu.memory_space<vmem>>, vector<1x512xf32>
    %8 = vector.shape_cast %7 : vector<1x512xf32> to vector<1x512xf32>
    %9 = vector.broadcast %8 : vector<1x512xf32> to vector<8x512xf32>
    %c0_9 = arith.constant 0 : index
    %c0_10 = arith.constant 0 : index
    %c0_11 = arith.constant 0 : index
    %10 = vector.load %arg1[%c0_9, %c0_10, %c0_11] : memref<2x8x128xf32, #tpu.memory_space<vmem>>, vector<1x8x128xf32>
    %11 = vector.shape_cast %10 : vector<1x8x128xf32> to vector<8x128xf32>
    %c0_12 = arith.constant 0 : index
    %c0_13 = arith.constant 0 : index
    %c0_14 = arith.constant 0 : index
    %12 = vector.load %arg2[%c0_12, %c0_13, %c0_14] : memref<2x8x128xf32, #tpu.memory_space<vmem>>, vector<1x8x128xf32>
    %13 = vector.shape_cast %12 : vector<1x8x128xf32> to vector<8x128xf32>
    %c1 = arith.constant 1 : index
    %c0_15 = arith.constant 0 : index
    %c0_16 = arith.constant 0 : index
    %14 = vector.load %arg1[%c1, %c0_15, %c0_16] : memref<2x8x128xf32, #tpu.memory_space<vmem>>, vector<1x8x128xf32>
    %15 = vector.shape_cast %14 : vector<1x8x128xf32> to vector<8x128xf32>
    %c1_17 = arith.constant 1 : index
    %c0_18 = arith.constant 0 : index
    %c0_19 = arith.constant 0 : index
    %16 = vector.load %arg2[%c1_17, %c0_18, %c0_19] : memref<2x8x128xf32, #tpu.memory_space<vmem>>, vector<1x8x128xf32>
    %17 = vector.shape_cast %16 : vector<1x8x128xf32> to vector<8x128xf32>
    %c0_i32 = arith.constant 0 : i32
    %c8_i32 = arith.constant 8 : i32
    %18 = arith.muli %c0_i32, %c8_i32 : i32
    %19 = tpu.assume_multiple %18, 8 : i32
    %20 = arith.index_cast %19 : i32 to index
    %c0_20 = arith.constant 0 : index
    %21 = vector.load %arg13[%20, %c0_20] : memref<128x512xf32, #tpu.memory_space<vmem>>, vector<8x512xf32>
    %c0_21 = arith.constant 0 : index
    %c0_22 = arith.constant 0 : index
    %22 = vector.load %arg4[%c0_21, %c0_22] : memref<128x512xf32, #tpu.memory_space<vmem>>, vector<128x512xf32>
    %cst_23 = arith.constant dense<0.000000e+00> : vector<8x512xf32>
    %23 = tpu.matmul %11, %22, %cst_23 {dimension_numbers = #tpu.dot_dimension_numbers<[1], [0], [0], [1], [0, 0, 1, 1], [], []>} : vector<8x128xf32>, vector<128x512xf32>, vector<8x512xf32> -> vector<8x512xf32>
    %24 = arith.addf %21, %23 : vector<8x512xf32>
    %25 = vector.extract_strided_slice %24 {offsets = [0, 0], sizes = [8, 128], strides = [1, 1]} : vector<8x512xf32> to vector<8x128xf32>
    %26 = arith.negf %25 : vector<8x128xf32>
    %27 = math.exp %26 : vector<8x128xf32>
    %cst_24 = arith.constant 1.000000e+00 : f32
    %28 = vector.broadcast %cst_24 : f32 to vector<8x128xf32>
    %29 = arith.addf %28, %27 : vector<8x128xf32>
    %30 = arith.divf %28, %29 : vector<8x128xf32>
    %31 = vector.extract_strided_slice %24 {offsets = [0, 128], sizes = [8, 128], strides = [1, 1]} : vector<8x512xf32> to vector<8x128xf32>
    %32 = arith.negf %31 : vector<8x128xf32>
    %33 = math.exp %32 : vector<8x128xf32>
    %cst_25 = arith.constant 1.000000e+00 : f32
    %34 = vector.broadcast %cst_25 : f32 to vector<8x128xf32>
    %35 = arith.addf %34, %33 : vector<8x128xf32>
    %36 = arith.divf %34, %35 : vector<8x128xf32>
    %37 = vector.extract_strided_slice %24 {offsets = [0, 256], sizes = [8, 128], strides = [1, 1]} : vector<8x512xf32> to vector<8x128xf32>
    %38 = math.tanh %37 : vector<8x128xf32>
    %39 = vector.extract_strided_slice %24 {offsets = [0, 384], sizes = [8, 128], strides = [1, 1]} : vector<8x512xf32> to vector<8x128xf32>
    %40 = arith.negf %39 : vector<8x128xf32>
    %41 = math.exp %40 : vector<8x128xf32>
    %cst_26 = arith.constant 1.000000e+00 : f32
    %42 = vector.broadcast %cst_26 : f32 to vector<8x128xf32>
    %43 = arith.addf %42, %41 : vector<8x128xf32>
    %44 = arith.divf %42, %43 : vector<8x128xf32>
    %45 = arith.mulf %36, %13 : vector<8x128xf32>
    %46 = arith.mulf %30, %38 : vector<8x128xf32>
    %47 = arith.addf %45, %46 : vector<8x128xf32>
    %48 = math.tanh %47 : vector<8x128xf32>
    %49 = arith.mulf %44, %48 : vector<8x128xf32>
    %50 = tpu.concatenate %49, %15 in 1 : vector<8x128xf32>, vector<8x128xf32> -> vector<8x256xf32>
    %c0_27 = arith.constant 0 : index
    %c0_28 = arith.constant 0 : index
    %51 = vector.load %arg6[%c0_27, %c0_28] : memref<256x512xf32, #tpu.memory_space<vmem>>, vector<256x512xf32>
    %cst_29 = arith.constant dense<0.000000e+00> : vector<8x512xf32>
    %52 = tpu.matmul %50, %51, %cst_29 {dimension_numbers = #tpu.dot_dimension_numbers<[1], [0], [0], [1], [0, 0, 1, 1], [], []>} : vector<8x256xf32>, vector<256x512xf32>, vector<8x512xf32> -> vector<8x512xf32>
    %53 = arith.addf %52, %9 : vector<8x512xf32>
    %54 = vector.extract_strided_slice %53 {offsets = [0, 0], sizes = [8, 128], strides = [1, 1]} : vector<8x512xf32> to vector<8x128xf32>
    %55 = arith.negf %54 : vector<8x128xf32>
    %56 = math.exp %55 : vector<8x128xf32>
    %cst_30 = arith.constant 1.000000e+00 : f32
    %57 = vector.broadcast %cst_30 : f32 to vector<8x128xf32>
    %58 = arith.addf %57, %56 : vector<8x128xf32>
    %59 = arith.divf %57, %58 : vector<8x128xf32>
    %60 = vector.extract_strided_slice %53 {offsets = [0, 128], sizes = [8, 128], strides = [1, 1]} : vector<8x512xf32> to vector<8x128xf32>
    %61 = arith.negf %60 : vector<8x128xf32>
    %62 = math.exp %61 : vector<8x128xf32>
    %cst_31 = arith.constant 1.000000e+00 : f32
    %63 = vector.broadcast %cst_31 : f32 to vector<8x128xf32>
    %64 = arith.addf %63, %62 : vector<8x128xf32>
    %65 = arith.divf %63, %64 : vector<8x128xf32>
    %66 = vector.extract_strided_slice %53 {offsets = [0, 256], sizes = [8, 128], strides = [1, 1]} : vector<8x512xf32> to vector<8x128xf32>
    %67 = math.tanh %66 : vector<8x128xf32>
    %68 = vector.extract_strided_slice %53 {offsets = [0, 384], sizes = [8, 128], strides = [1, 1]} : vector<8x512xf32> to vector<8x128xf32>
    %69 = arith.negf %68 : vector<8x128xf32>
    %70 = math.exp %69 : vector<8x128xf32>
    %cst_32 = arith.constant 1.000000e+00 : f32
    %71 = vector.broadcast %cst_32 : f32 to vector<8x128xf32>
    %72 = arith.addf %71, %70 : vector<8x128xf32>
    %73 = arith.divf %71, %72 : vector<8x128xf32>
    %74 = arith.mulf %65, %17 : vector<8x128xf32>
    %75 = arith.mulf %59, %67 : vector<8x128xf32>
    %76 = arith.addf %74, %75 : vector<8x128xf32>
    %77 = math.tanh %76 : vector<8x128xf32>
    %78 = arith.mulf %73, %77 : vector<8x128xf32>
    %c1_i32 = arith.constant 1 : i32
    %c8_i32_33 = arith.constant 8 : i32
    %79 = arith.muli %c1_i32, %c8_i32_33 : i32
    %80 = tpu.assume_multiple %79, 8 : i32
    %81 = arith.index_cast %80 : i32 to index
    %c0_34 = arith.constant 0 : index
    %82 = vector.load %arg13[%81, %c0_34] : memref<128x512xf32, #tpu.memory_space<vmem>>, vector<8x512xf32>
    %c0_35 = arith.constant 0 : index
    %c0_36 = arith.constant 0 : index
    %83 = vector.load %arg4[%c0_35, %c0_36] : memref<128x512xf32, #tpu.memory_space<vmem>>, vector<128x512xf32>
    %cst_37 = arith.constant dense<0.000000e+00> : vector<8x512xf32>
    %84 = tpu.matmul %49, %83, %cst_37 {dimension_numbers = #tpu.dot_dimension_numbers<[1], [0], [0], [1], [0, 0, 1, 1], [], []>} : vector<8x128xf32>, vector<128x512xf32>, vector<8x512xf32> -> vector<8x512xf32>
    %85 = arith.addf %82, %84 : vector<8x512xf32>
    %86 = vector.extract_strided_slice %85 {offsets = [0, 0], sizes = [8, 128], strides = [1, 1]} : vector<8x512xf32> to vector<8x128xf32>
    %87 = arith.negf %86 : vector<8x128xf32>
    %88 = math.exp %87 : vector<8x128xf32>
    %cst_38 = arith.constant 1.000000e+00 : f32
    %89 = vector.broadcast %cst_38 : f32 to vector<8x128xf32>
    %90 = arith.addf %89, %88 : vector<8x128xf32>
    %91 = arith.divf %89, %90 : vector<8x128xf32>
    %92 = vector.extract_strided_slice %85 {offsets = [0, 128], sizes = [8, 128], strides = [1, 1]} : vector<8x512xf32> to vector<8x128xf32>
    %93 = arith.negf %92 : vector<8x128xf32>
    %94 = math.exp %93 : vector<8x128xf32>
    %cst_39 = arith.constant 1.000000e+00 : f32
    %95 = vector.broadcast %cst_39 : f32 to vector<8x128xf32>
    %96 = arith.addf %95, %94 : vector<8x128xf32>
    %97 = arith.divf %95, %96 : vector<8x128xf32>
    %98 = vector.extract_strided_slice %85 {offsets = [0, 256], sizes = [8, 128], strides = [1, 1]} : vector<8x512xf32> to vector<8x128xf32>
    %99 = math.tanh %98 : vector<8x128xf32>
    %100 = vector.extract_strided_slice %85 {offsets = [0, 384], sizes = [8, 128], strides = [1, 1]} : vector<8x512xf32> to vector<8x128xf32>
    %101 = arith.negf %100 : vector<8x128xf32>
    %102 = math.exp %101 : vector<8x128xf32>
    %cst_40 = arith.constant 1.000000e+00 : f32
    %103 = vector.broadcast %cst_40 : f32 to vector<8x128xf32>
    %104 = arith.addf %103, %102 : vector<8x128xf32>
    %105 = arith.divf %103, %104 : vector<8x128xf32>
    %106 = arith.mulf %97, %47 : vector<8x128xf32>
    %107 = arith.mulf %91, %99 : vector<8x128xf32>
    %108 = arith.addf %106, %107 : vector<8x128xf32>
    %109 = math.tanh %108 : vector<8x128xf32>
    %110 = arith.mulf %105, %109 : vector<8x128xf32>
    %111 = tpu.concatenate %110, %78 in 1 : vector<8x128xf32>, vector<8x128xf32> -> vector<8x256xf32>
    %c0_41 = arith.constant 0 : index
    %c0_42 = arith.constant 0 : index
    %112 = vector.load %arg6[%c0_41, %c0_42] : memref<256x512xf32, #tpu.memory_space<vmem>>, vector<256x512xf32>
    %cst_43 = arith.constant dense<0.000000e+00> : vector<8x512xf32>
    %113 = tpu.matmul %111, %112, %cst_43 {dimension_numbers = #tpu.dot_dimension_numbers<[1], [0], [0], [1], [0, 0, 1, 1], [], []>} : vector<8x256xf32>, vector<256x512xf32>, vector<8x512xf32> -> vector<8x512xf32>
    %114 = arith.addf %113, %9 : vector<8x512xf32>
    %115 = vector.extract_strided_slice %114 {offsets = [0, 0], sizes = [8, 128], strides = [1, 1]} : vector<8x512xf32> to vector<8x128xf32>
    %116 = arith.negf %115 : vector<8x128xf32>
    %117 = math.exp %116 : vector<8x128xf32>
    %cst_44 = arith.constant 1.000000e+00 : f32
    %118 = vector.broadcast %cst_44 : f32 to vector<8x128xf32>
    %119 = arith.addf %118, %117 : vector<8x128xf32>
    %120 = arith.divf %118, %119 : vector<8x128xf32>
    %121 = vector.extract_strided_slice %114 {offsets = [0, 128], sizes = [8, 128], strides = [1, 1]} : vector<8x512xf32> to vector<8x128xf32>
    %122 = arith.negf %121 : vector<8x128xf32>
    %123 = math.exp %122 : vector<8x128xf32>
    %cst_45 = arith.constant 1.000000e+00 : f32
    %124 = vector.broadcast %cst_45 : f32 to vector<8x128xf32>
    %125 = arith.addf %124, %123 : vector<8x128xf32>
    %126 = arith.divf %124, %125 : vector<8x128xf32>
    %127 = vector.extract_strided_slice %114 {offsets = [0, 256], sizes = [8, 128], strides = [1, 1]} : vector<8x512xf32> to vector<8x128xf32>
    %128 = math.tanh %127 : vector<8x128xf32>
    %129 = vector.extract_strided_slice %114 {offsets = [0, 384], sizes = [8, 128], strides = [1, 1]} : vector<8x512xf32> to vector<8x128xf32>
    %130 = arith.negf %129 : vector<8x128xf32>
    %131 = math.exp %130 : vector<8x128xf32>
    %cst_46 = arith.constant 1.000000e+00 : f32
    %132 = vector.broadcast %cst_46 : f32 to vector<8x128xf32>
    %133 = arith.addf %132, %131 : vector<8x128xf32>
    %134 = arith.divf %132, %133 : vector<8x128xf32>
    %135 = arith.mulf %126, %76 : vector<8x128xf32>
    %136 = arith.mulf %120, %128 : vector<8x128xf32>
    %137 = arith.addf %135, %136 : vector<8x128xf32>
    %138 = math.tanh %137 : vector<8x128xf32>
    %139 = arith.mulf %134, %138 : vector<8x128xf32>
    %c2_i32 = arith.constant 2 : i32
    %c8_i32_47 = arith.constant 8 : i32
    %140 = arith.muli %c2_i32, %c8_i32_47 : i32
    %141 = tpu.assume_multiple %140, 8 : i32
    %142 = arith.index_cast %141 : i32 to index
    %c0_48 = arith.constant 0 : index
    %143 = vector.load %arg13[%142, %c0_48] : memref<128x512xf32, #tpu.memory_space<vmem>>, vector<8x512xf32>
    %c0_49 = arith.constant 0 : index
    %c0_50 = arith.constant 0 : index
    %144 = vector.load %arg4[%c0_49, %c0_50] : memref<128x512xf32, #tpu.memory_space<vmem>>, vector<128x512xf32>
    %cst_51 = arith.constant dense<0.000000e+00> : vector<8x512xf32>
    %145 = tpu.matmul %110, %144, %cst_51 {dimension_numbers = #tpu.dot_dimension_numbers<[1], [0], [0], [1], [0, 0, 1, 1], [], []>} : vector<8x128xf32>, vector<128x512xf32>, vector<8x512xf32> -> vector<8x512xf32>
    %146 = arith.addf %143, %145 : vector<8x512xf32>
    %147 = vector.extract_strided_slice %146 {offsets = [0, 0], sizes = [8, 128], strides = [1, 1]} : vector<8x512xf32> to vector<8x128xf32>
    %148 = arith.negf %147 : vector<8x128xf32>
    %149 = math.exp %148 : vector<8x128xf32>
    %cst_52 = arith.constant 1.000000e+00 : f32
    %150 = vector.broadcast %cst_52 : f32 to vector<8x128xf32>
    %151 = arith.addf %150, %149 : vector<8x128xf32>
    %152 = arith.divf %150, %151 : vector<8x128xf32>
    %153 = vector.extract_strided_slice %146 {offsets = [0, 128], sizes = [8, 128], strides = [1, 1]} : vector<8x512xf32> to vector<8x128xf32>
    %154 = arith.negf %153 : vector<8x128xf32>
    %155 = math.exp %154 : vector<8x128xf32>
    %cst_53 = arith.constant 1.000000e+00 : f32
    %156 = vector.broadcast %cst_53 : f32 to vector<8x128xf32>
    %157 = arith.addf %156, %155 : vector<8x128xf32>
    %158 = arith.divf %156, %157 : vector<8x128xf32>
    %159 = vector.extract_strided_slice %146 {offsets = [0, 256], sizes = [8, 128], strides = [1, 1]} : vector<8x512xf32> to vector<8x128xf32>
    %160 = math.tanh %159 : vector<8x128xf32>
    %161 = vector.extract_strided_slice %146 {offsets = [0, 384], sizes = [8, 128], strides = [1, 1]} : vector<8x512xf32> to vector<8x128xf32>
    %162 = arith.negf %161 : vector<8x128xf32>
    %163 = math.exp %162 : vector<8x128xf32>
    %cst_54 = arith.constant 1.000000e+00 : f32
    %164 = vector.broadcast %cst_54 : f32 to vector<8x128xf32>
    %165 = arith.addf %164, %163 : vector<8x128xf32>
    %166 = arith.divf %164, %165 : vector<8x128xf32>
    %167 = arith.mulf %158, %108 : vector<8x128xf32>
    %168 = arith.mulf %152, %160 : vector<8x128xf32>
    %169 = arith.addf %167, %168 : vector<8x128xf32>
    %170 = math.tanh %169 : vector<8x128xf32>
    %171 = arith.mulf %166, %170 : vector<8x128xf32>
    %172 = tpu.concatenate %171, %139 in 1 : vector<8x128xf32>, vector<8x128xf32> -> vector<8x256xf32>
    %c0_55 = arith.constant 0 : index
    %c0_56 = arith.constant 0 : index
    %173 = vector.load %arg6[%c0_55, %c0_56] : memref<256x512xf32, #tpu.memory_space<vmem>>, vector<256x512xf32>
    %cst_57 = arith.constant dense<0.000000e+00> : vector<8x512xf32>
    %174 = tpu.matmul %172, %173, %cst_57 {dimension_numbers = #tpu.dot_dimension_numbers<[1], [0], [0], [1], [0, 0, 1, 1], [], []>} : vector<8x256xf32>, vector<256x512xf32>, vector<8x512xf32> -> vector<8x512xf32>
    %175 = arith.addf %174, %9 : vector<8x512xf32>
    %176 = vector.extract_strided_slice %175 {offsets = [0, 0], sizes = [8, 128], strides = [1, 1]} : vector<8x512xf32> to vector<8x128xf32>
    %177 = arith.negf %176 : vector<8x128xf32>
    %178 = math.exp %177 : vector<8x128xf32>
    %cst_58 = arith.constant 1.000000e+00 : f32
    %179 = vector.broadcast %cst_58 : f32 to vector<8x128xf32>
    %180 = arith.addf %179, %178 : vector<8x128xf32>
    %181 = arith.divf %179, %180 : vector<8x128xf32>
    %182 = vector.extract_strided_slice %175 {offsets = [0, 128], sizes = [8, 128], strides = [1, 1]} : vector<8x512xf32> to vector<8x128xf32>
    %183 = arith.negf %182 : vector<8x128xf32>
    %184 = math.exp %183 : vector<8x128xf32>
    %cst_59 = arith.constant 1.000000e+00 : f32
    %185 = vector.broadcast %cst_59 : f32 to vector<8x128xf32>
    %186 = arith.addf %185, %184 : vector<8x128xf32>
    %187 = arith.divf %185, %186 : vector<8x128xf32>
    %188 = vector.extract_strided_slice %175 {offsets = [0, 256], sizes = [8, 128], strides = [1, 1]} : vector<8x512xf32> to vector<8x128xf32>
    %189 = math.tanh %188 : vector<8x128xf32>
    %190 = vector.extract_strided_slice %175 {offsets = [0, 384], sizes = [8, 128], strides = [1, 1]} : vector<8x512xf32> to vector<8x128xf32>
    %191 = arith.negf %190 : vector<8x128xf32>
    %192 = math.exp %191 : vector<8x128xf32>
    %cst_60 = arith.constant 1.000000e+00 : f32
    %193 = vector.broadcast %cst_60 : f32 to vector<8x128xf32>
    %194 = arith.addf %193, %192 : vector<8x128xf32>
    %195 = arith.divf %193, %194 : vector<8x128xf32>
    %196 = arith.mulf %187, %137 : vector<8x128xf32>
    %197 = arith.mulf %181, %189 : vector<8x128xf32>
    %198 = arith.addf %196, %197 : vector<8x128xf32>
    %199 = math.tanh %198 : vector<8x128xf32>
    %200 = arith.mulf %195, %199 : vector<8x128xf32>
    %c3_i32 = arith.constant 3 : i32
    %c8_i32_61 = arith.constant 8 : i32
    %201 = arith.muli %c3_i32, %c8_i32_61 : i32
    %202 = tpu.assume_multiple %201, 8 : i32
    %203 = arith.index_cast %202 : i32 to index
    %c0_62 = arith.constant 0 : index
    %204 = vector.load %arg13[%203, %c0_62] : memref<128x512xf32, #tpu.memory_space<vmem>>, vector<8x512xf32>
    %c0_63 = arith.constant 0 : index
    %c0_64 = arith.constant 0 : index
    %205 = vector.load %arg4[%c0_63, %c0_64] : memref<128x512xf32, #tpu.memory_space<vmem>>, vector<128x512xf32>
    %cst_65 = arith.constant dense<0.000000e+00> : vector<8x512xf32>
    %206 = tpu.matmul %171, %205, %cst_65 {dimension_numbers = #tpu.dot_dimension_numbers<[1], [0], [0], [1], [0, 0, 1, 1], [], []>} : vector<8x128xf32>, vector<128x512xf32>, vector<8x512xf32> -> vector<8x512xf32>
    %207 = arith.addf %204, %206 : vector<8x512xf32>
    %208 = vector.extract_strided_slice %207 {offsets = [0, 0], sizes = [8, 128], strides = [1, 1]} : vector<8x512xf32> to vector<8x128xf32>
    %209 = arith.negf %208 : vector<8x128xf32>
    %210 = math.exp %209 : vector<8x128xf32>
    %cst_66 = arith.constant 1.000000e+00 : f32
    %211 = vector.broadcast %cst_66 : f32 to vector<8x128xf32>
    %212 = arith.addf %211, %210 : vector<8x128xf32>
    %213 = arith.divf %211, %212 : vector<8x128xf32>
    %214 = vector.extract_strided_slice %207 {offsets = [0, 128], sizes = [8, 128], strides = [1, 1]} : vector<8x512xf32> to vector<8x128xf32>
    %215 = arith.negf %214 : vector<8x128xf32>
    %216 = math.exp %215 : vector<8x128xf32>
    %cst_67 = arith.constant 1.000000e+00 : f32
    %217 = vector.broadcast %cst_67 : f32 to vector<8x128xf32>
    %218 = arith.addf %217, %216 : vector<8x128xf32>
    %219 = arith.divf %217, %218 : vector<8x128xf32>
    %220 = vector.extract_strided_slice %207 {offsets = [0, 256], sizes = [8, 128], strides = [1, 1]} : vector<8x512xf32> to vector<8x128xf32>
    %221 = math.tanh %220 : vector<8x128xf32>
    %222 = vector.extract_strided_slice %207 {offsets = [0, 384], sizes = [8, 128], strides = [1, 1]} : vector<8x512xf32> to vector<8x128xf32>
    %223 = arith.negf %222 : vector<8x128xf32>
    %224 = math.exp %223 : vector<8x128xf32>
    %cst_68 = arith.constant 1.000000e+00 : f32
    %225 = vector.broadcast %cst_68 : f32 to vector<8x128xf32>
    %226 = arith.addf %225, %224 : vector<8x128xf32>
    %227 = arith.divf %225, %226 : vector<8x128xf32>
    %228 = arith.mulf %219, %169 : vector<8x128xf32>
    %229 = arith.mulf %213, %221 : vector<8x128xf32>
    %230 = arith.addf %228, %229 : vector<8x128xf32>
    %231 = math.tanh %230 : vector<8x128xf32>
    %232 = arith.mulf %227, %231 : vector<8x128xf32>
    %233 = tpu.concatenate %232, %200 in 1 : vector<8x128xf32>, vector<8x128xf32> -> vector<8x256xf32>
    %c0_69 = arith.constant 0 : index
    %c0_70 = arith.constant 0 : index
    %234 = vector.load %arg6[%c0_69, %c0_70] : memref<256x512xf32, #tpu.memory_space<vmem>>, vector<256x512xf32>
    %cst_71 = arith.constant dense<0.000000e+00> : vector<8x512xf32>
    %235 = tpu.matmul %233, %234, %cst_71 {dimension_numbers = #tpu.dot_dimension_numbers<[1], [0], [0], [1], [0, 0, 1, 1], [], []>} : vector<8x256xf32>, vector<256x512xf32>, vector<8x512xf32> -> vector<8x512xf32>
    %236 = arith.addf %235, %9 : vector<8x512xf32>
    %237 = vector.extract_strided_slice %236 {offsets = [0, 0], sizes = [8, 128], strides = [1, 1]} : vector<8x512xf32> to vector<8x128xf32>
    %238 = arith.negf %237 : vector<8x128xf32>
    %239 = math.exp %238 : vector<8x128xf32>
    %cst_72 = arith.constant 1.000000e+00 : f32
    %240 = vector.broadcast %cst_72 : f32 to vector<8x128xf32>
    %241 = arith.addf %240, %239 : vector<8x128xf32>
    %242 = arith.divf %240, %241 : vector<8x128xf32>
    %243 = vector.extract_strided_slice %236 {offsets = [0, 128], sizes = [8, 128], strides = [1, 1]} : vector<8x512xf32> to vector<8x128xf32>
    %244 = arith.negf %243 : vector<8x128xf32>
    %245 = math.exp %244 : vector<8x128xf32>
    %cst_73 = arith.constant 1.000000e+00 : f32
    %246 = vector.broadcast %cst_73 : f32 to vector<8x128xf32>
    %247 = arith.addf %246, %245 : vector<8x128xf32>
    %248 = arith.divf %246, %247 : vector<8x128xf32>
    %249 = vector.extract_strided_slice %236 {offsets = [0, 256], sizes = [8, 128], strides = [1, 1]} : vector<8x512xf32> to vector<8x128xf32>
    %250 = math.tanh %249 : vector<8x128xf32>
    %251 = vector.extract_strided_slice %236 {offsets = [0, 384], sizes = [8, 128], strides = [1, 1]} : vector<8x512xf32> to vector<8x128xf32>
    %252 = arith.negf %251 : vector<8x128xf32>
    %253 = math.exp %252 : vector<8x128xf32>
    %cst_74 = arith.constant 1.000000e+00 : f32
    %254 = vector.broadcast %cst_74 : f32 to vector<8x128xf32>
    %255 = arith.addf %254, %253 : vector<8x128xf32>
    %256 = arith.divf %254, %255 : vector<8x128xf32>
    %257 = arith.mulf %248, %198 : vector<8x128xf32>
    %258 = arith.mulf %242, %250 : vector<8x128xf32>
    %259 = arith.addf %257, %258 : vector<8x128xf32>
    %260 = math.tanh %259 : vector<8x128xf32>
    %261 = arith.mulf %256, %260 : vector<8x128xf32>
    %c4_i32 = arith.constant 4 : i32
    %c8_i32_75 = arith.constant 8 : i32
    %262 = arith.muli %c4_i32, %c8_i32_75 : i32
    %263 = tpu.assume_multiple %262, 8 : i32
    %264 = arith.index_cast %263 : i32 to index
    %c0_76 = arith.constant 0 : index
    %265 = vector.load %arg13[%264, %c0_76] : memref<128x512xf32, #tpu.memory_space<vmem>>, vector<8x512xf32>
    %c0_77 = arith.constant 0 : index
    %c0_78 = arith.constant 0 : index
    %266 = vector.load %arg4[%c0_77, %c0_78] : memref<128x512xf32, #tpu.memory_space<vmem>>, vector<128x512xf32>
    %cst_79 = arith.constant dense<0.000000e+00> : vector<8x512xf32>
    %267 = tpu.matmul %232, %266, %cst_79 {dimension_numbers = #tpu.dot_dimension_numbers<[1], [0], [0], [1], [0, 0, 1, 1], [], []>} : vector<8x128xf32>, vector<128x512xf32>, vector<8x512xf32> -> vector<8x512xf32>
    %268 = arith.addf %265, %267 : vector<8x512xf32>
    %269 = vector.extract_strided_slice %268 {offsets = [0, 0], sizes = [8, 128], strides = [1, 1]} : vector<8x512xf32> to vector<8x128xf32>
    %270 = arith.negf %269 : vector<8x128xf32>
    %271 = math.exp %270 : vector<8x128xf32>
    %cst_80 = arith.constant 1.000000e+00 : f32
    %272 = vector.broadcast %cst_80 : f32 to vector<8x128xf32>
    %273 = arith.addf %272, %271 : vector<8x128xf32>
    %274 = arith.divf %272, %273 : vector<8x128xf32>
    %275 = vector.extract_strided_slice %268 {offsets = [0, 128], sizes = [8, 128], strides = [1, 1]} : vector<8x512xf32> to vector<8x128xf32>
    %276 = arith.negf %275 : vector<8x128xf32>
    %277 = math.exp %276 : vector<8x128xf32>
    %cst_81 = arith.constant 1.000000e+00 : f32
    %278 = vector.broadcast %cst_81 : f32 to vector<8x128xf32>
    %279 = arith.addf %278, %277 : vector<8x128xf32>
    %280 = arith.divf %278, %279 : vector<8x128xf32>
    %281 = vector.extract_strided_slice %268 {offsets = [0, 256], sizes = [8, 128], strides = [1, 1]} : vector<8x512xf32> to vector<8x128xf32>
    %282 = math.tanh %281 : vector<8x128xf32>
    %283 = vector.extract_strided_slice %268 {offsets = [0, 384], sizes = [8, 128], strides = [1, 1]} : vector<8x512xf32> to vector<8x128xf32>
    %284 = arith.negf %283 : vector<8x128xf32>
    %285 = math.exp %284 : vector<8x128xf32>
    %cst_82 = arith.constant 1.000000e+00 : f32
    %286 = vector.broadcast %cst_82 : f32 to vector<8x128xf32>
    %287 = arith.addf %286, %285 : vector<8x128xf32>
    %288 = arith.divf %286, %287 : vector<8x128xf32>
    %289 = arith.mulf %280, %230 : vector<8x128xf32>
    %290 = arith.mulf %274, %282 : vector<8x128xf32>
    %291 = arith.addf %289, %290 : vector<8x128xf32>
    %292 = math.tanh %291 : vector<8x128xf32>
    %293 = arith.mulf %288, %292 : vector<8x128xf32>
    %294 = tpu.concatenate %293, %261 in 1 : vector<8x128xf32>, vector<8x128xf32> -> vector<8x256xf32>
    %c0_83 = arith.constant 0 : index
    %c0_84 = arith.constant 0 : index
    %295 = vector.load %arg6[%c0_83, %c0_84] : memref<256x512xf32, #tpu.memory_space<vmem>>, vector<256x512xf32>
    %cst_85 = arith.constant dense<0.000000e+00> : vector<8x512xf32>
    %296 = tpu.matmul %294, %295, %cst_85 {dimension_numbers = #tpu.dot_dimension_numbers<[1], [0], [0], [1], [0, 0, 1, 1], [], []>} : vector<8x256xf32>, vector<256x512xf32>, vector<8x512xf32> -> vector<8x512xf32>
    %297 = arith.addf %296, %9 : vector<8x512xf32>
    %298 = vector.extract_strided_slice %297 {offsets = [0, 0], sizes = [8, 128], strides = [1, 1]} : vector<8x512xf32> to vector<8x128xf32>
    %299 = arith.negf %298 : vector<8x128xf32>
    %300 = math.exp %299 : vector<8x128xf32>
    %cst_86 = arith.constant 1.000000e+00 : f32
    %301 = vector.broadcast %cst_86 : f32 to vector<8x128xf32>
    %302 = arith.addf %301, %300 : vector<8x128xf32>
    %303 = arith.divf %301, %302 : vector<8x128xf32>
    %304 = vector.extract_strided_slice %297 {offsets = [0, 128], sizes = [8, 128], strides = [1, 1]} : vector<8x512xf32> to vector<8x128xf32>
    %305 = arith.negf %304 : vector<8x128xf32>
    %306 = math.exp %305 : vector<8x128xf32>
    %cst_87 = arith.constant 1.000000e+00 : f32
    %307 = vector.broadcast %cst_87 : f32 to vector<8x128xf32>
    %308 = arith.addf %307, %306 : vector<8x128xf32>
    %309 = arith.divf %307, %308 : vector<8x128xf32>
    %310 = vector.extract_strided_slice %297 {offsets = [0, 256], sizes = [8, 128], strides = [1, 1]} : vector<8x512xf32> to vector<8x128xf32>
    %311 = math.tanh %310 : vector<8x128xf32>
    %312 = vector.extract_strided_slice %297 {offsets = [0, 384], sizes = [8, 128], strides = [1, 1]} : vector<8x512xf32> to vector<8x128xf32>
    %313 = arith.negf %312 : vector<8x128xf32>
    %314 = math.exp %313 : vector<8x128xf32>
    %cst_88 = arith.constant 1.000000e+00 : f32
    %315 = vector.broadcast %cst_88 : f32 to vector<8x128xf32>
    %316 = arith.addf %315, %314 : vector<8x128xf32>
    %317 = arith.divf %315, %316 : vector<8x128xf32>
    %318 = arith.mulf %309, %259 : vector<8x128xf32>
    %319 = arith.mulf %303, %311 : vector<8x128xf32>
    %320 = arith.addf %318, %319 : vector<8x128xf32>
    %321 = math.tanh %320 : vector<8x128xf32>
    %322 = arith.mulf %317, %321 : vector<8x128xf32>
    %c5_i32 = arith.constant 5 : i32
    %c8_i32_89 = arith.constant 8 : i32
    %323 = arith.muli %c5_i32, %c8_i32_89 : i32
    %324 = tpu.assume_multiple %323, 8 : i32
    %325 = arith.index_cast %324 : i32 to index
    %c0_90 = arith.constant 0 : index
    %326 = vector.load %arg13[%325, %c0_90] : memref<128x512xf32, #tpu.memory_space<vmem>>, vector<8x512xf32>
    %c0_91 = arith.constant 0 : index
    %c0_92 = arith.constant 0 : index
    %327 = vector.load %arg4[%c0_91, %c0_92] : memref<128x512xf32, #tpu.memory_space<vmem>>, vector<128x512xf32>
    %cst_93 = arith.constant dense<0.000000e+00> : vector<8x512xf32>
    %328 = tpu.matmul %293, %327, %cst_93 {dimension_numbers = #tpu.dot_dimension_numbers<[1], [0], [0], [1], [0, 0, 1, 1], [], []>} : vector<8x128xf32>, vector<128x512xf32>, vector<8x512xf32> -> vector<8x512xf32>
    %329 = arith.addf %326, %328 : vector<8x512xf32>
    %330 = vector.extract_strided_slice %329 {offsets = [0, 0], sizes = [8, 128], strides = [1, 1]} : vector<8x512xf32> to vector<8x128xf32>
    %331 = arith.negf %330 : vector<8x128xf32>
    %332 = math.exp %331 : vector<8x128xf32>
    %cst_94 = arith.constant 1.000000e+00 : f32
    %333 = vector.broadcast %cst_94 : f32 to vector<8x128xf32>
    %334 = arith.addf %333, %332 : vector<8x128xf32>
    %335 = arith.divf %333, %334 : vector<8x128xf32>
    %336 = vector.extract_strided_slice %329 {offsets = [0, 128], sizes = [8, 128], strides = [1, 1]} : vector<8x512xf32> to vector<8x128xf32>
    %337 = arith.negf %336 : vector<8x128xf32>
    %338 = math.exp %337 : vector<8x128xf32>
    %cst_95 = arith.constant 1.000000e+00 : f32
    %339 = vector.broadcast %cst_95 : f32 to vector<8x128xf32>
    %340 = arith.addf %339, %338 : vector<8x128xf32>
    %341 = arith.divf %339, %340 : vector<8x128xf32>
    %342 = vector.extract_strided_slice %329 {offsets = [0, 256], sizes = [8, 128], strides = [1, 1]} : vector<8x512xf32> to vector<8x128xf32>
    %343 = math.tanh %342 : vector<8x128xf32>
    %344 = vector.extract_strided_slice %329 {offsets = [0, 384], sizes = [8, 128], strides = [1, 1]} : vector<8x512xf32> to vector<8x128xf32>
    %345 = arith.negf %344 : vector<8x128xf32>
    %346 = math.exp %345 : vector<8x128xf32>
    %cst_96 = arith.constant 1.000000e+00 : f32
    %347 = vector.broadcast %cst_96 : f32 to vector<8x128xf32>
    %348 = arith.addf %347, %346 : vector<8x128xf32>
    %349 = arith.divf %347, %348 : vector<8x128xf32>
    %350 = arith.mulf %341, %291 : vector<8x128xf32>
    %351 = arith.mulf %335, %343 : vector<8x128xf32>
    %352 = arith.addf %350, %351 : vector<8x128xf32>
    %353 = math.tanh %352 : vector<8x128xf32>
    %354 = arith.mulf %349, %353 : vector<8x128xf32>
    %355 = tpu.concatenate %354, %322 in 1 : vector<8x128xf32>, vector<8x128xf32> -> vector<8x256xf32>
    %c0_97 = arith.constant 0 : index
    %c0_98 = arith.constant 0 : index
    %356 = vector.load %arg6[%c0_97, %c0_98] : memref<256x512xf32, #tpu.memory_space<vmem>>, vector<256x512xf32>
    %cst_99 = arith.constant dense<0.000000e+00> : vector<8x512xf32>
    %357 = tpu.matmul %355, %356, %cst_99 {dimension_numbers = #tpu.dot_dimension_numbers<[1], [0], [0], [1], [0, 0, 1, 1], [], []>} : vector<8x256xf32>, vector<256x512xf32>, vector<8x512xf32> -> vector<8x512xf32>
    %358 = arith.addf %357, %9 : vector<8x512xf32>
    %359 = vector.extract_strided_slice %358 {offsets = [0, 0], sizes = [8, 128], strides = [1, 1]} : vector<8x512xf32> to vector<8x128xf32>
    %360 = arith.negf %359 : vector<8x128xf32>
    %361 = math.exp %360 : vector<8x128xf32>
    %cst_100 = arith.constant 1.000000e+00 : f32
    %362 = vector.broadcast %cst_100 : f32 to vector<8x128xf32>
    %363 = arith.addf %362, %361 : vector<8x128xf32>
    %364 = arith.divf %362, %363 : vector<8x128xf32>
    %365 = vector.extract_strided_slice %358 {offsets = [0, 128], sizes = [8, 128], strides = [1, 1]} : vector<8x512xf32> to vector<8x128xf32>
    %366 = arith.negf %365 : vector<8x128xf32>
    %367 = math.exp %366 : vector<8x128xf32>
    %cst_101 = arith.constant 1.000000e+00 : f32
    %368 = vector.broadcast %cst_101 : f32 to vector<8x128xf32>
    %369 = arith.addf %368, %367 : vector<8x128xf32>
    %370 = arith.divf %368, %369 : vector<8x128xf32>
    %371 = vector.extract_strided_slice %358 {offsets = [0, 256], sizes = [8, 128], strides = [1, 1]} : vector<8x512xf32> to vector<8x128xf32>
    %372 = math.tanh %371 : vector<8x128xf32>
    %373 = vector.extract_strided_slice %358 {offsets = [0, 384], sizes = [8, 128], strides = [1, 1]} : vector<8x512xf32> to vector<8x128xf32>
    %374 = arith.negf %373 : vector<8x128xf32>
    %375 = math.exp %374 : vector<8x128xf32>
    %cst_102 = arith.constant 1.000000e+00 : f32
    %376 = vector.broadcast %cst_102 : f32 to vector<8x128xf32>
    %377 = arith.addf %376, %375 : vector<8x128xf32>
    %378 = arith.divf %376, %377 : vector<8x128xf32>
    %379 = arith.mulf %370, %320 : vector<8x128xf32>
    %380 = arith.mulf %364, %372 : vector<8x128xf32>
    %381 = arith.addf %379, %380 : vector<8x128xf32>
    %382 = math.tanh %381 : vector<8x128xf32>
    %383 = arith.mulf %378, %382 : vector<8x128xf32>
    %c6_i32 = arith.constant 6 : i32
    %c8_i32_103 = arith.constant 8 : i32
    %384 = arith.muli %c6_i32, %c8_i32_103 : i32
    %385 = tpu.assume_multiple %384, 8 : i32
    %386 = arith.index_cast %385 : i32 to index
    %c0_104 = arith.constant 0 : index
    %387 = vector.load %arg13[%386, %c0_104] : memref<128x512xf32, #tpu.memory_space<vmem>>, vector<8x512xf32>
    %c0_105 = arith.constant 0 : index
    %c0_106 = arith.constant 0 : index
    %388 = vector.load %arg4[%c0_105, %c0_106] : memref<128x512xf32, #tpu.memory_space<vmem>>, vector<128x512xf32>
    %cst_107 = arith.constant dense<0.000000e+00> : vector<8x512xf32>
    %389 = tpu.matmul %354, %388, %cst_107 {dimension_numbers = #tpu.dot_dimension_numbers<[1], [0], [0], [1], [0, 0, 1, 1], [], []>} : vector<8x128xf32>, vector<128x512xf32>, vector<8x512xf32> -> vector<8x512xf32>
    %390 = arith.addf %387, %389 : vector<8x512xf32>
    %391 = vector.extract_strided_slice %390 {offsets = [0, 0], sizes = [8, 128], strides = [1, 1]} : vector<8x512xf32> to vector<8x128xf32>
    %392 = arith.negf %391 : vector<8x128xf32>
    %393 = math.exp %392 : vector<8x128xf32>
    %cst_108 = arith.constant 1.000000e+00 : f32
    %394 = vector.broadcast %cst_108 : f32 to vector<8x128xf32>
    %395 = arith.addf %394, %393 : vector<8x128xf32>
    %396 = arith.divf %394, %395 : vector<8x128xf32>
    %397 = vector.extract_strided_slice %390 {offsets = [0, 128], sizes = [8, 128], strides = [1, 1]} : vector<8x512xf32> to vector<8x128xf32>
    %398 = arith.negf %397 : vector<8x128xf32>
    %399 = math.exp %398 : vector<8x128xf32>
    %cst_109 = arith.constant 1.000000e+00 : f32
    %400 = vector.broadcast %cst_109 : f32 to vector<8x128xf32>
    %401 = arith.addf %400, %399 : vector<8x128xf32>
    %402 = arith.divf %400, %401 : vector<8x128xf32>
    %403 = vector.extract_strided_slice %390 {offsets = [0, 256], sizes = [8, 128], strides = [1, 1]} : vector<8x512xf32> to vector<8x128xf32>
    %404 = math.tanh %403 : vector<8x128xf32>
    %405 = vector.extract_strided_slice %390 {offsets = [0, 384], sizes = [8, 128], strides = [1, 1]} : vector<8x512xf32> to vector<8x128xf32>
    %406 = arith.negf %405 : vector<8x128xf32>
    %407 = math.exp %406 : vector<8x128xf32>
    %cst_110 = arith.constant 1.000000e+00 : f32
    %408 = vector.broadcast %cst_110 : f32 to vector<8x128xf32>
    %409 = arith.addf %408, %407 : vector<8x128xf32>
    %410 = arith.divf %408, %409 : vector<8x128xf32>
    %411 = arith.mulf %402, %352 : vector<8x128xf32>
    %412 = arith.mulf %396, %404 : vector<8x128xf32>
    %413 = arith.addf %411, %412 : vector<8x128xf32>
    %414 = math.tanh %413 : vector<8x128xf32>
    %415 = arith.mulf %410, %414 : vector<8x128xf32>
    %416 = tpu.concatenate %415, %383 in 1 : vector<8x128xf32>, vector<8x128xf32> -> vector<8x256xf32>
    %c0_111 = arith.constant 0 : index
    %c0_112 = arith.constant 0 : index
    %417 = vector.load %arg6[%c0_111, %c0_112] : memref<256x512xf32, #tpu.memory_space<vmem>>, vector<256x512xf32>
    %cst_113 = arith.constant dense<0.000000e+00> : vector<8x512xf32>
    %418 = tpu.matmul %416, %417, %cst_113 {dimension_numbers = #tpu.dot_dimension_numbers<[1], [0], [0], [1], [0, 0, 1, 1], [], []>} : vector<8x256xf32>, vector<256x512xf32>, vector<8x512xf32> -> vector<8x512xf32>
    %419 = arith.addf %418, %9 : vector<8x512xf32>
    %420 = vector.extract_strided_slice %419 {offsets = [0, 0], sizes = [8, 128], strides = [1, 1]} : vector<8x512xf32> to vector<8x128xf32>
    %421 = arith.negf %420 : vector<8x128xf32>
    %422 = math.exp %421 : vector<8x128xf32>
    %cst_114 = arith.constant 1.000000e+00 : f32
    %423 = vector.broadcast %cst_114 : f32 to vector<8x128xf32>
    %424 = arith.addf %423, %422 : vector<8x128xf32>
    %425 = arith.divf %423, %424 : vector<8x128xf32>
    %426 = vector.extract_strided_slice %419 {offsets = [0, 128], sizes = [8, 128], strides = [1, 1]} : vector<8x512xf32> to vector<8x128xf32>
    %427 = arith.negf %426 : vector<8x128xf32>
    %428 = math.exp %427 : vector<8x128xf32>
    %cst_115 = arith.constant 1.000000e+00 : f32
    %429 = vector.broadcast %cst_115 : f32 to vector<8x128xf32>
    %430 = arith.addf %429, %428 : vector<8x128xf32>
    %431 = arith.divf %429, %430 : vector<8x128xf32>
    %432 = vector.extract_strided_slice %419 {offsets = [0, 256], sizes = [8, 128], strides = [1, 1]} : vector<8x512xf32> to vector<8x128xf32>
    %433 = math.tanh %432 : vector<8x128xf32>
    %434 = vector.extract_strided_slice %419 {offsets = [0, 384], sizes = [8, 128], strides = [1, 1]} : vector<8x512xf32> to vector<8x128xf32>
    %435 = arith.negf %434 : vector<8x128xf32>
    %436 = math.exp %435 : vector<8x128xf32>
    %cst_116 = arith.constant 1.000000e+00 : f32
    %437 = vector.broadcast %cst_116 : f32 to vector<8x128xf32>
    %438 = arith.addf %437, %436 : vector<8x128xf32>
    %439 = arith.divf %437, %438 : vector<8x128xf32>
    %440 = arith.mulf %431, %381 : vector<8x128xf32>
    %441 = arith.mulf %425, %433 : vector<8x128xf32>
    %442 = arith.addf %440, %441 : vector<8x128xf32>
    %443 = math.tanh %442 : vector<8x128xf32>
    %444 = arith.mulf %439, %443 : vector<8x128xf32>
    %c7_i32 = arith.constant 7 : i32
    %c8_i32_117 = arith.constant 8 : i32
    %445 = arith.muli %c7_i32, %c8_i32_117 : i32
    %446 = tpu.assume_multiple %445, 8 : i32
    %447 = arith.index_cast %446 : i32 to index
    %c0_118 = arith.constant 0 : index
    %448 = vector.load %arg13[%447, %c0_118] : memref<128x512xf32, #tpu.memory_space<vmem>>, vector<8x512xf32>
    %c0_119 = arith.constant 0 : index
    %c0_120 = arith.constant 0 : index
    %449 = vector.load %arg4[%c0_119, %c0_120] : memref<128x512xf32, #tpu.memory_space<vmem>>, vector<128x512xf32>
    %cst_121 = arith.constant dense<0.000000e+00> : vector<8x512xf32>
    %450 = tpu.matmul %415, %449, %cst_121 {dimension_numbers = #tpu.dot_dimension_numbers<[1], [0], [0], [1], [0, 0, 1, 1], [], []>} : vector<8x128xf32>, vector<128x512xf32>, vector<8x512xf32> -> vector<8x512xf32>
    %451 = arith.addf %448, %450 : vector<8x512xf32>
    %452 = vector.extract_strided_slice %451 {offsets = [0, 0], sizes = [8, 128], strides = [1, 1]} : vector<8x512xf32> to vector<8x128xf32>
    %453 = arith.negf %452 : vector<8x128xf32>
    %454 = math.exp %453 : vector<8x128xf32>
    %cst_122 = arith.constant 1.000000e+00 : f32
    %455 = vector.broadcast %cst_122 : f32 to vector<8x128xf32>
    %456 = arith.addf %455, %454 : vector<8x128xf32>
    %457 = arith.divf %455, %456 : vector<8x128xf32>
    %458 = vector.extract_strided_slice %451 {offsets = [0, 128], sizes = [8, 128], strides = [1, 1]} : vector<8x512xf32> to vector<8x128xf32>
    %459 = arith.negf %458 : vector<8x128xf32>
    %460 = math.exp %459 : vector<8x128xf32>
    %cst_123 = arith.constant 1.000000e+00 : f32
    %461 = vector.broadcast %cst_123 : f32 to vector<8x128xf32>
    %462 = arith.addf %461, %460 : vector<8x128xf32>
    %463 = arith.divf %461, %462 : vector<8x128xf32>
    %464 = vector.extract_strided_slice %451 {offsets = [0, 256], sizes = [8, 128], strides = [1, 1]} : vector<8x512xf32> to vector<8x128xf32>
    %465 = math.tanh %464 : vector<8x128xf32>
    %466 = vector.extract_strided_slice %451 {offsets = [0, 384], sizes = [8, 128], strides = [1, 1]} : vector<8x512xf32> to vector<8x128xf32>
    %467 = arith.negf %466 : vector<8x128xf32>
    %468 = math.exp %467 : vector<8x128xf32>
    %cst_124 = arith.constant 1.000000e+00 : f32
    %469 = vector.broadcast %cst_124 : f32 to vector<8x128xf32>
    %470 = arith.addf %469, %468 : vector<8x128xf32>
    %471 = arith.divf %469, %470 : vector<8x128xf32>
    %472 = arith.mulf %463, %413 : vector<8x128xf32>
    %473 = arith.mulf %457, %465 : vector<8x128xf32>
    %474 = arith.addf %472, %473 : vector<8x128xf32>
    %475 = math.tanh %474 : vector<8x128xf32>
    %476 = arith.mulf %471, %475 : vector<8x128xf32>
    %477 = tpu.concatenate %476, %444 in 1 : vector<8x128xf32>, vector<8x128xf32> -> vector<8x256xf32>
    %c0_125 = arith.constant 0 : index
    %c0_126 = arith.constant 0 : index
    %478 = vector.load %arg6[%c0_125, %c0_126] : memref<256x512xf32, #tpu.memory_space<vmem>>, vector<256x512xf32>
    %cst_127 = arith.constant dense<0.000000e+00> : vector<8x512xf32>
    %479 = tpu.matmul %477, %478, %cst_127 {dimension_numbers = #tpu.dot_dimension_numbers<[1], [0], [0], [1], [0, 0, 1, 1], [], []>} : vector<8x256xf32>, vector<256x512xf32>, vector<8x512xf32> -> vector<8x512xf32>
    %480 = arith.addf %479, %9 : vector<8x512xf32>
    %481 = vector.extract_strided_slice %480 {offsets = [0, 0], sizes = [8, 128], strides = [1, 1]} : vector<8x512xf32> to vector<8x128xf32>
    %482 = arith.negf %481 : vector<8x128xf32>
    %483 = math.exp %482 : vector<8x128xf32>
    %cst_128 = arith.constant 1.000000e+00 : f32
    %484 = vector.broadcast %cst_128 : f32 to vector<8x128xf32>
    %485 = arith.addf %484, %483 : vector<8x128xf32>
    %486 = arith.divf %484, %485 : vector<8x128xf32>
    %487 = vector.extract_strided_slice %480 {offsets = [0, 128], sizes = [8, 128], strides = [1, 1]} : vector<8x512xf32> to vector<8x128xf32>
    %488 = arith.negf %487 : vector<8x128xf32>
    %489 = math.exp %488 : vector<8x128xf32>
    %cst_129 = arith.constant 1.000000e+00 : f32
    %490 = vector.broadcast %cst_129 : f32 to vector<8x128xf32>
    %491 = arith.addf %490, %489 : vector<8x128xf32>
    %492 = arith.divf %490, %491 : vector<8x128xf32>
    %493 = vector.extract_strided_slice %480 {offsets = [0, 256], sizes = [8, 128], strides = [1, 1]} : vector<8x512xf32> to vector<8x128xf32>
    %494 = math.tanh %493 : vector<8x128xf32>
    %495 = vector.extract_strided_slice %480 {offsets = [0, 384], sizes = [8, 128], strides = [1, 1]} : vector<8x512xf32> to vector<8x128xf32>
    %496 = arith.negf %495 : vector<8x128xf32>
    %497 = math.exp %496 : vector<8x128xf32>
    %cst_130 = arith.constant 1.000000e+00 : f32
    %498 = vector.broadcast %cst_130 : f32 to vector<8x128xf32>
    %499 = arith.addf %498, %497 : vector<8x128xf32>
    %500 = arith.divf %498, %499 : vector<8x128xf32>
    %501 = arith.mulf %492, %442 : vector<8x128xf32>
    %502 = arith.mulf %486, %494 : vector<8x128xf32>
    %503 = arith.addf %501, %502 : vector<8x128xf32>
    %504 = math.tanh %503 : vector<8x128xf32>
    %505 = arith.mulf %500, %504 : vector<8x128xf32>
    %c8_i32_131 = arith.constant 8 : i32
    %c8_i32_132 = arith.constant 8 : i32
    %506 = arith.muli %c8_i32_131, %c8_i32_132 : i32
    %507 = tpu.assume_multiple %506, 8 : i32
    %508 = arith.index_cast %507 : i32 to index
    %c0_133 = arith.constant 0 : index
    %509 = vector.load %arg13[%508, %c0_133] : memref<128x512xf32, #tpu.memory_space<vmem>>, vector<8x512xf32>
    %c0_134 = arith.constant 0 : index
    %c0_135 = arith.constant 0 : index
    %510 = vector.load %arg4[%c0_134, %c0_135] : memref<128x512xf32, #tpu.memory_space<vmem>>, vector<128x512xf32>
    %cst_136 = arith.constant dense<0.000000e+00> : vector<8x512xf32>
    %511 = tpu.matmul %476, %510, %cst_136 {dimension_numbers = #tpu.dot_dimension_numbers<[1], [0], [0], [1], [0, 0, 1, 1], [], []>} : vector<8x128xf32>, vector<128x512xf32>, vector<8x512xf32> -> vector<8x512xf32>
    %512 = arith.addf %509, %511 : vector<8x512xf32>
    %513 = vector.extract_strided_slice %512 {offsets = [0, 0], sizes = [8, 128], strides = [1, 1]} : vector<8x512xf32> to vector<8x128xf32>
    %514 = arith.negf %513 : vector<8x128xf32>
    %515 = math.exp %514 : vector<8x128xf32>
    %cst_137 = arith.constant 1.000000e+00 : f32
    %516 = vector.broadcast %cst_137 : f32 to vector<8x128xf32>
    %517 = arith.addf %516, %515 : vector<8x128xf32>
    %518 = arith.divf %516, %517 : vector<8x128xf32>
    %519 = vector.extract_strided_slice %512 {offsets = [0, 128], sizes = [8, 128], strides = [1, 1]} : vector<8x512xf32> to vector<8x128xf32>
    %520 = arith.negf %519 : vector<8x128xf32>
    %521 = math.exp %520 : vector<8x128xf32>
    %cst_138 = arith.constant 1.000000e+00 : f32
    %522 = vector.broadcast %cst_138 : f32 to vector<8x128xf32>
    %523 = arith.addf %522, %521 : vector<8x128xf32>
    %524 = arith.divf %522, %523 : vector<8x128xf32>
    %525 = vector.extract_strided_slice %512 {offsets = [0, 256], sizes = [8, 128], strides = [1, 1]} : vector<8x512xf32> to vector<8x128xf32>
    %526 = math.tanh %525 : vector<8x128xf32>
    %527 = vector.extract_strided_slice %512 {offsets = [0, 384], sizes = [8, 128], strides = [1, 1]} : vector<8x512xf32> to vector<8x128xf32>
    %528 = arith.negf %527 : vector<8x128xf32>
    %529 = math.exp %528 : vector<8x128xf32>
    %cst_139 = arith.constant 1.000000e+00 : f32
    %530 = vector.broadcast %cst_139 : f32 to vector<8x128xf32>
    %531 = arith.addf %530, %529 : vector<8x128xf32>
    %532 = arith.divf %530, %531 : vector<8x128xf32>
    %533 = arith.mulf %524, %474 : vector<8x128xf32>
    %534 = arith.mulf %518, %526 : vector<8x128xf32>
    %535 = arith.addf %533, %534 : vector<8x128xf32>
    %536 = math.tanh %535 : vector<8x128xf32>
    %537 = arith.mulf %532, %536 : vector<8x128xf32>
    %538 = tpu.concatenate %537, %505 in 1 : vector<8x128xf32>, vector<8x128xf32> -> vector<8x256xf32>
    %c0_140 = arith.constant 0 : index
    %c0_141 = arith.constant 0 : index
    %539 = vector.load %arg6[%c0_140, %c0_141] : memref<256x512xf32, #tpu.memory_space<vmem>>, vector<256x512xf32>
    %cst_142 = arith.constant dense<0.000000e+00> : vector<8x512xf32>
    %540 = tpu.matmul %538, %539, %cst_142 {dimension_numbers = #tpu.dot_dimension_numbers<[1], [0], [0], [1], [0, 0, 1, 1], [], []>} : vector<8x256xf32>, vector<256x512xf32>, vector<8x512xf32> -> vector<8x512xf32>
    %541 = arith.addf %540, %9 : vector<8x512xf32>
    %542 = vector.extract_strided_slice %541 {offsets = [0, 0], sizes = [8, 128], strides = [1, 1]} : vector<8x512xf32> to vector<8x128xf32>
    %543 = arith.negf %542 : vector<8x128xf32>
    %544 = math.exp %543 : vector<8x128xf32>
    %cst_143 = arith.constant 1.000000e+00 : f32
    %545 = vector.broadcast %cst_143 : f32 to vector<8x128xf32>
    %546 = arith.addf %545, %544 : vector<8x128xf32>
    %547 = arith.divf %545, %546 : vector<8x128xf32>
    %548 = vector.extract_strided_slice %541 {offsets = [0, 128], sizes = [8, 128], strides = [1, 1]} : vector<8x512xf32> to vector<8x128xf32>
    %549 = arith.negf %548 : vector<8x128xf32>
    %550 = math.exp %549 : vector<8x128xf32>
    %cst_144 = arith.constant 1.000000e+00 : f32
    %551 = vector.broadcast %cst_144 : f32 to vector<8x128xf32>
    %552 = arith.addf %551, %550 : vector<8x128xf32>
    %553 = arith.divf %551, %552 : vector<8x128xf32>
    %554 = vector.extract_strided_slice %541 {offsets = [0, 256], sizes = [8, 128], strides = [1, 1]} : vector<8x512xf32> to vector<8x128xf32>
    %555 = math.tanh %554 : vector<8x128xf32>
    %556 = vector.extract_strided_slice %541 {offsets = [0, 384], sizes = [8, 128], strides = [1, 1]} : vector<8x512xf32> to vector<8x128xf32>
    %557 = arith.negf %556 : vector<8x128xf32>
    %558 = math.exp %557 : vector<8x128xf32>
    %cst_145 = arith.constant 1.000000e+00 : f32
    %559 = vector.broadcast %cst_145 : f32 to vector<8x128xf32>
    %560 = arith.addf %559, %558 : vector<8x128xf32>
    %561 = arith.divf %559, %560 : vector<8x128xf32>
    %562 = arith.mulf %553, %503 : vector<8x128xf32>
    %563 = arith.mulf %547, %555 : vector<8x128xf32>
    %564 = arith.addf %562, %563 : vector<8x128xf32>
    %565 = math.tanh %564 : vector<8x128xf32>
    %566 = arith.mulf %561, %565 : vector<8x128xf32>
    %c9_i32 = arith.constant 9 : i32
    %c8_i32_146 = arith.constant 8 : i32
    %567 = arith.muli %c9_i32, %c8_i32_146 : i32
    %568 = tpu.assume_multiple %567, 8 : i32
    %569 = arith.index_cast %568 : i32 to index
    %c0_147 = arith.constant 0 : index
    %570 = vector.load %arg13[%569, %c0_147] : memref<128x512xf32, #tpu.memory_space<vmem>>, vector<8x512xf32>
    %c0_148 = arith.constant 0 : index
    %c0_149 = arith.constant 0 : index
    %571 = vector.load %arg4[%c0_148, %c0_149] : memref<128x512xf32, #tpu.memory_space<vmem>>, vector<128x512xf32>
    %cst_150 = arith.constant dense<0.000000e+00> : vector<8x512xf32>
    %572 = tpu.matmul %537, %571, %cst_150 {dimension_numbers = #tpu.dot_dimension_numbers<[1], [0], [0], [1], [0, 0, 1, 1], [], []>} : vector<8x128xf32>, vector<128x512xf32>, vector<8x512xf32> -> vector<8x512xf32>
    %573 = arith.addf %570, %572 : vector<8x512xf32>
    %574 = vector.extract_strided_slice %573 {offsets = [0, 0], sizes = [8, 128], strides = [1, 1]} : vector<8x512xf32> to vector<8x128xf32>
    %575 = arith.negf %574 : vector<8x128xf32>
    %576 = math.exp %575 : vector<8x128xf32>
    %cst_151 = arith.constant 1.000000e+00 : f32
    %577 = vector.broadcast %cst_151 : f32 to vector<8x128xf32>
    %578 = arith.addf %577, %576 : vector<8x128xf32>
    %579 = arith.divf %577, %578 : vector<8x128xf32>
    %580 = vector.extract_strided_slice %573 {offsets = [0, 128], sizes = [8, 128], strides = [1, 1]} : vector<8x512xf32> to vector<8x128xf32>
    %581 = arith.negf %580 : vector<8x128xf32>
    %582 = math.exp %581 : vector<8x128xf32>
    %cst_152 = arith.constant 1.000000e+00 : f32
    %583 = vector.broadcast %cst_152 : f32 to vector<8x128xf32>
    %584 = arith.addf %583, %582 : vector<8x128xf32>
    %585 = arith.divf %583, %584 : vector<8x128xf32>
    %586 = vector.extract_strided_slice %573 {offsets = [0, 256], sizes = [8, 128], strides = [1, 1]} : vector<8x512xf32> to vector<8x128xf32>
    %587 = math.tanh %586 : vector<8x128xf32>
    %588 = vector.extract_strided_slice %573 {offsets = [0, 384], sizes = [8, 128], strides = [1, 1]} : vector<8x512xf32> to vector<8x128xf32>
    %589 = arith.negf %588 : vector<8x128xf32>
    %590 = math.exp %589 : vector<8x128xf32>
    %cst_153 = arith.constant 1.000000e+00 : f32
    %591 = vector.broadcast %cst_153 : f32 to vector<8x128xf32>
    %592 = arith.addf %591, %590 : vector<8x128xf32>
    %593 = arith.divf %591, %592 : vector<8x128xf32>
    %594 = arith.mulf %585, %535 : vector<8x128xf32>
    %595 = arith.mulf %579, %587 : vector<8x128xf32>
    %596 = arith.addf %594, %595 : vector<8x128xf32>
    %597 = math.tanh %596 : vector<8x128xf32>
    %598 = arith.mulf %593, %597 : vector<8x128xf32>
    %599 = tpu.concatenate %598, %566 in 1 : vector<8x128xf32>, vector<8x128xf32> -> vector<8x256xf32>
    %c0_154 = arith.constant 0 : index
    %c0_155 = arith.constant 0 : index
    %600 = vector.load %arg6[%c0_154, %c0_155] : memref<256x512xf32, #tpu.memory_space<vmem>>, vector<256x512xf32>
    %cst_156 = arith.constant dense<0.000000e+00> : vector<8x512xf32>
    %601 = tpu.matmul %599, %600, %cst_156 {dimension_numbers = #tpu.dot_dimension_numbers<[1], [0], [0], [1], [0, 0, 1, 1], [], []>} : vector<8x256xf32>, vector<256x512xf32>, vector<8x512xf32> -> vector<8x512xf32>
    %602 = arith.addf %601, %9 : vector<8x512xf32>
    %603 = vector.extract_strided_slice %602 {offsets = [0, 0], sizes = [8, 128], strides = [1, 1]} : vector<8x512xf32> to vector<8x128xf32>
    %604 = arith.negf %603 : vector<8x128xf32>
    %605 = math.exp %604 : vector<8x128xf32>
    %cst_157 = arith.constant 1.000000e+00 : f32
    %606 = vector.broadcast %cst_157 : f32 to vector<8x128xf32>
    %607 = arith.addf %606, %605 : vector<8x128xf32>
    %608 = arith.divf %606, %607 : vector<8x128xf32>
    %609 = vector.extract_strided_slice %602 {offsets = [0, 128], sizes = [8, 128], strides = [1, 1]} : vector<8x512xf32> to vector<8x128xf32>
    %610 = arith.negf %609 : vector<8x128xf32>
    %611 = math.exp %610 : vector<8x128xf32>
    %cst_158 = arith.constant 1.000000e+00 : f32
    %612 = vector.broadcast %cst_158 : f32 to vector<8x128xf32>
    %613 = arith.addf %612, %611 : vector<8x128xf32>
    %614 = arith.divf %612, %613 : vector<8x128xf32>
    %615 = vector.extract_strided_slice %602 {offsets = [0, 256], sizes = [8, 128], strides = [1, 1]} : vector<8x512xf32> to vector<8x128xf32>
    %616 = math.tanh %615 : vector<8x128xf32>
    %617 = vector.extract_strided_slice %602 {offsets = [0, 384], sizes = [8, 128], strides = [1, 1]} : vector<8x512xf32> to vector<8x128xf32>
    %618 = arith.negf %617 : vector<8x128xf32>
    %619 = math.exp %618 : vector<8x128xf32>
    %cst_159 = arith.constant 1.000000e+00 : f32
    %620 = vector.broadcast %cst_159 : f32 to vector<8x128xf32>
    %621 = arith.addf %620, %619 : vector<8x128xf32>
    %622 = arith.divf %620, %621 : vector<8x128xf32>
    %623 = arith.mulf %614, %564 : vector<8x128xf32>
    %624 = arith.mulf %608, %616 : vector<8x128xf32>
    %625 = arith.addf %623, %624 : vector<8x128xf32>
    %626 = math.tanh %625 : vector<8x128xf32>
    %627 = arith.mulf %622, %626 : vector<8x128xf32>
    %c10_i32 = arith.constant 10 : i32
    %c8_i32_160 = arith.constant 8 : i32
    %628 = arith.muli %c10_i32, %c8_i32_160 : i32
    %629 = tpu.assume_multiple %628, 8 : i32
    %630 = arith.index_cast %629 : i32 to index
    %c0_161 = arith.constant 0 : index
    %631 = vector.load %arg13[%630, %c0_161] : memref<128x512xf32, #tpu.memory_space<vmem>>, vector<8x512xf32>
    %c0_162 = arith.constant 0 : index
    %c0_163 = arith.constant 0 : index
    %632 = vector.load %arg4[%c0_162, %c0_163] : memref<128x512xf32, #tpu.memory_space<vmem>>, vector<128x512xf32>
    %cst_164 = arith.constant dense<0.000000e+00> : vector<8x512xf32>
    %633 = tpu.matmul %598, %632, %cst_164 {dimension_numbers = #tpu.dot_dimension_numbers<[1], [0], [0], [1], [0, 0, 1, 1], [], []>} : vector<8x128xf32>, vector<128x512xf32>, vector<8x512xf32> -> vector<8x512xf32>
    %634 = arith.addf %631, %633 : vector<8x512xf32>
    %635 = vector.extract_strided_slice %634 {offsets = [0, 0], sizes = [8, 128], strides = [1, 1]} : vector<8x512xf32> to vector<8x128xf32>
    %636 = arith.negf %635 : vector<8x128xf32>
    %637 = math.exp %636 : vector<8x128xf32>
    %cst_165 = arith.constant 1.000000e+00 : f32
    %638 = vector.broadcast %cst_165 : f32 to vector<8x128xf32>
    %639 = arith.addf %638, %637 : vector<8x128xf32>
    %640 = arith.divf %638, %639 : vector<8x128xf32>
    %641 = vector.extract_strided_slice %634 {offsets = [0, 128], sizes = [8, 128], strides = [1, 1]} : vector<8x512xf32> to vector<8x128xf32>
    %642 = arith.negf %641 : vector<8x128xf32>
    %643 = math.exp %642 : vector<8x128xf32>
    %cst_166 = arith.constant 1.000000e+00 : f32
    %644 = vector.broadcast %cst_166 : f32 to vector<8x128xf32>
    %645 = arith.addf %644, %643 : vector<8x128xf32>
    %646 = arith.divf %644, %645 : vector<8x128xf32>
    %647 = vector.extract_strided_slice %634 {offsets = [0, 256], sizes = [8, 128], strides = [1, 1]} : vector<8x512xf32> to vector<8x128xf32>
    %648 = math.tanh %647 : vector<8x128xf32>
    %649 = vector.extract_strided_slice %634 {offsets = [0, 384], sizes = [8, 128], strides = [1, 1]} : vector<8x512xf32> to vector<8x128xf32>
    %650 = arith.negf %649 : vector<8x128xf32>
    %651 = math.exp %650 : vector<8x128xf32>
    %cst_167 = arith.constant 1.000000e+00 : f32
    %652 = vector.broadcast %cst_167 : f32 to vector<8x128xf32>
    %653 = arith.addf %652, %651 : vector<8x128xf32>
    %654 = arith.divf %652, %653 : vector<8x128xf32>
    %655 = arith.mulf %646, %596 : vector<8x128xf32>
    %656 = arith.mulf %640, %648 : vector<8x128xf32>
    %657 = arith.addf %655, %656 : vector<8x128xf32>
    %658 = math.tanh %657 : vector<8x128xf32>
    %659 = arith.mulf %654, %658 : vector<8x128xf32>
    %660 = tpu.concatenate %659, %627 in 1 : vector<8x128xf32>, vector<8x128xf32> -> vector<8x256xf32>
    %c0_168 = arith.constant 0 : index
    %c0_169 = arith.constant 0 : index
    %661 = vector.load %arg6[%c0_168, %c0_169] : memref<256x512xf32, #tpu.memory_space<vmem>>, vector<256x512xf32>
    %cst_170 = arith.constant dense<0.000000e+00> : vector<8x512xf32>
    %662 = tpu.matmul %660, %661, %cst_170 {dimension_numbers = #tpu.dot_dimension_numbers<[1], [0], [0], [1], [0, 0, 1, 1], [], []>} : vector<8x256xf32>, vector<256x512xf32>, vector<8x512xf32> -> vector<8x512xf32>
    %663 = arith.addf %662, %9 : vector<8x512xf32>
    %664 = vector.extract_strided_slice %663 {offsets = [0, 0], sizes = [8, 128], strides = [1, 1]} : vector<8x512xf32> to vector<8x128xf32>
    %665 = arith.negf %664 : vector<8x128xf32>
    %666 = math.exp %665 : vector<8x128xf32>
    %cst_171 = arith.constant 1.000000e+00 : f32
    %667 = vector.broadcast %cst_171 : f32 to vector<8x128xf32>
    %668 = arith.addf %667, %666 : vector<8x128xf32>
    %669 = arith.divf %667, %668 : vector<8x128xf32>
    %670 = vector.extract_strided_slice %663 {offsets = [0, 128], sizes = [8, 128], strides = [1, 1]} : vector<8x512xf32> to vector<8x128xf32>
    %671 = arith.negf %670 : vector<8x128xf32>
    %672 = math.exp %671 : vector<8x128xf32>
    %cst_172 = arith.constant 1.000000e+00 : f32
    %673 = vector.broadcast %cst_172 : f32 to vector<8x128xf32>
    %674 = arith.addf %673, %672 : vector<8x128xf32>
    %675 = arith.divf %673, %674 : vector<8x128xf32>
    %676 = vector.extract_strided_slice %663 {offsets = [0, 256], sizes = [8, 128], strides = [1, 1]} : vector<8x512xf32> to vector<8x128xf32>
    %677 = math.tanh %676 : vector<8x128xf32>
    %678 = vector.extract_strided_slice %663 {offsets = [0, 384], sizes = [8, 128], strides = [1, 1]} : vector<8x512xf32> to vector<8x128xf32>
    %679 = arith.negf %678 : vector<8x128xf32>
    %680 = math.exp %679 : vector<8x128xf32>
    %cst_173 = arith.constant 1.000000e+00 : f32
    %681 = vector.broadcast %cst_173 : f32 to vector<8x128xf32>
    %682 = arith.addf %681, %680 : vector<8x128xf32>
    %683 = arith.divf %681, %682 : vector<8x128xf32>
    %684 = arith.mulf %675, %625 : vector<8x128xf32>
    %685 = arith.mulf %669, %677 : vector<8x128xf32>
    %686 = arith.addf %684, %685 : vector<8x128xf32>
    %687 = math.tanh %686 : vector<8x128xf32>
    %688 = arith.mulf %683, %687 : vector<8x128xf32>
    %c11_i32 = arith.constant 11 : i32
    %c8_i32_174 = arith.constant 8 : i32
    %689 = arith.muli %c11_i32, %c8_i32_174 : i32
    %690 = tpu.assume_multiple %689, 8 : i32
    %691 = arith.index_cast %690 : i32 to index
    %c0_175 = arith.constant 0 : index
    %692 = vector.load %arg13[%691, %c0_175] : memref<128x512xf32, #tpu.memory_space<vmem>>, vector<8x512xf32>
    %c0_176 = arith.constant 0 : index
    %c0_177 = arith.constant 0 : index
    %693 = vector.load %arg4[%c0_176, %c0_177] : memref<128x512xf32, #tpu.memory_space<vmem>>, vector<128x512xf32>
    %cst_178 = arith.constant dense<0.000000e+00> : vector<8x512xf32>
    %694 = tpu.matmul %659, %693, %cst_178 {dimension_numbers = #tpu.dot_dimension_numbers<[1], [0], [0], [1], [0, 0, 1, 1], [], []>} : vector<8x128xf32>, vector<128x512xf32>, vector<8x512xf32> -> vector<8x512xf32>
    %695 = arith.addf %692, %694 : vector<8x512xf32>
    %696 = vector.extract_strided_slice %695 {offsets = [0, 0], sizes = [8, 128], strides = [1, 1]} : vector<8x512xf32> to vector<8x128xf32>
    %697 = arith.negf %696 : vector<8x128xf32>
    %698 = math.exp %697 : vector<8x128xf32>
    %cst_179 = arith.constant 1.000000e+00 : f32
    %699 = vector.broadcast %cst_179 : f32 to vector<8x128xf32>
    %700 = arith.addf %699, %698 : vector<8x128xf32>
    %701 = arith.divf %699, %700 : vector<8x128xf32>
    %702 = vector.extract_strided_slice %695 {offsets = [0, 128], sizes = [8, 128], strides = [1, 1]} : vector<8x512xf32> to vector<8x128xf32>
    %703 = arith.negf %702 : vector<8x128xf32>
    %704 = math.exp %703 : vector<8x128xf32>
    %cst_180 = arith.constant 1.000000e+00 : f32
    %705 = vector.broadcast %cst_180 : f32 to vector<8x128xf32>
    %706 = arith.addf %705, %704 : vector<8x128xf32>
    %707 = arith.divf %705, %706 : vector<8x128xf32>
    %708 = vector.extract_strided_slice %695 {offsets = [0, 256], sizes = [8, 128], strides = [1, 1]} : vector<8x512xf32> to vector<8x128xf32>
    %709 = math.tanh %708 : vector<8x128xf32>
    %710 = vector.extract_strided_slice %695 {offsets = [0, 384], sizes = [8, 128], strides = [1, 1]} : vector<8x512xf32> to vector<8x128xf32>
    %711 = arith.negf %710 : vector<8x128xf32>
    %712 = math.exp %711 : vector<8x128xf32>
    %cst_181 = arith.constant 1.000000e+00 : f32
    %713 = vector.broadcast %cst_181 : f32 to vector<8x128xf32>
    %714 = arith.addf %713, %712 : vector<8x128xf32>
    %715 = arith.divf %713, %714 : vector<8x128xf32>
    %716 = arith.mulf %707, %657 : vector<8x128xf32>
    %717 = arith.mulf %701, %709 : vector<8x128xf32>
    %718 = arith.addf %716, %717 : vector<8x128xf32>
    %719 = math.tanh %718 : vector<8x128xf32>
    %720 = arith.mulf %715, %719 : vector<8x128xf32>
    %721 = tpu.concatenate %720, %688 in 1 : vector<8x128xf32>, vector<8x128xf32> -> vector<8x256xf32>
    %c0_182 = arith.constant 0 : index
    %c0_183 = arith.constant 0 : index
    %722 = vector.load %arg6[%c0_182, %c0_183] : memref<256x512xf32, #tpu.memory_space<vmem>>, vector<256x512xf32>
    %cst_184 = arith.constant dense<0.000000e+00> : vector<8x512xf32>
    %723 = tpu.matmul %721, %722, %cst_184 {dimension_numbers = #tpu.dot_dimension_numbers<[1], [0], [0], [1], [0, 0, 1, 1], [], []>} : vector<8x256xf32>, vector<256x512xf32>, vector<8x512xf32> -> vector<8x512xf32>
    %724 = arith.addf %723, %9 : vector<8x512xf32>
    %725 = vector.extract_strided_slice %724 {offsets = [0, 0], sizes = [8, 128], strides = [1, 1]} : vector<8x512xf32> to vector<8x128xf32>
    %726 = arith.negf %725 : vector<8x128xf32>
    %727 = math.exp %726 : vector<8x128xf32>
    %cst_185 = arith.constant 1.000000e+00 : f32
    %728 = vector.broadcast %cst_185 : f32 to vector<8x128xf32>
    %729 = arith.addf %728, %727 : vector<8x128xf32>
    %730 = arith.divf %728, %729 : vector<8x128xf32>
    %731 = vector.extract_strided_slice %724 {offsets = [0, 128], sizes = [8, 128], strides = [1, 1]} : vector<8x512xf32> to vector<8x128xf32>
    %732 = arith.negf %731 : vector<8x128xf32>
    %733 = math.exp %732 : vector<8x128xf32>
    %cst_186 = arith.constant 1.000000e+00 : f32
    %734 = vector.broadcast %cst_186 : f32 to vector<8x128xf32>
    %735 = arith.addf %734, %733 : vector<8x128xf32>
    %736 = arith.divf %734, %735 : vector<8x128xf32>
    %737 = vector.extract_strided_slice %724 {offsets = [0, 256], sizes = [8, 128], strides = [1, 1]} : vector<8x512xf32> to vector<8x128xf32>
    %738 = math.tanh %737 : vector<8x128xf32>
    %739 = vector.extract_strided_slice %724 {offsets = [0, 384], sizes = [8, 128], strides = [1, 1]} : vector<8x512xf32> to vector<8x128xf32>
    %740 = arith.negf %739 : vector<8x128xf32>
    %741 = math.exp %740 : vector<8x128xf32>
    %cst_187 = arith.constant 1.000000e+00 : f32
    %742 = vector.broadcast %cst_187 : f32 to vector<8x128xf32>
    %743 = arith.addf %742, %741 : vector<8x128xf32>
    %744 = arith.divf %742, %743 : vector<8x128xf32>
    %745 = arith.mulf %736, %686 : vector<8x128xf32>
    %746 = arith.mulf %730, %738 : vector<8x128xf32>
    %747 = arith.addf %745, %746 : vector<8x128xf32>
    %748 = math.tanh %747 : vector<8x128xf32>
    %749 = arith.mulf %744, %748 : vector<8x128xf32>
    %c12_i32 = arith.constant 12 : i32
    %c8_i32_188 = arith.constant 8 : i32
    %750 = arith.muli %c12_i32, %c8_i32_188 : i32
    %751 = tpu.assume_multiple %750, 8 : i32
    %752 = arith.index_cast %751 : i32 to index
    %c0_189 = arith.constant 0 : index
    %753 = vector.load %arg13[%752, %c0_189] : memref<128x512xf32, #tpu.memory_space<vmem>>, vector<8x512xf32>
    %c0_190 = arith.constant 0 : index
    %c0_191 = arith.constant 0 : index
    %754 = vector.load %arg4[%c0_190, %c0_191] : memref<128x512xf32, #tpu.memory_space<vmem>>, vector<128x512xf32>
    %cst_192 = arith.constant dense<0.000000e+00> : vector<8x512xf32>
    %755 = tpu.matmul %720, %754, %cst_192 {dimension_numbers = #tpu.dot_dimension_numbers<[1], [0], [0], [1], [0, 0, 1, 1], [], []>} : vector<8x128xf32>, vector<128x512xf32>, vector<8x512xf32> -> vector<8x512xf32>
    %756 = arith.addf %753, %755 : vector<8x512xf32>
    %757 = vector.extract_strided_slice %756 {offsets = [0, 0], sizes = [8, 128], strides = [1, 1]} : vector<8x512xf32> to vector<8x128xf32>
    %758 = arith.negf %757 : vector<8x128xf32>
    %759 = math.exp %758 : vector<8x128xf32>
    %cst_193 = arith.constant 1.000000e+00 : f32
    %760 = vector.broadcast %cst_193 : f32 to vector<8x128xf32>
    %761 = arith.addf %760, %759 : vector<8x128xf32>
    %762 = arith.divf %760, %761 : vector<8x128xf32>
    %763 = vector.extract_strided_slice %756 {offsets = [0, 128], sizes = [8, 128], strides = [1, 1]} : vector<8x512xf32> to vector<8x128xf32>
    %764 = arith.negf %763 : vector<8x128xf32>
    %765 = math.exp %764 : vector<8x128xf32>
    %cst_194 = arith.constant 1.000000e+00 : f32
    %766 = vector.broadcast %cst_194 : f32 to vector<8x128xf32>
    %767 = arith.addf %766, %765 : vector<8x128xf32>
    %768 = arith.divf %766, %767 : vector<8x128xf32>
    %769 = vector.extract_strided_slice %756 {offsets = [0, 256], sizes = [8, 128], strides = [1, 1]} : vector<8x512xf32> to vector<8x128xf32>
    %770 = math.tanh %769 : vector<8x128xf32>
    %771 = vector.extract_strided_slice %756 {offsets = [0, 384], sizes = [8, 128], strides = [1, 1]} : vector<8x512xf32> to vector<8x128xf32>
    %772 = arith.negf %771 : vector<8x128xf32>
    %773 = math.exp %772 : vector<8x128xf32>
    %cst_195 = arith.constant 1.000000e+00 : f32
    %774 = vector.broadcast %cst_195 : f32 to vector<8x128xf32>
    %775 = arith.addf %774, %773 : vector<8x128xf32>
    %776 = arith.divf %774, %775 : vector<8x128xf32>
    %777 = arith.mulf %768, %718 : vector<8x128xf32>
    %778 = arith.mulf %762, %770 : vector<8x128xf32>
    %779 = arith.addf %777, %778 : vector<8x128xf32>
    %780 = math.tanh %779 : vector<8x128xf32>
    %781 = arith.mulf %776, %780 : vector<8x128xf32>
    %782 = tpu.concatenate %781, %749 in 1 : vector<8x128xf32>, vector<8x128xf32> -> vector<8x256xf32>
    %c0_196 = arith.constant 0 : index
    %c0_197 = arith.constant 0 : index
    %783 = vector.load %arg6[%c0_196, %c0_197] : memref<256x512xf32, #tpu.memory_space<vmem>>, vector<256x512xf32>
    %cst_198 = arith.constant dense<0.000000e+00> : vector<8x512xf32>
    %784 = tpu.matmul %782, %783, %cst_198 {dimension_numbers = #tpu.dot_dimension_numbers<[1], [0], [0], [1], [0, 0, 1, 1], [], []>} : vector<8x256xf32>, vector<256x512xf32>, vector<8x512xf32> -> vector<8x512xf32>
    %785 = arith.addf %784, %9 : vector<8x512xf32>
    %786 = vector.extract_strided_slice %785 {offsets = [0, 0], sizes = [8, 128], strides = [1, 1]} : vector<8x512xf32> to vector<8x128xf32>
    %787 = arith.negf %786 : vector<8x128xf32>
    %788 = math.exp %787 : vector<8x128xf32>
    %cst_199 = arith.constant 1.000000e+00 : f32
    %789 = vector.broadcast %cst_199 : f32 to vector<8x128xf32>
    %790 = arith.addf %789, %788 : vector<8x128xf32>
    %791 = arith.divf %789, %790 : vector<8x128xf32>
    %792 = vector.extract_strided_slice %785 {offsets = [0, 128], sizes = [8, 128], strides = [1, 1]} : vector<8x512xf32> to vector<8x128xf32>
    %793 = arith.negf %792 : vector<8x128xf32>
    %794 = math.exp %793 : vector<8x128xf32>
    %cst_200 = arith.constant 1.000000e+00 : f32
    %795 = vector.broadcast %cst_200 : f32 to vector<8x128xf32>
    %796 = arith.addf %795, %794 : vector<8x128xf32>
    %797 = arith.divf %795, %796 : vector<8x128xf32>
    %798 = vector.extract_strided_slice %785 {offsets = [0, 256], sizes = [8, 128], strides = [1, 1]} : vector<8x512xf32> to vector<8x128xf32>
    %799 = math.tanh %798 : vector<8x128xf32>
    %800 = vector.extract_strided_slice %785 {offsets = [0, 384], sizes = [8, 128], strides = [1, 1]} : vector<8x512xf32> to vector<8x128xf32>
    %801 = arith.negf %800 : vector<8x128xf32>
    %802 = math.exp %801 : vector<8x128xf32>
    %cst_201 = arith.constant 1.000000e+00 : f32
    %803 = vector.broadcast %cst_201 : f32 to vector<8x128xf32>
    %804 = arith.addf %803, %802 : vector<8x128xf32>
    %805 = arith.divf %803, %804 : vector<8x128xf32>
    %806 = arith.mulf %797, %747 : vector<8x128xf32>
    %807 = arith.mulf %791, %799 : vector<8x128xf32>
    %808 = arith.addf %806, %807 : vector<8x128xf32>
    %809 = math.tanh %808 : vector<8x128xf32>
    %810 = arith.mulf %805, %809 : vector<8x128xf32>
    %c13_i32 = arith.constant 13 : i32
    %c8_i32_202 = arith.constant 8 : i32
    %811 = arith.muli %c13_i32, %c8_i32_202 : i32
    %812 = tpu.assume_multiple %811, 8 : i32
    %813 = arith.index_cast %812 : i32 to index
    %c0_203 = arith.constant 0 : index
    %814 = vector.load %arg13[%813, %c0_203] : memref<128x512xf32, #tpu.memory_space<vmem>>, vector<8x512xf32>
    %c0_204 = arith.constant 0 : index
    %c0_205 = arith.constant 0 : index
    %815 = vector.load %arg4[%c0_204, %c0_205] : memref<128x512xf32, #tpu.memory_space<vmem>>, vector<128x512xf32>
    %cst_206 = arith.constant dense<0.000000e+00> : vector<8x512xf32>
    %816 = tpu.matmul %781, %815, %cst_206 {dimension_numbers = #tpu.dot_dimension_numbers<[1], [0], [0], [1], [0, 0, 1, 1], [], []>} : vector<8x128xf32>, vector<128x512xf32>, vector<8x512xf32> -> vector<8x512xf32>
    %817 = arith.addf %814, %816 : vector<8x512xf32>
    %818 = vector.extract_strided_slice %817 {offsets = [0, 0], sizes = [8, 128], strides = [1, 1]} : vector<8x512xf32> to vector<8x128xf32>
    %819 = arith.negf %818 : vector<8x128xf32>
    %820 = math.exp %819 : vector<8x128xf32>
    %cst_207 = arith.constant 1.000000e+00 : f32
    %821 = vector.broadcast %cst_207 : f32 to vector<8x128xf32>
    %822 = arith.addf %821, %820 : vector<8x128xf32>
    %823 = arith.divf %821, %822 : vector<8x128xf32>
    %824 = vector.extract_strided_slice %817 {offsets = [0, 128], sizes = [8, 128], strides = [1, 1]} : vector<8x512xf32> to vector<8x128xf32>
    %825 = arith.negf %824 : vector<8x128xf32>
    %826 = math.exp %825 : vector<8x128xf32>
    %cst_208 = arith.constant 1.000000e+00 : f32
    %827 = vector.broadcast %cst_208 : f32 to vector<8x128xf32>
    %828 = arith.addf %827, %826 : vector<8x128xf32>
    %829 = arith.divf %827, %828 : vector<8x128xf32>
    %830 = vector.extract_strided_slice %817 {offsets = [0, 256], sizes = [8, 128], strides = [1, 1]} : vector<8x512xf32> to vector<8x128xf32>
    %831 = math.tanh %830 : vector<8x128xf32>
    %832 = vector.extract_strided_slice %817 {offsets = [0, 384], sizes = [8, 128], strides = [1, 1]} : vector<8x512xf32> to vector<8x128xf32>
    %833 = arith.negf %832 : vector<8x128xf32>
    %834 = math.exp %833 : vector<8x128xf32>
    %cst_209 = arith.constant 1.000000e+00 : f32
    %835 = vector.broadcast %cst_209 : f32 to vector<8x128xf32>
    %836 = arith.addf %835, %834 : vector<8x128xf32>
    %837 = arith.divf %835, %836 : vector<8x128xf32>
    %838 = arith.mulf %829, %779 : vector<8x128xf32>
    %839 = arith.mulf %823, %831 : vector<8x128xf32>
    %840 = arith.addf %838, %839 : vector<8x128xf32>
    %841 = math.tanh %840 : vector<8x128xf32>
    %842 = arith.mulf %837, %841 : vector<8x128xf32>
    %843 = tpu.concatenate %842, %810 in 1 : vector<8x128xf32>, vector<8x128xf32> -> vector<8x256xf32>
    %c0_210 = arith.constant 0 : index
    %c0_211 = arith.constant 0 : index
    %844 = vector.load %arg6[%c0_210, %c0_211] : memref<256x512xf32, #tpu.memory_space<vmem>>, vector<256x512xf32>
    %cst_212 = arith.constant dense<0.000000e+00> : vector<8x512xf32>
    %845 = tpu.matmul %843, %844, %cst_212 {dimension_numbers = #tpu.dot_dimension_numbers<[1], [0], [0], [1], [0, 0, 1, 1], [], []>} : vector<8x256xf32>, vector<256x512xf32>, vector<8x512xf32> -> vector<8x512xf32>
    %846 = arith.addf %845, %9 : vector<8x512xf32>
    %847 = vector.extract_strided_slice %846 {offsets = [0, 0], sizes = [8, 128], strides = [1, 1]} : vector<8x512xf32> to vector<8x128xf32>
    %848 = arith.negf %847 : vector<8x128xf32>
    %849 = math.exp %848 : vector<8x128xf32>
    %cst_213 = arith.constant 1.000000e+00 : f32
    %850 = vector.broadcast %cst_213 : f32 to vector<8x128xf32>
    %851 = arith.addf %850, %849 : vector<8x128xf32>
    %852 = arith.divf %850, %851 : vector<8x128xf32>
    %853 = vector.extract_strided_slice %846 {offsets = [0, 128], sizes = [8, 128], strides = [1, 1]} : vector<8x512xf32> to vector<8x128xf32>
    %854 = arith.negf %853 : vector<8x128xf32>
    %855 = math.exp %854 : vector<8x128xf32>
    %cst_214 = arith.constant 1.000000e+00 : f32
    %856 = vector.broadcast %cst_214 : f32 to vector<8x128xf32>
    %857 = arith.addf %856, %855 : vector<8x128xf32>
    %858 = arith.divf %856, %857 : vector<8x128xf32>
    %859 = vector.extract_strided_slice %846 {offsets = [0, 256], sizes = [8, 128], strides = [1, 1]} : vector<8x512xf32> to vector<8x128xf32>
    %860 = math.tanh %859 : vector<8x128xf32>
    %861 = vector.extract_strided_slice %846 {offsets = [0, 384], sizes = [8, 128], strides = [1, 1]} : vector<8x512xf32> to vector<8x128xf32>
    %862 = arith.negf %861 : vector<8x128xf32>
    %863 = math.exp %862 : vector<8x128xf32>
    %cst_215 = arith.constant 1.000000e+00 : f32
    %864 = vector.broadcast %cst_215 : f32 to vector<8x128xf32>
    %865 = arith.addf %864, %863 : vector<8x128xf32>
    %866 = arith.divf %864, %865 : vector<8x128xf32>
    %867 = arith.mulf %858, %808 : vector<8x128xf32>
    %868 = arith.mulf %852, %860 : vector<8x128xf32>
    %869 = arith.addf %867, %868 : vector<8x128xf32>
    %870 = math.tanh %869 : vector<8x128xf32>
    %871 = arith.mulf %866, %870 : vector<8x128xf32>
    %c14_i32 = arith.constant 14 : i32
    %c8_i32_216 = arith.constant 8 : i32
    %872 = arith.muli %c14_i32, %c8_i32_216 : i32
    %873 = tpu.assume_multiple %872, 8 : i32
    %874 = arith.index_cast %873 : i32 to index
    %c0_217 = arith.constant 0 : index
    %875 = vector.load %arg13[%874, %c0_217] : memref<128x512xf32, #tpu.memory_space<vmem>>, vector<8x512xf32>
    %c0_218 = arith.constant 0 : index
    %c0_219 = arith.constant 0 : index
    %876 = vector.load %arg4[%c0_218, %c0_219] : memref<128x512xf32, #tpu.memory_space<vmem>>, vector<128x512xf32>
    %cst_220 = arith.constant dense<0.000000e+00> : vector<8x512xf32>
    %877 = tpu.matmul %842, %876, %cst_220 {dimension_numbers = #tpu.dot_dimension_numbers<[1], [0], [0], [1], [0, 0, 1, 1], [], []>} : vector<8x128xf32>, vector<128x512xf32>, vector<8x512xf32> -> vector<8x512xf32>
    %878 = arith.addf %875, %877 : vector<8x512xf32>
    %879 = vector.extract_strided_slice %878 {offsets = [0, 0], sizes = [8, 128], strides = [1, 1]} : vector<8x512xf32> to vector<8x128xf32>
    %880 = arith.negf %879 : vector<8x128xf32>
    %881 = math.exp %880 : vector<8x128xf32>
    %cst_221 = arith.constant 1.000000e+00 : f32
    %882 = vector.broadcast %cst_221 : f32 to vector<8x128xf32>
    %883 = arith.addf %882, %881 : vector<8x128xf32>
    %884 = arith.divf %882, %883 : vector<8x128xf32>
    %885 = vector.extract_strided_slice %878 {offsets = [0, 128], sizes = [8, 128], strides = [1, 1]} : vector<8x512xf32> to vector<8x128xf32>
    %886 = arith.negf %885 : vector<8x128xf32>
    %887 = math.exp %886 : vector<8x128xf32>
    %cst_222 = arith.constant 1.000000e+00 : f32
    %888 = vector.broadcast %cst_222 : f32 to vector<8x128xf32>
    %889 = arith.addf %888, %887 : vector<8x128xf32>
    %890 = arith.divf %888, %889 : vector<8x128xf32>
    %891 = vector.extract_strided_slice %878 {offsets = [0, 256], sizes = [8, 128], strides = [1, 1]} : vector<8x512xf32> to vector<8x128xf32>
    %892 = math.tanh %891 : vector<8x128xf32>
    %893 = vector.extract_strided_slice %878 {offsets = [0, 384], sizes = [8, 128], strides = [1, 1]} : vector<8x512xf32> to vector<8x128xf32>
    %894 = arith.negf %893 : vector<8x128xf32>
    %895 = math.exp %894 : vector<8x128xf32>
    %cst_223 = arith.constant 1.000000e+00 : f32
    %896 = vector.broadcast %cst_223 : f32 to vector<8x128xf32>
    %897 = arith.addf %896, %895 : vector<8x128xf32>
    %898 = arith.divf %896, %897 : vector<8x128xf32>
    %899 = arith.mulf %890, %840 : vector<8x128xf32>
    %900 = arith.mulf %884, %892 : vector<8x128xf32>
    %901 = arith.addf %899, %900 : vector<8x128xf32>
    %902 = math.tanh %901 : vector<8x128xf32>
    %903 = arith.mulf %898, %902 : vector<8x128xf32>
    %904 = tpu.concatenate %903, %871 in 1 : vector<8x128xf32>, vector<8x128xf32> -> vector<8x256xf32>
    %c0_224 = arith.constant 0 : index
    %c0_225 = arith.constant 0 : index
    %905 = vector.load %arg6[%c0_224, %c0_225] : memref<256x512xf32, #tpu.memory_space<vmem>>, vector<256x512xf32>
    %cst_226 = arith.constant dense<0.000000e+00> : vector<8x512xf32>
    %906 = tpu.matmul %904, %905, %cst_226 {dimension_numbers = #tpu.dot_dimension_numbers<[1], [0], [0], [1], [0, 0, 1, 1], [], []>} : vector<8x256xf32>, vector<256x512xf32>, vector<8x512xf32> -> vector<8x512xf32>
    %907 = arith.addf %906, %9 : vector<8x512xf32>
    %908 = vector.extract_strided_slice %907 {offsets = [0, 0], sizes = [8, 128], strides = [1, 1]} : vector<8x512xf32> to vector<8x128xf32>
    %909 = arith.negf %908 : vector<8x128xf32>
    %910 = math.exp %909 : vector<8x128xf32>
    %cst_227 = arith.constant 1.000000e+00 : f32
    %911 = vector.broadcast %cst_227 : f32 to vector<8x128xf32>
    %912 = arith.addf %911, %910 : vector<8x128xf32>
    %913 = arith.divf %911, %912 : vector<8x128xf32>
    %914 = vector.extract_strided_slice %907 {offsets = [0, 128], sizes = [8, 128], strides = [1, 1]} : vector<8x512xf32> to vector<8x128xf32>
    %915 = arith.negf %914 : vector<8x128xf32>
    %916 = math.exp %915 : vector<8x128xf32>
    %cst_228 = arith.constant 1.000000e+00 : f32
    %917 = vector.broadcast %cst_228 : f32 to vector<8x128xf32>
    %918 = arith.addf %917, %916 : vector<8x128xf32>
    %919 = arith.divf %917, %918 : vector<8x128xf32>
    %920 = vector.extract_strided_slice %907 {offsets = [0, 256], sizes = [8, 128], strides = [1, 1]} : vector<8x512xf32> to vector<8x128xf32>
    %921 = math.tanh %920 : vector<8x128xf32>
    %922 = vector.extract_strided_slice %907 {offsets = [0, 384], sizes = [8, 128], strides = [1, 1]} : vector<8x512xf32> to vector<8x128xf32>
    %923 = arith.negf %922 : vector<8x128xf32>
    %924 = math.exp %923 : vector<8x128xf32>
    %cst_229 = arith.constant 1.000000e+00 : f32
    %925 = vector.broadcast %cst_229 : f32 to vector<8x128xf32>
    %926 = arith.addf %925, %924 : vector<8x128xf32>
    %927 = arith.divf %925, %926 : vector<8x128xf32>
    %928 = arith.mulf %919, %869 : vector<8x128xf32>
    %929 = arith.mulf %913, %921 : vector<8x128xf32>
    %930 = arith.addf %928, %929 : vector<8x128xf32>
    %931 = math.tanh %930 : vector<8x128xf32>
    %932 = arith.mulf %927, %931 : vector<8x128xf32>
    %c15_i32 = arith.constant 15 : i32
    %c8_i32_230 = arith.constant 8 : i32
    %933 = arith.muli %c15_i32, %c8_i32_230 : i32
    %934 = tpu.assume_multiple %933, 8 : i32
    %935 = arith.index_cast %934 : i32 to index
    %c0_231 = arith.constant 0 : index
    %936 = vector.load %arg13[%935, %c0_231] : memref<128x512xf32, #tpu.memory_space<vmem>>, vector<8x512xf32>
    %c0_232 = arith.constant 0 : index
    %c0_233 = arith.constant 0 : index
    %937 = vector.load %arg4[%c0_232, %c0_233] : memref<128x512xf32, #tpu.memory_space<vmem>>, vector<128x512xf32>
    %cst_234 = arith.constant dense<0.000000e+00> : vector<8x512xf32>
    %938 = tpu.matmul %903, %937, %cst_234 {dimension_numbers = #tpu.dot_dimension_numbers<[1], [0], [0], [1], [0, 0, 1, 1], [], []>} : vector<8x128xf32>, vector<128x512xf32>, vector<8x512xf32> -> vector<8x512xf32>
    %939 = arith.addf %936, %938 : vector<8x512xf32>
    %940 = vector.extract_strided_slice %939 {offsets = [0, 0], sizes = [8, 128], strides = [1, 1]} : vector<8x512xf32> to vector<8x128xf32>
    %941 = arith.negf %940 : vector<8x128xf32>
    %942 = math.exp %941 : vector<8x128xf32>
    %cst_235 = arith.constant 1.000000e+00 : f32
    %943 = vector.broadcast %cst_235 : f32 to vector<8x128xf32>
    %944 = arith.addf %943, %942 : vector<8x128xf32>
    %945 = arith.divf %943, %944 : vector<8x128xf32>
    %946 = vector.extract_strided_slice %939 {offsets = [0, 128], sizes = [8, 128], strides = [1, 1]} : vector<8x512xf32> to vector<8x128xf32>
    %947 = arith.negf %946 : vector<8x128xf32>
    %948 = math.exp %947 : vector<8x128xf32>
    %cst_236 = arith.constant 1.000000e+00 : f32
    %949 = vector.broadcast %cst_236 : f32 to vector<8x128xf32>
    %950 = arith.addf %949, %948 : vector<8x128xf32>
    %951 = arith.divf %949, %950 : vector<8x128xf32>
    %952 = vector.extract_strided_slice %939 {offsets = [0, 256], sizes = [8, 128], strides = [1, 1]} : vector<8x512xf32> to vector<8x128xf32>
    %953 = math.tanh %952 : vector<8x128xf32>
    %954 = vector.extract_strided_slice %939 {offsets = [0, 384], sizes = [8, 128], strides = [1, 1]} : vector<8x512xf32> to vector<8x128xf32>
    %955 = arith.negf %954 : vector<8x128xf32>
    %956 = math.exp %955 : vector<8x128xf32>
    %cst_237 = arith.constant 1.000000e+00 : f32
    %957 = vector.broadcast %cst_237 : f32 to vector<8x128xf32>
    %958 = arith.addf %957, %956 : vector<8x128xf32>
    %959 = arith.divf %957, %958 : vector<8x128xf32>
    %960 = arith.mulf %951, %901 : vector<8x128xf32>
    %961 = arith.mulf %945, %953 : vector<8x128xf32>
    %962 = arith.addf %960, %961 : vector<8x128xf32>
    %963 = math.tanh %962 : vector<8x128xf32>
    %964 = arith.mulf %959, %963 : vector<8x128xf32>
    %965 = tpu.concatenate %964, %932 in 1 : vector<8x128xf32>, vector<8x128xf32> -> vector<8x256xf32>
    %c0_238 = arith.constant 0 : index
    %c0_239 = arith.constant 0 : index
    %966 = vector.load %arg6[%c0_238, %c0_239] : memref<256x512xf32, #tpu.memory_space<vmem>>, vector<256x512xf32>
    %cst_240 = arith.constant dense<0.000000e+00> : vector<8x512xf32>
    %967 = tpu.matmul %965, %966, %cst_240 {dimension_numbers = #tpu.dot_dimension_numbers<[1], [0], [0], [1], [0, 0, 1, 1], [], []>} : vector<8x256xf32>, vector<256x512xf32>, vector<8x512xf32> -> vector<8x512xf32>
    %968 = arith.addf %967, %9 : vector<8x512xf32>
    %969 = vector.extract_strided_slice %968 {offsets = [0, 0], sizes = [8, 128], strides = [1, 1]} : vector<8x512xf32> to vector<8x128xf32>
    %970 = arith.negf %969 : vector<8x128xf32>
    %971 = math.exp %970 : vector<8x128xf32>
    %cst_241 = arith.constant 1.000000e+00 : f32
    %972 = vector.broadcast %cst_241 : f32 to vector<8x128xf32>
    %973 = arith.addf %972, %971 : vector<8x128xf32>
    %974 = arith.divf %972, %973 : vector<8x128xf32>
    %975 = vector.extract_strided_slice %968 {offsets = [0, 128], sizes = [8, 128], strides = [1, 1]} : vector<8x512xf32> to vector<8x128xf32>
    %976 = arith.negf %975 : vector<8x128xf32>
    %977 = math.exp %976 : vector<8x128xf32>
    %cst_242 = arith.constant 1.000000e+00 : f32
    %978 = vector.broadcast %cst_242 : f32 to vector<8x128xf32>
    %979 = arith.addf %978, %977 : vector<8x128xf32>
    %980 = arith.divf %978, %979 : vector<8x128xf32>
    %981 = vector.extract_strided_slice %968 {offsets = [0, 256], sizes = [8, 128], strides = [1, 1]} : vector<8x512xf32> to vector<8x128xf32>
    %982 = math.tanh %981 : vector<8x128xf32>
    %983 = vector.extract_strided_slice %968 {offsets = [0, 384], sizes = [8, 128], strides = [1, 1]} : vector<8x512xf32> to vector<8x128xf32>
    %984 = arith.negf %983 : vector<8x128xf32>
    %985 = math.exp %984 : vector<8x128xf32>
    %cst_243 = arith.constant 1.000000e+00 : f32
    %986 = vector.broadcast %cst_243 : f32 to vector<8x128xf32>
    %987 = arith.addf %986, %985 : vector<8x128xf32>
    %988 = arith.divf %986, %987 : vector<8x128xf32>
    %989 = arith.mulf %980, %930 : vector<8x128xf32>
    %990 = arith.mulf %974, %982 : vector<8x128xf32>
    %991 = arith.addf %989, %990 : vector<8x128xf32>
    %992 = math.tanh %991 : vector<8x128xf32>
    %993 = arith.mulf %988, %992 : vector<8x128xf32>
    %c16_i32 = arith.constant 16 : i32
    %c0_244 = arith.constant 0 : index
    %c0_245 = arith.constant 0 : index
    %c0_246 = arith.constant 0 : index
    %994 = vector.load %arg11[%c0_244, %c0_245, %c0_246] : memref<2x8x128xf32, #tpu.memory_space<vmem>>, vector<1x8x128xf32>
    %995 = vector.shape_cast %994 : vector<1x8x128xf32> to vector<8x128xf32>
    %996 = vector.shape_cast %964 : vector<8x128xf32> to vector<1x8x128xf32>
    tpu.vector_store %arg11[%c0_244, %c0_245, %c0_246], %996 {strides = array<i32>} : memref<2x8x128xf32, #tpu.memory_space<vmem>>, vector<1x8x128xf32>,
    %c1_247 = arith.constant 1 : index
    %c0_248 = arith.constant 0 : index
    %c0_249 = arith.constant 0 : index
    %997 = vector.load %arg11[%c1_247, %c0_248, %c0_249] : memref<2x8x128xf32, #tpu.memory_space<vmem>>, vector<1x8x128xf32>
    %998 = vector.shape_cast %997 : vector<1x8x128xf32> to vector<8x128xf32>
    %999 = vector.shape_cast %993 : vector<8x128xf32> to vector<1x8x128xf32>
    tpu.vector_store %arg11[%c1_247, %c0_248, %c0_249], %999 {strides = array<i32>} : memref<2x8x128xf32, #tpu.memory_space<vmem>>, vector<1x8x128xf32>,
    %c0_250 = arith.constant 0 : index
    %c0_251 = arith.constant 0 : index
    %c0_252 = arith.constant 0 : index
    %1000 = vector.load %arg12[%c0_250, %c0_251, %c0_252] : memref<2x8x128xf32, #tpu.memory_space<vmem>>, vector<1x8x128xf32>
    %1001 = vector.shape_cast %1000 : vector<1x8x128xf32> to vector<8x128xf32>
    %1002 = vector.shape_cast %962 : vector<8x128xf32> to vector<1x8x128xf32>
    tpu.vector_store %arg12[%c0_250, %c0_251, %c0_252], %1002 {strides = array<i32>} : memref<2x8x128xf32, #tpu.memory_space<vmem>>, vector<1x8x128xf32>,
    %c1_253 = arith.constant 1 : index
    %c0_254 = arith.constant 0 : index
    %c0_255 = arith.constant 0 : index
    %1003 = vector.load %arg12[%c1_253, %c0_254, %c0_255] : memref<2x8x128xf32, #tpu.memory_space<vmem>>, vector<1x8x128xf32>
    %1004 = vector.shape_cast %1003 : vector<1x8x128xf32> to vector<8x128xf32>
    %1005 = vector.shape_cast %991 : vector<8x128xf32> to vector<1x8x128xf32>
    tpu.vector_store %arg12[%c1_253, %c0_254, %c0_255], %1005 {strides = array<i32>} : memref<2x8x128xf32, #tpu.memory_space<vmem>>, vector<1x8x128xf32>,
    %c0_256 = arith.constant 0 : index
    %c0_257 = arith.constant 0 : index
    %1006 = vector.load %arg8[%c0_256, %c0_257] : memref<1x128xf32, #tpu.memory_space<vmem>>, vector<1x128xf32>
    %1007 = vector.broadcast %1006 : vector<1x128xf32> to vector<8x128xf32>
    %1008 = arith.mulf %993, %1007 : vector<8x128xf32>
    %cst_258 = arith.constant dense<0.000000e+00> : vector<8xf32>
    %1009 = vector.multi_reduction <add>, %1008, %cst_258 [1] : vector<8x128xf32> to vector<8xf32>
    %1010 = vector.shape_cast %1009 : vector<8xf32> to vector<8x1xf32>
    %c0_259 = arith.constant 0 : index
    %c0_260 = arith.constant 0 : index
    %1011 = vector.load %arg9[%c0_259, %c0_260] : memref<1x1xf32, #tpu.memory_space<vmem>>, vector<1x1xf32>
    %1012 = vector.broadcast %1011 : vector<1x1xf32> to vector<8x1xf32>
    %1013 = arith.addf %1010, %1012 : vector<8x1xf32>
    %1014 = arith.negf %1013 : vector<8x1xf32>
    %1015 = math.exp %1014 : vector<8x1xf32>
    %cst_261 = arith.constant 1.000000e+00 : f32
    %1016 = vector.broadcast %cst_261 : f32 to vector<8x1xf32>
    %1017 = arith.addf %1016, %1015 : vector<8x1xf32>
    %1018 = arith.divf %1016, %1017 : vector<8x1xf32>
    %c0_262 = arith.constant 0 : index
    %c0_263 = arith.constant 0 : index
    %1019 = vector.load %arg10[%c0_262, %c0_263] : memref<8x1xf32, #tpu.memory_space<vmem>>, vector<8x1xf32>
    tpu.vector_store %arg10[%c0_262, %c0_263], %1018 {strides = array<i32>} : memref<8x1xf32, #tpu.memory_space<vmem>>, vector<8x1xf32>,
    return
  }
}

</mosaic_0001>

<llo_original>
// kernel: tpu_custom_call.1
$region0: #{tpu_custom_call.1}
  #allocation0 [shape = 'u32[]', space=smem, size = 0x4, offset = 0x4, fixed_abs, tag = 'smem constant byte address 0x4 - core index']
  #allocation1 [shape = 'u32[144,128]{1,0:T(1,128)}', space=vmem, size = 0x12000, scoped, tag = 'internal scratch']
  #allocation2 [shape = 'f32[128,512]{1,0:T(8,128)}', space=vmem, size = 0x40000, scoped, tag = 'scratch operand']
  #allocation3 [shape = 'f32[1,1]{1,0:T(1,128)S(1)}', space=vmem, size = 0x200, scoped, tag = 'scoped memory for tpu_custom_call.1']
  %s0 = inlined_call_operand.hbm [shape: f32[128,128], index: 0, kind: input, shape index: {}]
  %s1 = inlined_call_operand.hbm [shape: f32[2,8,128], index: 1, kind: input, shape index: {}]
  %s2 = inlined_call_operand.hbm [shape: f32[2,8,128], index: 2, kind: input, shape index: {}]
  %s3 = inlined_call_operand.hbm [shape: f32[128,512], index: 3, kind: input, shape index: {}]
  %s4 = inlined_call_operand.hbm [shape: f32[128,512], index: 4, kind: input, shape index: {}]
  %s5 = inlined_call_operand.vmem [shape: f32[1,512], index: 5, kind: input, shape index: {}]
  %s6 = inlined_call_operand.hbm [shape: f32[256,512], index: 6, kind: input, shape index: {}]
  %s7 = inlined_call_operand.vmem [shape: f32[1,512], index: 7, kind: input, shape index: {}]
  %s8 = inlined_call_operand.vmem [shape: f32[1,128], index: 8, kind: input, shape index: {}]
  %s9 = inlined_call_operand.<no memory space> [shape: f32[1,1], index: 9, kind: input, shape index: {}]
  %s10 = inlined_call_operand.vmem [shape: f32[8,1], index: 10, kind: output, shape index: {0}]
  %s11 = inlined_call_operand.hbm [shape: f32[2,8,128], index: 11, kind: output, shape index: {1}]
  %s12 = inlined_call_operand.hbm [shape: f32[2,8,128], index: 12, kind: output, shape index: {2}]
  %13 = xla_tuple %s10, %s11, %s12
  %s14 = sld [smem:[#allocation0]]
  $region90: #{tpu_custom_call.1} parent=0
    _
  %s16 = ssub.s32 1, %s14
  %s17 = scalar_select 0, %s16, %s14
  %v18 = vstv %s9
  %19 = vst [vmem:[#allocation3] sm:$0x1] %v18
  $region1: #{tpu_custom_call.1} parent=0
    #allocation4 [shape = 'u8[65536]{0}', space=vmem, size = 0x10000, scoped, tag = 'input window, operand 0, single buffered']
    #allocation5 [shape = 's32[1]{0}', space=sflag, size = 0x4, scoped, tag = 'scoped memory for tpu_custom_call.1']
    #allocation6 [shape = 's32[1]{0}', space=sflag, size = 0x4, scoped, tag = 'scoped memory for tpu_custom_call.1']
    #allocation7 [shape = 'u8[8192]{0}', space=vmem, size = 0x2000, scoped, tag = 'input window, operand 1, single buffered']
    #allocation8 [shape = 's32[1]{0}', space=sflag, size = 0x4, scoped, tag = 'scoped memory for tpu_custom_call.1']
    #allocation9 [shape = 'u8[8192]{0}', space=vmem, size = 0x2000, scoped, tag = 'input window, operand 2, single buffered']
    #allocation10 [shape = 'u8[262144]{0}', space=vmem, size = 0x40000, scoped, tag = 'input window, operand 3, single buffered']
    #allocation11 [shape = 's32[1]{0}', space=sflag, size = 0x4, scoped, tag = 'scoped memory for tpu_custom_call.1']
    #allocation12 [shape = 'u8[262144]{0}', space=vmem, size = 0x40000, scoped, tag = 'input window, operand 4, single buffered']
    #allocation13 [shape = 'u8[524288]{0}', space=vmem, size = 0x80000, scoped, tag = 'input window, operand 6, single buffered']
    #allocation14 [shape = 's32[1]{0}', space=sflag, size = 0x4, scoped, tag = 'scoped memory for tpu_custom_call.1']
    #allocation15 [shape = 'u8[8192]{0}', space=vmem, size = 0x2000, scoped, tag = 'output window, operand 1, single buffered']
    #allocation16 [shape = 'u8[8192]{0}', space=vmem, size = 0x2000, scoped, tag = 'output window, operand 2, single buffered']
    #allocation17 [shape = 's32[1]{0}', space=sflag, size = 0x4, scoped, tag = 'scoped memory for tpu_custom_call.1']
    %20 = vsyncpa [#allocation5], 0
    %21 = vsyncpa [#allocation8], 0
    %22 = vsyncpa [#allocation11], 0
    %23 = vsyncpa [#allocation14], 0
    %24 = vsyncpa [#allocation6], 0
    %25 = vsyncpa [#allocation17], 0
    // Predicated region
    $region2: #{tpu_custom_call.1} parent=1 // pred_check
      _
    $region3: #{tpu_custom_call.1} parent=1 // pred_check_branch
      %27 = sbr.rel (0) target = $region5
    $region4: #{tpu_custom_call.1} parent=1 // pred_region
      %s29 = ssub.s32 2048, 2048
      %30 = vsyncadd [#allocation5], %s29
      %s31 = sshll.u32 [#allocation4], 4
      %s32 = int_to_ptr.vmem [resolvable:$true] %s31
      %37 = dma.hbm_to_vmem [thread:$0]  %s0, 2048, %s32, [#allocation5], 128, 128, 8
    $region5: #{tpu_custom_call.1} parent=1 // pred_fallthru
      _
    // Predicated region
    $region6: #{tpu_custom_call.1} parent=1 // pred_check
      _
    $region7: #{tpu_custom_call.1} parent=1 // pred_check_branch
      %39 = sbr.rel (0) target = $region9
    $region8: #{tpu_custom_call.1} parent=1 // pred_region
      %s41 = ssub.s32 256, 256
      %42 = vsyncadd [#allocation8], %s41
      %s43 = sshll.u32 [#allocation7], 4
      %s44 = int_to_ptr.vmem [resolvable:$true] %s43
      %49 = dma.hbm_to_vmem [thread:$0]  %s1, 256, %s44, [#allocation8], 128, 128, 8
    $region9: #{tpu_custom_call.1} parent=1 // pred_fallthru
      _
    // Predicated region
    $region10: #{tpu_custom_call.1} parent=1 // pred_check
      _
    $region11: #{tpu_custom_call.1} parent=1 // pred_check_branch
      %51 = sbr.rel (0) target = $region13
    $region12: #{tpu_custom_call.1} parent=1 // pred_region
      %s53 = ssub.s32 256, 256
      %54 = vsyncadd [#allocation8], %s53
      %s55 = sshll.u32 [#allocation9], 4
      %s56 = int_to_ptr.vmem [resolvable:$true] %s55
      %61 = dma.hbm_to_vmem [thread:$0]  %s2, 256, %s56, [#allocation8], 128, 128, 8
    $region13: #{tpu_custom_call.1} parent=1 // pred_fallthru
      _
    // Predicated region
    $region14: #{tpu_custom_call.1} parent=1 // pred_check
      _
    $region15: #{tpu_custom_call.1} parent=1 // pred_check_branch
      %63 = sbr.rel (0) target = $region17
    $region16: #{tpu_custom_call.1} parent=1 // pred_region
      %s65 = ssub.s32 8192, 8192
      %66 = vsyncadd [#allocation11], %s65
      %s67 = sshll.u32 [#allocation10], 4
      %s68 = int_to_ptr.vmem [resolvable:$true] %s67
      %73 = dma.hbm_to_vmem [thread:$0]  %s3, 8192, %s68, [#allocation11], 512, 512, 32
    $region17: #{tpu_custom_call.1} parent=1 // pred_fallthru
      _
    // Predicated region
    $region18: #{tpu_custom_call.1} parent=1 // pred_check
      _
    $region19: #{tpu_custom_call.1} parent=1 // pred_check_branch
      %75 = sbr.rel (0) target = $region21
    $region20: #{tpu_custom_call.1} parent=1 // pred_region
      %s77 = ssub.s32 8192, 8192
      %78 = vsyncadd [#allocation11], %s77
      %s79 = sshll.u32 [#allocation12], 4
      %s80 = int_to_ptr.vmem [resolvable:$true] %s79
      %85 = dma.hbm_to_vmem [thread:$0]  %s4, 8192, %s80, [#allocation11], 512, 512, 32
    $region21: #{tpu_custom_call.1} parent=1 // pred_fallthru
      _
    // Predicated region
    $region22: #{tpu_custom_call.1} parent=1 // pred_check
      _
    $region23: #{tpu_custom_call.1} parent=1 // pred_check_branch
      %87 = sbr.rel (0) target = $region25
    $region24: #{tpu_custom_call.1} parent=1 // pred_region
      _
    $region25: #{tpu_custom_call.1} parent=1 // pred_fallthru
      _
    // Predicated region
    $region26: #{tpu_custom_call.1} parent=1 // pred_check
      _
    $region27: #{tpu_custom_call.1} parent=1 // pred_check_branch
      %89 = sbr.rel (0) target = $region29
    $region28: #{tpu_custom_call.1} parent=1 // pred_region
      %s91 = ssub.s32 16384, 16384
      %92 = vsyncadd [#allocation14], %s91
      %s93 = sshll.u32 [#allocation13], 4
      %s94 = int_to_ptr.vmem [resolvable:$true] %s93
      %99 = dma.hbm_to_vmem [thread:$0]  %s6, 16384, %s94, [#allocation14], 512, 512, 32
    $region29: #{tpu_custom_call.1} parent=1 // pred_fallthru
      _
    // Predicated region
    $region30: #{tpu_custom_call.1} parent=1 // pred_check
      _
    $region31: #{tpu_custom_call.1} parent=1 // pred_check_branch
      %101 = sbr.rel (0) target = $region33
    $region32: #{tpu_custom_call.1} parent=1 // pred_region
      _
    $region33: #{tpu_custom_call.1} parent=1 // pred_fallthru
      _
    // Predicated region
    $region34: #{tpu_custom_call.1} parent=1 // pred_check
      _
    $region35: #{tpu_custom_call.1} parent=1 // pred_check_branch
      %103 = sbr.rel (0) target = $region37
    $region36: #{tpu_custom_call.1} parent=1 // pred_region
      _
    $region37: #{tpu_custom_call.1} parent=1 // pred_fallthru
      _
    // Predicated region
    $region38: #{tpu_custom_call.1} parent=1 // pred_check
      _
    $region39: #{tpu_custom_call.1} parent=1 // pred_check_branch
      %105 = sbr.rel (0) target = $region41
    $region40: #{tpu_custom_call.1} parent=1 // pred_region
      _
    $region41: #{tpu_custom_call.1} parent=1 // pred_fallthru
      _
    // Predicated region
    $region42: #{tpu_custom_call.1} parent=1 // pred_check
      _
    $region43: #{tpu_custom_call.1} parent=1 // pred_check_branch
      %107 = sbr.rel (0) target = $region45
    $region44: #{tpu_custom_call.1} parent=1 // pred_region
      %108 = dma.done [#allocation5], 2048
    $region45: #{tpu_custom_call.1} parent=1 // pred_fallthru
      _
    // Predicated region
    $region46: #{tpu_custom_call.1} parent=1 // pred_check
      _
    $region47: #{tpu_custom_call.1} parent=1 // pred_check_branch
      %110 = sbr.rel (0) target = $region49
    $region48: #{tpu_custom_call.1} parent=1 // pred_region
      %111 = dma.done [#allocation8], 256
    $region49: #{tpu_custom_call.1} parent=1 // pred_fallthru
      _
    // Predicated region
    $region50: #{tpu_custom_call.1} parent=1 // pred_check
      _
    $region51: #{tpu_custom_call.1} parent=1 // pred_check_branch
      %113 = sbr.rel (0) target = $region53
    $region52: #{tpu_custom_call.1} parent=1 // pred_region
      %114 = dma.done [#allocation8], 256
    $region53: #{tpu_custom_call.1} parent=1 // pred_fallthru
      _
    // Predicated region
    $region54: #{tpu_custom_call.1} parent=1 // pred_check
      _
    $region55: #{tpu_custom_call.1} parent=1 // pred_check_branch
      %116 = sbr.rel (0) target = $region57
    $region56: #{tpu_custom_call.1} parent=1 // pred_region
      %117 = dma.done [#allocation11], 8192
    $region57: #{tpu_custom_call.1} parent=1 // pred_fallthru
      _
    // Predicated region
    $region58: #{tpu_custom_call.1} parent=1 // pred_check
      _
    $region59: #{tpu_custom_call.1} parent=1 // pred_check_branch
      %119 = sbr.rel (0) target = $region61
    $region60: #{tpu_custom_call.1} parent=1 // pred_region
      %120 = dma.done [#allocation11], 8192
    $region61: #{tpu_custom_call.1} parent=1 // pred_fallthru
      _
    // Predicated region
    $region62: #{tpu_custom_call.1} parent=1 // pred_check
      _
    $region63: #{tpu_custom_call.1} parent=1 // pred_check_branch
      %122 = sbr.rel (0) target = $region65
    $region64: #{tpu_custom_call.1} parent=1 // pred_region
      %123 = dma.done [#allocation14], 16384
    $region65: #{tpu_custom_call.1} parent=1 // pred_fallthru
      _
    %v124 = vld [vmem:[#allocation4] sm:$0xff]
    %v125 = vld [vmem:[#allocation4 + $0x8] sm:$0xff]
    %v126 = vld [vmem:[#allocation4 + $0x10] sm:$0xff]
    %v127 = vld [vmem:[#allocation4 + $0x18] sm:$0xff]
    %v128 = vld [vmem:[#allocation4 + $0x20] sm:$0xff]
    %v129 = vld [vmem:[#allocation4 + $0x28] sm:$0xff]
    %v130 = vld [vmem:[#allocation4 + $0x30] sm:$0xff]
    %v131 = vld [vmem:[#allocation4 + $0x38] sm:$0xff]
    %v132 = vld [vmem:[#allocation4 + $0x40] sm:$0xff]
    %v133 = vld [vmem:[#allocation4 + $0x48] sm:$0xff]
    %v134 = vld [vmem:[#allocation4 + $0x50] sm:$0xff]
    %v135 = vld [vmem:[#allocation4 + $0x58] sm:$0xff]
    %v136 = vld [vmem:[#allocation4 + $0x60] sm:$0xff]
    %v137 = vld [vmem:[#allocation4 + $0x68] sm:$0xff]
    %v138 = vld [vmem:[#allocation4 + $0x70] sm:$0xff]
    %v139 = vld [vmem:[#allocation4 + $0x78] sm:$0xff]
    %v140 = vld [vmem:[#allocation10] sm:$0xff]
    %v141 = vld [vmem:[#allocation10 + $0x8] sm:$0xff]
    %v142 = vld [vmem:[#allocation10 + $0x10] sm:$0xff]
    %v143 = vld [vmem:[#allocation10 + $0x18] sm:$0xff]
    %v144 = vld [vmem:[#allocation10 + $0x20] sm:$0xff]
    %v145 = vld [vmem:[#allocation10 + $0x28] sm:$0xff]
    %v146 = vld [vmem:[#allocation10 + $0x30] sm:$0xff]
    %v147 = vld [vmem:[#allocation10 + $0x38] sm:$0xff]
    %v148 = vld [vmem:[#allocation10 + $0x40] sm:$0xff]
    %v149 = vld [vmem:[#allocation10 + $0x48] sm:$0xff]
    %v150 = vld [vmem:[#allocation10 + $0x50] sm:$0xff]
    %v151 = vld [vmem:[#allocation10 + $0x58] sm:$0xff]
    %v152 = vld [vmem:[#allocation10 + $0x60] sm:$0xff]
    %v153 = vld [vmem:[#allocation10 + $0x68] sm:$0xff]
    %v154 = vld [vmem:[#allocation10 + $0x70] sm:$0xff]
    %v155 = vld [vmem:[#allocation10 + $0x78] sm:$0xff]
    %v156 = vld [vmem:[#allocation10 + $0x80] sm:$0xff]
    %v157 = vld [vmem:[#allocation10 + $0x88] sm:$0xff]
    %v158 = vld [vmem:[#allocation10 + $0x90] sm:$0xff]
    %v159 = vld [vmem:[#allocation10 + $0x98] sm:$0xff]
    %v160 = vld [vmem:[#allocation10 + $0xa0] sm:$0xff]
    %v161 = vld [vmem:[#allocation10 + $0xa8] sm:$0xff]
    %v162 = vld [vmem:[#allocation10 + $0xb0] sm:$0xff]
    %v163 = vld [vmem:[#allocation10 + $0xb8] sm:$0xff]
    %v164 = vld [vmem:[#allocation10 + $0xc0] sm:$0xff]
    %v165 = vld [vmem:[#allocation10 + $0xc8] sm:$0xff]
    %v166 = vld [vmem:[#allocation10 + $0xd0] sm:$0xff]
    %v167 = vld [vmem:[#allocation10 + $0xd8] sm:$0xff]
    %v168 = vld [vmem:[#allocation10 + $0xe0] sm:$0xff]
    %v169 = vld [vmem:[#allocation10 + $0xe8] sm:$0xff]
    %v170 = vld [vmem:[#allocation10 + $0xf0] sm:$0xff]
    %v171 = vld [vmem:[#allocation10 + $0xf8] sm:$0xff]
    %v172 = vld [vmem:[#allocation10 + $0x100] sm:$0xff]
    %v173 = vld [vmem:[#allocation10 + $0x108] sm:$0xff]
    %v174 = vld [vmem:[#allocation10 + $0x110] sm:$0xff]
    %v175 = vld [vmem:[#allocation10 + $0x118] sm:$0xff]
    %v176 = vld [vmem:[#allocation10 + $0x120] sm:$0xff]
    %v177 = vld [vmem:[#allocation10 + $0x128] sm:$0xff]
    %v178 = vld [vmem:[#allocation10 + $0x130] sm:$0xff]
    %v179 = vld [vmem:[#allocation10 + $0x138] sm:$0xff]
    %v180 = vld [vmem:[#allocation10 + $0x140] sm:$0xff]
    %v181 = vld [vmem:[#allocation10 + $0x148] sm:$0xff]
    %v182 = vld [vmem:[#allocation10 + $0x150] sm:$0xff]
    %v183 = vld [vmem:[#allocation10 + $0x158] sm:$0xff]
    %v184 = vld [vmem:[#allocation10 + $0x160] sm:$0xff]
    %v185 = vld [vmem:[#allocation10 + $0x168] sm:$0xff]
    %v186 = vld [vmem:[#allocation10 + $0x170] sm:$0xff]
    %v187 = vld [vmem:[#allocation10 + $0x178] sm:$0xff]
    %v188 = vld [vmem:[#allocation10 + $0x180] sm:$0xff]
    %v189 = vld [vmem:[#allocation10 + $0x188] sm:$0xff]
    %v190 = vld [vmem:[#allocation10 + $0x190] sm:$0xff]
    %v191 = vld [vmem:[#allocation10 + $0x198] sm:$0xff]
    %v192 = vld [vmem:[#allocation10 + $0x1a0] sm:$0xff]
    %v193 = vld [vmem:[#allocation10 + $0x1a8] sm:$0xff]
    %v194 = vld [vmem:[#allocation10 + $0x1b0] sm:$0xff]
    %v195 = vld [vmem:[#allocation10 + $0x1b8] sm:$0xff]
    %v196 = vld [vmem:[#allocation10 + $0x1c0] sm:$0xff]
    %v197 = vld [vmem:[#allocation10 + $0x1c8] sm:$0xff]
    %v198 = vld [vmem:[#allocation10 + $0x1d0] sm:$0xff]
    %v199 = vld [vmem:[#allocation10 + $0x1d8] sm:$0xff]
    %v200 = vld [vmem:[#allocation10 + $0x1e0] sm:$0xff]
    %v201 = vld [vmem:[#allocation10 + $0x1e8] sm:$0xff]
    %v202 = vld [vmem:[#allocation10 + $0x1f0] sm:$0xff]
    %v203 = vld [vmem:[#allocation10 + $0x1f8] sm:$0xff]
    %v204 = vld [vmem:[%s5] sm:$0xf]
    %v206 = vlaneseq
    %v207 = vshrl.u32 %v206, 7
    %v208 = vsub.s32 0, %v207
    %v209 = vrot.slane %v204, %v208
    %v210 = vlaneseq
    %v211 = vshrl.u32 %v210, 7
    %v212 = vsub.s32 1, %v211
    %v213 = vrot.slane %v204, %v212
    %v214 = vlaneseq
    %v215 = vshrl.u32 %v214, 7
    %v216 = vsub.s32 2, %v215
    %v217 = vrot.slane %v204, %v216
    %v218 = vlaneseq
    %v219 = vshrl.u32 %v218, 7
    %v220 = vsub.s32 3, %v219
    %v221 = vrot.slane %v204, %v220
    %226 = vmatprep.subr.mxu0 %v201
    %227 = vmatpush1.msra.mxu0 %v200
    %228 = vmatprep.subr.mxu0 %v197
    %229 = vmatpush1.msra.mxu0 %v196
    %230 = vmatprep.subr.mxu0 %v193
    %231 = vmatpush1.msra.mxu0 %v192
    %232 = vmatprep.subr.mxu0 %v189
    %233 = vmatpush1.msra.mxu0 %v188
    %234 = vmatprep.subr.mxu0 %v185
    %235 = vmatpush1.msra.mxu0 %v184
    %236 = vmatprep.subr.mxu0 %v181
    %237 = vmatpush1.msra.mxu0 %v180
    %238 = vmatprep.subr.mxu0 %v177
    %239 = vmatpush1.msra.mxu0 %v176
    %240 = vmatprep.subr.mxu0 %v173
    %241 = vmatpush1.msra.mxu0 %v172
    %242 = vmatprep.subr.mxu0 %v169
    %243 = vmatpush1.msra.mxu0 %v168
    %244 = vmatprep.subr.mxu0 %v165
    %245 = vmatpush1.msra.mxu0 %v164
    %246 = vmatprep.subr.mxu0 %v161
    %247 = vmatpush1.msra.mxu0 %v160
    %248 = vmatprep.subr.mxu0 %v157
    %249 = vmatpush1.msra.mxu0 %v156
    %250 = vmatprep.subr.mxu0 %v153
    %251 = vmatpush1.msra.mxu0 %v152
    %252 = vmatprep.subr.mxu0 %v149
    %253 = vmatpush1.msra.mxu0 %v148
    %254 = vmatprep.subr.mxu0 %v145
    %255 = vmatpush1.msra.mxu0 %v144
    %256 = vmatprep.subr.mxu0 %v141
    %257 = vmatpush1.msra.mxu0 %v140
    %258 = vmatprep.subr.mxu0 0.0
    %259 = vmatpush2.msra.mxu0 0.0
    %260 = vmatprep.subr.mxu0 0.0
    %261 = vmatpush2.msra.mxu0 0.0
    %262 = vmatprep.subr.mxu0 0.0
    %263 = vmatpush2.msra.mxu0 0.0
    %264 = vmatprep.subr.mxu0 0.0
    %265 = vmatpush2.msra.mxu0 0.0
    %266 = vmatprep.subr.mxu0 0.0
    %267 = vmatpush2.msra.mxu0 0.0
    %268 = vmatprep.subr.mxu0 0.0
    %269 = vmatpush2.msra.mxu0 0.0
    %270 = vmatprep.subr.mxu0 0.0
    %271 = vmatpush2.msra.mxu0 0.0
    %272 = vmatprep.subr.mxu0 0.0
    %273 = vmatpush2.msra.mxu0 0.0
    %274 = vmatprep.subr.mxu0 0.0
    %275 = vmatpush2.msra.mxu0 0.0
    %276 = vmatprep.subr.mxu0 0.0
    %277 = vmatpush2.msra.mxu0 0.0
    %278 = vmatprep.subr.mxu0 0.0
    %279 = vmatpush2.msra.mxu0 0.0
    %280 = vmatprep.subr.mxu0 0.0
    %281 = vmatpush2.msra.mxu0 0.0
    %282 = vmatprep.subr.mxu0 0.0
    %283 = vmatpush2.msra.mxu0 0.0
    %284 = vmatprep.subr.mxu0 0.0
    %285 = vmatpush2.msra.mxu0 0.0
    %286 = vmatprep.subr.mxu0 0.0
    %287 = vmatpush2.msra.mxu0 0.0
    %288 = vmatprep.subr.mxu0 0.0
    %289 = vmatpush2.msra.mxu0 0.0
    %290 = vmatprep.mubr.f32.mxu0 0.0
    %291 = vmatmul.mubr.f32.gmra.mxu0 %v124
    %v292 = vpop.f32.mrf.mxu0
    %v293 = vadd.f32 %v209, %v292
    %v294 = vpop.f32.mrf.mxu0
    %v295 = vadd.f32 %v213, %v294
    %296 = vmatprep.mubr.f32.mxu0 0.0
    %297 = vmatmul.mubr.f32.gmra.mxu0 %v125
    %v298 = vpop.f32.mrf.mxu0
    %v299 = vadd.f32 %v209, %v298
    %v300 = vpop.f32.mrf.mxu0
    %v301 = vadd.f32 %v213, %v300
    %302 = vmatprep.mubr.f32.mxu0 0.0
    %303 = vmatmul.mubr.f32.gmra.mxu0 %v126
    %v304 = vpop.f32.mrf.mxu0
    %v305 = vadd.f32 %v209, %v304
    %v306 = vpop.f32.mrf.mxu0
    %v307 = vadd.f32 %v213, %v306
    %308 = vmatprep.mubr.f32.mxu0 0.0
    %309 = vmatmul.mubr.f32.gmra.mxu0 %v127
    %v310 = vpop.f32.mrf.mxu0
    %v311 = vadd.f32 %v209, %v310
    %v312 = vpop.f32.mrf.mxu0
    %v313 = vadd.f32 %v213, %v312
    %314 = vmatprep.mubr.f32.mxu0 0.0
    %315 = vmatmul.mubr.f32.gmra.mxu0 %v128
    %v316 = vpop.f32.mrf.mxu0
    %v317 = vadd.f32 %v209, %v316
    %v318 = vpop.f32.mrf.mxu0
    %v319 = vadd.f32 %v213, %v318
    %320 = vmatprep.mubr.f32.mxu0 0.0
    %321 = vmatmul.mubr.f32.gmra.mxu0 %v129
    %v322 = vpop.f32.mrf.mxu0
    %v323 = vadd.f32 %v209, %v322
    %v324 = vpop.f32.mrf.mxu0
    %v325 = vadd.f32 %v213, %v324
    %326 = vmatprep.mubr.f32.mxu0 0.0
    %327 = vmatmul.mubr.f32.gmra.mxu0 %v130
    %v328 = vpop.f32.mrf.mxu0
    %v329 = vadd.f32 %v209, %v328
    %v330 = vpop.f32.mrf.mxu0
    %v331 = vadd.f32 %v213, %v330
    %332 = vmatprep.mubr.f32.mxu0 0.0
    %333 = vmatmul.mubr.f32.gmra.mxu0 %v131
    %v334 = vpop.f32.mrf.mxu0
    %v335 = vadd.f32 %v209, %v334
    %v336 = vpop.f32.mrf.mxu0
    %v337 = vadd.f32 %v213, %v336
    %338 = vmatprep.mubr.f32.mxu0 0.0
    %339 = vmatmul.mubr.f32.gmra.mxu0 %v132
    %v340 = vpop.f32.mrf.mxu0
    %v341 = vadd.f32 %v209, %v340
    %v342 = vpop.f32.mrf.mxu0
    %v343 = vadd.f32 %v213, %v342
    %344 = vmatprep.mubr.f32.mxu0 0.0
    %345 = vmatmul.mubr.f32.gmra.mxu0 %v133
    %v346 = vpop.f32.mrf.mxu0
    %v347 = vadd.f32 %v209, %v346
    %v348 = vpop.f32.mrf.mxu0
    %v349 = vadd.f32 %v213, %v348
    %350 = vmatprep.mubr.f32.mxu0 0.0
    %351 = vmatmul.mubr.f32.gmra.mxu0 %v134
    %v352 = vpop.f32.mrf.mxu0
    %v353 = vadd.f32 %v209, %v352
    %v354 = vpop.f32.mrf.mxu0
    %v355 = vadd.f32 %v213, %v354
    %356 = vmatprep.mubr.f32.mxu0 0.0
    %357 = vmatmul.mubr.f32.gmra.mxu0 %v135
    %v358 = vpop.f32.mrf.mxu0
    %v359 = vadd.f32 %v209, %v358
    %v360 = vpop.f32.mrf.mxu0
    %v361 = vadd.f32 %v213, %v360
    %362 = vmatprep.mubr.f32.mxu0 0.0
    %363 = vmatmul.mubr.f32.gmra.mxu0 %v136
    %v364 = vpop.f32.mrf.mxu0
    %v365 = vadd.f32 %v209, %v364
    %v366 = vpop.f32.mrf.mxu0
    %v367 = vadd.f32 %v213, %v366
    %368 = vmatprep.mubr.f32.mxu0 0.0
    %369 = vmatmul.mubr.f32.gmra.mxu0 %v137
    %v370 = vpop.f32.mrf.mxu0
    %v371 = vadd.f32 %v209, %v370
    %v372 = vpop.f32.mrf.mxu0
    %v373 = vadd.f32 %v213, %v372
    %374 = vmatprep.mubr.f32.mxu0 0.0
    %375 = vmatmul.mubr.f32.gmra.mxu0 %v138
    %v376 = vpop.f32.mrf.mxu0
    %v377 = vadd.f32 %v209, %v376
    %v378 = vpop.f32.mrf.mxu0
    %v379 = vadd.f32 %v213, %v378
    %380 = vmatprep.mubr.f32.mxu0 0.0
    %381 = vmatmul.mubr.f32.gmra.mxu0 %v139
    %v382 = vpop.f32.mrf.mxu0
    %v383 = vadd.f32 %v209, %v382
    %v384 = vpop.f32.mrf.mxu0
    %v385 = vadd.f32 %v213, %v384
    %386 = vdwg.mxu0
    %387 = vmatprep.subr.mxu0 %v203
    %388 = vmatpush1.msra.mxu0 %v202
    %389 = vmatprep.subr.mxu0 %v199
    %390 = vmatpush1.msra.mxu0 %v198
    %391 = vmatprep.subr.mxu0 %v195
    %392 = vmatpush1.msra.mxu0 %v194
    %393 = vmatprep.subr.mxu0 %v191
    %394 = vmatpush1.msra.mxu0 %v190
    %395 = vmatprep.subr.mxu0 %v187
    %396 = vmatpush1.msra.mxu0 %v186
    %397 = vmatprep.subr.mxu0 %v183
    %398 = vmatpush1.msra.mxu0 %v182
    %399 = vmatprep.subr.mxu0 %v179
    %400 = vmatpush1.msra.mxu0 %v178
    %401 = vmatprep.subr.mxu0 %v175
    %402 = vmatpush1.msra.mxu0 %v174
    %403 = vmatprep.subr.mxu0 %v171
    %404 = vmatpush1.msra.mxu0 %v170
    %405 = vmatprep.subr.mxu0 %v167
    %406 = vmatpush1.msra.mxu0 %v166
    %407 = vmatprep.subr.mxu0 %v163
    %408 = vmatpush1.msra.mxu0 %v162
    %409 = vmatprep.subr.mxu0 %v159
    %410 = vmatpush1.msra.mxu0 %v158
    %411 = vmatprep.subr.mxu0 %v155
    %412 = vmatpush1.msra.mxu0 %v154
    %413 = vmatprep.subr.mxu0 %v151
    %414 = vmatpush1.msra.mxu0 %v150
    %415 = vmatprep.subr.mxu0 %v147
    %416 = vmatpush1.msra.mxu0 %v146
    %417 = vmatprep.subr.mxu0 %v143
    %418 = vmatpush1.msra.mxu0 %v142
    %419 = vmatprep.subr.mxu0 0.0
    %420 = vmatpush2.msra.mxu0 0.0
    %421 = vmatprep.subr.mxu0 0.0
    %422 = vmatpush2.msra.mxu0 0.0
    %423 = vmatprep.subr.mxu0 0.0
    %424 = vmatpush2.msra.mxu0 0.0
    %425 = vmatprep.subr.mxu0 0.0
    %426 = vmatpush2.msra.mxu0 0.0
    %427 = vmatprep.subr.mxu0 0.0
    %428 = vmatpush2.msra.mxu0 0.0
    %429 = vmatprep.subr.mxu0 0.0
    %430 = vmatpush2.msra.mxu0 0.0
    %431 = vmatprep.subr.mxu0 0.0
    %432 = vmatpush2.msra.mxu0 0.0
    %433 = vmatprep.subr.mxu0 0.0
    %434 = vmatpush2.msra.mxu0 0.0
    %435 = vmatprep.subr.mxu0 0.0
    %436 = vmatpush2.msra.mxu0 0.0
    %437 = vmatprep.subr.mxu0 0.0
    %438 = vmatpush2.msra.mxu0 0.0
    %439 = vmatprep.subr.mxu0 0.0
    %440 = vmatpush2.msra.mxu0 0.0
    %441 = vmatprep.subr.mxu0 0.0
    %442 = vmatpush2.msra.mxu0 0.0
    %443 = vmatprep.subr.mxu0 0.0
    %444 = vmatpush2.msra.mxu0 0.0
    %445 = vmatprep.subr.mxu0 0.0
    %446 = vmatpush2.msra.mxu0 0.0
    %447 = vmatprep.subr.mxu0 0.0
    %448 = vmatpush2.msra.mxu0 0.0
    %449 = vmatprep.subr.mxu0 0.0
    %450 = vmatpush2.msra.mxu0 0.0
    %451 = vmatprep.mubr.f32.mxu0 0.0
    %452 = vmatmul.mubr.f32.gmra.mxu0 %v124
    %v453 = vpop.f32.mrf.mxu0
    %v454 = vadd.f32 %v217, %v453
    %v455 = vpop.f32.mrf.mxu0
    %v456 = vadd.f32 %v221, %v455
    %457 = vmatprep.mubr.f32.mxu0 0.0
    %458 = vmatmul.mubr.f32.gmra.mxu0 %v125
    %v459 = vpop.f32.mrf.mxu0
    %v460 = vadd.f32 %v217, %v459
    %v461 = vpop.f32.mrf.mxu0
    %v462 = vadd.f32 %v221, %v461
    %463 = vmatprep.mubr.f32.mxu0 0.0
    %464 = vmatmul.mubr.f32.gmra.mxu0 %v126
    %v465 = vpop.f32.mrf.mxu0
    %v466 = vadd.f32 %v217, %v465
    %v467 = vpop.f32.mrf.mxu0
    %v468 = vadd.f32 %v221, %v467
    %469 = vmatprep.mubr.f32.mxu0 0.0
    %470 = vmatmul.mubr.f32.gmra.mxu0 %v127
    %v471 = vpop.f32.mrf.mxu0
    %v472 = vadd.f32 %v217, %v471
    %v473 = vpop.f32.mrf.mxu0
    %v474 = vadd.f32 %v221, %v473
    %475 = vmatprep.mubr.f32.mxu0 0.0
    %476 = vmatmul.mubr.f32.gmra.mxu0 %v128
    %v477 = vpop.f32.mrf.mxu0
    %v478 = vadd.f32 %v217, %v477
    %v479 = vpop.f32.mrf.mxu0
    %v480 = vadd.f32 %v221, %v479
    %481 = vmatprep.mubr.f32.mxu0 0.0
    %482 = vmatmul.mubr.f32.gmra.mxu0 %v129
    %v483 = vpop.f32.mrf.mxu0
    %v484 = vadd.f32 %v217, %v483
    %v485 = vpop.f32.mrf.mxu0
    %v486 = vadd.f32 %v221, %v485
    %487 = vmatprep.mubr.f32.mxu0 0.0
    %488 = vmatmul.mubr.f32.gmra.mxu0 %v130
    %v489 = vpop.f32.mrf.mxu0
    %v490 = vadd.f32 %v217, %v489
    %v491 = vpop.f32.mrf.mxu0
    %v492 = vadd.f32 %v221, %v491
    %493 = vmatprep.mubr.f32.mxu0 0.0
    %494 = vmatmul.mubr.f32.gmra.mxu0 %v131
    %v495 = vpop.f32.mrf.mxu0
    %v496 = vadd.f32 %v217, %v495
    %v497 = vpop.f32.mrf.mxu0
    %v498 = vadd.f32 %v221, %v497
    %499 = vmatprep.mubr.f32.mxu0 0.0
    %500 = vmatmul.mubr.f32.gmra.mxu0 %v132
    %v501 = vpop.f32.mrf.mxu0
    %v502 = vadd.f32 %v217, %v501
    %v503 = vpop.f32.mrf.mxu0
    %v504 = vadd.f32 %v221, %v503
    %505 = vmatprep.mubr.f32.mxu0 0.0
    %506 = vmatmul.mubr.f32.gmra.mxu0 %v133
    %v507 = vpop.f32.mrf.mxu0
    %v508 = vadd.f32 %v217, %v507
    %v509 = vpop.f32.mrf.mxu0
    %v510 = vadd.f32 %v221, %v509
    %511 = vmatprep.mubr.f32.mxu0 0.0
    %512 = vmatmul.mubr.f32.gmra.mxu0 %v134
    %v513 = vpop.f32.mrf.mxu0
    %v514 = vadd.f32 %v217, %v513
    %v515 = vpop.f32.mrf.mxu0
    %v516 = vadd.f32 %v221, %v515
    %517 = vmatprep.mubr.f32.mxu0 0.0
    %518 = vmatmul.mubr.f32.gmra.mxu0 %v135
    %v519 = vpop.f32.mrf.mxu0
    %v520 = vadd.f32 %v217, %v519
    %v521 = vpop.f32.mrf.mxu0
    %v522 = vadd.f32 %v221, %v521
    %523 = vmatprep.mubr.f32.mxu0 0.0
    %524 = vmatmul.mubr.f32.gmra.mxu0 %v136
    %v525 = vpop.f32.mrf.mxu0
    %v526 = vadd.f32 %v217, %v525
    %v527 = vpop.f32.mrf.mxu0
    %v528 = vadd.f32 %v221, %v527
    %529 = vmatprep.mubr.f32.mxu0 0.0
    %530 = vmatmul.mubr.f32.gmra.mxu0 %v137
    %v531 = vpop.f32.mrf.mxu0
    %v532 = vadd.f32 %v217, %v531
    %v533 = vpop.f32.mrf.mxu0
    %v534 = vadd.f32 %v221, %v533
    %535 = vmatprep.mubr.f32.mxu0 0.0
    %536 = vmatmul.mubr.f32.gmra.mxu0 %v138
    %v537 = vpop.f32.mrf.mxu0
    %v538 = vadd.f32 %v217, %v537
    %v539 = vpop.f32.mrf.mxu0
    %v540 = vadd.f32 %v221, %v539
    %541 = vmatprep.mubr.f32.mxu0 0.0
    %542 = vmatmul.mubr.f32.gmra.mxu0 %v139
    %v543 = vpop.f32.mrf.mxu0
    %v544 = vadd.f32 %v217, %v543
    %v545 = vpop.f32.mrf.mxu0
    %v546 = vadd.f32 %v221, %v545
    %547 = vdwg.mxu0
    %548 = vst [vmem:[#allocation2] sm:$0xff] %v293
    %549 = vst [vmem:[#allocation2 + $0x8] sm:$0xff] %v295
    %550 = vst [vmem:[#allocation2 + $0x10] sm:$0xff] %v454
    %551 = vst [vmem:[#allocation2 + $0x18] sm:$0xff] %v456
    %552 = vst [vmem:[#allocation2 + $0x20] sm:$0xff] %v299
    %553 = vst [vmem:[#allocation2 + $0x28] sm:$0xff] %v301
    %554 = vst [vmem:[#allocation2 + $0x30] sm:$0xff] %v460
    %555 = vst [vmem:[#allocation2 + $0x38] sm:$0xff] %v462
    %556 = vst [vmem:[#allocation2 + $0x40] sm:$0xff] %v305
    %557 = vst [vmem:[#allocation2 + $0x48] sm:$0xff] %v307
    %558 = vst [vmem:[#allocation2 + $0x50] sm:$0xff] %v466
    %559 = vst [vmem:[#allocation2 + $0x58] sm:$0xff] %v468
    %560 = vst [vmem:[#allocation2 + $0x60] sm:$0xff] %v311
    %561 = vst [vmem:[#allocation2 + $0x68] sm:$0xff] %v313
    %562 = vst [vmem:[#allocation2 + $0x70] sm:$0xff] %v472
    %563 = vst [vmem:[#allocation2 + $0x78] sm:$0xff] %v474
    %564 = vst [vmem:[#allocation2 + $0x80] sm:$0xff] %v317
    %565 = vst [vmem:[#allocation2 + $0x88] sm:$0xff] %v319
    %566 = vst [vmem:[#allocation2 + $0x90] sm:$0xff] %v478
    %567 = vst [vmem:[#allocation2 + $0x98] sm:$0xff] %v480
    %568 = vst [vmem:[#allocation2 + $0xa0] sm:$0xff] %v323
    %569 = vst [vmem:[#allocation2 + $0xa8] sm:$0xff] %v325
    %570 = vst [vmem:[#allocation2 + $0xb0] sm:$0xff] %v484
    %571 = vst [vmem:[#allocation2 + $0xb8] sm:$0xff] %v486
    %572 = vst [vmem:[#allocation2 + $0xc0] sm:$0xff] %v329
    %573 = vst [vmem:[#allocation2 + $0xc8] sm:$0xff] %v331
    %574 = vst [vmem:[#allocation2 + $0xd0] sm:$0xff] %v490
    %575 = vst [vmem:[#allocation2 + $0xd8] sm:$0xff] %v492
    %576 = vst [vmem:[#allocation2 + $0xe0] sm:$0xff] %v335
    %577 = vst [vmem:[#allocation2 + $0xe8] sm:$0xff] %v337
    %578 = vst [vmem:[#allocation2 + $0xf0] sm:$0xff] %v496
    %579 = vst [vmem:[#allocation2 + $0xf8] sm:$0xff] %v498
    %580 = vst [vmem:[#allocation2 + $0x100] sm:$0xff] %v341
    %581 = vst [vmem:[#allocation2 + $0x108] sm:$0xff] %v343
    %582 = vst [vmem:[#allocation2 + $0x110] sm:$0xff] %v502
    %583 = vst [vmem:[#allocation2 + $0x118] sm:$0xff] %v504
    %584 = vst [vmem:[#allocation2 + $0x120] sm:$0xff] %v347
    %585 = vst [vmem:[#allocation2 + $0x128] sm:$0xff] %v349
    %586 = vst [vmem:[#allocation2 + $0x130] sm:$0xff] %v508
    %587 = vst [vmem:[#allocation2 + $0x138] sm:$0xff] %v510
    %588 = vst [vmem:[#allocation2 + $0x140] sm:$0xff] %v353
    %589 = vst [vmem:[#allocation2 + $0x148] sm:$0xff] %v355
    %590 = vst [vmem:[#allocation2 + $0x150] sm:$0xff] %v514
    %591 = vst [vmem:[#allocation2 + $0x158] sm:$0xff] %v516
    %592 = vst [vmem:[#allocation2 + $0x160] sm:$0xff] %v359
    %593 = vst [vmem:[#allocation2 + $0x168] sm:$0xff] %v361
    %594 = vst [vmem:[#allocation2 + $0x170] sm:$0xff] %v520
    %595 = vst [vmem:[#allocation2 + $0x178] sm:$0xff] %v522
    %596 = vst [vmem:[#allocation2 + $0x180] sm:$0xff] %v365
    %597 = vst [vmem:[#allocation2 + $0x188] sm:$0xff] %v367
    %598 = vst [vmem:[#allocation2 + $0x190] sm:$0xff] %v526
    %599 = vst [vmem:[#allocation2 + $0x198] sm:$0xff] %v528
    %600 = vst [vmem:[#allocation2 + $0x1a0] sm:$0xff] %v371
    %601 = vst [vmem:[#allocation2 + $0x1a8] sm:$0xff] %v373
    %602 = vst [vmem:[#allocation2 + $0x1b0] sm:$0xff] %v532
    %603 = vst [vmem:[#allocation2 + $0x1b8] sm:$0xff] %v534
    %604 = vst [vmem:[#allocation2 + $0x1c0] sm:$0xff] %v377
    %605 = vst [vmem:[#allocation2 + $0x1c8] sm:$0xff] %v379
    %606 = vst [vmem:[#allocation2 + $0x1d0] sm:$0xff] %v538
    %607 = vst [vmem:[#allocation2 + $0x1d8] sm:$0xff] %v540
    %608 = vst [vmem:[#allocation2 + $0x1e0] sm:$0xff] %v383
    %609 = vst [vmem:[#allocation2 + $0x1e8] sm:$0xff] %v385
    %610 = vst [vmem:[#allocation2 + $0x1f0] sm:$0xff] %v544
    %611 = vst [vmem:[#allocation2 + $0x1f8] sm:$0xff] %v546
    %v612 = vld [vmem:[%s7] sm:$0xf]
    %v614 = vlaneseq
    %v615 = vshrl.u32 %v614, 7
    %v616 = vsub.s32 0, %v615
    %v617 = vrot.slane %v612, %v616
    %v618 = vlaneseq
    %v619 = vshrl.u32 %v618, 7
    %v620 = vsub.s32 1, %v619
    %v621 = vrot.slane %v612, %v620
    %v622 = vlaneseq
    %v623 = vshrl.u32 %v622, 7
    %v624 = vsub.s32 2, %v623
    %v625 = vrot.slane %v612, %v624
    %v626 = vlaneseq
    %v627 = vshrl.u32 %v626, 7
    %v628 = vsub.s32 3, %v627
    %v629 = vrot.slane %v612, %v628
    %v634 = vld [vmem:[#allocation7] sm:$0xff]
    %v635 = vld [vmem:[#allocation9] sm:$0xff]
    %s636 = scalar_lea.vmem [#allocation7], 8
    %v637 = vld [vmem:[%s636] sm:$0xff]
    %s638 = scalar_lea.vmem [#allocation9], 8
    %v639 = vld [vmem:[%s638] sm:$0xff]
    %s640 = smul.u32 0, 4
    %s641 = smul.addr %s640, 8
    %s642 = scalar_lea.vmem [#allocation2], %s641
    %v643 = vld [vmem:[%s642] sm:$0xff]
    %v644 = vld [vmem:[%s642 + $0x8] sm:$0xff]
    %v645 = vld [vmem:[%s642 + $0x10] sm:$0xff]
    %v646 = vld [vmem:[%s642 + $0x18] sm:$0xff]
    %v647 = vld [vmem:[#allocation12] sm:$0xff]
    %v648 = vld [vmem:[#allocation12 + $0x8] sm:$0xff]
    %v649 = vld [vmem:[#allocation12 + $0x10] sm:$0xff]
    %v650 = vld [vmem:[#allocation12 + $0x18] sm:$0xff]
    %v651 = vld [vmem:[#allocation12 + $0x20] sm:$0xff]
    %v652 = vld [vmem:[#allocation12 + $0x28] sm:$0xff]
    %v653 = vld [vmem:[#allocation12 + $0x30] sm:$0xff]
    %v654 = vld [vmem:[#allocation12 + $0x38] sm:$0xff]
    %v655 = vld [vmem:[#allocation12 + $0x40] sm:$0xff]
    %v656 = vld [vmem:[#allocation12 + $0x48] sm:$0xff]
    %v657 = vld [vmem:[#allocation12 + $0x50] sm:$0xff]
    %v658 = vld [vmem:[#allocation12 + $0x58] sm:$0xff]
    %v659 = vld [vmem:[#allocation12 + $0x60] sm:$0xff]
    %v660 = vld [vmem:[#allocation12 + $0x68] sm:$0xff]
    %v661 = vld [vmem:[#allocation12 + $0x70] sm:$0xff]
    %v662 = vld [vmem:[#allocation12 + $0x78] sm:$0xff]
    %v663 = vld [vmem:[#allocation12 + $0x80] sm:$0xff]
    %v664 = vld [vmem:[#allocation12 + $0x88] sm:$0xff]
    %v665 = vld [vmem:[#allocation12 + $0x90] sm:$0xff]
    %v666 = vld [vmem:[#allocation12 + $0x98] sm:$0xff]
    %v667 = vld [vmem:[#allocation12 + $0xa0] sm:$0xff]
    %v668 = vld [vmem:[#allocation12 + $0xa8] sm:$0xff]
    %v669 = vld [vmem:[#allocation12 + $0xb0] sm:$0xff]
    %v670 = vld [vmem:[#allocation12 + $0xb8] sm:$0xff]
    %v671 = vld [vmem:[#allocation12 + $0xc0] sm:$0xff]
    %v672 = vld [vmem:[#allocation12 + $0xc8] sm:$0xff]
    %v673 = vld [vmem:[#allocation12 + $0xd0] sm:$0xff]
    %v674 = vld [vmem:[#allocation12 + $0xd8] sm:$0xff]
    %v675 = vld [vmem:[#allocation12 + $0xe0] sm:$0xff]
    %v676 = vld [vmem:[#allocation12 + $0xe8] sm:$0xff]
    %v677 = vld [vmem:[#allocation12 + $0xf0] sm:$0xff]
    %v678 = vld [vmem:[#allocation12 + $0xf8] sm:$0xff]
    %v679 = vld [vmem:[#allocation12 + $0x100] sm:$0xff]
    %v680 = vld [vmem:[#allocation12 + $0x108] sm:$0xff]
    %v681 = vld [vmem:[#allocation12 + $0x110] sm:$0xff]
    %v682 = vld [vmem:[#allocation12 + $0x118] sm:$0xff]
    %v683 = vld [vmem:[#allocation12 + $0x120] sm:$0xff]
    %v684 = vld [vmem:[#allocation12 + $0x128] sm:$0xff]
    %v685 = vld [vmem:[#allocation12 + $0x130] sm:$0xff]
    %v686 = vld [vmem:[#allocation12 + $0x138] sm:$0xff]
    %v687 = vld [vmem:[#allocation12 + $0x140] sm:$0xff]
    %v688 = vld [vmem:[#allocation12 + $0x148] sm:$0xff]
    %v689 = vld [vmem:[#allocation12 + $0x150] sm:$0xff]
    %v690 = vld [vmem:[#allocation12 + $0x158] sm:$0xff]
    %v691 = vld [vmem:[#allocation12 + $0x160] sm:$0xff]
    %v692 = vld [vmem:[#allocation12 + $0x168] sm:$0xff]
    %v693 = vld [vmem:[#allocation12 + $0x170] sm:$0xff]
    %v694 = vld [vmem:[#allocation12 + $0x178] sm:$0xff]
    %v695 = vld [vmem:[#allocation12 + $0x180] sm:$0xff]
    %v696 = vld [vmem:[#allocation12 + $0x188] sm:$0xff]
    %v697 = vld [vmem:[#allocation12 + $0x190] sm:$0xff]
    %v698 = vld [vmem:[#allocation12 + $0x198] sm:$0xff]
    %v699 = vld [vmem:[#allocation12 + $0x1a0] sm:$0xff]
    %v700 = vld [vmem:[#allocation12 + $0x1a8] sm:$0xff]
    %v701 = vld [vmem:[#allocation12 + $0x1b0] sm:$0xff]
    %v702 = vld [vmem:[#allocation12 + $0x1b8] sm:$0xff]
    %v703 = vld [vmem:[#allocation12 + $0x1c0] sm:$0xff]
    %v704 = vld [vmem:[#allocation12 + $0x1c8] sm:$0xff]
    %v705 = vld [vmem:[#allocation12 + $0x1d0] sm:$0xff]
    %v706 = vld [vmem:[#allocation12 + $0x1d8] sm:$0xff]
    %v707 = vld [vmem:[#allocation12 + $0x1e0] sm:$0xff]
    %v708 = vld [vmem:[#allocation12 + $0x1e8] sm:$0xff]
    %v709 = vld [vmem:[#allocation12 + $0x1f0] sm:$0xff]
    %v710 = vld [vmem:[#allocation12 + $0x1f8] sm:$0xff]
    %711 = vmatprep.subr.mxu0 %v708
    %712 = vmatpush1.msra.mxu0 %v707
    %713 = vmatprep.subr.mxu0 %v704
    %714 = vmatpush1.msra.mxu0 %v703
    %715 = vmatprep.subr.mxu0 %v700
    %716 = vmatpush1.msra.mxu0 %v699
    %717 = vmatprep.subr.mxu0 %v696
    %718 = vmatpush1.msra.mxu0 %v695
    %719 = vmatprep.subr.mxu0 %v692
    %720 = vmatpush1.msra.mxu0 %v691
    %721 = vmatprep.subr.mxu0 %v688
    %722 = vmatpush1.msra.mxu0 %v687
    %723 = vmatprep.subr.mxu0 %v684
    %724 = vmatpush1.msra.mxu0 %v683
    %725 = vmatprep.subr.mxu0 %v680
    %726 = vmatpush1.msra.mxu0 %v679
    %727 = vmatprep.subr.mxu0 %v676
    %728 = vmatpush1.msra.mxu0 %v675
    %729 = vmatprep.subr.mxu0 %v672
    %730 = vmatpush1.msra.mxu0 %v671
    %731 = vmatprep.subr.mxu0 %v668
    %732 = vmatpush1.msra.mxu0 %v667
    %733 = vmatprep.subr.mxu0 %v664
    %734 = vmatpush1.msra.mxu0 %v663
    %735 = vmatprep.subr.mxu0 %v660
    %736 = vmatpush1.msra.mxu0 %v659
    %737 = vmatprep.subr.mxu0 %v656
    %738 = vmatpush1.msra.mxu0 %v655
    %739 = vmatprep.subr.mxu0 %v652
    %740 = vmatpush1.msra.mxu0 %v651
    %741 = vmatprep.subr.mxu0 %v648
    %742 = vmatpush1.msra.mxu0 %v647
    %743 = vmatprep.subr.mxu0 0.0
    %744 = vmatpush2.msra.mxu0 0.0
    %745 = vmatprep.subr.mxu0 0.0
    %746 = vmatpush2.msra.mxu0 0.0
    %747 = vmatprep.subr.mxu0 0.0
    %748 = vmatpush2.msra.mxu0 0.0
    %749 = vmatprep.subr.mxu0 0.0
    %750 = vmatpush2.msra.mxu0 0.0
    %751 = vmatprep.subr.mxu0 0.0
    %752 = vmatpush2.msra.mxu0 0.0
    %753 = vmatprep.subr.mxu0 0.0
    %754 = vmatpush2.msra.mxu0 0.0
    %755 = vmatprep.subr.mxu0 0.0
    %756 = vmatpush2.msra.mxu0 0.0
    %757 = vmatprep.subr.mxu0 0.0
    %758 = vmatpush2.msra.mxu0 0.0
    %759 = vmatprep.subr.mxu0 0.0
    %760 = vmatpush2.msra.mxu0 0.0
    %761 = vmatprep.subr.mxu0 0.0
    %762 = vmatpush2.msra.mxu0 0.0
    %763 = vmatprep.subr.mxu0 0.0
    %764 = vmatpush2.msra.mxu0 0.0
    %765 = vmatprep.subr.mxu0 0.0
    %766 = vmatpush2.msra.mxu0 0.0
    %767 = vmatprep.subr.mxu0 0.0
    %768 = vmatpush2.msra.mxu0 0.0
    %769 = vmatprep.subr.mxu0 0.0
    %770 = vmatpush2.msra.mxu0 0.0
    %771 = vmatprep.subr.mxu0 0.0
    %772 = vmatpush2.msra.mxu0 0.0
    %773 = vmatprep.subr.mxu0 0.0
    %774 = vmatpush2.msra.mxu0 0.0
    %775 = vmatprep.mubr.f32.mxu0 0.0
    %776 = vmatmul.mubr.f32.gmra.mxu0 %v634
    %v777 = vpop.f32.mrf.mxu0
    %v778 = vadd.f32 0.0, %v777
    %v779 = vpop.f32.mrf.mxu0
    %v780 = vadd.f32 0.0, %v779
    %781 = vdwg.mxu0
    %782 = vmatprep.subr.mxu0 %v710
    %783 = vmatpush1.msra.mxu0 %v709
    %784 = vmatprep.subr.mxu0 %v706
    %785 = vmatpush1.msra.mxu0 %v705
    %786 = vmatprep.subr.mxu0 %v702
    %787 = vmatpush1.msra.mxu0 %v701
    %788 = vmatprep.subr.mxu0 %v698
    %789 = vmatpush1.msra.mxu0 %v697
    %790 = vmatprep.subr.mxu0 %v694
    %791 = vmatpush1.msra.mxu0 %v693
    %792 = vmatprep.subr.mxu0 %v690
    %793 = vmatpush1.msra.mxu0 %v689
    %794 = vmatprep.subr.mxu0 %v686
    %795 = vmatpush1.msra.mxu0 %v685
    %796 = vmatprep.subr.mxu0 %v682
    %797 = vmatpush1.msra.mxu0 %v681
    %798 = vmatprep.subr.mxu0 %v678
    %799 = vmatpush1.msra.mxu0 %v677
    %800 = vmatprep.subr.mxu0 %v674
    %801 = vmatpush1.msra.mxu0 %v673
    %802 = vmatprep.subr.mxu0 %v670
    %803 = vmatpush1.msra.mxu0 %v669
    %804 = vmatprep.subr.mxu0 %v666
    %805 = vmatpush1.msra.mxu0 %v665
    %806 = vmatprep.subr.mxu0 %v662
    %807 = vmatpush1.msra.mxu0 %v661
    %808 = vmatprep.subr.mxu0 %v658
    %809 = vmatpush1.msra.mxu0 %v657
    %810 = vmatprep.subr.mxu0 %v654
    %811 = vmatpush1.msra.mxu0 %v653
    %812 = vmatprep.subr.mxu0 %v650
    %813 = vmatpush1.msra.mxu0 %v649
    %814 = vmatprep.subr.mxu0 0.0
    %815 = vmatpush2.msra.mxu0 0.0
    %816 = vmatprep.subr.mxu0 0.0
    %817 = vmatpush2.msra.mxu0 0.0
    %818 = vmatprep.subr.mxu0 0.0
    %819 = vmatpush2.msra.mxu0 0.0
    %820 = vmatprep.subr.mxu0 0.0
    %821 = vmatpush2.msra.mxu0 0.0
    %822 = vmatprep.subr.mxu0 0.0
    %823 = vmatpush2.msra.mxu0 0.0
    %824 = vmatprep.subr.mxu0 0.0
    %825 = vmatpush2.msra.mxu0 0.0
    %826 = vmatprep.subr.mxu0 0.0
    %827 = vmatpush2.msra.mxu0 0.0
    %828 = vmatprep.subr.mxu0 0.0
    %829 = vmatpush2.msra.mxu0 0.0
    %830 = vmatprep.subr.mxu0 0.0
    %831 = vmatpush2.msra.mxu0 0.0
    %832 = vmatprep.subr.mxu0 0.0
    %833 = vmatpush2.msra.mxu0 0.0
    %834 = vmatprep.subr.mxu0 0.0
    %835 = vmatpush2.msra.mxu0 0.0
    %836 = vmatprep.subr.mxu0 0.0
    %837 = vmatpush2.msra.mxu0 0.0
    %838 = vmatprep.subr.mxu0 0.0
    %839 = vmatpush2.msra.mxu0 0.0
    %840 = vmatprep.subr.mxu0 0.0
    %841 = vmatpush2.msra.mxu0 0.0
    %842 = vmatprep.subr.mxu0 0.0
    %843 = vmatpush2.msra.mxu0 0.0
    %844 = vmatprep.subr.mxu0 0.0
    %845 = vmatpush2.msra.mxu0 0.0
    %846 = vmatprep.mubr.f32.mxu0 0.0
    %847 = vmatmul.mubr.f32.gmra.mxu0 %v634
    %v848 = vpop.f32.mrf.mxu0
    %v849 = vadd.f32 0.0, %v848
    %v850 = vpop.f32.mrf.mxu0
    %v851 = vadd.f32 0.0, %v850
    %852 = vdwg.mxu0
    %v853 = vadd.f32 %v643, %v778
    %v854 = vadd.f32 %v644, %v780
    %v855 = vadd.f32 %v645, %v849
    %v856 = vadd.f32 %v646, %v851
    %v857 = vxor.u32 %v853, 2147483648
    %v858 = vmul.f32 %v857, 1.442695
    %v859 = vpow.pop %v858
    %v860 = vadd.f32 %v859, 1.0
    %v861 = vrcp.pop %v860
    %v862 = vmul.f32 1.0, %v861
    %v863 = vxor.u32 %v854, 2147483648
    %v864 = vmul.f32 %v863, 1.442695
    %v865 = vpow.pop %v864
    %v866 = vadd.f32 %v865, 1.0
    %v867 = vrcp.pop %v866
    %v868 = vmul.f32 1.0, %v867
    %v869 = vtanh.pop %v855
    %v870 = vxor.u32 %v856, 2147483648
    %v871 = vmul.f32 %v870, 1.442695
    %v872 = vpow.pop %v871
    %v873 = vadd.f32 %v872, 1.0
    %v874 = vrcp.pop %v873
    %v875 = vmul.f32 1.0, %v874
    %v876 = vmul.f32 %v868, %v635
    %v877 = vmul.f32 %v862, %v869
    %v878 = vadd.f32 %v876, %v877
    %v879 = vtanh.pop %v878
    %v880 = vmul.f32 %v875, %v879
    %v881 = vld [vmem:[#allocation13] sm:$0xff]
    %v882 = vld [vmem:[#allocation13 + $0x8] sm:$0xff]
    %v883 = vld [vmem:[#allocation13 + $0x10] sm:$0xff]
    %v884 = vld [vmem:[#allocation13 + $0x18] sm:$0xff]
    %v885 = vld [vmem:[#allocation13 + $0x20] sm:$0xff]
    %v886 = vld [vmem:[#allocation13 + $0x28] sm:$0xff]
    %v887 = vld [vmem:[#allocation13 + $0x30] sm:$0xff]
    %v888 = vld [vmem:[#allocation13 + $0x38] sm:$0xff]
    %v889 = vld [vmem:[#allocation13 + $0x40] sm:$0xff]
    %v890 = vld [vmem:[#allocation13 + $0x48] sm:$0xff]
    %v891 = vld [vmem:[#allocation13 + $0x50] sm:$0xff]
    %v892 = vld [vmem:[#allocation13 + $0x58] sm:$0xff]
    %v893 = vld [vmem:[#allocation13 + $0x60] sm:$0xff]
    %v894 = vld [vmem:[#allocation13 + $0x68] sm:$0xff]
    %v895 = vld [vmem:[#allocation13 + $0x70] sm:$0xff]
    %v896 = vld [vmem:[#allocation13 + $0x78] sm:$0xff]
    %v897 = vld [vmem:[#allocation13 + $0x80] sm:$0xff]
    %v898 = vld [vmem:[#allocation13 + $0x88] sm:$0xff]
    %v899 = vld [vmem:[#allocation13 + $0x90] sm:$0xff]
    %v900 = vld [vmem:[#allocation13 + $0x98] sm:$0xff]
    %v901 = vld [vmem:[#allocation13 + $0xa0] sm:$0xff]
    %v902 = vld [vmem:[#allocation13 + $0xa8] sm:$0xff]
    %v903 = vld [vmem:[#allocation13 + $0xb0] sm:$0xff]
    %v904 = vld [vmem:[#allocation13 + $0xb8] sm:$0xff]
    %v905 = vld [vmem:[#allocation13 + $0xc0] sm:$0xff]
    %v906 = vld [vmem:[#allocation13 + $0xc8] sm:$0xff]
    %v907 = vld [vmem:[#allocation13 + $0xd0] sm:$0xff]
    %v908 = vld [vmem:[#allocation13 + $0xd8] sm:$0xff]
    %v909 = vld [vmem:[#allocation13 + $0xe0] sm:$0xff]
    %v910 = vld [vmem:[#allocation13 + $0xe8] sm:$0xff]
    %v911 = vld [vmem:[#allocation13 + $0xf0] sm:$0xff]
    %v912 = vld [vmem:[#allocation13 + $0xf8] sm:$0xff]
    %v913 = vld [vmem:[#allocation13 + $0x100] sm:$0xff]
    %v914 = vld [vmem:[#allocation13 + $0x108] sm:$0xff]
    %v915 = vld [vmem:[#allocation13 + $0x110] sm:$0xff]
    %v916 = vld [vmem:[#allocation13 + $0x118] sm:$0xff]
    %v917 = vld [vmem:[#allocation13 + $0x120] sm:$0xff]
    %v918 = vld [vmem:[#allocation13 + $0x128] sm:$0xff]
    %v919 = vld [vmem:[#allocation13 + $0x130] sm:$0xff]
    %v920 = vld [vmem:[#allocation13 + $0x138] sm:$0xff]
    %v921 = vld [vmem:[#allocation13 + $0x140] sm:$0xff]
    %v922 = vld [vmem:[#allocation13 + $0x148] sm:$0xff]
    %v923 = vld [vmem:[#allocation13 + $0x150] sm:$0xff]
    %v924 = vld [vmem:[#allocation13 + $0x158] sm:$0xff]
    %v925 = vld [vmem:[#allocation13 + $0x160] sm:$0xff]
    %v926 = vld [vmem:[#allocation13 + $0x168] sm:$0xff]
    %v927 = vld [vmem:[#allocation13 + $0x170] sm:$0xff]
    %v928 = vld [vmem:[#allocation13 + $0x178] sm:$0xff]
    %v929 = vld [vmem:[#allocation13 + $0x180] sm:$0xff]
    %v930 = vld [vmem:[#allocation13 + $0x188] sm:$0xff]
    %v931 = vld [vmem:[#allocation13 + $0x190] sm:$0xff]
    %v932 = vld [vmem:[#allocation13 + $0x198] sm:$0xff]
    %v933 = vld [vmem:[#allocation13 + $0x1a0] sm:$0xff]
    %v934 = vld [vmem:[#allocation13 + $0x1a8] sm:$0xff]
    %v935 = vld [vmem:[#allocation13 + $0x1b0] sm:$0xff]
    %v936 = vld [vmem:[#allocation13 + $0x1b8] sm:$0xff]
    %v937 = vld [vmem:[#allocation13 + $0x1c0] sm:$0xff]
    %v938 = vld [vmem:[#allocation13 + $0x1c8] sm:$0xff]
    %v939 = vld [vmem:[#allocation13 + $0x1d0] sm:$0xff]
    %v940 = vld [vmem:[#allocation13 + $0x1d8] sm:$0xff]
    %v941 = vld [vmem:[#allocation13 + $0x1e0] sm:$0xff]
    %v942 = vld [vmem:[#allocation13 + $0x1e8] sm:$0xff]
    %v943 = vld [vmem:[#allocation13 + $0x1f0] sm:$0xff]
    %v944 = vld [vmem:[#allocation13 + $0x1f8] sm:$0xff]
    %v945 = vld [vmem:[#allocation13 + $0x200] sm:$0xff]
    %v946 = vld [vmem:[#allocation13 + $0x208] sm:$0xff]
    %v947 = vld [vmem:[#allocation13 + $0x210] sm:$0xff]
    %v948 = vld [vmem:[#allocation13 + $0x218] sm:$0xff]
    %v949 = vld [vmem:[#allocation13 + $0x220] sm:$0xff]
    %v950 = vld [vmem:[#allocation13 + $0x228] sm:$0xff]
    %v951 = vld [vmem:[#allocation13 + $0x230] sm:$0xff]
    %v952 = vld [vmem:[#allocation13 + $0x238] sm:$0xff]
    %v953 = vld [vmem:[#allocation13 + $0x240] sm:$0xff]
    %v954 = vld [vmem:[#allocation13 + $0x248] sm:$0xff]
    %v955 = vld [vmem:[#allocation13 + $0x250] sm:$0xff]
    %v956 = vld [vmem:[#allocation13 + $0x258] sm:$0xff]
    %v957 = vld [vmem:[#allocation13 + $0x260] sm:$0xff]
    %v958 = vld [vmem:[#allocation13 + $0x268] sm:$0xff]
    %v959 = vld [vmem:[#allocation13 + $0x270] sm:$0xff]
    %v960 = vld [vmem:[#allocation13 + $0x278] sm:$0xff]
    %v961 = vld [vmem:[#allocation13 + $0x280] sm:$0xff]
    %v962 = vld [vmem:[#allocation13 + $0x288] sm:$0xff]
    %v963 = vld [vmem:[#allocation13 + $0x290] sm:$0xff]
    %v964 = vld [vmem:[#allocation13 + $0x298] sm:$0xff]
    %v965 = vld [vmem:[#allocation13 + $0x2a0] sm:$0xff]
    %v966 = vld [vmem:[#allocation13 + $0x2a8] sm:$0xff]
    %v967 = vld [vmem:[#allocation13 + $0x2b0] sm:$0xff]
    %v968 = vld [vmem:[#allocation13 + $0x2b8] sm:$0xff]
    %v969 = vld [vmem:[#allocation13 + $0x2c0] sm:$0xff]
    %v970 = vld [vmem:[#allocation13 + $0x2c8] sm:$0xff]
    %v971 = vld [vmem:[#allocation13 + $0x2d0] sm:$0xff]
    %v972 = vld [vmem:[#allocation13 + $0x2d8] sm:$0xff]
    %v973 = vld [vmem:[#allocation13 + $0x2e0] sm:$0xff]
    %v974 = vld [vmem:[#allocation13 + $0x2e8] sm:$0xff]
    %v975 = vld [vmem:[#allocation13 + $0x2f0] sm:$0xff]
    %v976 = vld [vmem:[#allocation13 + $0x2f8] sm:$0xff]
    %v977 = vld [vmem:[#allocation13 + $0x300] sm:$0xff]
    %v978 = vld [vmem:[#allocation13 + $0x308] sm:$0xff]
    %v979 = vld [vmem:[#allocation13 + $0x310] sm:$0xff]
    %v980 = vld [vmem:[#allocation13 + $0x318] sm:$0xff]
    %v981 = vld [vmem:[#allocation13 + $0x320] sm:$0xff]
    %v982 = vld [vmem:[#allocation13 + $0x328] sm:$0xff]
    %v983 = vld [vmem:[#allocation13 + $0x330] sm:$0xff]
    %v984 = vld [vmem:[#allocation13 + $0x338] sm:$0xff]
    %v985 = vld [vmem:[#allocation13 + $0x340] sm:$0xff]
    %v986 = vld [vmem:[#allocation13 + $0x348] sm:$0xff]
    %v987 = vld [vmem:[#allocation13 + $0x350] sm:$0xff]
    %v988 = vld [vmem:[#allocation13 + $0x358] sm:$0xff]
    %v989 = vld [vmem:[#allocation13 + $0x360] sm:$0xff]
    %v990 = vld [vmem:[#allocation13 + $0x368] sm:$0xff]
    %v991 = vld [vmem:[#allocation13 + $0x370] sm:$0xff]
    %v992 = vld [vmem:[#allocation13 + $0x378] sm:$0xff]
    %v993 = vld [vmem:[#allocation13 + $0x380] sm:$0xff]
    %v994 = vld [vmem:[#allocation13 + $0x388] sm:$0xff]
    %v995 = vld [vmem:[#allocation13 + $0x390] sm:$0xff]
    %v996 = vld [vmem:[#allocation13 + $0x398] sm:$0xff]
    %v997 = vld [vmem:[#allocation13 + $0x3a0] sm:$0xff]
    %v998 = vld [vmem:[#allocation13 + $0x3a8] sm:$0xff]
    %v999 = vld [vmem:[#allocation13 + $0x3b0] sm:$0xff]
    %v1000 = vld [vmem:[#allocation13 + $0x3b8] sm:$0xff]
    %v1001 = vld [vmem:[#allocation13 + $0x3c0] sm:$0xff]
    %v1002 = vld [vmem:[#allocation13 + $0x3c8] sm:$0xff]
    %v1003 = vld [vmem:[#allocation13 + $0x3d0] sm:$0xff]
    %v1004 = vld [vmem:[#allocation13 + $0x3d8] sm:$0xff]
    %v1005 = vld [vmem:[#allocation13 + $0x3e0] sm:$0xff]
    %v1006 = vld [vmem:[#allocation13 + $0x3e8] sm:$0xff]
    %v1007 = vld [vmem:[#allocation13 + $0x3f0] sm:$0xff]
    %v1008 = vld [vmem:[#allocation13 + $0x3f8] sm:$0xff]
    %1009 = vmatprep.subr.mxu0 %v942
    %1010 = vmatpush1.msra.mxu0 %v941
    %1011 = vmatprep.subr.mxu0 %v938
    %1012 = vmatpush1.msra.mxu0 %v937
    %1013 = vmatprep.subr.mxu0 %v934
    %1014 = vmatpush1.msra.mxu0 %v933
    %1015 = vmatprep.subr.mxu0 %v930
    %1016 = vmatpush1.msra.mxu0 %v929
    %1017 = vmatprep.subr.mxu0 %v926
    %1018 = vmatpush1.msra.mxu0 %v925
    %1019 = vmatprep.subr.mxu0 %v922
    %1020 = vmatpush1.msra.mxu0 %v921
    %1021 = vmatprep.subr.mxu0 %v918
    %1022 = vmatpush1.msra.mxu0 %v917
    %1023 = vmatprep.subr.mxu0 %v914
    %1024 = vmatpush1.msra.mxu0 %v913
    %1025 = vmatprep.subr.mxu0 %v910
    %1026 = vmatpush1.msra.mxu0 %v909
    %1027 = vmatprep.subr.mxu0 %v906
    %1028 = vmatpush1.msra.mxu0 %v905
    %1029 = vmatprep.subr.mxu0 %v902
    %1030 = vmatpush1.msra.mxu0 %v901
    %1031 = vmatprep.subr.mxu0 %v898
    %1032 = vmatpush1.msra.mxu0 %v897
    %1033 = vmatprep.subr.mxu0 %v894
    %1034 = vmatpush1.msra.mxu0 %v893
    %1035 = vmatprep.subr.mxu0 %v890
    %1036 = vmatpush1.msra.mxu0 %v889
    %1037 = vmatprep.subr.mxu0 %v886
    %1038 = vmatpush1.msra.mxu0 %v885
    %1039 = vmatprep.subr.mxu0 %v882
    %1040 = vmatpush1.msra.mxu0 %v881
    %1041 = vmatprep.subr.mxu0 %v1006
    %1042 = vmatpush2.msra.mxu0 %v1005
    %1043 = vmatprep.subr.mxu0 %v1002
    %1044 = vmatpush2.msra.mxu0 %v1001
    %1045 = vmatprep.subr.mxu0 %v998
    %1046 = vmatpush2.msra.mxu0 %v997
    %1047 = vmatprep.subr.mxu0 %v994
    %1048 = vmatpush2.msra.mxu0 %v993
    %1049 = vmatprep.subr.mxu0 %v990
    %1050 = vmatpush2.msra.mxu0 %v989
    %1051 = vmatprep.subr.mxu0 %v986
    %1052 = vmatpush2.msra.mxu0 %v985
    %1053 = vmatprep.subr.mxu0 %v982
    %1054 = vmatpush2.msra.mxu0 %v981
    %1055 = vmatprep.subr.mxu0 %v978
    %1056 = vmatpush2.msra.mxu0 %v977
    %1057 = vmatprep.subr.mxu0 %v974
    %1058 = vmatpush2.msra.mxu0 %v973
    %1059 = vmatprep.subr.mxu0 %v970
    %1060 = vmatpush2.msra.mxu0 %v969
    %1061 = vmatprep.subr.mxu0 %v966
    %1062 = vmatpush2.msra.mxu0 %v965
    %1063 = vmatprep.subr.mxu0 %v962
    %1064 = vmatpush2.msra.mxu0 %v961
    %1065 = vmatprep.subr.mxu0 %v958
    %1066 = vmatpush2.msra.mxu0 %v957
    %1067 = vmatprep.subr.mxu0 %v954
    %1068 = vmatpush2.msra.mxu0 %v953
    %1069 = vmatprep.subr.mxu0 %v950
    %1070 = vmatpush2.msra.mxu0 %v949
    %1071 = vmatprep.subr.mxu0 %v946
    %1072 = vmatpush2.msra.mxu0 %v945
    %1073 = vmatprep.mubr.f32.mxu0 %v637
    %1074 = vmatmul.mubr.f32.gmra.mxu0 %v880
    %v1075 = vpop.f32.mrf.mxu0
    %v1076 = vadd.f32 %v617, %v1075
    %v1077 = vpop.f32.mrf.mxu0
    %v1078 = vadd.f32 %v621, %v1077
    %1079 = vdwg.mxu0
    %1080 = vmatprep.subr.mxu0 %v944
    %1081 = vmatpush1.msra.mxu0 %v943
    %1082 = vmatprep.subr.mxu0 %v940
    %1083 = vmatpush1.msra.mxu0 %v939
    %1084 = vmatprep.subr.mxu0 %v936
    %1085 = vmatpush1.msra.mxu0 %v935
    %1086 = vmatprep.subr.mxu0 %v932
    %1087 = vmatpush1.msra.mxu0 %v931
    %1088 = vmatprep.subr.mxu0 %v928
    %1089 = vmatpush1.msra.mxu0 %v927
    %1090 = vmatprep.subr.mxu0 %v924
    %1091 = vmatpush1.msra.mxu0 %v923
    %1092 = vmatprep.subr.mxu0 %v920
    %1093 = vmatpush1.msra.mxu0 %v919
    %1094 = vmatprep.subr.mxu0 %v916
    %1095 = vmatpush1.msra.mxu0 %v915
    %1096 = vmatprep.subr.mxu0 %v912
    %1097 = vmatpush1.msra.mxu0 %v911
    %1098 = vmatprep.subr.mxu0 %v908
    %1099 = vmatpush1.msra.mxu0 %v907
    %1100 = vmatprep.subr.mxu0 %v904
    %1101 = vmatpush1.msra.mxu0 %v903
    %1102 = vmatprep.subr.mxu0 %v900
    %1103 = vmatpush1.msra.mxu0 %v899
    %1104 = vmatprep.subr.mxu0 %v896
    %1105 = vmatpush1.msra.mxu0 %v895
    %1106 = vmatprep.subr.mxu0 %v892
    %1107 = vmatpush1.msra.mxu0 %v891
    %1108 = vmatprep.subr.mxu0 %v888
    %1109 = vmatpush1.msra.mxu0 %v887
    %1110 = vmatprep.subr.mxu0 %v884
    %1111 = vmatpush1.msra.mxu0 %v883
    %1112 = vmatprep.subr.mxu0 %v1008
    %1113 = vmatpush2.msra.mxu0 %v1007
    %1114 = vmatprep.subr.mxu0 %v1004
    %1115 = vmatpush2.msra.mxu0 %v1003
    %1116 = vmatprep.subr.mxu0 %v1000
    %1117 = vmatpush2.msra.mxu0 %v999
    %1118 = vmatprep.subr.mxu0 %v996
    %1119 = vmatpush2.msra.mxu0 %v995
    %1120 = vmatprep.subr.mxu0 %v992
    %1121 = vmatpush2.msra.mxu0 %v991
    %1122 = vmatprep.subr.mxu0 %v988
    %1123 = vmatpush2.msra.mxu0 %v987
    %1124 = vmatprep.subr.mxu0 %v984
    %1125 = vmatpush2.msra.mxu0 %v983
    %1126 = vmatprep.subr.mxu0 %v980
    %1127 = vmatpush2.msra.mxu0 %v979
    %1128 = vmatprep.subr.mxu0 %v976
    %1129 = vmatpush2.msra.mxu0 %v975
    %1130 = vmatprep.subr.mxu0 %v972
    %1131 = vmatpush2.msra.mxu0 %v971
    %1132 = vmatprep.subr.mxu0 %v968
    %1133 = vmatpush2.msra.mxu0 %v967
    %1134 = vmatprep.subr.mxu0 %v964
    %1135 = vmatpush2.msra.mxu0 %v963
    %1136 = vmatprep.subr.mxu0 %v960
    %1137 = vmatpush2.msra.mxu0 %v959
    %1138 = vmatprep.subr.mxu0 %v956
    %1139 = vmatpush2.msra.mxu0 %v955
    %1140 = vmatprep.subr.mxu0 %v952
    %1141 = vmatpush2.msra.mxu0 %v951
    %1142 = vmatprep.subr.mxu0 %v948
    %1143 = vmatpush2.msra.mxu0 %v947
    %1144 = vmatprep.mubr.f32.mxu0 %v637
    %1145 = vmatmul.mubr.f32.gmra.mxu0 %v880
    %v1146 = vpop.f32.mrf.mxu0
    %v1147 = vadd.f32 %v625, %v1146
    %v1148 = vpop.f32.mrf.mxu0
    %v1149 = vadd.f32 %v629, %v1148
    %1150 = vdwg.mxu0
    %v1151 = vxor.u32 %v1076, 2147483648
    %v1152 = vmul.f32 %v1151, 1.442695
    %v1153 = vpow.pop %v1152
    %v1154 = vadd.f32 %v1153, 1.0
    %v1155 = vrcp.pop %v1154
    %v1156 = vmul.f32 1.0, %v1155
    %v1157 = vxor.u32 %v1078, 2147483648
    %v1158 = vmul.f32 %v1157, 1.442695
    %v1159 = vpow.pop %v1158
    %v1160 = vadd.f32 %v1159, 1.0
    %v1161 = vrcp.pop %v1160
    %v1162 = vmul.f32 1.0, %v1161
    %v1163 = vtanh.pop %v1147
    %v1164 = vxor.u32 %v1149, 2147483648
    %v1165 = vmul.f32 %v1164, 1.442695
    %v1166 = vpow.pop %v1165
    %v1167 = vadd.f32 %v1166, 1.0
    %v1168 = vrcp.pop %v1167
    %v1169 = vmul.f32 1.0, %v1168
    %v1170 = vmul.f32 %v1162, %v639
    %v1171 = vmul.f32 %v1156, %v1163
    %v1172 = vadd.f32 %v1170, %v1171
    %v1173 = vtanh.pop %v1172
    %v1174 = vmul.f32 %v1169, %v1173
    %s1175 = smul.u32 1, 4
    %s1176 = smul.addr %s1175, 8
    %s1177 = scalar_lea.vmem [#allocation2], %s1176
    %v1178 = vld [vmem:[%s1177] sm:$0xff]
    %v1179 = vld [vmem:[%s1177 + $0x8] sm:$0xff]
    %v1180 = vld [vmem:[%s1177 + $0x10] sm:$0xff]
    %v1181 = vld [vmem:[%s1177 + $0x18] sm:$0xff]
    %1182 = vmatprep.subr.mxu0 %v708
    %1183 = vmatpush1.msra.mxu0 %v707
    %1184 = vmatprep.subr.mxu0 %v704
    %1185 = vmatpush1.msra.mxu0 %v703
    %1186 = vmatprep.subr.mxu0 %v700
    %1187 = vmatpush1.msra.mxu0 %v699
    %1188 = vmatprep.subr.mxu0 %v696
    %1189 = vmatpush1.msra.mxu0 %v695
    %1190 = vmatprep.subr.mxu0 %v692
    %1191 = vmatpush1.msra.mxu0 %v691
    %1192 = vmatprep.subr.mxu0 %v688
    %1193 = vmatpush1.msra.mxu0 %v687
    %1194 = vmatprep.subr.mxu0 %v684
    %1195 = vmatpush1.msra.mxu0 %v683
    %1196 = vmatprep.subr.mxu0 %v680
    %1197 = vmatpush1.msra.mxu0 %v679
    %1198 = vmatprep.subr.mxu0 %v676
    %1199 = vmatpush1.msra.mxu0 %v675
    %1200 = vmatprep.subr.mxu0 %v672
    %1201 = vmatpush1.msra.mxu0 %v671
    %1202 = vmatprep.subr.mxu0 %v668
    %1203 = vmatpush1.msra.mxu0 %v667
    %1204 = vmatprep.subr.mxu0 %v664
    %1205 = vmatpush1.msra.mxu0 %v663
    %1206 = vmatprep.subr.mxu0 %v660
    %1207 = vmatpush1.msra.mxu0 %v659
    %1208 = vmatprep.subr.mxu0 %v656
    %1209 = vmatpush1.msra.mxu0 %v655
    %1210 = vmatprep.subr.mxu0 %v652
    %1211 = vmatpush1.msra.mxu0 %v651
    %1212 = vmatprep.subr.mxu0 %v648
    %1213 = vmatpush1.msra.mxu0 %v647
    %1214 = vmatprep.subr.mxu0 0.0
    %1215 = vmatpush2.msra.mxu0 0.0
    %1216 = vmatprep.subr.mxu0 0.0
    %1217 = vmatpush2.msra.mxu0 0.0
    %1218 = vmatprep.subr.mxu0 0.0
    %1219 = vmatpush2.msra.mxu0 0.0
    %1220 = vmatprep.subr.mxu0 0.0
    %1221 = vmatpush2.msra.mxu0 0.0
    %1222 = vmatprep.subr.mxu0 0.0
    %1223 = vmatpush2.msra.mxu0 0.0
    %1224 = vmatprep.subr.mxu0 0.0
    %1225 = vmatpush2.msra.mxu0 0.0
    %1226 = vmatprep.subr.mxu0 0.0
    %1227 = vmatpush2.msra.mxu0 0.0
    %1228 = vmatprep.subr.mxu0 0.0
    %1229 = vmatpush2.msra.mxu0 0.0
    %1230 = vmatprep.subr.mxu0 0.0
    %1231 = vmatpush2.msra.mxu0 0.0
    %1232 = vmatprep.subr.mxu0 0.0
    %1233 = vmatpush2.msra.mxu0 0.0
    %1234 = vmatprep.subr.mxu0 0.0
    %1235 = vmatpush2.msra.mxu0 0.0
    %1236 = vmatprep.subr.mxu0 0.0
    %1237 = vmatpush2.msra.mxu0 0.0
    %1238 = vmatprep.subr.mxu0 0.0
    %1239 = vmatpush2.msra.mxu0 0.0
    %1240 = vmatprep.subr.mxu0 0.0
    %1241 = vmatpush2.msra.mxu0 0.0
    %1242 = vmatprep.subr.mxu0 0.0
    %1243 = vmatpush2.msra.mxu0 0.0
    %1244 = vmatprep.subr.mxu0 0.0
    %1245 = vmatpush2.msra.mxu0 0.0
    %1246 = vmatprep.mubr.f32.mxu0 0.0
    %1247 = vmatmul.mubr.f32.gmra.mxu0 %v880
    %v1248 = vpop.f32.mrf.mxu0
    %v1249 = vadd.f32 0.0, %v1248
    %v1250 = vpop.f32.mrf.mxu0
    %v1251 = vadd.f32 0.0, %v1250
    %1252 = vdwg.mxu0
    %1253 = vmatprep.subr.mxu0 %v710
    %1254 = vmatpush1.msra.mxu0 %v709
    %1255 = vmatprep.subr.mxu0 %v706
    %1256 = vmatpush1.msra.mxu0 %v705
    %1257 = vmatprep.subr.mxu0 %v702
    %1258 = vmatpush1.msra.mxu0 %v701
    %1259 = vmatprep.subr.mxu0 %v698
    %1260 = vmatpush1.msra.mxu0 %v697
    %1261 = vmatprep.subr.mxu0 %v694
    %1262 = vmatpush1.msra.mxu0 %v693
    %1263 = vmatprep.subr.mxu0 %v690
    %1264 = vmatpush1.msra.mxu0 %v689
    %1265 = vmatprep.subr.mxu0 %v686
    %1266 = vmatpush1.msra.mxu0 %v685
    %1267 = vmatprep.subr.mxu0 %v682
    %1268 = vmatpush1.msra.mxu0 %v681
    %1269 = vmatprep.subr.mxu0 %v678
    %1270 = vmatpush1.msra.mxu0 %v677
    %1271 = vmatprep.subr.mxu0 %v674
    %1272 = vmatpush1.msra.mxu0 %v673
    %1273 = vmatprep.subr.mxu0 %v670
    %1274 = vmatpush1.msra.mxu0 %v669
    %1275 = vmatprep.subr.mxu0 %v666
    %1276 = vmatpush1.msra.mxu0 %v665
    %1277 = vmatprep.subr.mxu0 %v662
    %1278 = vmatpush1.msra.mxu0 %v661
    %1279 = vmatprep.subr.mxu0 %v658
    %1280 = vmatpush1.msra.mxu0 %v657
    %1281 = vmatprep.subr.mxu0 %v654
    %1282 = vmatpush1.msra.mxu0 %v653
    %1283 = vmatprep.subr.mxu0 %v650
    %1284 = vmatpush1.msra.mxu0 %v649
    %1285 = vmatprep.subr.mxu0 0.0
    %1286 = vmatpush2.msra.mxu0 0.0
    %1287 = vmatprep.subr.mxu0 0.0
    %1288 = vmatpush2.msra.mxu0 0.0
    %1289 = vmatprep.subr.mxu0 0.0
    %1290 = vmatpush2.msra.mxu0 0.0
    %1291 = vmatprep.subr.mxu0 0.0
    %1292 = vmatpush2.msra.mxu0 0.0
    %1293 = vmatprep.subr.mxu0 0.0
    %1294 = vmatpush2.msra.mxu0 0.0
    %1295 = vmatprep.subr.mxu0 0.0
    %1296 = vmatpush2.msra.mxu0 0.0
    %1297 = vmatprep.subr.mxu0 0.0
    %1298 = vmatpush2.msra.mxu0 0.0
    %1299 = vmatprep.subr.mxu0 0.0
    %1300 = vmatpush2.msra.mxu0 0.0
    %1301 = vmatprep.subr.mxu0 0.0
    %1302 = vmatpush2.msra.mxu0 0.0
    %1303 = vmatprep.subr.mxu0 0.0
    %1304 = vmatpush2.msra.mxu0 0.0
    %1305 = vmatprep.subr.mxu0 0.0
    %1306 = vmatpush2.msra.mxu0 0.0
    %1307 = vmatprep.subr.mxu0 0.0
    %1308 = vmatpush2.msra.mxu0 0.0
    %1309 = vmatprep.subr.mxu0 0.0
    %1310 = vmatpush2.msra.mxu0 0.0
    %1311 = vmatprep.subr.mxu0 0.0
    %1312 = vmatpush2.msra.mxu0 0.0
    %1313 = vmatprep.subr.mxu0 0.0
    %1314 = vmatpush2.msra.mxu0 0.0
    %1315 = vmatprep.subr.mxu0 0.0
    %1316 = vmatpush2.msra.mxu0 0.0
    %1317 = vmatprep.mubr.f32.mxu0 0.0
    %1318 = vmatmul.mubr.f32.gmra.mxu0 %v880
    %v1319 = vpop.f32.mrf.mxu0
    %v1320 = vadd.f32 0.0, %v1319
    %v1321 = vpop.f32.mrf.mxu0
    %v1322 = vadd.f32 0.0, %v1321
    %1323 = vdwg.mxu0
    %v1324 = vadd.f32 %v1178, %v1249
    %v1325 = vadd.f32 %v1179, %v1251
    %v1326 = vadd.f32 %v1180, %v1320
    %v1327 = vadd.f32 %v1181, %v1322
    %v1328 = vxor.u32 %v1324, 2147483648
    %v1329 = vmul.f32 %v1328, 1.442695
    %v1330 = vpow.pop %v1329
    %v1331 = vadd.f32 %v1330, 1.0
    %v1332 = vrcp.pop %v1331
    %v1333 = vmul.f32 1.0, %v1332
    %v1334 = vxor.u32 %v1325, 2147483648
    %v1335 = vmul.f32 %v1334, 1.442695
    %v1336 = vpow.pop %v1335
    %v1337 = vadd.f32 %v1336, 1.0
    %v1338 = vrcp.pop %v1337
    %v1339 = vmul.f32 1.0, %v1338
    %v1340 = vtanh.pop %v1326
    %v1341 = vxor.u32 %v1327, 2147483648
    %v1342 = vmul.f32 %v1341, 1.442695
    %v1343 = vpow.pop %v1342
    %v1344 = vadd.f32 %v1343, 1.0
    %v1345 = vrcp.pop %v1344
    %v1346 = vmul.f32 1.0, %v1345
    %v1347 = vmul.f32 %v1339, %v878
    %v1348 = vmul.f32 %v1333, %v1340
    %v1349 = vadd.f32 %v1347, %v1348
    %v1350 = vtanh.pop %v1349
    %v1351 = vmul.f32 %v1346, %v1350
    %1352 = vmatprep.subr.mxu0 %v942
    %1353 = vmatpush1.msra.mxu0 %v941
    %1354 = vmatprep.subr.mxu0 %v938
    %1355 = vmatpush1.msra.mxu0 %v937
    %1356 = vmatprep.subr.mxu0 %v934
    %1357 = vmatpush1.msra.mxu0 %v933
    %1358 = vmatprep.subr.mxu0 %v930
    %1359 = vmatpush1.msra.mxu0 %v929
    %1360 = vmatprep.subr.mxu0 %v926
    %1361 = vmatpush1.msra.mxu0 %v925
    %1362 = vmatprep.subr.mxu0 %v922
    %1363 = vmatpush1.msra.mxu0 %v921
    %1364 = vmatprep.subr.mxu0 %v918
    %1365 = vmatpush1.msra.mxu0 %v917
    %1366 = vmatprep.subr.mxu0 %v914
    %1367 = vmatpush1.msra.mxu0 %v913
    %1368 = vmatprep.subr.mxu0 %v910
    %1369 = vmatpush1.msra.mxu0 %v909
    %1370 = vmatprep.subr.mxu0 %v906
    %1371 = vmatpush1.msra.mxu0 %v905
    %1372 = vmatprep.subr.mxu0 %v902
    %1373 = vmatpush1.msra.mxu0 %v901
    %1374 = vmatprep.subr.mxu0 %v898
    %1375 = vmatpush1.msra.mxu0 %v897
    %1376 = vmatprep.subr.mxu0 %v894
    %1377 = vmatpush1.msra.mxu0 %v893
    %1378 = vmatprep.subr.mxu0 %v890
    %1379 = vmatpush1.msra.mxu0 %v889
    %1380 = vmatprep.subr.mxu0 %v886
    %1381 = vmatpush1.msra.mxu0 %v885
    %1382 = vmatprep.subr.mxu0 %v882
    %1383 = vmatpush1.msra.mxu0 %v881
    %1384 = vmatprep.subr.mxu0 %v1006
    %1385 = vmatpush2.msra.mxu0 %v1005
    %1386 = vmatprep.subr.mxu0 %v1002
    %1387 = vmatpush2.msra.mxu0 %v1001
    %1388 = vmatprep.subr.mxu0 %v998
    %1389 = vmatpush2.msra.mxu0 %v997
    %1390 = vmatprep.subr.mxu0 %v994
    %1391 = vmatpush2.msra.mxu0 %v993
    %1392 = vmatprep.subr.mxu0 %v990
    %1393 = vmatpush2.msra.mxu0 %v989
    %1394 = vmatprep.subr.mxu0 %v986
    %1395 = vmatpush2.msra.mxu0 %v985
    %1396 = vmatprep.subr.mxu0 %v982
    %1397 = vmatpush2.msra.mxu0 %v981
    %1398 = vmatprep.subr.mxu0 %v978
    %1399 = vmatpush2.msra.mxu0 %v977
    %1400 = vmatprep.subr.mxu0 %v974
    %1401 = vmatpush2.msra.mxu0 %v973
    %1402 = vmatprep.subr.mxu0 %v970
    %1403 = vmatpush2.msra.mxu0 %v969
    %1404 = vmatprep.subr.mxu0 %v966
    %1405 = vmatpush2.msra.mxu0 %v965
    %1406 = vmatprep.subr.mxu0 %v962
    %1407 = vmatpush2.msra.mxu0 %v961
    %1408 = vmatprep.subr.mxu0 %v958
    %1409 = vmatpush2.msra.mxu0 %v957
    %1410 = vmatprep.subr.mxu0 %v954
    %1411 = vmatpush2.msra.mxu0 %v953
    %1412 = vmatprep.subr.mxu0 %v950
    %1413 = vmatpush2.msra.mxu0 %v949
    %1414 = vmatprep.subr.mxu0 %v946
    %1415 = vmatpush2.msra.mxu0 %v945
    %1416 = vmatprep.mubr.f32.mxu0 %v1174
    %1417 = vmatmul.mubr.f32.gmra.mxu0 %v1351
    %v1418 = vpop.f32.mrf.mxu0
    %v1419 = vadd.f32 %v617, %v1418
    %v1420 = vpop.f32.mrf.mxu0
    %v1421 = vadd.f32 %v621, %v1420
    %1422 = vdwg.mxu0
    %1423 = vmatprep.subr.mxu0 %v944
    %1424 = vmatpush1.msra.mxu0 %v943
    %1425 = vmatprep.subr.mxu0 %v940
    %1426 = vmatpush1.msra.mxu0 %v939
    %1427 = vmatprep.subr.mxu0 %v936
    %1428 = vmatpush1.msra.mxu0 %v935
    %1429 = vmatprep.subr.mxu0 %v932
    %1430 = vmatpush1.msra.mxu0 %v931
    %1431 = vmatprep.subr.mxu0 %v928
    %1432 = vmatpush1.msra.mxu0 %v927
    %1433 = vmatprep.subr.mxu0 %v924
    %1434 = vmatpush1.msra.mxu0 %v923
    %1435 = vmatprep.subr.mxu0 %v920
    %1436 = vmatpush1.msra.mxu0 %v919
    %1437 = vmatprep.subr.mxu0 %v916
    %1438 = vmatpush1.msra.mxu0 %v915
    %1439 = vmatprep.subr.mxu0 %v912
    %1440 = vmatpush1.msra.mxu0 %v911
    %1441 = vmatprep.subr.mxu0 %v908
    %1442 = vmatpush1.msra.mxu0 %v907
    %1443 = vmatprep.subr.mxu0 %v904
    %1444 = vmatpush1.msra.mxu0 %v903
    %1445 = vmatprep.subr.mxu0 %v900
    %1446 = vmatpush1.msra.mxu0 %v899
    %1447 = vmatprep.subr.mxu0 %v896
    %1448 = vmatpush1.msra.mxu0 %v895
    %1449 = vmatprep.subr.mxu0 %v892
    %1450 = vmatpush1.msra.mxu0 %v891
    %1451 = vmatprep.subr.mxu0 %v888
    %1452 = vmatpush1.msra.mxu0 %v887
    %1453 = vmatprep.subr.mxu0 %v884
    %1454 = vmatpush1.msra.mxu0 %v883
    %1455 = vmatprep.subr.mxu0 %v1008
    %1456 = vmatpush2.msra.mxu0 %v1007
    %1457 = vmatprep.subr.mxu0 %v1004
    %1458 = vmatpush2.msra.mxu0 %v1003
    %1459 = vmatprep.subr.mxu0 %v1000
    %1460 = vmatpush2.msra.mxu0 %v999
    %1461 = vmatprep.subr.mxu0 %v996
    %1462 = vmatpush2.msra.mxu0 %v995
    %1463 = vmatprep.subr.mxu0 %v992
    %1464 = vmatpush2.msra.mxu0 %v991
    %1465 = vmatprep.subr.mxu0 %v988
    %1466 = vmatpush2.msra.mxu0 %v987
    %1467 = vmatprep.subr.mxu0 %v984
    %1468 = vmatpush2.msra.mxu0 %v983
    %1469 = vmatprep.subr.mxu0 %v980
    %1470 = vmatpush2.msra.mxu0 %v979
    %1471 = vmatprep.subr.mxu0 %v976
    %1472 = vmatpush2.msra.mxu0 %v975
    %1473 = vmatprep.subr.mxu0 %v972
    %1474 = vmatpush2.msra.mxu0 %v971
    %1475 = vmatprep.subr.mxu0 %v968
    %1476 = vmatpush2.msra.mxu0 %v967
    %1477 = vmatprep.subr.mxu0 %v964
    %1478 = vmatpush2.msra.mxu0 %v963
    %1479 = vmatprep.subr.mxu0 %v960
    %1480 = vmatpush2.msra.mxu0 %v959
    %1481 = vmatprep.subr.mxu0 %v956
    %1482 = vmatpush2.msra.mxu0 %v955
    %1483 = vmatprep.subr.mxu0 %v952
    %1484 = vmatpush2.msra.mxu0 %v951
    %1485 = vmatprep.subr.mxu0 %v948
    %1486 = vmatpush2.msra.mxu0 %v947
    %1487 = vmatprep.mubr.f32.mxu0 %v1174
    %1488 = vmatmul.mubr.f32.gmra.mxu0 %v1351
    %v1489 = vpop.f32.mrf.mxu0
    %v1490 = vadd.f32 %v625, %v1489
    %v1491 = vpop.f32.mrf.mxu0
    %v1492 = vadd.f32 %v629, %v1491
    %1493 = vdwg.mxu0
    %v1494 = vxor.u32 %v1419, 2147483648
    %v1495 = vmul.f32 %v1494, 1.442695
    %v1496 = vpow.pop %v1495
    %v1497 = vadd.f32 %v1496, 1.0
    %v1498 = vrcp.pop %v1497
    %v1499 = vmul.f32 1.0, %v1498
    %v1500 = vxor.u32 %v1421, 2147483648
    %v1501 = vmul.f32 %v1500, 1.442695
    %v1502 = vpow.pop %v1501
    %v1503 = vadd.f32 %v1502, 1.0
    %v1504 = vrcp.pop %v1503
    %v1505 = vmul.f32 1.0, %v1504
    %v1506 = vtanh.pop %v1490
    %v1507 = vxor.u32 %v1492, 2147483648
    %v1508 = vmul.f32 %v1507, 1.442695
    %v1509 = vpow.pop %v1508
    %v1510 = vadd.f32 %v1509, 1.0
    %v1511 = vrcp.pop %v1510
    %v1512 = vmul.f32 1.0, %v1511
    %v1513 = vmul.f32 %v1505, %v1172
    %v1514 = vmul.f32 %v1499, %v1506
    %v1515 = vadd.f32 %v1513, %v1514
    %v1516 = vtanh.pop %v1515
    %v1517 = vmul.f32 %v1512, %v1516
    %s1518 = smul.u32 2, 4
    %s1519 = smul.addr %s1518, 8
    %s1520 = scalar_lea.vmem [#allocation2], %s1519
    %v1521 = vld [vmem:[%s1520] sm:$0xff]
    %v1522 = vld [vmem:[%s1520 + $0x8] sm:$0xff]
    %v1523 = vld [vmem:[%s1520 + $0x10] sm:$0xff]
    %v1524 = vld [vmem:[%s1520 + $0x18] sm:$0xff]
    %1525 = vmatprep.subr.mxu0 %v708
    %1526 = vmatpush1.msra.mxu0 %v707
    %1527 = vmatprep.subr.mxu0 %v704
    %1528 = vmatpush1.msra.mxu0 %v703
    %1529 = vmatprep.subr.mxu0 %v700
    %1530 = vmatpush1.msra.mxu0 %v699
    %1531 = vmatprep.subr.mxu0 %v696
    %1532 = vmatpush1.msra.mxu0 %v695
    %1533 = vmatprep.subr.mxu0 %v692
    %1534 = vmatpush1.msra.mxu0 %v691
    %1535 = vmatprep.subr.mxu0 %v688
    %1536 = vmatpush1.msra.mxu0 %v687
    %1537 = vmatprep.subr.mxu0 %v684
    %1538 = vmatpush1.msra.mxu0 %v683
    %1539 = vmatprep.subr.mxu0 %v680
    %1540 = vmatpush1.msra.mxu0 %v679
    %1541 = vmatprep.subr.mxu0 %v676
    %1542 = vmatpush1.msra.mxu0 %v675
    %1543 = vmatprep.subr.mxu0 %v672
    %1544 = vmatpush1.msra.mxu0 %v671
    %1545 = vmatprep.subr.mxu0 %v668
    %1546 = vmatpush1.msra.mxu0 %v667
    %1547 = vmatprep.subr.mxu0 %v664
    %1548 = vmatpush1.msra.mxu0 %v663
    %1549 = vmatprep.subr.mxu0 %v660
    %1550 = vmatpush1.msra.mxu0 %v659
    %1551 = vmatprep.subr.mxu0 %v656
    %1552 = vmatpush1.msra.mxu0 %v655
    %1553 = vmatprep.subr.mxu0 %v652
    %1554 = vmatpush1.msra.mxu0 %v651
    %1555 = vmatprep.subr.mxu0 %v648
    %1556 = vmatpush1.msra.mxu0 %v647
    %1557 = vmatprep.subr.mxu0 0.0
    %1558 = vmatpush2.msra.mxu0 0.0
    %1559 = vmatprep.subr.mxu0 0.0
    %1560 = vmatpush2.msra.mxu0 0.0
    %1561 = vmatprep.subr.mxu0 0.0
    %1562 = vmatpush2.msra.mxu0 0.0
    %1563 = vmatprep.subr.mxu0 0.0
    %1564 = vmatpush2.msra.mxu0 0.0
    %1565 = vmatprep.subr.mxu0 0.0
    %1566 = vmatpush2.msra.mxu0 0.0
    %1567 = vmatprep.subr.mxu0 0.0
    %1568 = vmatpush2.msra.mxu0 0.0
    %1569 = vmatprep.subr.mxu0 0.0
    %1570 = vmatpush2.msra.mxu0 0.0
    %1571 = vmatprep.subr.mxu0 0.0
    %1572 = vmatpush2.msra.mxu0 0.0
    %1573 = vmatprep.subr.mxu0 0.0
    %1574 = vmatpush2.msra.mxu0 0.0
    %1575 = vmatprep.subr.mxu0 0.0
    %1576 = vmatpush2.msra.mxu0 0.0
    %1577 = vmatprep.subr.mxu0 0.0
    %1578 = vmatpush2.msra.mxu0 0.0
    %1579 = vmatprep.subr.mxu0 0.0
    %1580 = vmatpush2.msra.mxu0 0.0
    %1581 = vmatprep.subr.mxu0 0.0
    %1582 = vmatpush2.msra.mxu0 0.0
    %1583 = vmatprep.subr.mxu0 0.0
    %1584 = vmatpush2.msra.mxu0 0.0
    %1585 = vmatprep.subr.mxu0 0.0
    %1586 = vmatpush2.msra.mxu0 0.0
    %1587 = vmatprep.subr.mxu0 0.0
    %1588 = vmatpush2.msra.mxu0 0.0
    %1589 = vmatprep.mubr.f32.mxu0 0.0
    %1590 = vmatmul.mubr.f32.gmra.mxu0 %v1351
    %v1591 = vpop.f32.mrf.mxu0
    %v1592 = vadd.f32 0.0, %v1591
    %v1593 = vpop.f32.mrf.mxu0
    %v1594 = vadd.f32 0.0, %v1593
    %1595 = vdwg.mxu0
    %1596 = vmatprep.subr.mxu0 %v710
    %1597 = vmatpush1.msra.mxu0 %v709
    %1598 = vmatprep.subr.mxu0 %v706
    %1599 = vmatpush1.msra.mxu0 %v705
    %1600 = vmatprep.subr.mxu0 %v702
    %1601 = vmatpush1.msra.mxu0 %v701
    %1602 = vmatprep.subr.mxu0 %v698
    %1603 = vmatpush1.msra.mxu0 %v697
    %1604 = vmatprep.subr.mxu0 %v694
    %1605 = vmatpush1.msra.mxu0 %v693
    %1606 = vmatprep.subr.mxu0 %v690
    %1607 = vmatpush1.msra.mxu0 %v689
    %1608 = vmatprep.subr.mxu0 %v686
    %1609 = vmatpush1.msra.mxu0 %v685
    %1610 = vmatprep.subr.mxu0 %v682
    %1611 = vmatpush1.msra.mxu0 %v681
    %1612 = vmatprep.subr.mxu0 %v678
    %1613 = vmatpush1.msra.mxu0 %v677
    %1614 = vmatprep.subr.mxu0 %v674
    %1615 = vmatpush1.msra.mxu0 %v673
    %1616 = vmatprep.subr.mxu0 %v670
    %1617 = vmatpush1.msra.mxu0 %v669
    %1618 = vmatprep.subr.mxu0 %v666
    %1619 = vmatpush1.msra.mxu0 %v665
    %1620 = vmatprep.subr.mxu0 %v662
    %1621 = vmatpush1.msra.mxu0 %v661
    %1622 = vmatprep.subr.mxu0 %v658
    %1623 = vmatpush1.msra.mxu0 %v657
    %1624 = vmatprep.subr.mxu0 %v654
    %1625 = vmatpush1.msra.mxu0 %v653
    %1626 = vmatprep.subr.mxu0 %v650
    %1627 = vmatpush1.msra.mxu0 %v649
    %1628 = vmatprep.subr.mxu0 0.0
    %1629 = vmatpush2.msra.mxu0 0.0
    %1630 = vmatprep.subr.mxu0 0.0
    %1631 = vmatpush2.msra.mxu0 0.0
    %1632 = vmatprep.subr.mxu0 0.0
    %1633 = vmatpush2.msra.mxu0 0.0
    %1634 = vmatprep.subr.mxu0 0.0
    %1635 = vmatpush2.msra.mxu0 0.0
    %1636 = vmatprep.subr.mxu0 0.0
    %1637 = vmatpush2.msra.mxu0 0.0
    %1638 = vmatprep.subr.mxu0 0.0
    %1639 = vmatpush2.msra.mxu0 0.0
    %1640 = vmatprep.subr.mxu0 0.0
    %1641 = vmatpush2.msra.mxu0 0.0
    %1642 = vmatprep.subr.mxu0 0.0
    %1643 = vmatpush2.msra.mxu0 0.0
    %1644 = vmatprep.subr.mxu0 0.0
    %1645 = vmatpush2.msra.mxu0 0.0
    %1646 = vmatprep.subr.mxu0 0.0
    %1647 = vmatpush2.msra.mxu0 0.0
    %1648 = vmatprep.subr.mxu0 0.0
    %1649 = vmatpush2.msra.mxu0 0.0
    %1650 = vmatprep.subr.mxu0 0.0
    %1651 = vmatpush2.msra.mxu0 0.0
    %1652 = vmatprep.subr.mxu0 0.0
    %1653 = vmatpush2.msra.mxu0 0.0
    %1654 = vmatprep.subr.mxu0 0.0
    %1655 = vmatpush2.msra.mxu0 0.0
    %1656 = vmatprep.subr.mxu0 0.0
    %1657 = vmatpush2.msra.mxu0 0.0
    %1658 = vmatprep.subr.mxu0 0.0
    %1659 = vmatpush2.msra.mxu0 0.0
    %1660 = vmatprep.mubr.f32.mxu0 0.0
    %1661 = vmatmul.mubr.f32.gmra.mxu0 %v1351
    %v1662 = vpop.f32.mrf.mxu0
    %v1663 = vadd.f32 0.0, %v1662
    %v1664 = vpop.f32.mrf.mxu0
    %v1665 = vadd.f32 0.0, %v1664
    %1666 = vdwg.mxu0
    %v1667 = vadd.f32 %v1521, %v1592
    %v1668 = vadd.f32 %v1522, %v1594
    %v1669 = vadd.f32 %v1523, %v1663
    %v1670 = vadd.f32 %v1524, %v1665
    %v1671 = vxor.u32 %v1667, 2147483648
    %v1672 = vmul.f32 %v1671, 1.442695
    %v1673 = vpow.pop %v1672
    %v1674 = vadd.f32 %v1673, 1.0
    %v1675 = vrcp.pop %v1674
    %v1676 = vmul.f32 1.0, %v1675
    %v1677 = vxor.u32 %v1668, 2147483648
    %v1678 = vmul.f32 %v1677, 1.442695
    %v1679 = vpow.pop %v1678
    %v1680 = vadd.f32 %v1679, 1.0
    %v1681 = vrcp.pop %v1680
    %v1682 = vmul.f32 1.0, %v1681
    %v1683 = vtanh.pop %v1669
    %v1684 = vxor.u32 %v1670, 2147483648
    %v1685 = vmul.f32 %v1684, 1.442695
    %v1686 = vpow.pop %v1685
    %v1687 = vadd.f32 %v1686, 1.0
    %v1688 = vrcp.pop %v1687
    %v1689 = vmul.f32 1.0, %v1688
    %v1690 = vmul.f32 %v1682, %v1349
    %v1691 = vmul.f32 %v1676, %v1683
    %v1692 = vadd.f32 %v1690, %v1691
    %v1693 = vtanh.pop %v1692
    %v1694 = vmul.f32 %v1689, %v1693
    %1695 = vmatprep.subr.mxu0 %v942
    %1696 = vmatpush1.msra.mxu0 %v941
    %1697 = vmatprep.subr.mxu0 %v938
    %1698 = vmatpush1.msra.mxu0 %v937
    %1699 = vmatprep.subr.mxu0 %v934
    %1700 = vmatpush1.msra.mxu0 %v933
    %1701 = vmatprep.subr.mxu0 %v930
    %1702 = vmatpush1.msra.mxu0 %v929
    %1703 = vmatprep.subr.mxu0 %v926
    %1704 = vmatpush1.msra.mxu0 %v925
    %1705 = vmatprep.subr.mxu0 %v922
    %1706 = vmatpush1.msra.mxu0 %v921
    %1707 = vmatprep.subr.mxu0 %v918
    %1708 = vmatpush1.msra.mxu0 %v917
    %1709 = vmatprep.subr.mxu0 %v914
    %1710 = vmatpush1.msra.mxu0 %v913
    %1711 = vmatprep.subr.mxu0 %v910
    %1712 = vmatpush1.msra.mxu0 %v909
    %1713 = vmatprep.subr.mxu0 %v906
    %1714 = vmatpush1.msra.mxu0 %v905
    %1715 = vmatprep.subr.mxu0 %v902
    %1716 = vmatpush1.msra.mxu0 %v901
    %1717 = vmatprep.subr.mxu0 %v898
    %1718 = vmatpush1.msra.mxu0 %v897
    %1719 = vmatprep.subr.mxu0 %v894
    %1720 = vmatpush1.msra.mxu0 %v893
    %1721 = vmatprep.subr.mxu0 %v890
    %1722 = vmatpush1.msra.mxu0 %v889
    %1723 = vmatprep.subr.mxu0 %v886
    %1724 = vmatpush1.msra.mxu0 %v885
    %1725 = vmatprep.subr.mxu0 %v882
    %1726 = vmatpush1.msra.mxu0 %v881
    %1727 = vmatprep.subr.mxu0 %v1006
    %1728 = vmatpush2.msra.mxu0 %v1005
    %1729 = vmatprep.subr.mxu0 %v1002
    %1730 = vmatpush2.msra.mxu0 %v1001
    %1731 = vmatprep.subr.mxu0 %v998
    %1732 = vmatpush2.msra.mxu0 %v997
    %1733 = vmatprep.subr.mxu0 %v994
    %1734 = vmatpush2.msra.mxu0 %v993
    %1735 = vmatprep.subr.mxu0 %v990
    %1736 = vmatpush2.msra.mxu0 %v989
    %1737 = vmatprep.subr.mxu0 %v986
    %1738 = vmatpush2.msra.mxu0 %v985
    %1739 = vmatprep.subr.mxu0 %v982
    %1740 = vmatpush2.msra.mxu0 %v981
    %1741 = vmatprep.subr.mxu0 %v978
    %1742 = vmatpush2.msra.mxu0 %v977
    %1743 = vmatprep.subr.mxu0 %v974
    %1744 = vmatpush2.msra.mxu0 %v973
    %1745 = vmatprep.subr.mxu0 %v970
    %1746 = vmatpush2.msra.mxu0 %v969
    %1747 = vmatprep.subr.mxu0 %v966
    %1748 = vmatpush2.msra.mxu0 %v965
    %1749 = vmatprep.subr.mxu0 %v962
    %1750 = vmatpush2.msra.mxu0 %v961
    %1751 = vmatprep.subr.mxu0 %v958
    %1752 = vmatpush2.msra.mxu0 %v957
    %1753 = vmatprep.subr.mxu0 %v954
    %1754 = vmatpush2.msra.mxu0 %v953
    %1755 = vmatprep.subr.mxu0 %v950
    %1756 = vmatpush2.msra.mxu0 %v949
    %1757 = vmatprep.subr.mxu0 %v946
    %1758 = vmatpush2.msra.mxu0 %v945
    %1759 = vmatprep.mubr.f32.mxu0 %v1517
    %1760 = vmatmul.mubr.f32.gmra.mxu0 %v1694
    %v1761 = vpop.f32.mrf.mxu0
    %v1762 = vadd.f32 %v617, %v1761
    %v1763 = vpop.f32.mrf.mxu0
    %v1764 = vadd.f32 %v621, %v1763
    %1765 = vdwg.mxu0
    %1766 = vmatprep.subr.mxu0 %v944
    %1767 = vmatpush1.msra.mxu0 %v943
    %1768 = vmatprep.subr.mxu0 %v940
    %1769 = vmatpush1.msra.mxu0 %v939
    %1770 = vmatprep.subr.mxu0 %v936
    %1771 = vmatpush1.msra.mxu0 %v935
    %1772 = vmatprep.subr.mxu0 %v932
    %1773 = vmatpush1.msra.mxu0 %v931
    %1774 = vmatprep.subr.mxu0 %v928
    %1775 = vmatpush1.msra.mxu0 %v927
    %1776 = vmatprep.subr.mxu0 %v924
    %1777 = vmatpush1.msra.mxu0 %v923
    %1778 = vmatprep.subr.mxu0 %v920
    %1779 = vmatpush1.msra.mxu0 %v919
    %1780 = vmatprep.subr.mxu0 %v916
    %1781 = vmatpush1.msra.mxu0 %v915
    %1782 = vmatprep.subr.mxu0 %v912
    %1783 = vmatpush1.msra.mxu0 %v911
    %1784 = vmatprep.subr.mxu0 %v908
    %1785 = vmatpush1.msra.mxu0 %v907
    %1786 = vmatprep.subr.mxu0 %v904
    %1787 = vmatpush1.msra.mxu0 %v903
    %1788 = vmatprep.subr.mxu0 %v900
    %1789 = vmatpush1.msra.mxu0 %v899
    %1790 = vmatprep.subr.mxu0 %v896
    %1791 = vmatpush1.msra.mxu0 %v895
    %1792 = vmatprep.subr.mxu0 %v892
    %1793 = vmatpush1.msra.mxu0 %v891
    %1794 = vmatprep.subr.mxu0 %v888
    %1795 = vmatpush1.msra.mxu0 %v887
    %1796 = vmatprep.subr.mxu0 %v884
    %1797 = vmatpush1.msra.mxu0 %v883
    %1798 = vmatprep.subr.mxu0 %v1008
    %1799 = vmatpush2.msra.mxu0 %v1007
    %1800 = vmatprep.subr.mxu0 %v1004
    %1801 = vmatpush2.msra.mxu0 %v1003
    %1802 = vmatprep.subr.mxu0 %v1000
    %1803 = vmatpush2.msra.mxu0 %v999
    %1804 = vmatprep.subr.mxu0 %v996
    %1805 = vmatpush2.msra.mxu0 %v995
    %1806 = vmatprep.subr.mxu0 %v992
    %1807 = vmatpush2.msra.mxu0 %v991
    %1808 = vmatprep.subr.mxu0 %v988
    %1809 = vmatpush2.msra.mxu0 %v987
    %1810 = vmatprep.subr.mxu0 %v984
    %1811 = vmatpush2.msra.mxu0 %v983
    %1812 = vmatprep.subr.mxu0 %v980
    %1813 = vmatpush2.msra.mxu0 %v979
    %1814 = vmatprep.subr.mxu0 %v976
    %1815 = vmatpush2.msra.mxu0 %v975
    %1816 = vmatprep.subr.mxu0 %v972
    %1817 = vmatpush2.msra.mxu0 %v971
    %1818 = vmatprep.subr.mxu0 %v968
    %1819 = vmatpush2.msra.mxu0 %v967
    %1820 = vmatprep.subr.mxu0 %v964
    %1821 = vmatpush2.msra.mxu0 %v963
    %1822 = vmatprep.subr.mxu0 %v960
    %1823 = vmatpush2.msra.mxu0 %v959
    %1824 = vmatprep.subr.mxu0 %v956
    %1825 = vmatpush2.msra.mxu0 %v955
    %1826 = vmatprep.subr.mxu0 %v952
    %1827 = vmatpush2.msra.mxu0 %v951
    %1828 = vmatprep.subr.mxu0 %v948
    %1829 = vmatpush2.msra.mxu0 %v947
    %1830 = vmatprep.mubr.f32.mxu0 %v1517
    %1831 = vmatmul.mubr.f32.gmra.mxu0 %v1694
    %v1832 = vpop.f32.mrf.mxu0
    %v1833 = vadd.f32 %v625, %v1832
    %v1834 = vpop.f32.mrf.mxu0
    %v1835 = vadd.f32 %v629, %v1834
    %1836 = vdwg.mxu0
    %v1837 = vxor.u32 %v1762, 2147483648
    %v1838 = vmul.f32 %v1837, 1.442695
    %v1839 = vpow.pop %v1838
    %v1840 = vadd.f32 %v1839, 1.0
    %v1841 = vrcp.pop %v1840
    %v1842 = vmul.f32 1.0, %v1841
    %v1843 = vxor.u32 %v1764, 2147483648
    %v1844 = vmul.f32 %v1843, 1.442695
    %v1845 = vpow.pop %v1844
    %v1846 = vadd.f32 %v1845, 1.0
    %v1847 = vrcp.pop %v1846
    %v1848 = vmul.f32 1.0, %v1847
    %v1849 = vtanh.pop %v1833
    %v1850 = vxor.u32 %v1835, 2147483648
    %v1851 = vmul.f32 %v1850, 1.442695
    %v1852 = vpow.pop %v1851
    %v1853 = vadd.f32 %v1852, 1.0
    %v1854 = vrcp.pop %v1853
    %v1855 = vmul.f32 1.0, %v1854
    %v1856 = vmul.f32 %v1848, %v1515
    %v1857 = vmul.f32 %v1842, %v1849
    %v1858 = vadd.f32 %v1856, %v1857
    %v1859 = vtanh.pop %v1858
    %v1860 = vmul.f32 %v1855, %v1859
    %s1861 = smul.u32 3, 4
    %s1862 = smul.addr %s1861, 8
    %s1863 = scalar_lea.vmem [#allocation2], %s1862
    %v1864 = vld [vmem:[%s1863] sm:$0xff]
    %v1865 = vld [vmem:[%s1863 + $0x8] sm:$0xff]
    %v1866 = vld [vmem:[%s1863 + $0x10] sm:$0xff]
    %v1867 = vld [vmem:[%s1863 + $0x18] sm:$0xff]
    %1868 = vmatprep.subr.mxu0 %v708
    %1869 = vmatpush1.msra.mxu0 %v707
    %1870 = vmatprep.subr.mxu0 %v704
    %1871 = vmatpush1.msra.mxu0 %v703
    %1872 = vmatprep.subr.mxu0 %v700
    %1873 = vmatpush1.msra.mxu0 %v699
    %1874 = vmatprep.subr.mxu0 %v696
    %1875 = vmatpush1.msra.mxu0 %v695
    %1876 = vmatprep.subr.mxu0 %v692
    %1877 = vmatpush1.msra.mxu0 %v691
    %1878 = vmatprep.subr.mxu0 %v688
    %1879 = vmatpush1.msra.mxu0 %v687
    %1880 = vmatprep.subr.mxu0 %v684
    %1881 = vmatpush1.msra.mxu0 %v683
    %1882 = vmatprep.subr.mxu0 %v680
    %1883 = vmatpush1.msra.mxu0 %v679
    %1884 = vmatprep.subr.mxu0 %v676
    %1885 = vmatpush1.msra.mxu0 %v675
    %1886 = vmatprep.subr.mxu0 %v672
    %1887 = vmatpush1.msra.mxu0 %v671
    %1888 = vmatprep.subr.mxu0 %v668
    %1889 = vmatpush1.msra.mxu0 %v667
    %1890 = vmatprep.subr.mxu0 %v664
    %1891 = vmatpush1.msra.mxu0 %v663
    %1892 = vmatprep.subr.mxu0 %v660
    %1893 = vmatpush1.msra.mxu0 %v659
    %1894 = vmatprep.subr.mxu0 %v656
    %1895 = vmatpush1.msra.mxu0 %v655
    %1896 = vmatprep.subr.mxu0 %v652
    %1897 = vmatpush1.msra.mxu0 %v651
    %1898 = vmatprep.subr.mxu0 %v648
    %1899 = vmatpush1.msra.mxu0 %v647
    %1900 = vmatprep.subr.mxu0 0.0
    %1901 = vmatpush2.msra.mxu0 0.0
    %1902 = vmatprep.subr.mxu0 0.0
    %1903 = vmatpush2.msra.mxu0 0.0
    %1904 = vmatprep.subr.mxu0 0.0
    %1905 = vmatpush2.msra.mxu0 0.0
    %1906 = vmatprep.subr.mxu0 0.0
    %1907 = vmatpush2.msra.mxu0 0.0
    %1908 = vmatprep.subr.mxu0 0.0
    %1909 = vmatpush2.msra.mxu0 0.0
    %1910 = vmatprep.subr.mxu0 0.0
    %1911 = vmatpush2.msra.mxu0 0.0
    %1912 = vmatprep.subr.mxu0 0.0
    %1913 = vmatpush2.msra.mxu0 0.0
    %1914 = vmatprep.subr.mxu0 0.0
    %1915 = vmatpush2.msra.mxu0 0.0
    %1916 = vmatprep.subr.mxu0 0.0
    %1917 = vmatpush2.msra.mxu0 0.0
    %1918 = vmatprep.subr.mxu0 0.0
    %1919 = vmatpush2.msra.mxu0 0.0
    %1920 = vmatprep.subr.mxu0 0.0
    %1921 = vmatpush2.msra.mxu0 0.0
    %1922 = vmatprep.subr.mxu0 0.0
    %1923 = vmatpush2.msra.mxu0 0.0
    %1924 = vmatprep.subr.mxu0 0.0
    %1925 = vmatpush2.msra.mxu0 0.0
    %1926 = vmatprep.subr.mxu0 0.0
    %1927 = vmatpush2.msra.mxu0 0.0
    %1928 = vmatprep.subr.mxu0 0.0
    %1929 = vmatpush2.msra.mxu0 0.0
    %1930 = vmatprep.subr.mxu0 0.0
    %1931 = vmatpush2.msra.mxu0 0.0
    %1932 = vmatprep.mubr.f32.mxu0 0.0
    %1933 = vmatmul.mubr.f32.gmra.mxu0 %v1694
    %v1934 = vpop.f32.mrf.mxu0
    %v1935 = vadd.f32 0.0, %v1934
    %v1936 = vpop.f32.mrf.mxu0
    %v1937 = vadd.f32 0.0, %v1936
    %1938 = vdwg.mxu0
    %1939 = vmatprep.subr.mxu0 %v710
    %1940 = vmatpush1.msra.mxu0 %v709
    %1941 = vmatprep.subr.mxu0 %v706
    %1942 = vmatpush1.msra.mxu0 %v705
    %1943 = vmatprep.subr.mxu0 %v702
    %1944 = vmatpush1.msra.mxu0 %v701
    %1945 = vmatprep.subr.mxu0 %v698
    %1946 = vmatpush1.msra.mxu0 %v697
    %1947 = vmatprep.subr.mxu0 %v694
    %1948 = vmatpush1.msra.mxu0 %v693
    %1949 = vmatprep.subr.mxu0 %v690
    %1950 = vmatpush1.msra.mxu0 %v689
    %1951 = vmatprep.subr.mxu0 %v686
    %1952 = vmatpush1.msra.mxu0 %v685
    %1953 = vmatprep.subr.mxu0 %v682
    %1954 = vmatpush1.msra.mxu0 %v681
    %1955 = vmatprep.subr.mxu0 %v678
    %1956 = vmatpush1.msra.mxu0 %v677
    %1957 = vmatprep.subr.mxu0 %v674
    %1958 = vmatpush1.msra.mxu0 %v673
    %1959 = vmatprep.subr.mxu0 %v670
    %1960 = vmatpush1.msra.mxu0 %v669
    %1961 = vmatprep.subr.mxu0 %v666
    %1962 = vmatpush1.msra.mxu0 %v665
    %1963 = vmatprep.subr.mxu0 %v662
    %1964 = vmatpush1.msra.mxu0 %v661
    %1965 = vmatprep.subr.mxu0 %v658
    %1966 = vmatpush1.msra.mxu0 %v657
    %1967 = vmatprep.subr.mxu0 %v654
    %1968 = vmatpush1.msra.mxu0 %v653
    %1969 = vmatprep.subr.mxu0 %v650
    %1970 = vmatpush1.msra.mxu0 %v649
    %1971 = vmatprep.subr.mxu0 0.0
    %1972 = vmatpush2.msra.mxu0 0.0
    %1973 = vmatprep.subr.mxu0 0.0
    %1974 = vmatpush2.msra.mxu0 0.0
    %1975 = vmatprep.subr.mxu0 0.0
    %1976 = vmatpush2.msra.mxu0 0.0
    %1977 = vmatprep.subr.mxu0 0.0
    %1978 = vmatpush2.msra.mxu0 0.0
    %1979 = vmatprep.subr.mxu0 0.0
    %1980 = vmatpush2.msra.mxu0 0.0
    %1981 = vmatprep.subr.mxu0 0.0
    %1982 = vmatpush2.msra.mxu0 0.0
    %1983 = vmatprep.subr.mxu0 0.0
    %1984 = vmatpush2.msra.mxu0 0.0
    %1985 = vmatprep.subr.mxu0 0.0
    %1986 = vmatpush2.msra.mxu0 0.0
    %1987 = vmatprep.subr.mxu0 0.0
    %1988 = vmatpush2.msra.mxu0 0.0
    %1989 = vmatprep.subr.mxu0 0.0
    %1990 = vmatpush2.msra.mxu0 0.0
    %1991 = vmatprep.subr.mxu0 0.0
    %1992 = vmatpush2.msra.mxu0 0.0
    %1993 = vmatprep.subr.mxu0 0.0
    %1994 = vmatpush2.msra.mxu0 0.0
    %1995 = vmatprep.subr.mxu0 0.0
    %1996 = vmatpush2.msra.mxu0 0.0
    %1997 = vmatprep.subr.mxu0 0.0
    %1998 = vmatpush2.msra.mxu0 0.0
    %1999 = vmatprep.subr.mxu0 0.0
    %2000 = vmatpush2.msra.mxu0 0.0
    %2001 = vmatprep.subr.mxu0 0.0
    %2002 = vmatpush2.msra.mxu0 0.0
    %2003 = vmatprep.mubr.f32.mxu0 0.0
    %2004 = vmatmul.mubr.f32.gmra.mxu0 %v1694
    %v2005 = vpop.f32.mrf.mxu0
    %v2006 = vadd.f32 0.0, %v2005
    %v2007 = vpop.f32.mrf.mxu0
    %v2008 = vadd.f32 0.0, %v2007
    %2009 = vdwg.mxu0
    %v2010 = vadd.f32 %v1864, %v1935
    %v2011 = vadd.f32 %v1865, %v1937
    %v2012 = vadd.f32 %v1866, %v2006
    %v2013 = vadd.f32 %v1867, %v2008
    %v2014 = vxor.u32 %v2010, 2147483648
    %v2015 = vmul.f32 %v2014, 1.442695
    %v2016 = vpow.pop %v2015
    %v2017 = vadd.f32 %v2016, 1.0
    %v2018 = vrcp.pop %v2017
    %v2019 = vmul.f32 1.0, %v2018
    %v2020 = vxor.u32 %v2011, 2147483648
    %v2021 = vmul.f32 %v2020, 1.442695
    %v2022 = vpow.pop %v2021
    %v2023 = vadd.f32 %v2022, 1.0
    %v2024 = vrcp.pop %v2023
    %v2025 = vmul.f32 1.0, %v2024
    %v2026 = vtanh.pop %v2012
    %v2027 = vxor.u32 %v2013, 2147483648
    %v2028 = vmul.f32 %v2027, 1.442695
    %v2029 = vpow.pop %v2028
    %v2030 = vadd.f32 %v2029, 1.0
    %v2031 = vrcp.pop %v2030
    %v2032 = vmul.f32 1.0, %v2031
    %v2033 = vmul.f32 %v2025, %v1692
    %v2034 = vmul.f32 %v2019, %v2026
    %v2035 = vadd.f32 %v2033, %v2034
    %v2036 = vtanh.pop %v2035
    %v2037 = vmul.f32 %v2032, %v2036
    %2038 = vmatprep.subr.mxu0 %v942
    %2039 = vmatpush1.msra.mxu0 %v941
    %2040 = vmatprep.subr.mxu0 %v938
    %2041 = vmatpush1.msra.mxu0 %v937
    %2042 = vmatprep.subr.mxu0 %v934
    %2043 = vmatpush1.msra.mxu0 %v933
    %2044 = vmatprep.subr.mxu0 %v930
    %2045 = vmatpush1.msra.mxu0 %v929
    %2046 = vmatprep.subr.mxu0 %v926
    %2047 = vmatpush1.msra.mxu0 %v925
    %2048 = vmatprep.subr.mxu0 %v922
    %2049 = vmatpush1.msra.mxu0 %v921
    %2050 = vmatprep.subr.mxu0 %v918
    %2051 = vmatpush1.msra.mxu0 %v917
    %2052 = vmatprep.subr.mxu0 %v914
    %2053 = vmatpush1.msra.mxu0 %v913
    %2054 = vmatprep.subr.mxu0 %v910
    %2055 = vmatpush1.msra.mxu0 %v909
    %2056 = vmatprep.subr.mxu0 %v906
    %2057 = vmatpush1.msra.mxu0 %v905
    %2058 = vmatprep.subr.mxu0 %v902
    %2059 = vmatpush1.msra.mxu0 %v901
    %2060 = vmatprep.subr.mxu0 %v898
    %2061 = vmatpush1.msra.mxu0 %v897
    %2062 = vmatprep.subr.mxu0 %v894
    %2063 = vmatpush1.msra.mxu0 %v893
    %2064 = vmatprep.subr.mxu0 %v890
    %2065 = vmatpush1.msra.mxu0 %v889
    %2066 = vmatprep.subr.mxu0 %v886
    %2067 = vmatpush1.msra.mxu0 %v885
    %2068 = vmatprep.subr.mxu0 %v882
    %2069 = vmatpush1.msra.mxu0 %v881
    %2070 = vmatprep.subr.mxu0 %v1006
    %2071 = vmatpush2.msra.mxu0 %v1005
    %2072 = vmatprep.subr.mxu0 %v1002
    %2073 = vmatpush2.msra.mxu0 %v1001
    %2074 = vmatprep.subr.mxu0 %v998
    %2075 = vmatpush2.msra.mxu0 %v997
    %2076 = vmatprep.subr.mxu0 %v994
    %2077 = vmatpush2.msra.mxu0 %v993
    %2078 = vmatprep.subr.mxu0 %v990
    %2079 = vmatpush2.msra.mxu0 %v989
    %2080 = vmatprep.subr.mxu0 %v986
    %2081 = vmatpush2.msra.mxu0 %v985
    %2082 = vmatprep.subr.mxu0 %v982
    %2083 = vmatpush2.msra.mxu0 %v981
    %2084 = vmatprep.subr.mxu0 %v978
    %2085 = vmatpush2.msra.mxu0 %v977
    %2086 = vmatprep.subr.mxu0 %v974
    %2087 = vmatpush2.msra.mxu0 %v973
    %2088 = vmatprep.subr.mxu0 %v970
    %2089 = vmatpush2.msra.mxu0 %v969
    %2090 = vmatprep.subr.mxu0 %v966
    %2091 = vmatpush2.msra.mxu0 %v965
    %2092 = vmatprep.subr.mxu0 %v962
    %2093 = vmatpush2.msra.mxu0 %v961
    %2094 = vmatprep.subr.mxu0 %v958
    %2095 = vmatpush2.msra.mxu0 %v957
    %2096 = vmatprep.subr.mxu0 %v954
    %2097 = vmatpush2.msra.mxu0 %v953
    %2098 = vmatprep.subr.mxu0 %v950
    %2099 = vmatpush2.msra.mxu0 %v949
    %2100 = vmatprep.subr.mxu0 %v946
    %2101 = vmatpush2.msra.mxu0 %v945
    %2102 = vmatprep.mubr.f32.mxu0 %v1860
    %2103 = vmatmul.mubr.f32.gmra.mxu0 %v2037
    %v2104 = vpop.f32.mrf.mxu0
    %v2105 = vadd.f32 %v617, %v2104
    %v2106 = vpop.f32.mrf.mxu0
    %v2107 = vadd.f32 %v621, %v2106
    %2108 = vdwg.mxu0
    %2109 = vmatprep.subr.mxu0 %v944
    %2110 = vmatpush1.msra.mxu0 %v943
    %2111 = vmatprep.subr.mxu0 %v940
    %2112 = vmatpush1.msra.mxu0 %v939
    %2113 = vmatprep.subr.mxu0 %v936
    %2114 = vmatpush1.msra.mxu0 %v935
    %2115 = vmatprep.subr.mxu0 %v932
    %2116 = vmatpush1.msra.mxu0 %v931
    %2117 = vmatprep.subr.mxu0 %v928
    %2118 = vmatpush1.msra.mxu0 %v927
    %2119 = vmatprep.subr.mxu0 %v924
    %2120 = vmatpush1.msra.mxu0 %v923
    %2121 = vmatprep.subr.mxu0 %v920
    %2122 = vmatpush1.msra.mxu0 %v919
    %2123 = vmatprep.subr.mxu0 %v916
    %2124 = vmatpush1.msra.mxu0 %v915
    %2125 = vmatprep.subr.mxu0 %v912
    %2126 = vmatpush1.msra.mxu0 %v911
    %2127 = vmatprep.subr.mxu0 %v908
    %2128 = vmatpush1.msra.mxu0 %v907
    %2129 = vmatprep.subr.mxu0 %v904
    %2130 = vmatpush1.msra.mxu0 %v903
    %2131 = vmatprep.subr.mxu0 %v900
    %2132 = vmatpush1.msra.mxu0 %v899
    %2133 = vmatprep.subr.mxu0 %v896
    %2134 = vmatpush1.msra.mxu0 %v895
    %2135 = vmatprep.subr.mxu0 %v892
    %2136 = vmatpush1.msra.mxu0 %v891
    %2137 = vmatprep.subr.mxu0 %v888
    %2138 = vmatpush1.msra.mxu0 %v887
    %2139 = vmatprep.subr.mxu0 %v884
    %2140 = vmatpush1.msra.mxu0 %v883
    %2141 = vmatprep.subr.mxu0 %v1008
    %2142 = vmatpush2.msra.mxu0 %v1007
    %2143 = vmatprep.subr.mxu0 %v1004
    %2144 = vmatpush2.msra.mxu0 %v1003
    %2145 = vmatprep.subr.mxu0 %v1000
    %2146 = vmatpush2.msra.mxu0 %v999
    %2147 = vmatprep.subr.mxu0 %v996
    %2148 = vmatpush2.msra.mxu0 %v995
    %2149 = vmatprep.subr.mxu0 %v992
    %2150 = vmatpush2.msra.mxu0 %v991
    %2151 = vmatprep.subr.mxu0 %v988
    %2152 = vmatpush2.msra.mxu0 %v987
    %2153 = vmatprep.subr.mxu0 %v984
    %2154 = vmatpush2.msra.mxu0 %v983
    %2155 = vmatprep.subr.mxu0 %v980
    %2156 = vmatpush2.msra.mxu0 %v979
    %2157 = vmatprep.subr.mxu0 %v976
    %2158 = vmatpush2.msra.mxu0 %v975
    %2159 = vmatprep.subr.mxu0 %v972
    %2160 = vmatpush2.msra.mxu0 %v971
    %2161 = vmatprep.subr.mxu0 %v968
    %2162 = vmatpush2.msra.mxu0 %v967
    %2163 = vmatprep.subr.mxu0 %v964
    %2164 = vmatpush2.msra.mxu0 %v963
    %2165 = vmatprep.subr.mxu0 %v960
    %2166 = vmatpush2.msra.mxu0 %v959
    %2167 = vmatprep.subr.mxu0 %v956
    %2168 = vmatpush2.msra.mxu0 %v955
    %2169 = vmatprep.subr.mxu0 %v952
    %2170 = vmatpush2.msra.mxu0 %v951
    %2171 = vmatprep.subr.mxu0 %v948
    %2172 = vmatpush2.msra.mxu0 %v947
    %2173 = vmatprep.mubr.f32.mxu0 %v1860
    %2174 = vmatmul.mubr.f32.gmra.mxu0 %v2037
    %v2175 = vpop.f32.mrf.mxu0
    %v2176 = vadd.f32 %v625, %v2175
    %v2177 = vpop.f32.mrf.mxu0
    %v2178 = vadd.f32 %v629, %v2177
    %2179 = vdwg.mxu0
    %v2180 = vxor.u32 %v2105, 2147483648
    %v2181 = vmul.f32 %v2180, 1.442695
    %v2182 = vpow.pop %v2181
    %v2183 = vadd.f32 %v2182, 1.0
    %v2184 = vrcp.pop %v2183
    %v2185 = vmul.f32 1.0, %v2184
    %v2186 = vxor.u32 %v2107, 2147483648
    %v2187 = vmul.f32 %v2186, 1.442695
    %v2188 = vpow.pop %v2187
    %v2189 = vadd.f32 %v2188, 1.0
    %v2190 = vrcp.pop %v2189
    %v2191 = vmul.f32 1.0, %v2190
    %v2192 = vtanh.pop %v2176
    %v2193 = vxor.u32 %v2178, 2147483648
    %v2194 = vmul.f32 %v2193, 1.442695
    %v2195 = vpow.pop %v2194
    %v2196 = vadd.f32 %v2195, 1.0
    %v2197 = vrcp.pop %v2196
    %v2198 = vmul.f32 1.0, %v2197
    %v2199 = vmul.f32 %v2191, %v1858
    %v2200 = vmul.f32 %v2185, %v2192
    %v2201 = vadd.f32 %v2199, %v2200
    %v2202 = vtanh.pop %v2201
    %v2203 = vmul.f32 %v2198, %v2202
    %s2204 = smul.u32 4, 4
    %s2205 = smul.addr %s2204, 8
    %s2206 = scalar_lea.vmem [#allocation2], %s2205
    %v2207 = vld [vmem:[%s2206] sm:$0xff]
    %v2208 = vld [vmem:[%s2206 + $0x8] sm:$0xff]
    %v2209 = vld [vmem:[%s2206 + $0x10] sm:$0xff]
    %v2210 = vld [vmem:[%s2206 + $0x18] sm:$0xff]
    %2211 = vmatprep.subr.mxu0 %v708
    %2212 = vmatpush1.msra.mxu0 %v707
    %2213 = vmatprep.subr.mxu0 %v704
    %2214 = vmatpush1.msra.mxu0 %v703
    %2215 = vmatprep.subr.mxu0 %v700
    %2216 = vmatpush1.msra.mxu0 %v699
    %2217 = vmatprep.subr.mxu0 %v696
    %2218 = vmatpush1.msra.mxu0 %v695
    %2219 = vmatprep.subr.mxu0 %v692
    %2220 = vmatpush1.msra.mxu0 %v691
    %2221 = vmatprep.subr.mxu0 %v688
    %2222 = vmatpush1.msra.mxu0 %v687
    %2223 = vmatprep.subr.mxu0 %v684
    %2224 = vmatpush1.msra.mxu0 %v683
    %2225 = vmatprep.subr.mxu0 %v680
    %2226 = vmatpush1.msra.mxu0 %v679
    %2227 = vmatprep.subr.mxu0 %v676
    %2228 = vmatpush1.msra.mxu0 %v675
    %2229 = vmatprep.subr.mxu0 %v672
    %2230 = vmatpush1.msra.mxu0 %v671
    %2231 = vmatprep.subr.mxu0 %v668
    %2232 = vmatpush1.msra.mxu0 %v667
    %2233 = vmatprep.subr.mxu0 %v664
    %2234 = vmatpush1.msra.mxu0 %v663
    %2235 = vmatprep.subr.mxu0 %v660
    %2236 = vmatpush1.msra.mxu0 %v659
    %2237 = vmatprep.subr.mxu0 %v656
    %2238 = vmatpush1.msra.mxu0 %v655
    %2239 = vmatprep.subr.mxu0 %v652
    %2240 = vmatpush1.msra.mxu0 %v651
    %2241 = vmatprep.subr.mxu0 %v648
    %2242 = vmatpush1.msra.mxu0 %v647
    %2243 = vmatprep.subr.mxu0 0.0
    %2244 = vmatpush2.msra.mxu0 0.0
    %2245 = vmatprep.subr.mxu0 0.0
    %2246 = vmatpush2.msra.mxu0 0.0
    %2247 = vmatprep.subr.mxu0 0.0
    %2248 = vmatpush2.msra.mxu0 0.0
    %2249 = vmatprep.subr.mxu0 0.0
    %2250 = vmatpush2.msra.mxu0 0.0
    %2251 = vmatprep.subr.mxu0 0.0
    %2252 = vmatpush2.msra.mxu0 0.0
    %2253 = vmatprep.subr.mxu0 0.0
    %2254 = vmatpush2.msra.mxu0 0.0
    %2255 = vmatprep.subr.mxu0 0.0
    %2256 = vmatpush2.msra.mxu0 0.0
    %2257 = vmatprep.subr.mxu0 0.0
    %2258 = vmatpush2.msra.mxu0 0.0
    %2259 = vmatprep.subr.mxu0 0.0
    %2260 = vmatpush2.msra.mxu0 0.0
    %2261 = vmatprep.subr.mxu0 0.0
    %2262 = vmatpush2.msra.mxu0 0.0
    %2263 = vmatprep.subr.mxu0 0.0
    %2264 = vmatpush2.msra.mxu0 0.0
    %2265 = vmatprep.subr.mxu0 0.0
    %2266 = vmatpush2.msra.mxu0 0.0
    %2267 = vmatprep.subr.mxu0 0.0
    %2268 = vmatpush2.msra.mxu0 0.0
    %2269 = vmatprep.subr.mxu0 0.0
    %2270 = vmatpush2.msra.mxu0 0.0
    %2271 = vmatprep.subr.mxu0 0.0
    %2272 = vmatpush2.msra.mxu0 0.0
    %2273 = vmatprep.subr.mxu0 0.0
    %2274 = vmatpush2.msra.mxu0 0.0
    %2275 = vmatprep.mubr.f32.mxu0 0.0
    %2276 = vmatmul.mubr.f32.gmra.mxu0 %v2037
    %v2277 = vpop.f32.mrf.mxu0
    %v2278 = vadd.f32 0.0, %v2277
    %v2279 = vpop.f32.mrf.mxu0
    %v2280 = vadd.f32 0.0, %v2279
    %2281 = vdwg.mxu0
    %2282 = vmatprep.subr.mxu0 %v710
    %2283 = vmatpush1.msra.mxu0 %v709
    %2284 = vmatprep.subr.mxu0 %v706
    %2285 = vmatpush1.msra.mxu0 %v705
    %2286 = vmatprep.subr.mxu0 %v702
    %2287 = vmatpush1.msra.mxu0 %v701
    %2288 = vmatprep.subr.mxu0 %v698
    %2289 = vmatpush1.msra.mxu0 %v697
    %2290 = vmatprep.subr.mxu0 %v694
    %2291 = vmatpush1.msra.mxu0 %v693
    %2292 = vmatprep.subr.mxu0 %v690
    %2293 = vmatpush1.msra.mxu0 %v689
    %2294 = vmatprep.subr.mxu0 %v686
    %2295 = vmatpush1.msra.mxu0 %v685
    %2296 = vmatprep.subr.mxu0 %v682
    %2297 = vmatpush1.msra.mxu0 %v681
    %2298 = vmatprep.subr.mxu0 %v678
    %2299 = vmatpush1.msra.mxu0 %v677
    %2300 = vmatprep.subr.mxu0 %v674
    %2301 = vmatpush1.msra.mxu0 %v673
    %2302 = vmatprep.subr.mxu0 %v670
    %2303 = vmatpush1.msra.mxu0 %v669
    %2304 = vmatprep.subr.mxu0 %v666
    %2305 = vmatpush1.msra.mxu0 %v665
    %2306 = vmatprep.subr.mxu0 %v662
    %2307 = vmatpush1.msra.mxu0 %v661
    %2308 = vmatprep.subr.mxu0 %v658
    %2309 = vmatpush1.msra.mxu0 %v657
    %2310 = vmatprep.subr.mxu0 %v654
    %2311 = vmatpush1.msra.mxu0 %v653
    %2312 = vmatprep.subr.mxu0 %v650
    %2313 = vmatpush1.msra.mxu0 %v649
    %2314 = vmatprep.subr.mxu0 0.0
    %2315 = vmatpush2.msra.mxu0 0.0
    %2316 = vmatprep.subr.mxu0 0.0
    %2317 = vmatpush2.msra.mxu0 0.0
    %2318 = vmatprep.subr.mxu0 0.0
    %2319 = vmatpush2.msra.mxu0 0.0
    %2320 = vmatprep.subr.mxu0 0.0
    %2321 = vmatpush2.msra.mxu0 0.0
    %2322 = vmatprep.subr.mxu0 0.0
    %2323 = vmatpush2.msra.mxu0 0.0
    %2324 = vmatprep.subr.mxu0 0.0
    %2325 = vmatpush2.msra.mxu0 0.0
    %2326 = vmatprep.subr.mxu0 0.0
    %2327 = vmatpush2.msra.mxu0 0.0
    %2328 = vmatprep.subr.mxu0 0.0
    %2329 = vmatpush2.msra.mxu0 0.0
    %2330 = vmatprep.subr.mxu0 0.0
    %2331 = vmatpush2.msra.mxu0 0.0
    %2332 = vmatprep.subr.mxu0 0.0
    %2333 = vmatpush2.msra.mxu0 0.0
    %2334 = vmatprep.subr.mxu0 0.0
    %2335 = vmatpush2.msra.mxu0 0.0
    %2336 = vmatprep.subr.mxu0 0.0
    %2337 = vmatpush2.msra.mxu0 0.0
    %2338 = vmatprep.subr.mxu0 0.0
    %2339 = vmatpush2.msra.mxu0 0.0
    %2340 = vmatprep.subr.mxu0 0.0
    %2341 = vmatpush2.msra.mxu0 0.0
    %2342 = vmatprep.subr.mxu0 0.0
    %2343 = vmatpush2.msra.mxu0 0.0
    %2344 = vmatprep.subr.mxu0 0.0
    %2345 = vmatpush2.msra.mxu0 0.0
    %2346 = vmatprep.mubr.f32.mxu0 0.0
    %2347 = vmatmul.mubr.f32.gmra.mxu0 %v2037
    %v2348 = vpop.f32.mrf.mxu0
    %v2349 = vadd.f32 0.0, %v2348
    %v2350 = vpop.f32.mrf.mxu0
    %v2351 = vadd.f32 0.0, %v2350
    %2352 = vdwg.mxu0
    %v2353 = vadd.f32 %v2207, %v2278
    %v2354 = vadd.f32 %v2208, %v2280
    %v2355 = vadd.f32 %v2209, %v2349
    %v2356 = vadd.f32 %v2210, %v2351
    %v2357 = vxor.u32 %v2353, 2147483648
    %v2358 = vmul.f32 %v2357, 1.442695
    %v2359 = vpow.pop %v2358
    %v2360 = vadd.f32 %v2359, 1.0
    %v2361 = vrcp.pop %v2360
    %v2362 = vmul.f32 1.0, %v2361
    %v2363 = vxor.u32 %v2354, 2147483648
    %v2364 = vmul.f32 %v2363, 1.442695
    %v2365 = vpow.pop %v2364
    %v2366 = vadd.f32 %v2365, 1.0
    %v2367 = vrcp.pop %v2366
    %v2368 = vmul.f32 1.0, %v2367
    %v2369 = vtanh.pop %v2355
    %v2370 = vxor.u32 %v2356, 2147483648
    %v2371 = vmul.f32 %v2370, 1.442695
    %v2372 = vpow.pop %v2371
    %v2373 = vadd.f32 %v2372, 1.0
    %v2374 = vrcp.pop %v2373
    %v2375 = vmul.f32 1.0, %v2374
    %v2376 = vmul.f32 %v2368, %v2035
    %v2377 = vmul.f32 %v2362, %v2369
    %v2378 = vadd.f32 %v2376, %v2377
    %v2379 = vtanh.pop %v2378
    %v2380 = vmul.f32 %v2375, %v2379
    %2381 = vmatprep.subr.mxu0 %v942
    %2382 = vmatpush1.msra.mxu0 %v941
    %2383 = vmatprep.subr.mxu0 %v938
    %2384 = vmatpush1.msra.mxu0 %v937
    %2385 = vmatprep.subr.mxu0 %v934
    %2386 = vmatpush1.msra.mxu0 %v933
    %2387 = vmatprep.subr.mxu0 %v930
    %2388 = vmatpush1.msra.mxu0 %v929
    %2389 = vmatprep.subr.mxu0 %v926
    %2390 = vmatpush1.msra.mxu0 %v925
    %2391 = vmatprep.subr.mxu0 %v922
    %2392 = vmatpush1.msra.mxu0 %v921
    %2393 = vmatprep.subr.mxu0 %v918
    %2394 = vmatpush1.msra.mxu0 %v917
    %2395 = vmatprep.subr.mxu0 %v914
    %2396 = vmatpush1.msra.mxu0 %v913
    %2397 = vmatprep.subr.mxu0 %v910
    %2398 = vmatpush1.msra.mxu0 %v909
    %2399 = vmatprep.subr.mxu0 %v906
    %2400 = vmatpush1.msra.mxu0 %v905
    %2401 = vmatprep.subr.mxu0 %v902
    %2402 = vmatpush1.msra.mxu0 %v901
    %2403 = vmatprep.subr.mxu0 %v898
    %2404 = vmatpush1.msra.mxu0 %v897
    %2405 = vmatprep.subr.mxu0 %v894
    %2406 = vmatpush1.msra.mxu0 %v893
    %2407 = vmatprep.subr.mxu0 %v890
    %2408 = vmatpush1.msra.mxu0 %v889
    %2409 = vmatprep.subr.mxu0 %v886
    %2410 = vmatpush1.msra.mxu0 %v885
    %2411 = vmatprep.subr.mxu0 %v882
    %2412 = vmatpush1.msra.mxu0 %v881
    %2413 = vmatprep.subr.mxu0 %v1006
    %2414 = vmatpush2.msra.mxu0 %v1005
    %2415 = vmatprep.subr.mxu0 %v1002
    %2416 = vmatpush2.msra.mxu0 %v1001
    %2417 = vmatprep.subr.mxu0 %v998
    %2418 = vmatpush2.msra.mxu0 %v997
    %2419 = vmatprep.subr.mxu0 %v994
    %2420 = vmatpush2.msra.mxu0 %v993
    %2421 = vmatprep.subr.mxu0 %v990
    %2422 = vmatpush2.msra.mxu0 %v989
    %2423 = vmatprep.subr.mxu0 %v986
    %2424 = vmatpush2.msra.mxu0 %v985
    %2425 = vmatprep.subr.mxu0 %v982
    %2426 = vmatpush2.msra.mxu0 %v981
    %2427 = vmatprep.subr.mxu0 %v978
    %2428 = vmatpush2.msra.mxu0 %v977
    %2429 = vmatprep.subr.mxu0 %v974
    %2430 = vmatpush2.msra.mxu0 %v973
    %2431 = vmatprep.subr.mxu0 %v970
    %2432 = vmatpush2.msra.mxu0 %v969
    %2433 = vmatprep.subr.mxu0 %v966
    %2434 = vmatpush2.msra.mxu0 %v965
    %2435 = vmatprep.subr.mxu0 %v962
    %2436 = vmatpush2.msra.mxu0 %v961
    %2437 = vmatprep.subr.mxu0 %v958
    %2438 = vmatpush2.msra.mxu0 %v957
    %2439 = vmatprep.subr.mxu0 %v954
    %2440 = vmatpush2.msra.mxu0 %v953
    %2441 = vmatprep.subr.mxu0 %v950
    %2442 = vmatpush2.msra.mxu0 %v949
    %2443 = vmatprep.subr.mxu0 %v946
    %2444 = vmatpush2.msra.mxu0 %v945
    %2445 = vmatprep.mubr.f32.mxu0 %v2203
    %2446 = vmatmul.mubr.f32.gmra.mxu0 %v2380
    %v2447 = vpop.f32.mrf.mxu0
    %v2448 = vadd.f32 %v617, %v2447
    %v2449 = vpop.f32.mrf.mxu0
    %v2450 = vadd.f32 %v621, %v2449
    %2451 = vdwg.mxu0
    %2452 = vmatprep.subr.mxu0 %v944
    %2453 = vmatpush1.msra.mxu0 %v943
    %2454 = vmatprep.subr.mxu0 %v940
    %2455 = vmatpush1.msra.mxu0 %v939
    %2456 = vmatprep.subr.mxu0 %v936
    %2457 = vmatpush1.msra.mxu0 %v935
    %2458 = vmatprep.subr.mxu0 %v932
    %2459 = vmatpush1.msra.mxu0 %v931
    %2460 = vmatprep.subr.mxu0 %v928
    %2461 = vmatpush1.msra.mxu0 %v927
    %2462 = vmatprep.subr.mxu0 %v924
    %2463 = vmatpush1.msra.mxu0 %v923
    %2464 = vmatprep.subr.mxu0 %v920
    %2465 = vmatpush1.msra.mxu0 %v919
    %2466 = vmatprep.subr.mxu0 %v916
    %2467 = vmatpush1.msra.mxu0 %v915
    %2468 = vmatprep.subr.mxu0 %v912
    %2469 = vmatpush1.msra.mxu0 %v911
    %2470 = vmatprep.subr.mxu0 %v908
    %2471 = vmatpush1.msra.mxu0 %v907
    %2472 = vmatprep.subr.mxu0 %v904
    %2473 = vmatpush1.msra.mxu0 %v903
    %2474 = vmatprep.subr.mxu0 %v900
    %2475 = vmatpush1.msra.mxu0 %v899
    %2476 = vmatprep.subr.mxu0 %v896
    %2477 = vmatpush1.msra.mxu0 %v895
    %2478 = vmatprep.subr.mxu0 %v892
    %2479 = vmatpush1.msra.mxu0 %v891
    %2480 = vmatprep.subr.mxu0 %v888
    %2481 = vmatpush1.msra.mxu0 %v887
    %2482 = vmatprep.subr.mxu0 %v884
    %2483 = vmatpush1.msra.mxu0 %v883
    %2484 = vmatprep.subr.mxu0 %v1008
    %2485 = vmatpush2.msra.mxu0 %v1007
    %2486 = vmatprep.subr.mxu0 %v1004
    %2487 = vmatpush2.msra.mxu0 %v1003
    %2488 = vmatprep.subr.mxu0 %v1000
    %2489 = vmatpush2.msra.mxu0 %v999
    %2490 = vmatprep.subr.mxu0 %v996
    %2491 = vmatpush2.msra.mxu0 %v995
    %2492 = vmatprep.subr.mxu0 %v992
    %2493 = vmatpush2.msra.mxu0 %v991
    %2494 = vmatprep.subr.mxu0 %v988
    %2495 = vmatpush2.msra.mxu0 %v987
    %2496 = vmatprep.subr.mxu0 %v984
    %2497 = vmatpush2.msra.mxu0 %v983
    %2498 = vmatprep.subr.mxu0 %v980
    %2499 = vmatpush2.msra.mxu0 %v979
    %2500 = vmatprep.subr.mxu0 %v976
    %2501 = vmatpush2.msra.mxu0 %v975
    %2502 = vmatprep.subr.mxu0 %v972
    %2503 = vmatpush2.msra.mxu0 %v971
    %2504 = vmatprep.subr.mxu0 %v968
    %2505 = vmatpush2.msra.mxu0 %v967
    %2506 = vmatprep.subr.mxu0 %v964
    %2507 = vmatpush2.msra.mxu0 %v963
    %2508 = vmatprep.subr.mxu0 %v960
    %2509 = vmatpush2.msra.mxu0 %v959
    %2510 = vmatprep.subr.mxu0 %v956
    %2511 = vmatpush2.msra.mxu0 %v955
    %2512 = vmatprep.subr.mxu0 %v952
    %2513 = vmatpush2.msra.mxu0 %v951
    %2514 = vmatprep.subr.mxu0 %v948
    %2515 = vmatpush2.msra.mxu0 %v947
    %2516 = vmatprep.mubr.f32.mxu0 %v2203
    %2517 = vmatmul.mubr.f32.gmra.mxu0 %v2380
    %v2518 = vpop.f32.mrf.mxu0
    %v2519 = vadd.f32 %v625, %v2518
    %v2520 = vpop.f32.mrf.mxu0
    %v2521 = vadd.f32 %v629, %v2520
    %2522 = vdwg.mxu0
    %v2523 = vxor.u32 %v2448, 2147483648
    %v2524 = vmul.f32 %v2523, 1.442695
    %v2525 = vpow.pop %v2524
    %v2526 = vadd.f32 %v2525, 1.0
    %v2527 = vrcp.pop %v2526
    %v2528 = vmul.f32 1.0, %v2527
    %v2529 = vxor.u32 %v2450, 2147483648
    %v2530 = vmul.f32 %v2529, 1.442695
    %v2531 = vpow.pop %v2530
    %v2532 = vadd.f32 %v2531, 1.0
    %v2533 = vrcp.pop %v2532
    %v2534 = vmul.f32 1.0, %v2533
    %v2535 = vtanh.pop %v2519
    %v2536 = vxor.u32 %v2521, 2147483648
    %v2537 = vmul.f32 %v2536, 1.442695
    %v2538 = vpow.pop %v2537
    %v2539 = vadd.f32 %v2538, 1.0
    %v2540 = vrcp.pop %v2539
    %v2541 = vmul.f32 1.0, %v2540
    %v2542 = vmul.f32 %v2534, %v2201
    %v2543 = vmul.f32 %v2528, %v2535
    %v2544 = vadd.f32 %v2542, %v2543
    %v2545 = vtanh.pop %v2544
    %v2546 = vmul.f32 %v2541, %v2545
    %s2547 = smul.u32 5, 4
    %s2548 = smul.addr %s2547, 8
    %s2549 = scalar_lea.vmem [#allocation2], %s2548
    %v2550 = vld [vmem:[%s2549] sm:$0xff]
    %v2551 = vld [vmem:[%s2549 + $0x8] sm:$0xff]
    %v2552 = vld [vmem:[%s2549 + $0x10] sm:$0xff]
    %v2553 = vld [vmem:[%s2549 + $0x18] sm:$0xff]
    %2554 = vmatprep.subr.mxu0 %v708
    %2555 = vmatpush1.msra.mxu0 %v707
    %2556 = vmatprep.subr.mxu0 %v704
    %2557 = vmatpush1.msra.mxu0 %v703
    %2558 = vmatprep.subr.mxu0 %v700
    %2559 = vmatpush1.msra.mxu0 %v699
    %2560 = vmatprep.subr.mxu0 %v696
    %2561 = vmatpush1.msra.mxu0 %v695
    %2562 = vmatprep.subr.mxu0 %v692
    %2563 = vmatpush1.msra.mxu0 %v691
    %2564 = vmatprep.subr.mxu0 %v688
    %2565 = vmatpush1.msra.mxu0 %v687
    %2566 = vmatprep.subr.mxu0 %v684
    %2567 = vmatpush1.msra.mxu0 %v683
    %2568 = vmatprep.subr.mxu0 %v680
    %2569 = vmatpush1.msra.mxu0 %v679
    %2570 = vmatprep.subr.mxu0 %v676
    %2571 = vmatpush1.msra.mxu0 %v675
    %2572 = vmatprep.subr.mxu0 %v672
    %2573 = vmatpush1.msra.mxu0 %v671
    %2574 = vmatprep.subr.mxu0 %v668
    %2575 = vmatpush1.msra.mxu0 %v667
    %2576 = vmatprep.subr.mxu0 %v664
    %2577 = vmatpush1.msra.mxu0 %v663
    %2578 = vmatprep.subr.mxu0 %v660
    %2579 = vmatpush1.msra.mxu0 %v659
    %2580 = vmatprep.subr.mxu0 %v656
    %2581 = vmatpush1.msra.mxu0 %v655
    %2582 = vmatprep.subr.mxu0 %v652
    %2583 = vmatpush1.msra.mxu0 %v651
    %2584 = vmatprep.subr.mxu0 %v648
    %2585 = vmatpush1.msra.mxu0 %v647
    %2586 = vmatprep.subr.mxu0 0.0
    %2587 = vmatpush2.msra.mxu0 0.0
    %2588 = vmatprep.subr.mxu0 0.0
    %2589 = vmatpush2.msra.mxu0 0.0
    %2590 = vmatprep.subr.mxu0 0.0
    %2591 = vmatpush2.msra.mxu0 0.0
    %2592 = vmatprep.subr.mxu0 0.0
    %2593 = vmatpush2.msra.mxu0 0.0
    %2594 = vmatprep.subr.mxu0 0.0
    %2595 = vmatpush2.msra.mxu0 0.0
    %2596 = vmatprep.subr.mxu0 0.0
    %2597 = vmatpush2.msra.mxu0 0.0
    %2598 = vmatprep.subr.mxu0 0.0
    %2599 = vmatpush2.msra.mxu0 0.0
    %2600 = vmatprep.subr.mxu0 0.0
    %2601 = vmatpush2.msra.mxu0 0.0
    %2602 = vmatprep.subr.mxu0 0.0
    %2603 = vmatpush2.msra.mxu0 0.0
    %2604 = vmatprep.subr.mxu0 0.0
    %2605 = vmatpush2.msra.mxu0 0.0
    %2606 = vmatprep.subr.mxu0 0.0
    %2607 = vmatpush2.msra.mxu0 0.0
    %2608 = vmatprep.subr.mxu0 0.0
    %2609 = vmatpush2.msra.mxu0 0.0
    %2610 = vmatprep.subr.mxu0 0.0
    %2611 = vmatpush2.msra.mxu0 0.0
    %2612 = vmatprep.subr.mxu0 0.0
    %2613 = vmatpush2.msra.mxu0 0.0
    %2614 = vmatprep.subr.mxu0 0.0
    %2615 = vmatpush2.msra.mxu0 0.0
    %2616 = vmatprep.subr.mxu0 0.0
    %2617 = vmatpush2.msra.mxu0 0.0
    %2618 = vmatprep.mubr.f32.mxu0 0.0
    %2619 = vmatmul.mubr.f32.gmra.mxu0 %v2380
    %v2620 = vpop.f32.mrf.mxu0
    %v2621 = vadd.f32 0.0, %v2620
    %v2622 = vpop.f32.mrf.mxu0
    %v2623 = vadd.f32 0.0, %v2622
    %2624 = vdwg.mxu0
    %2625 = vmatprep.subr.mxu0 %v710
    %2626 = vmatpush1.msra.mxu0 %v709
    %2627 = vmatprep.subr.mxu0 %v706
    %2628 = vmatpush1.msra.mxu0 %v705
    %2629 = vmatprep.subr.mxu0 %v702
    %2630 = vmatpush1.msra.mxu0 %v701
    %2631 = vmatprep.subr.mxu0 %v698
    %2632 = vmatpush1.msra.mxu0 %v697
    %2633 = vmatprep.subr.mxu0 %v694
    %2634 = vmatpush1.msra.mxu0 %v693
    %2635 = vmatprep.subr.mxu0 %v690
    %2636 = vmatpush1.msra.mxu0 %v689
    %2637 = vmatprep.subr.mxu0 %v686
    %2638 = vmatpush1.msra.mxu0 %v685
    %2639 = vmatprep.subr.mxu0 %v682
    %2640 = vmatpush1.msra.mxu0 %v681
    %2641 = vmatprep.subr.mxu0 %v678
    %2642 = vmatpush1.msra.mxu0 %v677
    %2643 = vmatprep.subr.mxu0 %v674
    %2644 = vmatpush1.msra.mxu0 %v673
    %2645 = vmatprep.subr.mxu0 %v670
    %2646 = vmatpush1.msra.mxu0 %v669
    %2647 = vmatprep.subr.mxu0 %v666
    %2648 = vmatpush1.msra.mxu0 %v665
    %2649 = vmatprep.subr.mxu0 %v662
    %2650 = vmatpush1.msra.mxu0 %v661
    %2651 = vmatprep.subr.mxu0 %v658
    %2652 = vmatpush1.msra.mxu0 %v657
    %2653 = vmatprep.subr.mxu0 %v654
    %2654 = vmatpush1.msra.mxu0 %v653
    %2655 = vmatprep.subr.mxu0 %v650
    %2656 = vmatpush1.msra.mxu0 %v649
    %2657 = vmatprep.subr.mxu0 0.0
    %2658 = vmatpush2.msra.mxu0 0.0
    %2659 = vmatprep.subr.mxu0 0.0
    %2660 = vmatpush2.msra.mxu0 0.0
    %2661 = vmatprep.subr.mxu0 0.0
    %2662 = vmatpush2.msra.mxu0 0.0
    %2663 = vmatprep.subr.mxu0 0.0
    %2664 = vmatpush2.msra.mxu0 0.0
    %2665 = vmatprep.subr.mxu0 0.0
    %2666 = vmatpush2.msra.mxu0 0.0
    %2667 = vmatprep.subr.mxu0 0.0
    %2668 = vmatpush2.msra.mxu0 0.0
    %2669 = vmatprep.subr.mxu0 0.0
    %2670 = vmatpush2.msra.mxu0 0.0
    %2671 = vmatprep.subr.mxu0 0.0
    %2672 = vmatpush2.msra.mxu0 0.0
    %2673 = vmatprep.subr.mxu0 0.0
    %2674 = vmatpush2.msra.mxu0 0.0
    %2675 = vmatprep.subr.mxu0 0.0
    %2676 = vmatpush2.msra.mxu0 0.0
    %2677 = vmatprep.subr.mxu0 0.0
    %2678 = vmatpush2.msra.mxu0 0.0
    %2679 = vmatprep.subr.mxu0 0.0
    %2680 = vmatpush2.msra.mxu0 0.0
    %2681 = vmatprep.subr.mxu0 0.0
    %2682 = vmatpush2.msra.mxu0 0.0
    %2683 = vmatprep.subr.mxu0 0.0
    %2684 = vmatpush2.msra.mxu0 0.0
    %2685 = vmatprep.subr.mxu0 0.0
    %2686 = vmatpush2.msra.mxu0 0.0
    %2687 = vmatprep.subr.mxu0 0.0
    %2688 = vmatpush2.msra.mxu0 0.0
    %2689 = vmatprep.mubr.f32.mxu0 0.0
    %2690 = vmatmul.mubr.f32.gmra.mxu0 %v2380
    %v2691 = vpop.f32.mrf.mxu0
    %v2692 = vadd.f32 0.0, %v2691
    %v2693 = vpop.f32.mrf.mxu0
    %v2694 = vadd.f32 0.0, %v2693
    %2695 = vdwg.mxu0
    %v2696 = vadd.f32 %v2550, %v2621
    %v2697 = vadd.f32 %v2551, %v2623
    %v2698 = vadd.f32 %v2552, %v2692
    %v2699 = vadd.f32 %v2553, %v2694
    %v2700 = vxor.u32 %v2696, 2147483648
    %v2701 = vmul.f32 %v2700, 1.442695
    %v2702 = vpow.pop %v2701
    %v2703 = vadd.f32 %v2702, 1.0
    %v2704 = vrcp.pop %v2703
    %v2705 = vmul.f32 1.0, %v2704
    %v2706 = vxor.u32 %v2697, 2147483648
    %v2707 = vmul.f32 %v2706, 1.442695
    %v2708 = vpow.pop %v2707
    %v2709 = vadd.f32 %v2708, 1.0
    %v2710 = vrcp.pop %v2709
    %v2711 = vmul.f32 1.0, %v2710
    %v2712 = vtanh.pop %v2698
    %v2713 = vxor.u32 %v2699, 2147483648
    %v2714 = vmul.f32 %v2713, 1.442695
    %v2715 = vpow.pop %v2714
    %v2716 = vadd.f32 %v2715, 1.0
    %v2717 = vrcp.pop %v2716
    %v2718 = vmul.f32 1.0, %v2717
    %v2719 = vmul.f32 %v2711, %v2378
    %v2720 = vmul.f32 %v2705, %v2712
    %v2721 = vadd.f32 %v2719, %v2720
    %v2722 = vtanh.pop %v2721
    %v2723 = vmul.f32 %v2718, %v2722
    %2724 = vmatprep.subr.mxu0 %v942
    %2725 = vmatpush1.msra.mxu0 %v941
    %2726 = vmatprep.subr.mxu0 %v938
    %2727 = vmatpush1.msra.mxu0 %v937
    %2728 = vmatprep.subr.mxu0 %v934
    %2729 = vmatpush1.msra.mxu0 %v933
    %2730 = vmatprep.subr.mxu0 %v930
    %2731 = vmatpush1.msra.mxu0 %v929
    %2732 = vmatprep.subr.mxu0 %v926
    %2733 = vmatpush1.msra.mxu0 %v925
    %2734 = vmatprep.subr.mxu0 %v922
    %2735 = vmatpush1.msra.mxu0 %v921
    %2736 = vmatprep.subr.mxu0 %v918
    %2737 = vmatpush1.msra.mxu0 %v917
    %2738 = vmatprep.subr.mxu0 %v914
    %2739 = vmatpush1.msra.mxu0 %v913
    %2740 = vmatprep.subr.mxu0 %v910
    %2741 = vmatpush1.msra.mxu0 %v909
    %2742 = vmatprep.subr.mxu0 %v906
    %2743 = vmatpush1.msra.mxu0 %v905
    %2744 = vmatprep.subr.mxu0 %v902
    %2745 = vmatpush1.msra.mxu0 %v901
    %2746 = vmatprep.subr.mxu0 %v898
    %2747 = vmatpush1.msra.mxu0 %v897
    %2748 = vmatprep.subr.mxu0 %v894
    %2749 = vmatpush1.msra.mxu0 %v893
    %2750 = vmatprep.subr.mxu0 %v890
    %2751 = vmatpush1.msra.mxu0 %v889
    %2752 = vmatprep.subr.mxu0 %v886
    %2753 = vmatpush1.msra.mxu0 %v885
    %2754 = vmatprep.subr.mxu0 %v882
    %2755 = vmatpush1.msra.mxu0 %v881
    %2756 = vmatprep.subr.mxu0 %v1006
    %2757 = vmatpush2.msra.mxu0 %v1005
    %2758 = vmatprep.subr.mxu0 %v1002
    %2759 = vmatpush2.msra.mxu0 %v1001
    %2760 = vmatprep.subr.mxu0 %v998
    %2761 = vmatpush2.msra.mxu0 %v997
    %2762 = vmatprep.subr.mxu0 %v994
    %2763 = vmatpush2.msra.mxu0 %v993
    %2764 = vmatprep.subr.mxu0 %v990
    %2765 = vmatpush2.msra.mxu0 %v989
    %2766 = vmatprep.subr.mxu0 %v986
    %2767 = vmatpush2.msra.mxu0 %v985
    %2768 = vmatprep.subr.mxu0 %v982
    %2769 = vmatpush2.msra.mxu0 %v981
    %2770 = vmatprep.subr.mxu0 %v978
    %2771 = vmatpush2.msra.mxu0 %v977
    %2772 = vmatprep.subr.mxu0 %v974
    %2773 = vmatpush2.msra.mxu0 %v973
    %2774 = vmatprep.subr.mxu0 %v970
    %2775 = vmatpush2.msra.mxu0 %v969
    %2776 = vmatprep.subr.mxu0 %v966
    %2777 = vmatpush2.msra.mxu0 %v965
    %2778 = vmatprep.subr.mxu0 %v962
    %2779 = vmatpush2.msra.mxu0 %v961
    %2780 = vmatprep.subr.mxu0 %v958
    %2781 = vmatpush2.msra.mxu0 %v957
    %2782 = vmatprep.subr.mxu0 %v954
    %2783 = vmatpush2.msra.mxu0 %v953
    %2784 = vmatprep.subr.mxu0 %v950
    %2785 = vmatpush2.msra.mxu0 %v949
    %2786 = vmatprep.subr.mxu0 %v946
    %2787 = vmatpush2.msra.mxu0 %v945
    %2788 = vmatprep.mubr.f32.mxu0 %v2546
    %2789 = vmatmul.mubr.f32.gmra.mxu0 %v2723
    %v2790 = vpop.f32.mrf.mxu0
    %v2791 = vadd.f32 %v617, %v2790
    %v2792 = vpop.f32.mrf.mxu0
    %v2793 = vadd.f32 %v621, %v2792
    %2794 = vdwg.mxu0
    %2795 = vmatprep.subr.mxu0 %v944
    %2796 = vmatpush1.msra.mxu0 %v943
    %2797 = vmatprep.subr.mxu0 %v940
    %2798 = vmatpush1.msra.mxu0 %v939
    %2799 = vmatprep.subr.mxu0 %v936
    %2800 = vmatpush1.msra.mxu0 %v935
    %2801 = vmatprep.subr.mxu0 %v932
    %2802 = vmatpush1.msra.mxu0 %v931
    %2803 = vmatprep.subr.mxu0 %v928
    %2804 = vmatpush1.msra.mxu0 %v927
    %2805 = vmatprep.subr.mxu0 %v924
    %2806 = vmatpush1.msra.mxu0 %v923
    %2807 = vmatprep.subr.mxu0 %v920
    %2808 = vmatpush1.msra.mxu0 %v919
    %2809 = vmatprep.subr.mxu0 %v916
    %2810 = vmatpush1.msra.mxu0 %v915
    %2811 = vmatprep.subr.mxu0 %v912
    %2812 = vmatpush1.msra.mxu0 %v911
    %2813 = vmatprep.subr.mxu0 %v908
    %2814 = vmatpush1.msra.mxu0 %v907
    %2815 = vmatprep.subr.mxu0 %v904
    %2816 = vmatpush1.msra.mxu0 %v903
    %2817 = vmatprep.subr.mxu0 %v900
    %2818 = vmatpush1.msra.mxu0 %v899
    %2819 = vmatprep.subr.mxu0 %v896
    %2820 = vmatpush1.msra.mxu0 %v895
    %2821 = vmatprep.subr.mxu0 %v892
    %2822 = vmatpush1.msra.mxu0 %v891
    %2823 = vmatprep.subr.mxu0 %v888
    %2824 = vmatpush1.msra.mxu0 %v887
    %2825 = vmatprep.subr.mxu0 %v884
    %2826 = vmatpush1.msra.mxu0 %v883
    %2827 = vmatprep.subr.mxu0 %v1008
    %2828 = vmatpush2.msra.mxu0 %v1007
    %2829 = vmatprep.subr.mxu0 %v1004
    %2830 = vmatpush2.msra.mxu0 %v1003
    %2831 = vmatprep.subr.mxu0 %v1000
    %2832 = vmatpush2.msra.mxu0 %v999
    %2833 = vmatprep.subr.mxu0 %v996
    %2834 = vmatpush2.msra.mxu0 %v995
    %2835 = vmatprep.subr.mxu0 %v992
    %2836 = vmatpush2.msra.mxu0 %v991
    %2837 = vmatprep.subr.mxu0 %v988
    %2838 = vmatpush2.msra.mxu0 %v987
    %2839 = vmatprep.subr.mxu0 %v984
    %2840 = vmatpush2.msra.mxu0 %v983
    %2841 = vmatprep.subr.mxu0 %v980
    %2842 = vmatpush2.msra.mxu0 %v979
    %2843 = vmatprep.subr.mxu0 %v976
    %2844 = vmatpush2.msra.mxu0 %v975
    %2845 = vmatprep.subr.mxu0 %v972
    %2846 = vmatpush2.msra.mxu0 %v971
    %2847 = vmatprep.subr.mxu0 %v968
    %2848 = vmatpush2.msra.mxu0 %v967
    %2849 = vmatprep.subr.mxu0 %v964
    %2850 = vmatpush2.msra.mxu0 %v963
    %2851 = vmatprep.subr.mxu0 %v960
    %2852 = vmatpush2.msra.mxu0 %v959
    %2853 = vmatprep.subr.mxu0 %v956
    %2854 = vmatpush2.msra.mxu0 %v955
    %2855 = vmatprep.subr.mxu0 %v952
    %2856 = vmatpush2.msra.mxu0 %v951
    %2857 = vmatprep.subr.mxu0 %v948
    %2858 = vmatpush2.msra.mxu0 %v947
    %2859 = vmatprep.mubr.f32.mxu0 %v2546
    %2860 = vmatmul.mubr.f32.gmra.mxu0 %v2723
    %v2861 = vpop.f32.mrf.mxu0
    %v2862 = vadd.f32 %v625, %v2861
    %v2863 = vpop.f32.mrf.mxu0
    %v2864 = vadd.f32 %v629, %v2863
    %2865 = vdwg.mxu0
    %v2866 = vxor.u32 %v2791, 2147483648
    %v2867 = vmul.f32 %v2866, 1.442695
    %v2868 = vpow.pop %v2867
    %v2869 = vadd.f32 %v2868, 1.0
    %v2870 = vrcp.pop %v2869
    %v2871 = vmul.f32 1.0, %v2870
    %v2872 = vxor.u32 %v2793, 2147483648
    %v2873 = vmul.f32 %v2872, 1.442695
    %v2874 = vpow.pop %v2873
    %v2875 = vadd.f32 %v2874, 1.0
    %v2876 = vrcp.pop %v2875
    %v2877 = vmul.f32 1.0, %v2876
    %v2878 = vtanh.pop %v2862
    %v2879 = vxor.u32 %v2864, 2147483648
    %v2880 = vmul.f32 %v2879, 1.442695
    %v2881 = vpow.pop %v2880
    %v2882 = vadd.f32 %v2881, 1.0
    %v2883 = vrcp.pop %v2882
    %v2884 = vmul.f32 1.0, %v2883
    %v2885 = vmul.f32 %v2877, %v2544
    %v2886 = vmul.f32 %v2871, %v2878
    %v2887 = vadd.f32 %v2885, %v2886
    %v2888 = vtanh.pop %v2887
    %v2889 = vmul.f32 %v2884, %v2888
    %s2890 = smul.u32 6, 4
    %s2891 = smul.addr %s2890, 8
    %s2892 = scalar_lea.vmem [#allocation2], %s2891
    %v2893 = vld [vmem:[%s2892] sm:$0xff]
    %v2894 = vld [vmem:[%s2892 + $0x8] sm:$0xff]
    %v2895 = vld [vmem:[%s2892 + $0x10] sm:$0xff]
    %v2896 = vld [vmem:[%s2892 + $0x18] sm:$0xff]
    %2897 = vmatprep.subr.mxu0 %v708
    %2898 = vmatpush1.msra.mxu0 %v707
    %2899 = vmatprep.subr.mxu0 %v704
    %2900 = vmatpush1.msra.mxu0 %v703
    %2901 = vmatprep.subr.mxu0 %v700
    %2902 = vmatpush1.msra.mxu0 %v699
    %2903 = vmatprep.subr.mxu0 %v696
    %2904 = vmatpush1.msra.mxu0 %v695
    %2905 = vmatprep.subr.mxu0 %v692
    %2906 = vmatpush1.msra.mxu0 %v691
    %2907 = vmatprep.subr.mxu0 %v688
    %2908 = vmatpush1.msra.mxu0 %v687
    %2909 = vmatprep.subr.mxu0 %v684
    %2910 = vmatpush1.msra.mxu0 %v683
    %2911 = vmatprep.subr.mxu0 %v680
    %2912 = vmatpush1.msra.mxu0 %v679
    %2913 = vmatprep.subr.mxu0 %v676
    %2914 = vmatpush1.msra.mxu0 %v675
    %2915 = vmatprep.subr.mxu0 %v672
    %2916 = vmatpush1.msra.mxu0 %v671
    %2917 = vmatprep.subr.mxu0 %v668
    %2918 = vmatpush1.msra.mxu0 %v667
    %2919 = vmatprep.subr.mxu0 %v664
    %2920 = vmatpush1.msra.mxu0 %v663
    %2921 = vmatprep.subr.mxu0 %v660
    %2922 = vmatpush1.msra.mxu0 %v659
    %2923 = vmatprep.subr.mxu0 %v656
    %2924 = vmatpush1.msra.mxu0 %v655
    %2925 = vmatprep.subr.mxu0 %v652
    %2926 = vmatpush1.msra.mxu0 %v651
    %2927 = vmatprep.subr.mxu0 %v648
    %2928 = vmatpush1.msra.mxu0 %v647
    %2929 = vmatprep.subr.mxu0 0.0
    %2930 = vmatpush2.msra.mxu0 0.0
    %2931 = vmatprep.subr.mxu0 0.0
    %2932 = vmatpush2.msra.mxu0 0.0
    %2933 = vmatprep.subr.mxu0 0.0
    %2934 = vmatpush2.msra.mxu0 0.0
    %2935 = vmatprep.subr.mxu0 0.0
    %2936 = vmatpush2.msra.mxu0 0.0
    %2937 = vmatprep.subr.mxu0 0.0
    %2938 = vmatpush2.msra.mxu0 0.0
    %2939 = vmatprep.subr.mxu0 0.0
    %2940 = vmatpush2.msra.mxu0 0.0
    %2941 = vmatprep.subr.mxu0 0.0
    %2942 = vmatpush2.msra.mxu0 0.0
    %2943 = vmatprep.subr.mxu0 0.0
    %2944 = vmatpush2.msra.mxu0 0.0
    %2945 = vmatprep.subr.mxu0 0.0
    %2946 = vmatpush2.msra.mxu0 0.0
    %2947 = vmatprep.subr.mxu0 0.0
    %2948 = vmatpush2.msra.mxu0 0.0
    %2949 = vmatprep.subr.mxu0 0.0
    %2950 = vmatpush2.msra.mxu0 0.0
    %2951 = vmatprep.subr.mxu0 0.0
    %2952 = vmatpush2.msra.mxu0 0.0
    %2953 = vmatprep.subr.mxu0 0.0
    %2954 = vmatpush2.msra.mxu0 0.0
    %2955 = vmatprep.subr.mxu0 0.0
    %2956 = vmatpush2.msra.mxu0 0.0
    %2957 = vmatprep.subr.mxu0 0.0
    %2958 = vmatpush2.msra.mxu0 0.0
    %2959 = vmatprep.subr.mxu0 0.0
    %2960 = vmatpush2.msra.mxu0 0.0
    %2961 = vmatprep.mubr.f32.mxu0 0.0
    %2962 = vmatmul.mubr.f32.gmra.mxu0 %v2723
    %v2963 = vpop.f32.mrf.mxu0
    %v2964 = vadd.f32 0.0, %v2963
    %v2965 = vpop.f32.mrf.mxu0
    %v2966 = vadd.f32 0.0, %v2965
    %2967 = vdwg.mxu0
    %2968 = vmatprep.subr.mxu0 %v710
    %2969 = vmatpush1.msra.mxu0 %v709
    %2970 = vmatprep.subr.mxu0 %v706
    %2971 = vmatpush1.msra.mxu0 %v705
    %2972 = vmatprep.subr.mxu0 %v702
    %2973 = vmatpush1.msra.mxu0 %v701
    %2974 = vmatprep.subr.mxu0 %v698
    %2975 = vmatpush1.msra.mxu0 %v697
    %2976 = vmatprep.subr.mxu0 %v694
    %2977 = vmatpush1.msra.mxu0 %v693
    %2978 = vmatprep.subr.mxu0 %v690
    %2979 = vmatpush1.msra.mxu0 %v689
    %2980 = vmatprep.subr.mxu0 %v686
    %2981 = vmatpush1.msra.mxu0 %v685
    %2982 = vmatprep.subr.mxu0 %v682
    %2983 = vmatpush1.msra.mxu0 %v681
    %2984 = vmatprep.subr.mxu0 %v678
    %2985 = vmatpush1.msra.mxu0 %v677
    %2986 = vmatprep.subr.mxu0 %v674
    %2987 = vmatpush1.msra.mxu0 %v673
    %2988 = vmatprep.subr.mxu0 %v670
    %2989 = vmatpush1.msra.mxu0 %v669
    %2990 = vmatprep.subr.mxu0 %v666
    %2991 = vmatpush1.msra.mxu0 %v665
    %2992 = vmatprep.subr.mxu0 %v662
    %2993 = vmatpush1.msra.mxu0 %v661
    %2994 = vmatprep.subr.mxu0 %v658
    %2995 = vmatpush1.msra.mxu0 %v657
    %2996 = vmatprep.subr.mxu0 %v654
    %2997 = vmatpush1.msra.mxu0 %v653
    %2998 = vmatprep.subr.mxu0 %v650
    %2999 = vmatpush1.msra.mxu0 %v649
    %3000 = vmatprep.subr.mxu0 0.0
    %3001 = vmatpush2.msra.mxu0 0.0
    %3002 = vmatprep.subr.mxu0 0.0
    %3003 = vmatpush2.msra.mxu0 0.0
    %3004 = vmatprep.subr.mxu0 0.0
    %3005 = vmatpush2.msra.mxu0 0.0
    %3006 = vmatprep.subr.mxu0 0.0
    %3007 = vmatpush2.msra.mxu0 0.0
    %3008 = vmatprep.subr.mxu0 0.0
    %3009 = vmatpush2.msra.mxu0 0.0
    %3010 = vmatprep.subr.mxu0 0.0
    %3011 = vmatpush2.msra.mxu0 0.0
    %3012 = vmatprep.subr.mxu0 0.0
    %3013 = vmatpush2.msra.mxu0 0.0
    %3014 = vmatprep.subr.mxu0 0.0
    %3015 = vmatpush2.msra.mxu0 0.0
    %3016 = vmatprep.subr.mxu0 0.0
    %3017 = vmatpush2.msra.mxu0 0.0
    %3018 = vmatprep.subr.mxu0 0.0
    %3019 = vmatpush2.msra.mxu0 0.0
    %3020 = vmatprep.subr.mxu0 0.0
    %3021 = vmatpush2.msra.mxu0 0.0
    %3022 = vmatprep.subr.mxu0 0.0
    %3023 = vmatpush2.msra.mxu0 0.0
    %3024 = vmatprep.subr.mxu0 0.0
    %3025 = vmatpush2.msra.mxu0 0.0
    %3026 = vmatprep.subr.mxu0 0.0
    %3027 = vmatpush2.msra.mxu0 0.0
    %3028 = vmatprep.subr.mxu0 0.0
    %3029 = vmatpush2.msra.mxu0 0.0
    %3030 = vmatprep.subr.mxu0 0.0
    %3031 = vmatpush2.msra.mxu0 0.0
    %3032 = vmatprep.mubr.f32.mxu0 0.0
    %3033 = vmatmul.mubr.f32.gmra.mxu0 %v2723
    %v3034 = vpop.f32.mrf.mxu0
    %v3035 = vadd.f32 0.0, %v3034
    %v3036 = vpop.f32.mrf.mxu0
    %v3037 = vadd.f32 0.0, %v3036
    %3038 = vdwg.mxu0
    %v3039 = vadd.f32 %v2893, %v2964
    %v3040 = vadd.f32 %v2894, %v2966
    %v3041 = vadd.f32 %v2895, %v3035
    %v3042 = vadd.f32 %v2896, %v3037
    %v3043 = vxor.u32 %v3039, 2147483648
    %v3044 = vmul.f32 %v3043, 1.442695
    %v3045 = vpow.pop %v3044
    %v3046 = vadd.f32 %v3045, 1.0
    %v3047 = vrcp.pop %v3046
    %v3048 = vmul.f32 1.0, %v3047
    %v3049 = vxor.u32 %v3040, 2147483648
    %v3050 = vmul.f32 %v3049, 1.442695
    %v3051 = vpow.pop %v3050
    %v3052 = vadd.f32 %v3051, 1.0
    %v3053 = vrcp.pop %v3052
    %v3054 = vmul.f32 1.0, %v3053
    %v3055 = vtanh.pop %v3041
    %v3056 = vxor.u32 %v3042, 2147483648
    %v3057 = vmul.f32 %v3056, 1.442695
    %v3058 = vpow.pop %v3057
    %v3059 = vadd.f32 %v3058, 1.0
    %v3060 = vrcp.pop %v3059
    %v3061 = vmul.f32 1.0, %v3060
    %v3062 = vmul.f32 %v3054, %v2721
    %v3063 = vmul.f32 %v3048, %v3055
    %v3064 = vadd.f32 %v3062, %v3063
    %v3065 = vtanh.pop %v3064
    %v3066 = vmul.f32 %v3061, %v3065
    %3067 = vmatprep.subr.mxu0 %v942
    %3068 = vmatpush1.msra.mxu0 %v941
    %3069 = vmatprep.subr.mxu0 %v938
    %3070 = vmatpush1.msra.mxu0 %v937
    %3071 = vmatprep.subr.mxu0 %v934
    %3072 = vmatpush1.msra.mxu0 %v933
    %3073 = vmatprep.subr.mxu0 %v930
    %3074 = vmatpush1.msra.mxu0 %v929
    %3075 = vmatprep.subr.mxu0 %v926
    %3076 = vmatpush1.msra.mxu0 %v925
    %3077 = vmatprep.subr.mxu0 %v922
    %3078 = vmatpush1.msra.mxu0 %v921
    %3079 = vmatprep.subr.mxu0 %v918
    %3080 = vmatpush1.msra.mxu0 %v917
    %3081 = vmatprep.subr.mxu0 %v914
    %3082 = vmatpush1.msra.mxu0 %v913
    %3083 = vmatprep.subr.mxu0 %v910
    %3084 = vmatpush1.msra.mxu0 %v909
    %3085 = vmatprep.subr.mxu0 %v906
    %3086 = vmatpush1.msra.mxu0 %v905
    %3087 = vmatprep.subr.mxu0 %v902
    %3088 = vmatpush1.msra.mxu0 %v901
    %3089 = vmatprep.subr.mxu0 %v898
    %3090 = vmatpush1.msra.mxu0 %v897
    %3091 = vmatprep.subr.mxu0 %v894
    %3092 = vmatpush1.msra.mxu0 %v893
    %3093 = vmatprep.subr.mxu0 %v890
    %3094 = vmatpush1.msra.mxu0 %v889
    %3095 = vmatprep.subr.mxu0 %v886
    %3096 = vmatpush1.msra.mxu0 %v885
    %3097 = vmatprep.subr.mxu0 %v882
    %3098 = vmatpush1.msra.mxu0 %v881
    %3099 = vmatprep.subr.mxu0 %v1006
    %3100 = vmatpush2.msra.mxu0 %v1005
    %3101 = vmatprep.subr.mxu0 %v1002
    %3102 = vmatpush2.msra.mxu0 %v1001
    %3103 = vmatprep.subr.mxu0 %v998
    %3104 = vmatpush2.msra.mxu0 %v997
    %3105 = vmatprep.subr.mxu0 %v994
    %3106 = vmatpush2.msra.mxu0 %v993
    %3107 = vmatprep.subr.mxu0 %v990
    %3108 = vmatpush2.msra.mxu0 %v989
    %3109 = vmatprep.subr.mxu0 %v986
    %3110 = vmatpush2.msra.mxu0 %v985
    %3111 = vmatprep.subr.mxu0 %v982
    %3112 = vmatpush2.msra.mxu0 %v981
    %3113 = vmatprep.subr.mxu0 %v978
    %3114 = vmatpush2.msra.mxu0 %v977
    %3115 = vmatprep.subr.mxu0 %v974
    %3116 = vmatpush2.msra.mxu0 %v973
    %3117 = vmatprep.subr.mxu0 %v970
    %3118 = vmatpush2.msra.mxu0 %v969
    %3119 = vmatprep.subr.mxu0 %v966
    %3120 = vmatpush2.msra.mxu0 %v965
    %3121 = vmatprep.subr.mxu0 %v962
    %3122 = vmatpush2.msra.mxu0 %v961
    %3123 = vmatprep.subr.mxu0 %v958
    %3124 = vmatpush2.msra.mxu0 %v957
    %3125 = vmatprep.subr.mxu0 %v954
    %3126 = vmatpush2.msra.mxu0 %v953
    %3127 = vmatprep.subr.mxu0 %v950
    %3128 = vmatpush2.msra.mxu0 %v949
    %3129 = vmatprep.subr.mxu0 %v946
    %3130 = vmatpush2.msra.mxu0 %v945
    %3131 = vmatprep.mubr.f32.mxu0 %v2889
    %3132 = vmatmul.mubr.f32.gmra.mxu0 %v3066
    %v3133 = vpop.f32.mrf.mxu0
    %v3134 = vadd.f32 %v617, %v3133
    %v3135 = vpop.f32.mrf.mxu0
    %v3136 = vadd.f32 %v621, %v3135
    %3137 = vdwg.mxu0
    %3138 = vmatprep.subr.mxu0 %v944
    %3139 = vmatpush1.msra.mxu0 %v943
    %3140 = vmatprep.subr.mxu0 %v940
    %3141 = vmatpush1.msra.mxu0 %v939
    %3142 = vmatprep.subr.mxu0 %v936
    %3143 = vmatpush1.msra.mxu0 %v935
    %3144 = vmatprep.subr.mxu0 %v932
    %3145 = vmatpush1.msra.mxu0 %v931
    %3146 = vmatprep.subr.mxu0 %v928
    %3147 = vmatpush1.msra.mxu0 %v927
    %3148 = vmatprep.subr.mxu0 %v924
    %3149 = vmatpush1.msra.mxu0 %v923
    %3150 = vmatprep.subr.mxu0 %v920
    %3151 = vmatpush1.msra.mxu0 %v919
    %3152 = vmatprep.subr.mxu0 %v916
    %3153 = vmatpush1.msra.mxu0 %v915
    %3154 = vmatprep.subr.mxu0 %v912
    %3155 = vmatpush1.msra.mxu0 %v911
    %3156 = vmatprep.subr.mxu0 %v908
    %3157 = vmatpush1.msra.mxu0 %v907
    %3158 = vmatprep.subr.mxu0 %v904
    %3159 = vmatpush1.msra.mxu0 %v903
    %3160 = vmatprep.subr.mxu0 %v900
    %3161 = vmatpush1.msra.mxu0 %v899
    %3162 = vmatprep.subr.mxu0 %v896
    %3163 = vmatpush1.msra.mxu0 %v895
    %3164 = vmatprep.subr.mxu0 %v892
    %3165 = vmatpush1.msra.mxu0 %v891
    %3166 = vmatprep.subr.mxu0 %v888
    %3167 = vmatpush1.msra.mxu0 %v887
    %3168 = vmatprep.subr.mxu0 %v884
    %3169 = vmatpush1.msra.mxu0 %v883
    %3170 = vmatprep.subr.mxu0 %v1008
    %3171 = vmatpush2.msra.mxu0 %v1007
    %3172 = vmatprep.subr.mxu0 %v1004
    %3173 = vmatpush2.msra.mxu0 %v1003
    %3174 = vmatprep.subr.mxu0 %v1000
    %3175 = vmatpush2.msra.mxu0 %v999
    %3176 = vmatprep.subr.mxu0 %v996
    %3177 = vmatpush2.msra.mxu0 %v995
    %3178 = vmatprep.subr.mxu0 %v992
    %3179 = vmatpush2.msra.mxu0 %v991
    %3180 = vmatprep.subr.mxu0 %v988
    %3181 = vmatpush2.msra.mxu0 %v987
    %3182 = vmatprep.subr.mxu0 %v984
    %3183 = vmatpush2.msra.mxu0 %v983
    %3184 = vmatprep.subr.mxu0 %v980
    %3185 = vmatpush2.msra.mxu0 %v979
    %3186 = vmatprep.subr.mxu0 %v976
    %3187 = vmatpush2.msra.mxu0 %v975
    %3188 = vmatprep.subr.mxu0 %v972
    %3189 = vmatpush2.msra.mxu0 %v971
    %3190 = vmatprep.subr.mxu0 %v968
    %3191 = vmatpush2.msra.mxu0 %v967
    %3192 = vmatprep.subr.mxu0 %v964
    %3193 = vmatpush2.msra.mxu0 %v963
    %3194 = vmatprep.subr.mxu0 %v960
    %3195 = vmatpush2.msra.mxu0 %v959
    %3196 = vmatprep.subr.mxu0 %v956
    %3197 = vmatpush2.msra.mxu0 %v955
    %3198 = vmatprep.subr.mxu0 %v952
    %3199 = vmatpush2.msra.mxu0 %v951
    %3200 = vmatprep.subr.mxu0 %v948
    %3201 = vmatpush2.msra.mxu0 %v947
    %3202 = vmatprep.mubr.f32.mxu0 %v2889
    %3203 = vmatmul.mubr.f32.gmra.mxu0 %v3066
    %v3204 = vpop.f32.mrf.mxu0
    %v3205 = vadd.f32 %v625, %v3204
    %v3206 = vpop.f32.mrf.mxu0
    %v3207 = vadd.f32 %v629, %v3206
    %3208 = vdwg.mxu0
    %v3209 = vxor.u32 %v3134, 2147483648
    %v3210 = vmul.f32 %v3209, 1.442695
    %v3211 = vpow.pop %v3210
    %v3212 = vadd.f32 %v3211, 1.0
    %v3213 = vrcp.pop %v3212
    %v3214 = vmul.f32 1.0, %v3213
    %v3215 = vxor.u32 %v3136, 2147483648
    %v3216 = vmul.f32 %v3215, 1.442695
    %v3217 = vpow.pop %v3216
    %v3218 = vadd.f32 %v3217, 1.0
    %v3219 = vrcp.pop %v3218
    %v3220 = vmul.f32 1.0, %v3219
    %v3221 = vtanh.pop %v3205
    %v3222 = vxor.u32 %v3207, 2147483648
    %v3223 = vmul.f32 %v3222, 1.442695
    %v3224 = vpow.pop %v3223
    %v3225 = vadd.f32 %v3224, 1.0
    %v3226 = vrcp.pop %v3225
    %v3227 = vmul.f32 1.0, %v3226
    %v3228 = vmul.f32 %v3220, %v2887
    %v3229 = vmul.f32 %v3214, %v3221
    %v3230 = vadd.f32 %v3228, %v3229
    %v3231 = vtanh.pop %v3230
    %v3232 = vmul.f32 %v3227, %v3231
    %s3233 = smul.u32 7, 4
    %s3234 = smul.addr %s3233, 8
    %s3235 = scalar_lea.vmem [#allocation2], %s3234
    %v3236 = vld [vmem:[%s3235] sm:$0xff]
    %v3237 = vld [vmem:[%s3235 + $0x8] sm:$0xff]
    %v3238 = vld [vmem:[%s3235 + $0x10] sm:$0xff]
    %v3239 = vld [vmem:[%s3235 + $0x18] sm:$0xff]
    %3240 = vmatprep.subr.mxu0 %v708
    %3241 = vmatpush1.msra.mxu0 %v707
    %3242 = vmatprep.subr.mxu0 %v704
    %3243 = vmatpush1.msra.mxu0 %v703
    %3244 = vmatprep.subr.mxu0 %v700
    %3245 = vmatpush1.msra.mxu0 %v699
    %3246 = vmatprep.subr.mxu0 %v696
    %3247 = vmatpush1.msra.mxu0 %v695
    %3248 = vmatprep.subr.mxu0 %v692
    %3249 = vmatpush1.msra.mxu0 %v691
    %3250 = vmatprep.subr.mxu0 %v688
    %3251 = vmatpush1.msra.mxu0 %v687
    %3252 = vmatprep.subr.mxu0 %v684
    %3253 = vmatpush1.msra.mxu0 %v683
    %3254 = vmatprep.subr.mxu0 %v680
    %3255 = vmatpush1.msra.mxu0 %v679
    %3256 = vmatprep.subr.mxu0 %v676
    %3257 = vmatpush1.msra.mxu0 %v675
    %3258 = vmatprep.subr.mxu0 %v672
    %3259 = vmatpush1.msra.mxu0 %v671
    %3260 = vmatprep.subr.mxu0 %v668
    %3261 = vmatpush1.msra.mxu0 %v667
    %3262 = vmatprep.subr.mxu0 %v664
    %3263 = vmatpush1.msra.mxu0 %v663
    %3264 = vmatprep.subr.mxu0 %v660
    %3265 = vmatpush1.msra.mxu0 %v659
    %3266 = vmatprep.subr.mxu0 %v656
    %3267 = vmatpush1.msra.mxu0 %v655
    %3268 = vmatprep.subr.mxu0 %v652
    %3269 = vmatpush1.msra.mxu0 %v651
    %3270 = vmatprep.subr.mxu0 %v648
    %3271 = vmatpush1.msra.mxu0 %v647
    %3272 = vmatprep.subr.mxu0 0.0
    %3273 = vmatpush2.msra.mxu0 0.0
    %3274 = vmatprep.subr.mxu0 0.0
    %3275 = vmatpush2.msra.mxu0 0.0
    %3276 = vmatprep.subr.mxu0 0.0
    %3277 = vmatpush2.msra.mxu0 0.0
    %3278 = vmatprep.subr.mxu0 0.0
    %3279 = vmatpush2.msra.mxu0 0.0
    %3280 = vmatprep.subr.mxu0 0.0
    %3281 = vmatpush2.msra.mxu0 0.0
    %3282 = vmatprep.subr.mxu0 0.0
    %3283 = vmatpush2.msra.mxu0 0.0
    %3284 = vmatprep.subr.mxu0 0.0
    %3285 = vmatpush2.msra.mxu0 0.0
    %3286 = vmatprep.subr.mxu0 0.0
    %3287 = vmatpush2.msra.mxu0 0.0
    %3288 = vmatprep.subr.mxu0 0.0
    %3289 = vmatpush2.msra.mxu0 0.0
    %3290 = vmatprep.subr.mxu0 0.0
    %3291 = vmatpush2.msra.mxu0 0.0
    %3292 = vmatprep.subr.mxu0 0.0
    %3293 = vmatpush2.msra.mxu0 0.0
    %3294 = vmatprep.subr.mxu0 0.0
    %3295 = vmatpush2.msra.mxu0 0.0
    %3296 = vmatprep.subr.mxu0 0.0
    %3297 = vmatpush2.msra.mxu0 0.0
    %3298 = vmatprep.subr.mxu0 0.0
    %3299 = vmatpush2.msra.mxu0 0.0
    %3300 = vmatprep.subr.mxu0 0.0
    %3301 = vmatpush2.msra.mxu0 0.0
    %3302 = vmatprep.subr.mxu0 0.0
    %3303 = vmatpush2.msra.mxu0 0.0
    %3304 = vmatprep.mubr.f32.mxu0 0.0
    %3305 = vmatmul.mubr.f32.gmra.mxu0 %v3066
    %v3306 = vpop.f32.mrf.mxu0
    %v3307 = vadd.f32 0.0, %v3306
    %v3308 = vpop.f32.mrf.mxu0
    %v3309 = vadd.f32 0.0, %v3308
    %3310 = vdwg.mxu0
    %3311 = vmatprep.subr.mxu0 %v710
    %3312 = vmatpush1.msra.mxu0 %v709
    %3313 = vmatprep.subr.mxu0 %v706
    %3314 = vmatpush1.msra.mxu0 %v705
    %3315 = vmatprep.subr.mxu0 %v702
    %3316 = vmatpush1.msra.mxu0 %v701
    %3317 = vmatprep.subr.mxu0 %v698
    %3318 = vmatpush1.msra.mxu0 %v697
    %3319 = vmatprep.subr.mxu0 %v694
    %3320 = vmatpush1.msra.mxu0 %v693
    %3321 = vmatprep.subr.mxu0 %v690
    %3322 = vmatpush1.msra.mxu0 %v689
    %3323 = vmatprep.subr.mxu0 %v686
    %3324 = vmatpush1.msra.mxu0 %v685
    %3325 = vmatprep.subr.mxu0 %v682
    %3326 = vmatpush1.msra.mxu0 %v681
    %3327 = vmatprep.subr.mxu0 %v678
    %3328 = vmatpush1.msra.mxu0 %v677
    %3329 = vmatprep.subr.mxu0 %v674
    %3330 = vmatpush1.msra.mxu0 %v673
    %3331 = vmatprep.subr.mxu0 %v670
    %3332 = vmatpush1.msra.mxu0 %v669
    %3333 = vmatprep.subr.mxu0 %v666
    %3334 = vmatpush1.msra.mxu0 %v665
    %3335 = vmatprep.subr.mxu0 %v662
    %3336 = vmatpush1.msra.mxu0 %v661
    %3337 = vmatprep.subr.mxu0 %v658
    %3338 = vmatpush1.msra.mxu0 %v657
    %3339 = vmatprep.subr.mxu0 %v654
    %3340 = vmatpush1.msra.mxu0 %v653
    %3341 = vmatprep.subr.mxu0 %v650
    %3342 = vmatpush1.msra.mxu0 %v649
    %3343 = vmatprep.subr.mxu0 0.0
    %3344 = vmatpush2.msra.mxu0 0.0
    %3345 = vmatprep.subr.mxu0 0.0
    %3346 = vmatpush2.msra.mxu0 0.0
    %3347 = vmatprep.subr.mxu0 0.0
    %3348 = vmatpush2.msra.mxu0 0.0
    %3349 = vmatprep.subr.mxu0 0.0
    %3350 = vmatpush2.msra.mxu0 0.0
    %3351 = vmatprep.subr.mxu0 0.0
    %3352 = vmatpush2.msra.mxu0 0.0
    %3353 = vmatprep.subr.mxu0 0.0
    %3354 = vmatpush2.msra.mxu0 0.0
    %3355 = vmatprep.subr.mxu0 0.0
    %3356 = vmatpush2.msra.mxu0 0.0
    %3357 = vmatprep.subr.mxu0 0.0
    %3358 = vmatpush2.msra.mxu0 0.0
    %3359 = vmatprep.subr.mxu0 0.0
    %3360 = vmatpush2.msra.mxu0 0.0
    %3361 = vmatprep.subr.mxu0 0.0
    %3362 = vmatpush2.msra.mxu0 0.0
    %3363 = vmatprep.subr.mxu0 0.0
    %3364 = vmatpush2.msra.mxu0 0.0
    %3365 = vmatprep.subr.mxu0 0.0
    %3366 = vmatpush2.msra.mxu0 0.0
    %3367 = vmatprep.subr.mxu0 0.0
    %3368 = vmatpush2.msra.mxu0 0.0
    %3369 = vmatprep.subr.mxu0 0.0
    %3370 = vmatpush2.msra.mxu0 0.0
    %3371 = vmatprep.subr.mxu0 0.0
    %3372 = vmatpush2.msra.mxu0 0.0
    %3373 = vmatprep.subr.mxu0 0.0
    %3374 = vmatpush2.msra.mxu0 0.0
    %3375 = vmatprep.mubr.f32.mxu0 0.0
    %3376 = vmatmul.mubr.f32.gmra.mxu0 %v3066
    %v3377 = vpop.f32.mrf.mxu0
    %v3378 = vadd.f32 0.0, %v3377
    %v3379 = vpop.f32.mrf.mxu0
    %v3380 = vadd.f32 0.0, %v3379
    %3381 = vdwg.mxu0
    %v3382 = vadd.f32 %v3236, %v3307
    %v3383 = vadd.f32 %v3237, %v3309
    %v3384 = vadd.f32 %v3238, %v3378
    %v3385 = vadd.f32 %v3239, %v3380
    %v3386 = vxor.u32 %v3382, 2147483648
    %v3387 = vmul.f32 %v3386, 1.442695
    %v3388 = vpow.pop %v3387
    %v3389 = vadd.f32 %v3388, 1.0
    %v3390 = vrcp.pop %v3389
    %v3391 = vmul.f32 1.0, %v3390
    %v3392 = vxor.u32 %v3383, 2147483648
    %v3393 = vmul.f32 %v3392, 1.442695
    %v3394 = vpow.pop %v3393
    %v3395 = vadd.f32 %v3394, 1.0
    %v3396 = vrcp.pop %v3395
    %v3397 = vmul.f32 1.0, %v3396
    %v3398 = vtanh.pop %v3384
    %v3399 = vxor.u32 %v3385, 2147483648
    %v3400 = vmul.f32 %v3399, 1.442695
    %v3401 = vpow.pop %v3400
    %v3402 = vadd.f32 %v3401, 1.0
    %v3403 = vrcp.pop %v3402
    %v3404 = vmul.f32 1.0, %v3403
    %v3405 = vmul.f32 %v3397, %v3064
    %v3406 = vmul.f32 %v3391, %v3398
    %v3407 = vadd.f32 %v3405, %v3406
    %v3408 = vtanh.pop %v3407
    %v3409 = vmul.f32 %v3404, %v3408
    %3410 = vmatprep.subr.mxu0 %v942
    %3411 = vmatpush1.msra.mxu0 %v941
    %3412 = vmatprep.subr.mxu0 %v938
    %3413 = vmatpush1.msra.mxu0 %v937
    %3414 = vmatprep.subr.mxu0 %v934
    %3415 = vmatpush1.msra.mxu0 %v933
    %3416 = vmatprep.subr.mxu0 %v930
    %3417 = vmatpush1.msra.mxu0 %v929
    %3418 = vmatprep.subr.mxu0 %v926
    %3419 = vmatpush1.msra.mxu0 %v925
    %3420 = vmatprep.subr.mxu0 %v922
    %3421 = vmatpush1.msra.mxu0 %v921
    %3422 = vmatprep.subr.mxu0 %v918
    %3423 = vmatpush1.msra.mxu0 %v917
    %3424 = vmatprep.subr.mxu0 %v914
    %3425 = vmatpush1.msra.mxu0 %v913
    %3426 = vmatprep.subr.mxu0 %v910
    %3427 = vmatpush1.msra.mxu0 %v909
    %3428 = vmatprep.subr.mxu0 %v906
    %3429 = vmatpush1.msra.mxu0 %v905
    %3430 = vmatprep.subr.mxu0 %v902
    %3431 = vmatpush1.msra.mxu0 %v901
    %3432 = vmatprep.subr.mxu0 %v898
    %3433 = vmatpush1.msra.mxu0 %v897
    %3434 = vmatprep.subr.mxu0 %v894
    %3435 = vmatpush1.msra.mxu0 %v893
    %3436 = vmatprep.subr.mxu0 %v890
    %3437 = vmatpush1.msra.mxu0 %v889
    %3438 = vmatprep.subr.mxu0 %v886
    %3439 = vmatpush1.msra.mxu0 %v885
    %3440 = vmatprep.subr.mxu0 %v882
    %3441 = vmatpush1.msra.mxu0 %v881
    %3442 = vmatprep.subr.mxu0 %v1006
    %3443 = vmatpush2.msra.mxu0 %v1005
    %3444 = vmatprep.subr.mxu0 %v1002
    %3445 = vmatpush2.msra.mxu0 %v1001
    %3446 = vmatprep.subr.mxu0 %v998
    %3447 = vmatpush2.msra.mxu0 %v997
    %3448 = vmatprep.subr.mxu0 %v994
    %3449 = vmatpush2.msra.mxu0 %v993
    %3450 = vmatprep.subr.mxu0 %v990
    %3451 = vmatpush2.msra.mxu0 %v989
    %3452 = vmatprep.subr.mxu0 %v986
    %3453 = vmatpush2.msra.mxu0 %v985
    %3454 = vmatprep.subr.mxu0 %v982
    %3455 = vmatpush2.msra.mxu0 %v981
    %3456 = vmatprep.subr.mxu0 %v978
    %3457 = vmatpush2.msra.mxu0 %v977
    %3458 = vmatprep.subr.mxu0 %v974
    %3459 = vmatpush2.msra.mxu0 %v973
    %3460 = vmatprep.subr.mxu0 %v970
    %3461 = vmatpush2.msra.mxu0 %v969
    %3462 = vmatprep.subr.mxu0 %v966
    %3463 = vmatpush2.msra.mxu0 %v965
    %3464 = vmatprep.subr.mxu0 %v962
    %3465 = vmatpush2.msra.mxu0 %v961
    %3466 = vmatprep.subr.mxu0 %v958
    %3467 = vmatpush2.msra.mxu0 %v957
    %3468 = vmatprep.subr.mxu0 %v954
    %3469 = vmatpush2.msra.mxu0 %v953
    %3470 = vmatprep.subr.mxu0 %v950
    %3471 = vmatpush2.msra.mxu0 %v949
    %3472 = vmatprep.subr.mxu0 %v946
    %3473 = vmatpush2.msra.mxu0 %v945
    %3474 = vmatprep.mubr.f32.mxu0 %v3232
    %3475 = vmatmul.mubr.f32.gmra.mxu0 %v3409
    %v3476 = vpop.f32.mrf.mxu0
    %v3477 = vadd.f32 %v617, %v3476
    %v3478 = vpop.f32.mrf.mxu0
    %v3479 = vadd.f32 %v621, %v3478
    %3480 = vdwg.mxu0
    %3481 = vmatprep.subr.mxu0 %v944
    %3482 = vmatpush1.msra.mxu0 %v943
    %3483 = vmatprep.subr.mxu0 %v940
    %3484 = vmatpush1.msra.mxu0 %v939
    %3485 = vmatprep.subr.mxu0 %v936
    %3486 = vmatpush1.msra.mxu0 %v935
    %3487 = vmatprep.subr.mxu0 %v932
    %3488 = vmatpush1.msra.mxu0 %v931
    %3489 = vmatprep.subr.mxu0 %v928
    %3490 = vmatpush1.msra.mxu0 %v927
    %3491 = vmatprep.subr.mxu0 %v924
    %3492 = vmatpush1.msra.mxu0 %v923
    %3493 = vmatprep.subr.mxu0 %v920
    %3494 = vmatpush1.msra.mxu0 %v919
    %3495 = vmatprep.subr.mxu0 %v916
    %3496 = vmatpush1.msra.mxu0 %v915
    %3497 = vmatprep.subr.mxu0 %v912
    %3498 = vmatpush1.msra.mxu0 %v911
    %3499 = vmatprep.subr.mxu0 %v908
    %3500 = vmatpush1.msra.mxu0 %v907
    %3501 = vmatprep.subr.mxu0 %v904
    %3502 = vmatpush1.msra.mxu0 %v903
    %3503 = vmatprep.subr.mxu0 %v900
    %3504 = vmatpush1.msra.mxu0 %v899
    %3505 = vmatprep.subr.mxu0 %v896
    %3506 = vmatpush1.msra.mxu0 %v895
    %3507 = vmatprep.subr.mxu0 %v892
    %3508 = vmatpush1.msra.mxu0 %v891
    %3509 = vmatprep.subr.mxu0 %v888
    %3510 = vmatpush1.msra.mxu0 %v887
    %3511 = vmatprep.subr.mxu0 %v884
    %3512 = vmatpush1.msra.mxu0 %v883
    %3513 = vmatprep.subr.mxu0 %v1008
    %3514 = vmatpush2.msra.mxu0 %v1007
    %3515 = vmatprep.subr.mxu0 %v1004
    %3516 = vmatpush2.msra.mxu0 %v1003
    %3517 = vmatprep.subr.mxu0 %v1000
    %3518 = vmatpush2.msra.mxu0 %v999
    %3519 = vmatprep.subr.mxu0 %v996
    %3520 = vmatpush2.msra.mxu0 %v995
    %3521 = vmatprep.subr.mxu0 %v992
    %3522 = vmatpush2.msra.mxu0 %v991
    %3523 = vmatprep.subr.mxu0 %v988
    %3524 = vmatpush2.msra.mxu0 %v987
    %3525 = vmatprep.subr.mxu0 %v984
    %3526 = vmatpush2.msra.mxu0 %v983
    %3527 = vmatprep.subr.mxu0 %v980
    %3528 = vmatpush2.msra.mxu0 %v979
    %3529 = vmatprep.subr.mxu0 %v976
    %3530 = vmatpush2.msra.mxu0 %v975
    %3531 = vmatprep.subr.mxu0 %v972
    %3532 = vmatpush2.msra.mxu0 %v971
    %3533 = vmatprep.subr.mxu0 %v968
    %3534 = vmatpush2.msra.mxu0 %v967
    %3535 = vmatprep.subr.mxu0 %v964
    %3536 = vmatpush2.msra.mxu0 %v963
    %3537 = vmatprep.subr.mxu0 %v960
    %3538 = vmatpush2.msra.mxu0 %v959
    %3539 = vmatprep.subr.mxu0 %v956
    %3540 = vmatpush2.msra.mxu0 %v955
    %3541 = vmatprep.subr.mxu0 %v952
    %3542 = vmatpush2.msra.mxu0 %v951
    %3543 = vmatprep.subr.mxu0 %v948
    %3544 = vmatpush2.msra.mxu0 %v947
    %3545 = vmatprep.mubr.f32.mxu0 %v3232
    %3546 = vmatmul.mubr.f32.gmra.mxu0 %v3409
    %v3547 = vpop.f32.mrf.mxu0
    %v3548 = vadd.f32 %v625, %v3547
    %v3549 = vpop.f32.mrf.mxu0
    %v3550 = vadd.f32 %v629, %v3549
    %3551 = vdwg.mxu0
    %v3552 = vxor.u32 %v3477, 2147483648
    %v3553 = vmul.f32 %v3552, 1.442695
    %v3554 = vpow.pop %v3553
    %v3555 = vadd.f32 %v3554, 1.0
    %v3556 = vrcp.pop %v3555
    %v3557 = vmul.f32 1.0, %v3556
    %v3558 = vxor.u32 %v3479, 2147483648
    %v3559 = vmul.f32 %v3558, 1.442695
    %v3560 = vpow.pop %v3559
    %v3561 = vadd.f32 %v3560, 1.0
    %v3562 = vrcp.pop %v3561
    %v3563 = vmul.f32 1.0, %v3562
    %v3564 = vtanh.pop %v3548
    %v3565 = vxor.u32 %v3550, 2147483648
    %v3566 = vmul.f32 %v3565, 1.442695
    %v3567 = vpow.pop %v3566
    %v3568 = vadd.f32 %v3567, 1.0
    %v3569 = vrcp.pop %v3568
    %v3570 = vmul.f32 1.0, %v3569
    %v3571 = vmul.f32 %v3563, %v3230
    %v3572 = vmul.f32 %v3557, %v3564
    %v3573 = vadd.f32 %v3571, %v3572
    %v3574 = vtanh.pop %v3573
    %v3575 = vmul.f32 %v3570, %v3574
    %s3576 = smul.u32 8, 4
    %s3577 = smul.addr %s3576, 8
    %s3578 = scalar_lea.vmem [#allocation2], %s3577
    %v3579 = vld [vmem:[%s3578] sm:$0xff]
    %v3580 = vld [vmem:[%s3578 + $0x8] sm:$0xff]
    %v3581 = vld [vmem:[%s3578 + $0x10] sm:$0xff]
    %v3582 = vld [vmem:[%s3578 + $0x18] sm:$0xff]
    %3583 = vmatprep.subr.mxu0 %v708
    %3584 = vmatpush1.msra.mxu0 %v707
    %3585 = vmatprep.subr.mxu0 %v704
    %3586 = vmatpush1.msra.mxu0 %v703
    %3587 = vmatprep.subr.mxu0 %v700
    %3588 = vmatpush1.msra.mxu0 %v699
    %3589 = vmatprep.subr.mxu0 %v696
    %3590 = vmatpush1.msra.mxu0 %v695
    %3591 = vmatprep.subr.mxu0 %v692
    %3592 = vmatpush1.msra.mxu0 %v691
    %3593 = vmatprep.subr.mxu0 %v688
    %3594 = vmatpush1.msra.mxu0 %v687
    %3595 = vmatprep.subr.mxu0 %v684
    %3596 = vmatpush1.msra.mxu0 %v683
    %3597 = vmatprep.subr.mxu0 %v680
    %3598 = vmatpush1.msra.mxu0 %v679
    %3599 = vmatprep.subr.mxu0 %v676
    %3600 = vmatpush1.msra.mxu0 %v675
    %3601 = vmatprep.subr.mxu0 %v672
    %3602 = vmatpush1.msra.mxu0 %v671
    %3603 = vmatprep.subr.mxu0 %v668
    %3604 = vmatpush1.msra.mxu0 %v667
    %3605 = vmatprep.subr.mxu0 %v664
    %3606 = vmatpush1.msra.mxu0 %v663
    %3607 = vmatprep.subr.mxu0 %v660
    %3608 = vmatpush1.msra.mxu0 %v659
    %3609 = vmatprep.subr.mxu0 %v656
    %3610 = vmatpush1.msra.mxu0 %v655
    %3611 = vmatprep.subr.mxu0 %v652
    %3612 = vmatpush1.msra.mxu0 %v651
    %3613 = vmatprep.subr.mxu0 %v648
    %3614 = vmatpush1.msra.mxu0 %v647
    %3615 = vmatprep.subr.mxu0 0.0
    %3616 = vmatpush2.msra.mxu0 0.0
    %3617 = vmatprep.subr.mxu0 0.0
    %3618 = vmatpush2.msra.mxu0 0.0
    %3619 = vmatprep.subr.mxu0 0.0
    %3620 = vmatpush2.msra.mxu0 0.0
    %3621 = vmatprep.subr.mxu0 0.0
    %3622 = vmatpush2.msra.mxu0 0.0
    %3623 = vmatprep.subr.mxu0 0.0
    %3624 = vmatpush2.msra.mxu0 0.0
    %3625 = vmatprep.subr.mxu0 0.0
    %3626 = vmatpush2.msra.mxu0 0.0
    %3627 = vmatprep.subr.mxu0 0.0
    %3628 = vmatpush2.msra.mxu0 0.0
    %3629 = vmatprep.subr.mxu0 0.0
    %3630 = vmatpush2.msra.mxu0 0.0
    %3631 = vmatprep.subr.mxu0 0.0
    %3632 = vmatpush2.msra.mxu0 0.0
    %3633 = vmatprep.subr.mxu0 0.0
    %3634 = vmatpush2.msra.mxu0 0.0
    %3635 = vmatprep.subr.mxu0 0.0
    %3636 = vmatpush2.msra.mxu0 0.0
    %3637 = vmatprep.subr.mxu0 0.0
    %3638 = vmatpush2.msra.mxu0 0.0
    %3639 = vmatprep.subr.mxu0 0.0
    %3640 = vmatpush2.msra.mxu0 0.0
    %3641 = vmatprep.subr.mxu0 0.0
    %3642 = vmatpush2.msra.mxu0 0.0
    %3643 = vmatprep.subr.mxu0 0.0
    %3644 = vmatpush2.msra.mxu0 0.0
    %3645 = vmatprep.subr.mxu0 0.0
    %3646 = vmatpush2.msra.mxu0 0.0
    %3647 = vmatprep.mubr.f32.mxu0 0.0
    %3648 = vmatmul.mubr.f32.gmra.mxu0 %v3409
    %v3649 = vpop.f32.mrf.mxu0
    %v3650 = vadd.f32 0.0, %v3649
    %v3651 = vpop.f32.mrf.mxu0
    %v3652 = vadd.f32 0.0, %v3651
    %3653 = vdwg.mxu0
    %3654 = vmatprep.subr.mxu0 %v710
    %3655 = vmatpush1.msra.mxu0 %v709
    %3656 = vmatprep.subr.mxu0 %v706
    %3657 = vmatpush1.msra.mxu0 %v705
    %3658 = vmatprep.subr.mxu0 %v702
    %3659 = vmatpush1.msra.mxu0 %v701
    %3660 = vmatprep.subr.mxu0 %v698
    %3661 = vmatpush1.msra.mxu0 %v697
    %3662 = vmatprep.subr.mxu0 %v694
    %3663 = vmatpush1.msra.mxu0 %v693
    %3664 = vmatprep.subr.mxu0 %v690
    %3665 = vmatpush1.msra.mxu0 %v689
    %3666 = vmatprep.subr.mxu0 %v686
    %3667 = vmatpush1.msra.mxu0 %v685
    %3668 = vmatprep.subr.mxu0 %v682
    %3669 = vmatpush1.msra.mxu0 %v681
    %3670 = vmatprep.subr.mxu0 %v678
    %3671 = vmatpush1.msra.mxu0 %v677
    %3672 = vmatprep.subr.mxu0 %v674
    %3673 = vmatpush1.msra.mxu0 %v673
    %3674 = vmatprep.subr.mxu0 %v670
    %3675 = vmatpush1.msra.mxu0 %v669
    %3676 = vmatprep.subr.mxu0 %v666
    %3677 = vmatpush1.msra.mxu0 %v665
    %3678 = vmatprep.subr.mxu0 %v662
    %3679 = vmatpush1.msra.mxu0 %v661
    %3680 = vmatprep.subr.mxu0 %v658
    %3681 = vmatpush1.msra.mxu0 %v657
    %3682 = vmatprep.subr.mxu0 %v654
    %3683 = vmatpush1.msra.mxu0 %v653
    %3684 = vmatprep.subr.mxu0 %v650
    %3685 = vmatpush1.msra.mxu0 %v649
    %3686 = vmatprep.subr.mxu0 0.0
    %3687 = vmatpush2.msra.mxu0 0.0
    %3688 = vmatprep.subr.mxu0 0.0
    %3689 = vmatpush2.msra.mxu0 0.0
    %3690 = vmatprep.subr.mxu0 0.0
    %3691 = vmatpush2.msra.mxu0 0.0
    %3692 = vmatprep.subr.mxu0 0.0
    %3693 = vmatpush2.msra.mxu0 0.0
    %3694 = vmatprep.subr.mxu0 0.0
    %3695 = vmatpush2.msra.mxu0 0.0
    %3696 = vmatprep.subr.mxu0 0.0
    %3697 = vmatpush2.msra.mxu0 0.0
    %3698 = vmatprep.subr.mxu0 0.0
    %3699 = vmatpush2.msra.mxu0 0.0
    %3700 = vmatprep.subr.mxu0 0.0
    %3701 = vmatpush2.msra.mxu0 0.0
    %3702 = vmatprep.subr.mxu0 0.0
    %3703 = vmatpush2.msra.mxu0 0.0
    %3704 = vmatprep.subr.mxu0 0.0
    %3705 = vmatpush2.msra.mxu0 0.0
    %3706 = vmatprep.subr.mxu0 0.0
    %3707 = vmatpush2.msra.mxu0 0.0
    %3708 = vmatprep.subr.mxu0 0.0
    %3709 = vmatpush2.msra.mxu0 0.0
    %3710 = vmatprep.subr.mxu0 0.0
    %3711 = vmatpush2.msra.mxu0 0.0
    %3712 = vmatprep.subr.mxu0 0.0
    %3713 = vmatpush2.msra.mxu0 0.0
    %3714 = vmatprep.subr.mxu0 0.0
    %3715 = vmatpush2.msra.mxu0 0.0
    %3716 = vmatprep.subr.mxu0 0.0
    %3717 = vmatpush2.msra.mxu0 0.0
    %3718 = vmatprep.mubr.f32.mxu0 0.0
    %3719 = vmatmul.mubr.f32.gmra.mxu0 %v3409
    %v3720 = vpop.f32.mrf.mxu0
    %v3721 = vadd.f32 0.0, %v3720
    %v3722 = vpop.f32.mrf.mxu0
    %v3723 = vadd.f32 0.0, %v3722
    %3724 = vdwg.mxu0
    %v3725 = vadd.f32 %v3579, %v3650
    %v3726 = vadd.f32 %v3580, %v3652
    %v3727 = vadd.f32 %v3581, %v3721
    %v3728 = vadd.f32 %v3582, %v3723
    %v3729 = vxor.u32 %v3725, 2147483648
    %v3730 = vmul.f32 %v3729, 1.442695
    %v3731 = vpow.pop %v3730
    %v3732 = vadd.f32 %v3731, 1.0
    %v3733 = vrcp.pop %v3732
    %v3734 = vmul.f32 1.0, %v3733
    %v3735 = vxor.u32 %v3726, 2147483648
    %v3736 = vmul.f32 %v3735, 1.442695
    %v3737 = vpow.pop %v3736
    %v3738 = vadd.f32 %v3737, 1.0
    %v3739 = vrcp.pop %v3738
    %v3740 = vmul.f32 1.0, %v3739
    %v3741 = vtanh.pop %v3727
    %v3742 = vxor.u32 %v3728, 2147483648
    %v3743 = vmul.f32 %v3742, 1.442695
    %v3744 = vpow.pop %v3743
    %v3745 = vadd.f32 %v3744, 1.0
    %v3746 = vrcp.pop %v3745
    %v3747 = vmul.f32 1.0, %v3746
    %v3748 = vmul.f32 %v3740, %v3407
    %v3749 = vmul.f32 %v3734, %v3741
    %v3750 = vadd.f32 %v3748, %v3749
    %v3751 = vtanh.pop %v3750
    %v3752 = vmul.f32 %v3747, %v3751
    %3753 = vmatprep.subr.mxu0 %v942
    %3754 = vmatpush1.msra.mxu0 %v941
    %3755 = vmatprep.subr.mxu0 %v938
    %3756 = vmatpush1.msra.mxu0 %v937
    %3757 = vmatprep.subr.mxu0 %v934
    %3758 = vmatpush1.msra.mxu0 %v933
    %3759 = vmatprep.subr.mxu0 %v930
    %3760 = vmatpush1.msra.mxu0 %v929
    %3761 = vmatprep.subr.mxu0 %v926
    %3762 = vmatpush1.msra.mxu0 %v925
    %3763 = vmatprep.subr.mxu0 %v922
    %3764 = vmatpush1.msra.mxu0 %v921
    %3765 = vmatprep.subr.mxu0 %v918
    %3766 = vmatpush1.msra.mxu0 %v917
    %3767 = vmatprep.subr.mxu0 %v914
    %3768 = vmatpush1.msra.mxu0 %v913
    %3769 = vmatprep.subr.mxu0 %v910
    %3770 = vmatpush1.msra.mxu0 %v909
    %3771 = vmatprep.subr.mxu0 %v906
    %3772 = vmatpush1.msra.mxu0 %v905
    %3773 = vmatprep.subr.mxu0 %v902
    %3774 = vmatpush1.msra.mxu0 %v901
    %3775 = vmatprep.subr.mxu0 %v898
    %3776 = vmatpush1.msra.mxu0 %v897
    %3777 = vmatprep.subr.mxu0 %v894
    %3778 = vmatpush1.msra.mxu0 %v893
    %3779 = vmatprep.subr.mxu0 %v890
    %3780 = vmatpush1.msra.mxu0 %v889
    %3781 = vmatprep.subr.mxu0 %v886
    %3782 = vmatpush1.msra.mxu0 %v885
    %3783 = vmatprep.subr.mxu0 %v882
    %3784 = vmatpush1.msra.mxu0 %v881
    %3785 = vmatprep.subr.mxu0 %v1006
    %3786 = vmatpush2.msra.mxu0 %v1005
    %3787 = vmatprep.subr.mxu0 %v1002
    %3788 = vmatpush2.msra.mxu0 %v1001
    %3789 = vmatprep.subr.mxu0 %v998
    %3790 = vmatpush2.msra.mxu0 %v997
    %3791 = vmatprep.subr.mxu0 %v994
    %3792 = vmatpush2.msra.mxu0 %v993
    %3793 = vmatprep.subr.mxu0 %v990
    %3794 = vmatpush2.msra.mxu0 %v989
    %3795 = vmatprep.subr.mxu0 %v986
    %3796 = vmatpush2.msra.mxu0 %v985
    %3797 = vmatprep.subr.mxu0 %v982
    %3798 = vmatpush2.msra.mxu0 %v981
    %3799 = vmatprep.subr.mxu0 %v978
    %3800 = vmatpush2.msra.mxu0 %v977
    %3801 = vmatprep.subr.mxu0 %v974
    %3802 = vmatpush2.msra.mxu0 %v973
    %3803 = vmatprep.subr.mxu0 %v970
    %3804 = vmatpush2.msra.mxu0 %v969
    %3805 = vmatprep.subr.mxu0 %v966
    %3806 = vmatpush2.msra.mxu0 %v965
    %3807 = vmatprep.subr.mxu0 %v962
    %3808 = vmatpush2.msra.mxu0 %v961
    %3809 = vmatprep.subr.mxu0 %v958
    %3810 = vmatpush2.msra.mxu0 %v957
    %3811 = vmatprep.subr.mxu0 %v954
    %3812 = vmatpush2.msra.mxu0 %v953
    %3813 = vmatprep.subr.mxu0 %v950
    %3814 = vmatpush2.msra.mxu0 %v949
    %3815 = vmatprep.subr.mxu0 %v946
    %3816 = vmatpush2.msra.mxu0 %v945
    %3817 = vmatprep.mubr.f32.mxu0 %v3575
    %3818 = vmatmul.mubr.f32.gmra.mxu0 %v3752
    %v3819 = vpop.f32.mrf.mxu0
    %v3820 = vadd.f32 %v617, %v3819
    %v3821 = vpop.f32.mrf.mxu0
    %v3822 = vadd.f32 %v621, %v3821
    %3823 = vdwg.mxu0
    %3824 = vmatprep.subr.mxu0 %v944
    %3825 = vmatpush1.msra.mxu0 %v943
    %3826 = vmatprep.subr.mxu0 %v940
    %3827 = vmatpush1.msra.mxu0 %v939
    %3828 = vmatprep.subr.mxu0 %v936
    %3829 = vmatpush1.msra.mxu0 %v935
    %3830 = vmatprep.subr.mxu0 %v932
    %3831 = vmatpush1.msra.mxu0 %v931
    %3832 = vmatprep.subr.mxu0 %v928
    %3833 = vmatpush1.msra.mxu0 %v927
    %3834 = vmatprep.subr.mxu0 %v924
    %3835 = vmatpush1.msra.mxu0 %v923
    %3836 = vmatprep.subr.mxu0 %v920
    %3837 = vmatpush1.msra.mxu0 %v919
    %3838 = vmatprep.subr.mxu0 %v916
    %3839 = vmatpush1.msra.mxu0 %v915
    %3840 = vmatprep.subr.mxu0 %v912
    %3841 = vmatpush1.msra.mxu0 %v911
    %3842 = vmatprep.subr.mxu0 %v908
    %3843 = vmatpush1.msra.mxu0 %v907
    %3844 = vmatprep.subr.mxu0 %v904
    %3845 = vmatpush1.msra.mxu0 %v903
    %3846 = vmatprep.subr.mxu0 %v900
    %3847 = vmatpush1.msra.mxu0 %v899
    %3848 = vmatprep.subr.mxu0 %v896
    %3849 = vmatpush1.msra.mxu0 %v895
    %3850 = vmatprep.subr.mxu0 %v892
    %3851 = vmatpush1.msra.mxu0 %v891
    %3852 = vmatprep.subr.mxu0 %v888
    %3853 = vmatpush1.msra.mxu0 %v887
    %3854 = vmatprep.subr.mxu0 %v884
    %3855 = vmatpush1.msra.mxu0 %v883
    %3856 = vmatprep.subr.mxu0 %v1008
    %3857 = vmatpush2.msra.mxu0 %v1007
    %3858 = vmatprep.subr.mxu0 %v1004
    %3859 = vmatpush2.msra.mxu0 %v1003
    %3860 = vmatprep.subr.mxu0 %v1000
    %3861 = vmatpush2.msra.mxu0 %v999
    %3862 = vmatprep.subr.mxu0 %v996
    %3863 = vmatpush2.msra.mxu0 %v995
    %3864 = vmatprep.subr.mxu0 %v992
    %3865 = vmatpush2.msra.mxu0 %v991
    %3866 = vmatprep.subr.mxu0 %v988
    %3867 = vmatpush2.msra.mxu0 %v987
    %3868 = vmatprep.subr.mxu0 %v984
    %3869 = vmatpush2.msra.mxu0 %v983
    %3870 = vmatprep.subr.mxu0 %v980
    %3871 = vmatpush2.msra.mxu0 %v979
    %3872 = vmatprep.subr.mxu0 %v976
    %3873 = vmatpush2.msra.mxu0 %v975
    %3874 = vmatprep.subr.mxu0 %v972
    %3875 = vmatpush2.msra.mxu0 %v971
    %3876 = vmatprep.subr.mxu0 %v968
    %3877 = vmatpush2.msra.mxu0 %v967
    %3878 = vmatprep.subr.mxu0 %v964
    %3879 = vmatpush2.msra.mxu0 %v963
    %3880 = vmatprep.subr.mxu0 %v960
    %3881 = vmatpush2.msra.mxu0 %v959
    %3882 = vmatprep.subr.mxu0 %v956
    %3883 = vmatpush2.msra.mxu0 %v955
    %3884 = vmatprep.subr.mxu0 %v952
    %3885 = vmatpush2.msra.mxu0 %v951
    %3886 = vmatprep.subr.mxu0 %v948
    %3887 = vmatpush2.msra.mxu0 %v947
    %3888 = vmatprep.mubr.f32.mxu0 %v3575
    %3889 = vmatmul.mubr.f32.gmra.mxu0 %v3752
    %v3890 = vpop.f32.mrf.mxu0
    %v3891 = vadd.f32 %v625, %v3890
    %v3892 = vpop.f32.mrf.mxu0
    %v3893 = vadd.f32 %v629, %v3892
    %3894 = vdwg.mxu0
    %v3895 = vxor.u32 %v3820, 2147483648
    %v3896 = vmul.f32 %v3895, 1.442695
    %v3897 = vpow.pop %v3896
    %v3898 = vadd.f32 %v3897, 1.0
    %v3899 = vrcp.pop %v3898
    %v3900 = vmul.f32 1.0, %v3899
    %v3901 = vxor.u32 %v3822, 2147483648
    %v3902 = vmul.f32 %v3901, 1.442695
    %v3903 = vpow.pop %v3902
    %v3904 = vadd.f32 %v3903, 1.0
    %v3905 = vrcp.pop %v3904
    %v3906 = vmul.f32 1.0, %v3905
    %v3907 = vtanh.pop %v3891
    %v3908 = vxor.u32 %v3893, 2147483648
    %v3909 = vmul.f32 %v3908, 1.442695
    %v3910 = vpow.pop %v3909
    %v3911 = vadd.f32 %v3910, 1.0
    %v3912 = vrcp.pop %v3911
    %v3913 = vmul.f32 1.0, %v3912
    %v3914 = vmul.f32 %v3906, %v3573
    %v3915 = vmul.f32 %v3900, %v3907
    %v3916 = vadd.f32 %v3914, %v3915
    %v3917 = vtanh.pop %v3916
    %v3918 = vmul.f32 %v3913, %v3917
    %s3919 = smul.u32 9, 4
    %s3920 = smul.addr %s3919, 8
    %s3921 = scalar_lea.vmem [#allocation2], %s3920
    %v3922 = vld [vmem:[%s3921] sm:$0xff]
    %v3923 = vld [vmem:[%s3921 + $0x8] sm:$0xff]
    %v3924 = vld [vmem:[%s3921 + $0x10] sm:$0xff]
    %v3925 = vld [vmem:[%s3921 + $0x18] sm:$0xff]
    %3926 = vmatprep.subr.mxu0 %v708
    %3927 = vmatpush1.msra.mxu0 %v707
    %3928 = vmatprep.subr.mxu0 %v704
    %3929 = vmatpush1.msra.mxu0 %v703
    %3930 = vmatprep.subr.mxu0 %v700
    %3931 = vmatpush1.msra.mxu0 %v699
    %3932 = vmatprep.subr.mxu0 %v696
    %3933 = vmatpush1.msra.mxu0 %v695
    %3934 = vmatprep.subr.mxu0 %v692
    %3935 = vmatpush1.msra.mxu0 %v691
    %3936 = vmatprep.subr.mxu0 %v688
    %3937 = vmatpush1.msra.mxu0 %v687
    %3938 = vmatprep.subr.mxu0 %v684
    %3939 = vmatpush1.msra.mxu0 %v683
    %3940 = vmatprep.subr.mxu0 %v680
    %3941 = vmatpush1.msra.mxu0 %v679
    %3942 = vmatprep.subr.mxu0 %v676
    %3943 = vmatpush1.msra.mxu0 %v675
    %3944 = vmatprep.subr.mxu0 %v672
    %3945 = vmatpush1.msra.mxu0 %v671
    %3946 = vmatprep.subr.mxu0 %v668
    %3947 = vmatpush1.msra.mxu0 %v667
    %3948 = vmatprep.subr.mxu0 %v664
    %3949 = vmatpush1.msra.mxu0 %v663
    %3950 = vmatprep.subr.mxu0 %v660
    %3951 = vmatpush1.msra.mxu0 %v659
    %3952 = vmatprep.subr.mxu0 %v656
    %3953 = vmatpush1.msra.mxu0 %v655
    %3954 = vmatprep.subr.mxu0 %v652
    %3955 = vmatpush1.msra.mxu0 %v651
    %3956 = vmatprep.subr.mxu0 %v648
    %3957 = vmatpush1.msra.mxu0 %v647
    %3958 = vmatprep.subr.mxu0 0.0
    %3959 = vmatpush2.msra.mxu0 0.0
    %3960 = vmatprep.subr.mxu0 0.0
    %3961 = vmatpush2.msra.mxu0 0.0
    %3962 = vmatprep.subr.mxu0 0.0
    %3963 = vmatpush2.msra.mxu0 0.0
    %3964 = vmatprep.subr.mxu0 0.0
    %3965 = vmatpush2.msra.mxu0 0.0
    %3966 = vmatprep.subr.mxu0 0.0
    %3967 = vmatpush2.msra.mxu0 0.0
    %3968 = vmatprep.subr.mxu0 0.0
    %3969 = vmatpush2.msra.mxu0 0.0
    %3970 = vmatprep.subr.mxu0 0.0
    %3971 = vmatpush2.msra.mxu0 0.0
    %3972 = vmatprep.subr.mxu0 0.0
    %3973 = vmatpush2.msra.mxu0 0.0
    %3974 = vmatprep.subr.mxu0 0.0
    %3975 = vmatpush2.msra.mxu0 0.0
    %3976 = vmatprep.subr.mxu0 0.0
    %3977 = vmatpush2.msra.mxu0 0.0
    %3978 = vmatprep.subr.mxu0 0.0
    %3979 = vmatpush2.msra.mxu0 0.0
    %3980 = vmatprep.subr.mxu0 0.0
    %3981 = vmatpush2.msra.mxu0 0.0
    %3982 = vmatprep.subr.mxu0 0.0
    %3983 = vmatpush2.msra.mxu0 0.0
    %3984 = vmatprep.subr.mxu0 0.0
    %3985 = vmatpush2.msra.mxu0 0.0
    %3986 = vmatprep.subr.mxu0 0.0
    %3987 = vmatpush2.msra.mxu0 0.0
    %3988 = vmatprep.subr.mxu0 0.0
    %3989 = vmatpush2.msra.mxu0 0.0
    %3990 = vmatprep.mubr.f32.mxu0 0.0
    %3991 = vmatmul.mubr.f32.gmra.mxu0 %v3752
    %v3992 = vpop.f32.mrf.mxu0
    %v3993 = vadd.f32 0.0, %v3992
    %v3994 = vpop.f32.mrf.mxu0
    %v3995 = vadd.f32 0.0, %v3994
    %3996 = vdwg.mxu0
    %3997 = vmatprep.subr.mxu0 %v710
    %3998 = vmatpush1.msra.mxu0 %v709
    %3999 = vmatprep.subr.mxu0 %v706
    %4000 = vmatpush1.msra.mxu0 %v705
    %4001 = vmatprep.subr.mxu0 %v702
    %4002 = vmatpush1.msra.mxu0 %v701
    %4003 = vmatprep.subr.mxu0 %v698
    %4004 = vmatpush1.msra.mxu0 %v697
    %4005 = vmatprep.subr.mxu0 %v694
    %4006 = vmatpush1.msra.mxu0 %v693
    %4007 = vmatprep.subr.mxu0 %v690
    %4008 = vmatpush1.msra.mxu0 %v689
    %4009 = vmatprep.subr.mxu0 %v686
    %4010 = vmatpush1.msra.mxu0 %v685
    %4011 = vmatprep.subr.mxu0 %v682
    %4012 = vmatpush1.msra.mxu0 %v681
    %4013 = vmatprep.subr.mxu0 %v678
    %4014 = vmatpush1.msra.mxu0 %v677
    %4015 = vmatprep.subr.mxu0 %v674
    %4016 = vmatpush1.msra.mxu0 %v673
    %4017 = vmatprep.subr.mxu0 %v670
    %4018 = vmatpush1.msra.mxu0 %v669
    %4019 = vmatprep.subr.mxu0 %v666
    %4020 = vmatpush1.msra.mxu0 %v665
    %4021 = vmatprep.subr.mxu0 %v662
    %4022 = vmatpush1.msra.mxu0 %v661
    %4023 = vmatprep.subr.mxu0 %v658
    %4024 = vmatpush1.msra.mxu0 %v657
    %4025 = vmatprep.subr.mxu0 %v654
    %4026 = vmatpush1.msra.mxu0 %v653
    %4027 = vmatprep.subr.mxu0 %v650
    %4028 = vmatpush1.msra.mxu0 %v649
    %4029 = vmatprep.subr.mxu0 0.0
    %4030 = vmatpush2.msra.mxu0 0.0
    %4031 = vmatprep.subr.mxu0 0.0
    %4032 = vmatpush2.msra.mxu0 0.0
    %4033 = vmatprep.subr.mxu0 0.0
    %4034 = vmatpush2.msra.mxu0 0.0
    %4035 = vmatprep.subr.mxu0 0.0
    %4036 = vmatpush2.msra.mxu0 0.0
    %4037 = vmatprep.subr.mxu0 0.0
    %4038 = vmatpush2.msra.mxu0 0.0
    %4039 = vmatprep.subr.mxu0 0.0
    %4040 = vmatpush2.msra.mxu0 0.0
    %4041 = vmatprep.subr.mxu0 0.0
    %4042 = vmatpush2.msra.mxu0 0.0
    %4043 = vmatprep.subr.mxu0 0.0
    %4044 = vmatpush2.msra.mxu0 0.0
    %4045 = vmatprep.subr.mxu0 0.0
    %4046 = vmatpush2.msra.mxu0 0.0
    %4047 = vmatprep.subr.mxu0 0.0
    %4048 = vmatpush2.msra.mxu0 0.0
    %4049 = vmatprep.subr.mxu0 0.0
    %4050 = vmatpush2.msra.mxu0 0.0
    %4051 = vmatprep.subr.mxu0 0.0
    %4052 = vmatpush2.msra.mxu0 0.0
    %4053 = vmatprep.subr.mxu0 0.0
    %4054 = vmatpush2.msra.mxu0 0.0
    %4055 = vmatprep.subr.mxu0 0.0
    %4056 = vmatpush2.msra.mxu0 0.0
    %4057 = vmatprep.subr.mxu0 0.0
    %4058 = vmatpush2.msra.mxu0 0.0
    %4059 = vmatprep.subr.mxu0 0.0
    %4060 = vmatpush2.msra.mxu0 0.0
    %4061 = vmatprep.mubr.f32.mxu0 0.0
    %4062 = vmatmul.mubr.f32.gmra.mxu0 %v3752
    %v4063 = vpop.f32.mrf.mxu0
    %v4064 = vadd.f32 0.0, %v4063
    %v4065 = vpop.f32.mrf.mxu0
    %v4066 = vadd.f32 0.0, %v4065
    %4067 = vdwg.mxu0
    %v4068 = vadd.f32 %v3922, %v3993
    %v4069 = vadd.f32 %v3923, %v3995
    %v4070 = vadd.f32 %v3924, %v4064
    %v4071 = vadd.f32 %v3925, %v4066
    %v4072 = vxor.u32 %v4068, 2147483648
    %v4073 = vmul.f32 %v4072, 1.442695
    %v4074 = vpow.pop %v4073
    %v4075 = vadd.f32 %v4074, 1.0
    %v4076 = vrcp.pop %v4075
    %v4077 = vmul.f32 1.0, %v4076
    %v4078 = vxor.u32 %v4069, 2147483648
    %v4079 = vmul.f32 %v4078, 1.442695
    %v4080 = vpow.pop %v4079
    %v4081 = vadd.f32 %v4080, 1.0
    %v4082 = vrcp.pop %v4081
    %v4083 = vmul.f32 1.0, %v4082
    %v4084 = vtanh.pop %v4070
    %v4085 = vxor.u32 %v4071, 2147483648
    %v4086 = vmul.f32 %v4085, 1.442695
    %v4087 = vpow.pop %v4086
    %v4088 = vadd.f32 %v4087, 1.0
    %v4089 = vrcp.pop %v4088
    %v4090 = vmul.f32 1.0, %v4089
    %v4091 = vmul.f32 %v4083, %v3750
    %v4092 = vmul.f32 %v4077, %v4084
    %v4093 = vadd.f32 %v4091, %v4092
    %v4094 = vtanh.pop %v4093
    %v4095 = vmul.f32 %v4090, %v4094
    %4096 = vmatprep.subr.mxu0 %v942
    %4097 = vmatpush1.msra.mxu0 %v941
    %4098 = vmatprep.subr.mxu0 %v938
    %4099 = vmatpush1.msra.mxu0 %v937
    %4100 = vmatprep.subr.mxu0 %v934
    %4101 = vmatpush1.msra.mxu0 %v933
    %4102 = vmatprep.subr.mxu0 %v930
    %4103 = vmatpush1.msra.mxu0 %v929
    %4104 = vmatprep.subr.mxu0 %v926
    %4105 = vmatpush1.msra.mxu0 %v925
    %4106 = vmatprep.subr.mxu0 %v922
    %4107 = vmatpush1.msra.mxu0 %v921
    %4108 = vmatprep.subr.mxu0 %v918
    %4109 = vmatpush1.msra.mxu0 %v917
    %4110 = vmatprep.subr.mxu0 %v914
    %4111 = vmatpush1.msra.mxu0 %v913
    %4112 = vmatprep.subr.mxu0 %v910
    %4113 = vmatpush1.msra.mxu0 %v909
    %4114 = vmatprep.subr.mxu0 %v906
    %4115 = vmatpush1.msra.mxu0 %v905
    %4116 = vmatprep.subr.mxu0 %v902
    %4117 = vmatpush1.msra.mxu0 %v901
    %4118 = vmatprep.subr.mxu0 %v898
    %4119 = vmatpush1.msra.mxu0 %v897
    %4120 = vmatprep.subr.mxu0 %v894
    %4121 = vmatpush1.msra.mxu0 %v893
    %4122 = vmatprep.subr.mxu0 %v890
    %4123 = vmatpush1.msra.mxu0 %v889
    %4124 = vmatprep.subr.mxu0 %v886
    %4125 = vmatpush1.msra.mxu0 %v885
    %4126 = vmatprep.subr.mxu0 %v882
    %4127 = vmatpush1.msra.mxu0 %v881
    %4128 = vmatprep.subr.mxu0 %v1006
    %4129 = vmatpush2.msra.mxu0 %v1005
    %4130 = vmatprep.subr.mxu0 %v1002
    %4131 = vmatpush2.msra.mxu0 %v1001
    %4132 = vmatprep.subr.mxu0 %v998
    %4133 = vmatpush2.msra.mxu0 %v997
    %4134 = vmatprep.subr.mxu0 %v994
    %4135 = vmatpush2.msra.mxu0 %v993
    %4136 = vmatprep.subr.mxu0 %v990
    %4137 = vmatpush2.msra.mxu0 %v989
    %4138 = vmatprep.subr.mxu0 %v986
    %4139 = vmatpush2.msra.mxu0 %v985
    %4140 = vmatprep.subr.mxu0 %v982
    %4141 = vmatpush2.msra.mxu0 %v981
    %4142 = vmatprep.subr.mxu0 %v978
    %4143 = vmatpush2.msra.mxu0 %v977
    %4144 = vmatprep.subr.mxu0 %v974
    %4145 = vmatpush2.msra.mxu0 %v973
    %4146 = vmatprep.subr.mxu0 %v970
    %4147 = vmatpush2.msra.mxu0 %v969
    %4148 = vmatprep.subr.mxu0 %v966
    %4149 = vmatpush2.msra.mxu0 %v965
    %4150 = vmatprep.subr.mxu0 %v962
    %4151 = vmatpush2.msra.mxu0 %v961
    %4152 = vmatprep.subr.mxu0 %v958
    %4153 = vmatpush2.msra.mxu0 %v957
    %4154 = vmatprep.subr.mxu0 %v954
    %4155 = vmatpush2.msra.mxu0 %v953
    %4156 = vmatprep.subr.mxu0 %v950
    %4157 = vmatpush2.msra.mxu0 %v949
    %4158 = vmatprep.subr.mxu0 %v946
    %4159 = vmatpush2.msra.mxu0 %v945
    %4160 = vmatprep.mubr.f32.mxu0 %v3918
    %4161 = vmatmul.mubr.f32.gmra.mxu0 %v4095
    %v4162 = vpop.f32.mrf.mxu0
    %v4163 = vadd.f32 %v617, %v4162
    %v4164 = vpop.f32.mrf.mxu0
    %v4165 = vadd.f32 %v621, %v4164
    %4166 = vdwg.mxu0
    %4167 = vmatprep.subr.mxu0 %v944
    %4168 = vmatpush1.msra.mxu0 %v943
    %4169 = vmatprep.subr.mxu0 %v940
    %4170 = vmatpush1.msra.mxu0 %v939
    %4171 = vmatprep.subr.mxu0 %v936
    %4172 = vmatpush1.msra.mxu0 %v935
    %4173 = vmatprep.subr.mxu0 %v932
    %4174 = vmatpush1.msra.mxu0 %v931
    %4175 = vmatprep.subr.mxu0 %v928
    %4176 = vmatpush1.msra.mxu0 %v927
    %4177 = vmatprep.subr.mxu0 %v924
    %4178 = vmatpush1.msra.mxu0 %v923
    %4179 = vmatprep.subr.mxu0 %v920
    %4180 = vmatpush1.msra.mxu0 %v919
    %4181 = vmatprep.subr.mxu0 %v916
    %4182 = vmatpush1.msra.mxu0 %v915
    %4183 = vmatprep.subr.mxu0 %v912
    %4184 = vmatpush1.msra.mxu0 %v911
    %4185 = vmatprep.subr.mxu0 %v908
    %4186 = vmatpush1.msra.mxu0 %v907
    %4187 = vmatprep.subr.mxu0 %v904
    %4188 = vmatpush1.msra.mxu0 %v903
    %4189 = vmatprep.subr.mxu0 %v900
    %4190 = vmatpush1.msra.mxu0 %v899
    %4191 = vmatprep.subr.mxu0 %v896
    %4192 = vmatpush1.msra.mxu0 %v895
    %4193 = vmatprep.subr.mxu0 %v892
    %4194 = vmatpush1.msra.mxu0 %v891
    %4195 = vmatprep.subr.mxu0 %v888
    %4196 = vmatpush1.msra.mxu0 %v887
    %4197 = vmatprep.subr.mxu0 %v884
    %4198 = vmatpush1.msra.mxu0 %v883
    %4199 = vmatprep.subr.mxu0 %v1008
    %4200 = vmatpush2.msra.mxu0 %v1007
    %4201 = vmatprep.subr.mxu0 %v1004
    %4202 = vmatpush2.msra.mxu0 %v1003
    %4203 = vmatprep.subr.mxu0 %v1000
    %4204 = vmatpush2.msra.mxu0 %v999
    %4205 = vmatprep.subr.mxu0 %v996
    %4206 = vmatpush2.msra.mxu0 %v995
    %4207 = vmatprep.subr.mxu0 %v992
    %4208 = vmatpush2.msra.mxu0 %v991
    %4209 = vmatprep.subr.mxu0 %v988
    %4210 = vmatpush2.msra.mxu0 %v987
    %4211 = vmatprep.subr.mxu0 %v984
    %4212 = vmatpush2.msra.mxu0 %v983
    %4213 = vmatprep.subr.mxu0 %v980
    %4214 = vmatpush2.msra.mxu0 %v979
    %4215 = vmatprep.subr.mxu0 %v976
    %4216 = vmatpush2.msra.mxu0 %v975
    %4217 = vmatprep.subr.mxu0 %v972
    %4218 = vmatpush2.msra.mxu0 %v971
    %4219 = vmatprep.subr.mxu0 %v968
    %4220 = vmatpush2.msra.mxu0 %v967
    %4221 = vmatprep.subr.mxu0 %v964
    %4222 = vmatpush2.msra.mxu0 %v963
    %4223 = vmatprep.subr.mxu0 %v960
    %4224 = vmatpush2.msra.mxu0 %v959
    %4225 = vmatprep.subr.mxu0 %v956
    %4226 = vmatpush2.msra.mxu0 %v955
    %4227 = vmatprep.subr.mxu0 %v952
    %4228 = vmatpush2.msra.mxu0 %v951
    %4229 = vmatprep.subr.mxu0 %v948
    %4230 = vmatpush2.msra.mxu0 %v947
    %4231 = vmatprep.mubr.f32.mxu0 %v3918
    %4232 = vmatmul.mubr.f32.gmra.mxu0 %v4095
    %v4233 = vpop.f32.mrf.mxu0
    %v4234 = vadd.f32 %v625, %v4233
    %v4235 = vpop.f32.mrf.mxu0
    %v4236 = vadd.f32 %v629, %v4235
    %4237 = vdwg.mxu0
    %v4238 = vxor.u32 %v4163, 2147483648
    %v4239 = vmul.f32 %v4238, 1.442695
    %v4240 = vpow.pop %v4239
    %v4241 = vadd.f32 %v4240, 1.0
    %v4242 = vrcp.pop %v4241
    %v4243 = vmul.f32 1.0, %v4242
    %v4244 = vxor.u32 %v4165, 2147483648
    %v4245 = vmul.f32 %v4244, 1.442695
    %v4246 = vpow.pop %v4245
    %v4247 = vadd.f32 %v4246, 1.0
    %v4248 = vrcp.pop %v4247
    %v4249 = vmul.f32 1.0, %v4248
    %v4250 = vtanh.pop %v4234
    %v4251 = vxor.u32 %v4236, 2147483648
    %v4252 = vmul.f32 %v4251, 1.442695
    %v4253 = vpow.pop %v4252
    %v4254 = vadd.f32 %v4253, 1.0
    %v4255 = vrcp.pop %v4254
    %v4256 = vmul.f32 1.0, %v4255
    %v4257 = vmul.f32 %v4249, %v3916
    %v4258 = vmul.f32 %v4243, %v4250
    %v4259 = vadd.f32 %v4257, %v4258
    %v4260 = vtanh.pop %v4259
    %v4261 = vmul.f32 %v4256, %v4260
    %s4262 = smul.u32 10, 4
    %s4263 = smul.addr %s4262, 8
    %s4264 = scalar_lea.vmem [#allocation2], %s4263
    %v4265 = vld [vmem:[%s4264] sm:$0xff]
    %v4266 = vld [vmem:[%s4264 + $0x8] sm:$0xff]
    %v4267 = vld [vmem:[%s4264 + $0x10] sm:$0xff]
    %v4268 = vld [vmem:[%s4264 + $0x18] sm:$0xff]
    %4269 = vmatprep.subr.mxu0 %v708
    %4270 = vmatpush1.msra.mxu0 %v707
    %4271 = vmatprep.subr.mxu0 %v704
    %4272 = vmatpush1.msra.mxu0 %v703
    %4273 = vmatprep.subr.mxu0 %v700
    %4274 = vmatpush1.msra.mxu0 %v699
    %4275 = vmatprep.subr.mxu0 %v696
    %4276 = vmatpush1.msra.mxu0 %v695
    %4277 = vmatprep.subr.mxu0 %v692
    %4278 = vmatpush1.msra.mxu0 %v691
    %4279 = vmatprep.subr.mxu0 %v688
    %4280 = vmatpush1.msra.mxu0 %v687
    %4281 = vmatprep.subr.mxu0 %v684
    %4282 = vmatpush1.msra.mxu0 %v683
    %4283 = vmatprep.subr.mxu0 %v680
    %4284 = vmatpush1.msra.mxu0 %v679
    %4285 = vmatprep.subr.mxu0 %v676
    %4286 = vmatpush1.msra.mxu0 %v675
    %4287 = vmatprep.subr.mxu0 %v672
    %4288 = vmatpush1.msra.mxu0 %v671
    %4289 = vmatprep.subr.mxu0 %v668
    %4290 = vmatpush1.msra.mxu0 %v667
    %4291 = vmatprep.subr.mxu0 %v664
    %4292 = vmatpush1.msra.mxu0 %v663
    %4293 = vmatprep.subr.mxu0 %v660
    %4294 = vmatpush1.msra.mxu0 %v659
    %4295 = vmatprep.subr.mxu0 %v656
    %4296 = vmatpush1.msra.mxu0 %v655
    %4297 = vmatprep.subr.mxu0 %v652
    %4298 = vmatpush1.msra.mxu0 %v651
    %4299 = vmatprep.subr.mxu0 %v648
    %4300 = vmatpush1.msra.mxu0 %v647
    %4301 = vmatprep.subr.mxu0 0.0
    %4302 = vmatpush2.msra.mxu0 0.0
    %4303 = vmatprep.subr.mxu0 0.0
    %4304 = vmatpush2.msra.mxu0 0.0
    %4305 = vmatprep.subr.mxu0 0.0
    %4306 = vmatpush2.msra.mxu0 0.0
    %4307 = vmatprep.subr.mxu0 0.0
    %4308 = vmatpush2.msra.mxu0 0.0
    %4309 = vmatprep.subr.mxu0 0.0
    %4310 = vmatpush2.msra.mxu0 0.0
    %4311 = vmatprep.subr.mxu0 0.0
    %4312 = vmatpush2.msra.mxu0 0.0
    %4313 = vmatprep.subr.mxu0 0.0
    %4314 = vmatpush2.msra.mxu0 0.0
    %4315 = vmatprep.subr.mxu0 0.0
    %4316 = vmatpush2.msra.mxu0 0.0
    %4317 = vmatprep.subr.mxu0 0.0
    %4318 = vmatpush2.msra.mxu0 0.0
    %4319 = vmatprep.subr.mxu0 0.0
    %4320 = vmatpush2.msra.mxu0 0.0
    %4321 = vmatprep.subr.mxu0 0.0
    %4322 = vmatpush2.msra.mxu0 0.0
    %4323 = vmatprep.subr.mxu0 0.0
    %4324 = vmatpush2.msra.mxu0 0.0
    %4325 = vmatprep.subr.mxu0 0.0
    %4326 = vmatpush2.msra.mxu0 0.0
    %4327 = vmatprep.subr.mxu0 0.0
    %4328 = vmatpush2.msra.mxu0 0.0
    %4329 = vmatprep.subr.mxu0 0.0
    %4330 = vmatpush2.msra.mxu0 0.0
    %4331 = vmatprep.subr.mxu0 0.0
    %4332 = vmatpush2.msra.mxu0 0.0
    %4333 = vmatprep.mubr.f32.mxu0 0.0
    %4334 = vmatmul.mubr.f32.gmra.mxu0 %v4095
    %v4335 = vpop.f32.mrf.mxu0
    %v4336 = vadd.f32 0.0, %v4335
    %v4337 = vpop.f32.mrf.mxu0
    %v4338 = vadd.f32 0.0, %v4337
    %4339 = vdwg.mxu0
    %4340 = vmatprep.subr.mxu0 %v710
    %4341 = vmatpush1.msra.mxu0 %v709
    %4342 = vmatprep.subr.mxu0 %v706
    %4343 = vmatpush1.msra.mxu0 %v705
    %4344 = vmatprep.subr.mxu0 %v702
    %4345 = vmatpush1.msra.mxu0 %v701
    %4346 = vmatprep.subr.mxu0 %v698
    %4347 = vmatpush1.msra.mxu0 %v697
    %4348 = vmatprep.subr.mxu0 %v694
    %4349 = vmatpush1.msra.mxu0 %v693
    %4350 = vmatprep.subr.mxu0 %v690
    %4351 = vmatpush1.msra.mxu0 %v689
    %4352 = vmatprep.subr.mxu0 %v686
    %4353 = vmatpush1.msra.mxu0 %v685
    %4354 = vmatprep.subr.mxu0 %v682
    %4355 = vmatpush1.msra.mxu0 %v681
    %4356 = vmatprep.subr.mxu0 %v678
    %4357 = vmatpush1.msra.mxu0 %v677
    %4358 = vmatprep.subr.mxu0 %v674
    %4359 = vmatpush1.msra.mxu0 %v673
    %4360 = vmatprep.subr.mxu0 %v670
    %4361 = vmatpush1.msra.mxu0 %v669
    %4362 = vmatprep.subr.mxu0 %v666
    %4363 = vmatpush1.msra.mxu0 %v665
    %4364 = vmatprep.subr.mxu0 %v662
    %4365 = vmatpush1.msra.mxu0 %v661
    %4366 = vmatprep.subr.mxu0 %v658
    %4367 = vmatpush1.msra.mxu0 %v657
    %4368 = vmatprep.subr.mxu0 %v654
    %4369 = vmatpush1.msra.mxu0 %v653
    %4370 = vmatprep.subr.mxu0 %v650
    %4371 = vmatpush1.msra.mxu0 %v649
    %4372 = vmatprep.subr.mxu0 0.0
    %4373 = vmatpush2.msra.mxu0 0.0
    %4374 = vmatprep.subr.mxu0 0.0
    %4375 = vmatpush2.msra.mxu0 0.0
    %4376 = vmatprep.subr.mxu0 0.0
    %4377 = vmatpush2.msra.mxu0 0.0
    %4378 = vmatprep.subr.mxu0 0.0
    %4379 = vmatpush2.msra.mxu0 0.0
    %4380 = vmatprep.subr.mxu0 0.0
    %4381 = vmatpush2.msra.mxu0 0.0
    %4382 = vmatprep.subr.mxu0 0.0
    %4383 = vmatpush2.msra.mxu0 0.0
    %4384 = vmatprep.subr.mxu0 0.0
    %4385 = vmatpush2.msra.mxu0 0.0
    %4386 = vmatprep.subr.mxu0 0.0
    %4387 = vmatpush2.msra.mxu0 0.0
    %4388 = vmatprep.subr.mxu0 0.0
    %4389 = vmatpush2.msra.mxu0 0.0
    %4390 = vmatprep.subr.mxu0 0.0
    %4391 = vmatpush2.msra.mxu0 0.0
    %4392 = vmatprep.subr.mxu0 0.0
    %4393 = vmatpush2.msra.mxu0 0.0
    %4394 = vmatprep.subr.mxu0 0.0
    %4395 = vmatpush2.msra.mxu0 0.0
    %4396 = vmatprep.subr.mxu0 0.0
    %4397 = vmatpush2.msra.mxu0 0.0
    %4398 = vmatprep.subr.mxu0 0.0
    %4399 = vmatpush2.msra.mxu0 0.0
    %4400 = vmatprep.subr.mxu0 0.0
    %4401 = vmatpush2.msra.mxu0 0.0
    %4402 = vmatprep.subr.mxu0 0.0
    %4403 = vmatpush2.msra.mxu0 0.0
    %4404 = vmatprep.mubr.f32.mxu0 0.0
    %4405 = vmatmul.mubr.f32.gmra.mxu0 %v4095
    %v4406 = vpop.f32.mrf.mxu0
    %v4407 = vadd.f32 0.0, %v4406
    %v4408 = vpop.f32.mrf.mxu0
    %v4409 = vadd.f32 0.0, %v4408
    %4410 = vdwg.mxu0
    %v4411 = vadd.f32 %v4265, %v4336
    %v4412 = vadd.f32 %v4266, %v4338
    %v4413 = vadd.f32 %v4267, %v4407
    %v4414 = vadd.f32 %v4268, %v4409
    %v4415 = vxor.u32 %v4411, 2147483648
    %v4416 = vmul.f32 %v4415, 1.442695
    %v4417 = vpow.pop %v4416
    %v4418 = vadd.f32 %v4417, 1.0
    %v4419 = vrcp.pop %v4418
    %v4420 = vmul.f32 1.0, %v4419
    %v4421 = vxor.u32 %v4412, 2147483648
    %v4422 = vmul.f32 %v4421, 1.442695
    %v4423 = vpow.pop %v4422
    %v4424 = vadd.f32 %v4423, 1.0
    %v4425 = vrcp.pop %v4424
    %v4426 = vmul.f32 1.0, %v4425
    %v4427 = vtanh.pop %v4413
    %v4428 = vxor.u32 %v4414, 2147483648
    %v4429 = vmul.f32 %v4428, 1.442695
    %v4430 = vpow.pop %v4429
    %v4431 = vadd.f32 %v4430, 1.0
    %v4432 = vrcp.pop %v4431
    %v4433 = vmul.f32 1.0, %v4432
    %v4434 = vmul.f32 %v4426, %v4093
    %v4435 = vmul.f32 %v4420, %v4427
    %v4436 = vadd.f32 %v4434, %v4435
    %v4437 = vtanh.pop %v4436
    %v4438 = vmul.f32 %v4433, %v4437
    %4439 = vmatprep.subr.mxu0 %v942
    %4440 = vmatpush1.msra.mxu0 %v941
    %4441 = vmatprep.subr.mxu0 %v938
    %4442 = vmatpush1.msra.mxu0 %v937
    %4443 = vmatprep.subr.mxu0 %v934
    %4444 = vmatpush1.msra.mxu0 %v933
    %4445 = vmatprep.subr.mxu0 %v930
    %4446 = vmatpush1.msra.mxu0 %v929
    %4447 = vmatprep.subr.mxu0 %v926
    %4448 = vmatpush1.msra.mxu0 %v925
    %4449 = vmatprep.subr.mxu0 %v922
    %4450 = vmatpush1.msra.mxu0 %v921
    %4451 = vmatprep.subr.mxu0 %v918
    %4452 = vmatpush1.msra.mxu0 %v917
    %4453 = vmatprep.subr.mxu0 %v914
    %4454 = vmatpush1.msra.mxu0 %v913
    %4455 = vmatprep.subr.mxu0 %v910
    %4456 = vmatpush1.msra.mxu0 %v909
    %4457 = vmatprep.subr.mxu0 %v906
    %4458 = vmatpush1.msra.mxu0 %v905
    %4459 = vmatprep.subr.mxu0 %v902
    %4460 = vmatpush1.msra.mxu0 %v901
    %4461 = vmatprep.subr.mxu0 %v898
    %4462 = vmatpush1.msra.mxu0 %v897
    %4463 = vmatprep.subr.mxu0 %v894
    %4464 = vmatpush1.msra.mxu0 %v893
    %4465 = vmatprep.subr.mxu0 %v890
    %4466 = vmatpush1.msra.mxu0 %v889
    %4467 = vmatprep.subr.mxu0 %v886
    %4468 = vmatpush1.msra.mxu0 %v885
    %4469 = vmatprep.subr.mxu0 %v882
    %4470 = vmatpush1.msra.mxu0 %v881
    %4471 = vmatprep.subr.mxu0 %v1006
    %4472 = vmatpush2.msra.mxu0 %v1005
    %4473 = vmatprep.subr.mxu0 %v1002
    %4474 = vmatpush2.msra.mxu0 %v1001
    %4475 = vmatprep.subr.mxu0 %v998
    %4476 = vmatpush2.msra.mxu0 %v997
    %4477 = vmatprep.subr.mxu0 %v994
    %4478 = vmatpush2.msra.mxu0 %v993
    %4479 = vmatprep.subr.mxu0 %v990
    %4480 = vmatpush2.msra.mxu0 %v989
    %4481 = vmatprep.subr.mxu0 %v986
    %4482 = vmatpush2.msra.mxu0 %v985
    %4483 = vmatprep.subr.mxu0 %v982
    %4484 = vmatpush2.msra.mxu0 %v981
    %4485 = vmatprep.subr.mxu0 %v978
    %4486 = vmatpush2.msra.mxu0 %v977
    %4487 = vmatprep.subr.mxu0 %v974
    %4488 = vmatpush2.msra.mxu0 %v973
    %4489 = vmatprep.subr.mxu0 %v970
    %4490 = vmatpush2.msra.mxu0 %v969
    %4491 = vmatprep.subr.mxu0 %v966
    %4492 = vmatpush2.msra.mxu0 %v965
    %4493 = vmatprep.subr.mxu0 %v962
    %4494 = vmatpush2.msra.mxu0 %v961
    %4495 = vmatprep.subr.mxu0 %v958
    %4496 = vmatpush2.msra.mxu0 %v957
    %4497 = vmatprep.subr.mxu0 %v954
    %4498 = vmatpush2.msra.mxu0 %v953
    %4499 = vmatprep.subr.mxu0 %v950
    %4500 = vmatpush2.msra.mxu0 %v949
    %4501 = vmatprep.subr.mxu0 %v946
    %4502 = vmatpush2.msra.mxu0 %v945
    %4503 = vmatprep.mubr.f32.mxu0 %v4261
    %4504 = vmatmul.mubr.f32.gmra.mxu0 %v4438
    %v4505 = vpop.f32.mrf.mxu0
    %v4506 = vadd.f32 %v617, %v4505
    %v4507 = vpop.f32.mrf.mxu0
    %v4508 = vadd.f32 %v621, %v4507
    %4509 = vdwg.mxu0
    %4510 = vmatprep.subr.mxu0 %v944
    %4511 = vmatpush1.msra.mxu0 %v943
    %4512 = vmatprep.subr.mxu0 %v940
    %4513 = vmatpush1.msra.mxu0 %v939
    %4514 = vmatprep.subr.mxu0 %v936
    %4515 = vmatpush1.msra.mxu0 %v935
    %4516 = vmatprep.subr.mxu0 %v932
    %4517 = vmatpush1.msra.mxu0 %v931
    %4518 = vmatprep.subr.mxu0 %v928
    %4519 = vmatpush1.msra.mxu0 %v927
    %4520 = vmatprep.subr.mxu0 %v924
    %4521 = vmatpush1.msra.mxu0 %v923
    %4522 = vmatprep.subr.mxu0 %v920
    %4523 = vmatpush1.msra.mxu0 %v919
    %4524 = vmatprep.subr.mxu0 %v916
    %4525 = vmatpush1.msra.mxu0 %v915
    %4526 = vmatprep.subr.mxu0 %v912
    %4527 = vmatpush1.msra.mxu0 %v911
    %4528 = vmatprep.subr.mxu0 %v908
    %4529 = vmatpush1.msra.mxu0 %v907
    %4530 = vmatprep.subr.mxu0 %v904
    %4531 = vmatpush1.msra.mxu0 %v903
    %4532 = vmatprep.subr.mxu0 %v900
    %4533 = vmatpush1.msra.mxu0 %v899
    %4534 = vmatprep.subr.mxu0 %v896
    %4535 = vmatpush1.msra.mxu0 %v895
    %4536 = vmatprep.subr.mxu0 %v892
    %4537 = vmatpush1.msra.mxu0 %v891
    %4538 = vmatprep.subr.mxu0 %v888
    %4539 = vmatpush1.msra.mxu0 %v887
    %4540 = vmatprep.subr.mxu0 %v884
    %4541 = vmatpush1.msra.mxu0 %v883
    %4542 = vmatprep.subr.mxu0 %v1008
    %4543 = vmatpush2.msra.mxu0 %v1007
    %4544 = vmatprep.subr.mxu0 %v1004
    %4545 = vmatpush2.msra.mxu0 %v1003
    %4546 = vmatprep.subr.mxu0 %v1000
    %4547 = vmatpush2.msra.mxu0 %v999
    %4548 = vmatprep.subr.mxu0 %v996
    %4549 = vmatpush2.msra.mxu0 %v995
    %4550 = vmatprep.subr.mxu0 %v992
    %4551 = vmatpush2.msra.mxu0 %v991
    %4552 = vmatprep.subr.mxu0 %v988
    %4553 = vmatpush2.msra.mxu0 %v987
    %4554 = vmatprep.subr.mxu0 %v984
    %4555 = vmatpush2.msra.mxu0 %v983
    %4556 = vmatprep.subr.mxu0 %v980
    %4557 = vmatpush2.msra.mxu0 %v979
    %4558 = vmatprep.subr.mxu0 %v976
    %4559 = vmatpush2.msra.mxu0 %v975
    %4560 = vmatprep.subr.mxu0 %v972
    %4561 = vmatpush2.msra.mxu0 %v971
    %4562 = vmatprep.subr.mxu0 %v968
    %4563 = vmatpush2.msra.mxu0 %v967
    %4564 = vmatprep.subr.mxu0 %v964
    %4565 = vmatpush2.msra.mxu0 %v963
    %4566 = vmatprep.subr.mxu0 %v960
    %4567 = vmatpush2.msra.mxu0 %v959
    %4568 = vmatprep.subr.mxu0 %v956
    %4569 = vmatpush2.msra.mxu0 %v955
    %4570 = vmatprep.subr.mxu0 %v952
    %4571 = vmatpush2.msra.mxu0 %v951
    %4572 = vmatprep.subr.mxu0 %v948
    %4573 = vmatpush2.msra.mxu0 %v947
    %4574 = vmatprep.mubr.f32.mxu0 %v4261
    %4575 = vmatmul.mubr.f32.gmra.mxu0 %v4438
    %v4576 = vpop.f32.mrf.mxu0
    %v4577 = vadd.f32 %v625, %v4576
    %v4578 = vpop.f32.mrf.mxu0
    %v4579 = vadd.f32 %v629, %v4578
    %4580 = vdwg.mxu0
    %v4581 = vxor.u32 %v4506, 2147483648
    %v4582 = vmul.f32 %v4581, 1.442695
    %v4583 = vpow.pop %v4582
    %v4584 = vadd.f32 %v4583, 1.0
    %v4585 = vrcp.pop %v4584
    %v4586 = vmul.f32 1.0, %v4585
    %v4587 = vxor.u32 %v4508, 2147483648
    %v4588 = vmul.f32 %v4587, 1.442695
    %v4589 = vpow.pop %v4588
    %v4590 = vadd.f32 %v4589, 1.0
    %v4591 = vrcp.pop %v4590
    %v4592 = vmul.f32 1.0, %v4591
    %v4593 = vtanh.pop %v4577
    %v4594 = vxor.u32 %v4579, 2147483648
    %v4595 = vmul.f32 %v4594, 1.442695
    %v4596 = vpow.pop %v4595
    %v4597 = vadd.f32 %v4596, 1.0
    %v4598 = vrcp.pop %v4597
    %v4599 = vmul.f32 1.0, %v4598
    %v4600 = vmul.f32 %v4592, %v4259
    %v4601 = vmul.f32 %v4586, %v4593
    %v4602 = vadd.f32 %v4600, %v4601
    %v4603 = vtanh.pop %v4602
    %v4604 = vmul.f32 %v4599, %v4603
    %s4605 = smul.u32 11, 4
    %s4606 = smul.addr %s4605, 8
    %s4607 = scalar_lea.vmem [#allocation2], %s4606
    %v4608 = vld [vmem:[%s4607] sm:$0xff]
    %v4609 = vld [vmem:[%s4607 + $0x8] sm:$0xff]
    %v4610 = vld [vmem:[%s4607 + $0x10] sm:$0xff]
    %v4611 = vld [vmem:[%s4607 + $0x18] sm:$0xff]
    %4612 = vmatprep.subr.mxu0 %v708
    %4613 = vmatpush1.msra.mxu0 %v707
    %4614 = vmatprep.subr.mxu0 %v704
    %4615 = vmatpush1.msra.mxu0 %v703
    %4616 = vmatprep.subr.mxu0 %v700
    %4617 = vmatpush1.msra.mxu0 %v699
    %4618 = vmatprep.subr.mxu0 %v696
    %4619 = vmatpush1.msra.mxu0 %v695
    %4620 = vmatprep.subr.mxu0 %v692
    %4621 = vmatpush1.msra.mxu0 %v691
    %4622 = vmatprep.subr.mxu0 %v688
    %4623 = vmatpush1.msra.mxu0 %v687
    %4624 = vmatprep.subr.mxu0 %v684
    %4625 = vmatpush1.msra.mxu0 %v683
    %4626 = vmatprep.subr.mxu0 %v680
    %4627 = vmatpush1.msra.mxu0 %v679
    %4628 = vmatprep.subr.mxu0 %v676
    %4629 = vmatpush1.msra.mxu0 %v675
    %4630 = vmatprep.subr.mxu0 %v672
    %4631 = vmatpush1.msra.mxu0 %v671
    %4632 = vmatprep.subr.mxu0 %v668
    %4633 = vmatpush1.msra.mxu0 %v667
    %4634 = vmatprep.subr.mxu0 %v664
    %4635 = vmatpush1.msra.mxu0 %v663
    %4636 = vmatprep.subr.mxu0 %v660
    %4637 = vmatpush1.msra.mxu0 %v659
    %4638 = vmatprep.subr.mxu0 %v656
    %4639 = vmatpush1.msra.mxu0 %v655
    %4640 = vmatprep.subr.mxu0 %v652
    %4641 = vmatpush1.msra.mxu0 %v651
    %4642 = vmatprep.subr.mxu0 %v648
    %4643 = vmatpush1.msra.mxu0 %v647
    %4644 = vmatprep.subr.mxu0 0.0
    %4645 = vmatpush2.msra.mxu0 0.0
    %4646 = vmatprep.subr.mxu0 0.0
    %4647 = vmatpush2.msra.mxu0 0.0
    %4648 = vmatprep.subr.mxu0 0.0
    %4649 = vmatpush2.msra.mxu0 0.0
    %4650 = vmatprep.subr.mxu0 0.0
    %4651 = vmatpush2.msra.mxu0 0.0
    %4652 = vmatprep.subr.mxu0 0.0
    %4653 = vmatpush2.msra.mxu0 0.0
    %4654 = vmatprep.subr.mxu0 0.0
    %4655 = vmatpush2.msra.mxu0 0.0
    %4656 = vmatprep.subr.mxu0 0.0
    %4657 = vmatpush2.msra.mxu0 0.0
    %4658 = vmatprep.subr.mxu0 0.0
    %4659 = vmatpush2.msra.mxu0 0.0
    %4660 = vmatprep.subr.mxu0 0.0
    %4661 = vmatpush2.msra.mxu0 0.0
    %4662 = vmatprep.subr.mxu0 0.0
    %4663 = vmatpush2.msra.mxu0 0.0
    %4664 = vmatprep.subr.mxu0 0.0
    %4665 = vmatpush2.msra.mxu0 0.0
    %4666 = vmatprep.subr.mxu0 0.0
    %4667 = vmatpush2.msra.mxu0 0.0
    %4668 = vmatprep.subr.mxu0 0.0
    %4669 = vmatpush2.msra.mxu0 0.0
    %4670 = vmatprep.subr.mxu0 0.0
    %4671 = vmatpush2.msra.mxu0 0.0
    %4672 = vmatprep.subr.mxu0 0.0
    %4673 = vmatpush2.msra.mxu0 0.0
    %4674 = vmatprep.subr.mxu0 0.0
    %4675 = vmatpush2.msra.mxu0 0.0
    %4676 = vmatprep.mubr.f32.mxu0 0.0
    %4677 = vmatmul.mubr.f32.gmra.mxu0 %v4438
    %v4678 = vpop.f32.mrf.mxu0
    %v4679 = vadd.f32 0.0, %v4678
    %v4680 = vpop.f32.mrf.mxu0
    %v4681 = vadd.f32 0.0, %v4680
    %4682 = vdwg.mxu0
    %4683 = vmatprep.subr.mxu0 %v710
    %4684 = vmatpush1.msra.mxu0 %v709
    %4685 = vmatprep.subr.mxu0 %v706
    %4686 = vmatpush1.msra.mxu0 %v705
    %4687 = vmatprep.subr.mxu0 %v702
    %4688 = vmatpush1.msra.mxu0 %v701
    %4689 = vmatprep.subr.mxu0 %v698
    %4690 = vmatpush1.msra.mxu0 %v697
    %4691 = vmatprep.subr.mxu0 %v694
    %4692 = vmatpush1.msra.mxu0 %v693
    %4693 = vmatprep.subr.mxu0 %v690
    %4694 = vmatpush1.msra.mxu0 %v689
    %4695 = vmatprep.subr.mxu0 %v686
    %4696 = vmatpush1.msra.mxu0 %v685
    %4697 = vmatprep.subr.mxu0 %v682
    %4698 = vmatpush1.msra.mxu0 %v681
    %4699 = vmatprep.subr.mxu0 %v678
    %4700 = vmatpush1.msra.mxu0 %v677
    %4701 = vmatprep.subr.mxu0 %v674
    %4702 = vmatpush1.msra.mxu0 %v673
    %4703 = vmatprep.subr.mxu0 %v670
    %4704 = vmatpush1.msra.mxu0 %v669
    %4705 = vmatprep.subr.mxu0 %v666
    %4706 = vmatpush1.msra.mxu0 %v665
    %4707 = vmatprep.subr.mxu0 %v662
    %4708 = vmatpush1.msra.mxu0 %v661
    %4709 = vmatprep.subr.mxu0 %v658
    %4710 = vmatpush1.msra.mxu0 %v657
    %4711 = vmatprep.subr.mxu0 %v654
    %4712 = vmatpush1.msra.mxu0 %v653
    %4713 = vmatprep.subr.mxu0 %v650
    %4714 = vmatpush1.msra.mxu0 %v649
    %4715 = vmatprep.subr.mxu0 0.0
    %4716 = vmatpush2.msra.mxu0 0.0
    %4717 = vmatprep.subr.mxu0 0.0
    %4718 = vmatpush2.msra.mxu0 0.0
    %4719 = vmatprep.subr.mxu0 0.0
    %4720 = vmatpush2.msra.mxu0 0.0
    %4721 = vmatprep.subr.mxu0 0.0
    %4722 = vmatpush2.msra.mxu0 0.0
    %4723 = vmatprep.subr.mxu0 0.0
    %4724 = vmatpush2.msra.mxu0 0.0
    %4725 = vmatprep.subr.mxu0 0.0
    %4726 = vmatpush2.msra.mxu0 0.0
    %4727 = vmatprep.subr.mxu0 0.0
    %4728 = vmatpush2.msra.mxu0 0.0
    %4729 = vmatprep.subr.mxu0 0.0
    %4730 = vmatpush2.msra.mxu0 0.0
    %4731 = vmatprep.subr.mxu0 0.0
    %4732 = vmatpush2.msra.mxu0 0.0
    %4733 = vmatprep.subr.mxu0 0.0
    %4734 = vmatpush2.msra.mxu0 0.0
    %4735 = vmatprep.subr.mxu0 0.0
    %4736 = vmatpush2.msra.mxu0 0.0
    %4737 = vmatprep.subr.mxu0 0.0
    %4738 = vmatpush2.msra.mxu0 0.0
    %4739 = vmatprep.subr.mxu0 0.0
    %4740 = vmatpush2.msra.mxu0 0.0
    %4741 = vmatprep.subr.mxu0 0.0
    %4742 = vmatpush2.msra.mxu0 0.0
    %4743 = vmatprep.subr.mxu0 0.0
    %4744 = vmatpush2.msra.mxu0 0.0
    %4745 = vmatprep.subr.mxu0 0.0
    %4746 = vmatpush2.msra.mxu0 0.0
    %4747 = vmatprep.mubr.f32.mxu0 0.0
    %4748 = vmatmul.mubr.f32.gmra.mxu0 %v4438
    %v4749 = vpop.f32.mrf.mxu0
    %v4750 = vadd.f32 0.0, %v4749
    %v4751 = vpop.f32.mrf.mxu0
    %v4752 = vadd.f32 0.0, %v4751
    %4753 = vdwg.mxu0
    %v4754 = vadd.f32 %v4608, %v4679
    %v4755 = vadd.f32 %v4609, %v4681
    %v4756 = vadd.f32 %v4610, %v4750
    %v4757 = vadd.f32 %v4611, %v4752
    %v4758 = vxor.u32 %v4754, 2147483648
    %v4759 = vmul.f32 %v4758, 1.442695
    %v4760 = vpow.pop %v4759
    %v4761 = vadd.f32 %v4760, 1.0
    %v4762 = vrcp.pop %v4761
    %v4763 = vmul.f32 1.0, %v4762
    %v4764 = vxor.u32 %v4755, 2147483648
    %v4765 = vmul.f32 %v4764, 1.442695
    %v4766 = vpow.pop %v4765
    %v4767 = vadd.f32 %v4766, 1.0
    %v4768 = vrcp.pop %v4767
    %v4769 = vmul.f32 1.0, %v4768
    %v4770 = vtanh.pop %v4756
    %v4771 = vxor.u32 %v4757, 2147483648
    %v4772 = vmul.f32 %v4771, 1.442695
    %v4773 = vpow.pop %v4772
    %v4774 = vadd.f32 %v4773, 1.0
    %v4775 = vrcp.pop %v4774
    %v4776 = vmul.f32 1.0, %v4775
    %v4777 = vmul.f32 %v4769, %v4436
    %v4778 = vmul.f32 %v4763, %v4770
    %v4779 = vadd.f32 %v4777, %v4778
    %v4780 = vtanh.pop %v4779
    %v4781 = vmul.f32 %v4776, %v4780
    %4782 = vmatprep.subr.mxu0 %v942
    %4783 = vmatpush1.msra.mxu0 %v941
    %4784 = vmatprep.subr.mxu0 %v938
    %4785 = vmatpush1.msra.mxu0 %v937
    %4786 = vmatprep.subr.mxu0 %v934
    %4787 = vmatpush1.msra.mxu0 %v933
    %4788 = vmatprep.subr.mxu0 %v930
    %4789 = vmatpush1.msra.mxu0 %v929
    %4790 = vmatprep.subr.mxu0 %v926
    %4791 = vmatpush1.msra.mxu0 %v925
    %4792 = vmatprep.subr.mxu0 %v922
    %4793 = vmatpush1.msra.mxu0 %v921
    %4794 = vmatprep.subr.mxu0 %v918
    %4795 = vmatpush1.msra.mxu0 %v917
    %4796 = vmatprep.subr.mxu0 %v914
    %4797 = vmatpush1.msra.mxu0 %v913
    %4798 = vmatprep.subr.mxu0 %v910
    %4799 = vmatpush1.msra.mxu0 %v909
    %4800 = vmatprep.subr.mxu0 %v906
    %4801 = vmatpush1.msra.mxu0 %v905
    %4802 = vmatprep.subr.mxu0 %v902
    %4803 = vmatpush1.msra.mxu0 %v901
    %4804 = vmatprep.subr.mxu0 %v898
    %4805 = vmatpush1.msra.mxu0 %v897
    %4806 = vmatprep.subr.mxu0 %v894
    %4807 = vmatpush1.msra.mxu0 %v893
    %4808 = vmatprep.subr.mxu0 %v890
    %4809 = vmatpush1.msra.mxu0 %v889
    %4810 = vmatprep.subr.mxu0 %v886
    %4811 = vmatpush1.msra.mxu0 %v885
    %4812 = vmatprep.subr.mxu0 %v882
    %4813 = vmatpush1.msra.mxu0 %v881
    %4814 = vmatprep.subr.mxu0 %v1006
    %4815 = vmatpush2.msra.mxu0 %v1005
    %4816 = vmatprep.subr.mxu0 %v1002
    %4817 = vmatpush2.msra.mxu0 %v1001
    %4818 = vmatprep.subr.mxu0 %v998
    %4819 = vmatpush2.msra.mxu0 %v997
    %4820 = vmatprep.subr.mxu0 %v994
    %4821 = vmatpush2.msra.mxu0 %v993
    %4822 = vmatprep.subr.mxu0 %v990
    %4823 = vmatpush2.msra.mxu0 %v989
    %4824 = vmatprep.subr.mxu0 %v986
    %4825 = vmatpush2.msra.mxu0 %v985
    %4826 = vmatprep.subr.mxu0 %v982
    %4827 = vmatpush2.msra.mxu0 %v981
    %4828 = vmatprep.subr.mxu0 %v978
    %4829 = vmatpush2.msra.mxu0 %v977
    %4830 = vmatprep.subr.mxu0 %v974
    %4831 = vmatpush2.msra.mxu0 %v973
    %4832 = vmatprep.subr.mxu0 %v970
    %4833 = vmatpush2.msra.mxu0 %v969
    %4834 = vmatprep.subr.mxu0 %v966
    %4835 = vmatpush2.msra.mxu0 %v965
    %4836 = vmatprep.subr.mxu0 %v962
    %4837 = vmatpush2.msra.mxu0 %v961
    %4838 = vmatprep.subr.mxu0 %v958
    %4839 = vmatpush2.msra.mxu0 %v957
    %4840 = vmatprep.subr.mxu0 %v954
    %4841 = vmatpush2.msra.mxu0 %v953
    %4842 = vmatprep.subr.mxu0 %v950
    %4843 = vmatpush2.msra.mxu0 %v949
    %4844 = vmatprep.subr.mxu0 %v946
    %4845 = vmatpush2.msra.mxu0 %v945
    %4846 = vmatprep.mubr.f32.mxu0 %v4604
    %4847 = vmatmul.mubr.f32.gmra.mxu0 %v4781
    %v4848 = vpop.f32.mrf.mxu0
    %v4849 = vadd.f32 %v617, %v4848
    %v4850 = vpop.f32.mrf.mxu0
    %v4851 = vadd.f32 %v621, %v4850
    %4852 = vdwg.mxu0
    %4853 = vmatprep.subr.mxu0 %v944
    %4854 = vmatpush1.msra.mxu0 %v943
    %4855 = vmatprep.subr.mxu0 %v940
    %4856 = vmatpush1.msra.mxu0 %v939
    %4857 = vmatprep.subr.mxu0 %v936
    %4858 = vmatpush1.msra.mxu0 %v935
    %4859 = vmatprep.subr.mxu0 %v932
    %4860 = vmatpush1.msra.mxu0 %v931
    %4861 = vmatprep.subr.mxu0 %v928
    %4862 = vmatpush1.msra.mxu0 %v927
    %4863 = vmatprep.subr.mxu0 %v924
    %4864 = vmatpush1.msra.mxu0 %v923
    %4865 = vmatprep.subr.mxu0 %v920
    %4866 = vmatpush1.msra.mxu0 %v919
    %4867 = vmatprep.subr.mxu0 %v916
    %4868 = vmatpush1.msra.mxu0 %v915
    %4869 = vmatprep.subr.mxu0 %v912
    %4870 = vmatpush1.msra.mxu0 %v911
    %4871 = vmatprep.subr.mxu0 %v908
    %4872 = vmatpush1.msra.mxu0 %v907
    %4873 = vmatprep.subr.mxu0 %v904
    %4874 = vmatpush1.msra.mxu0 %v903
    %4875 = vmatprep.subr.mxu0 %v900
    %4876 = vmatpush1.msra.mxu0 %v899
    %4877 = vmatprep.subr.mxu0 %v896
    %4878 = vmatpush1.msra.mxu0 %v895
    %4879 = vmatprep.subr.mxu0 %v892
    %4880 = vmatpush1.msra.mxu0 %v891
    %4881 = vmatprep.subr.mxu0 %v888
    %4882 = vmatpush1.msra.mxu0 %v887
    %4883 = vmatprep.subr.mxu0 %v884
    %4884 = vmatpush1.msra.mxu0 %v883
    %4885 = vmatprep.subr.mxu0 %v1008
    %4886 = vmatpush2.msra.mxu0 %v1007
    %4887 = vmatprep.subr.mxu0 %v1004
    %4888 = vmatpush2.msra.mxu0 %v1003
    %4889 = vmatprep.subr.mxu0 %v1000
    %4890 = vmatpush2.msra.mxu0 %v999
    %4891 = vmatprep.subr.mxu0 %v996
    %4892 = vmatpush2.msra.mxu0 %v995
    %4893 = vmatprep.subr.mxu0 %v992
    %4894 = vmatpush2.msra.mxu0 %v991
    %4895 = vmatprep.subr.mxu0 %v988
    %4896 = vmatpush2.msra.mxu0 %v987
    %4897 = vmatprep.subr.mxu0 %v984
    %4898 = vmatpush2.msra.mxu0 %v983
    %4899 = vmatprep.subr.mxu0 %v980
    %4900 = vmatpush2.msra.mxu0 %v979
    %4901 = vmatprep.subr.mxu0 %v976
    %4902 = vmatpush2.msra.mxu0 %v975
    %4903 = vmatprep.subr.mxu0 %v972
    %4904 = vmatpush2.msra.mxu0 %v971
    %4905 = vmatprep.subr.mxu0 %v968
    %4906 = vmatpush2.msra.mxu0 %v967
    %4907 = vmatprep.subr.mxu0 %v964
    %4908 = vmatpush2.msra.mxu0 %v963
    %4909 = vmatprep.subr.mxu0 %v960
    %4910 = vmatpush2.msra.mxu0 %v959
    %4911 = vmatprep.subr.mxu0 %v956
    %4912 = vmatpush2.msra.mxu0 %v955
    %4913 = vmatprep.subr.mxu0 %v952
    %4914 = vmatpush2.msra.mxu0 %v951
    %4915 = vmatprep.subr.mxu0 %v948
    %4916 = vmatpush2.msra.mxu0 %v947
    %4917 = vmatprep.mubr.f32.mxu0 %v4604
    %4918 = vmatmul.mubr.f32.gmra.mxu0 %v4781
    %v4919 = vpop.f32.mrf.mxu0
    %v4920 = vadd.f32 %v625, %v4919
    %v4921 = vpop.f32.mrf.mxu0
    %v4922 = vadd.f32 %v629, %v4921
    %4923 = vdwg.mxu0
    %v4924 = vxor.u32 %v4849, 2147483648
    %v4925 = vmul.f32 %v4924, 1.442695
    %v4926 = vpow.pop %v4925
    %v4927 = vadd.f32 %v4926, 1.0
    %v4928 = vrcp.pop %v4927
    %v4929 = vmul.f32 1.0, %v4928
    %v4930 = vxor.u32 %v4851, 2147483648
    %v4931 = vmul.f32 %v4930, 1.442695
    %v4932 = vpow.pop %v4931
    %v4933 = vadd.f32 %v4932, 1.0
    %v4934 = vrcp.pop %v4933
    %v4935 = vmul.f32 1.0, %v4934
    %v4936 = vtanh.pop %v4920
    %v4937 = vxor.u32 %v4922, 2147483648
    %v4938 = vmul.f32 %v4937, 1.442695
    %v4939 = vpow.pop %v4938
    %v4940 = vadd.f32 %v4939, 1.0
    %v4941 = vrcp.pop %v4940
    %v4942 = vmul.f32 1.0, %v4941
    %v4943 = vmul.f32 %v4935, %v4602
    %v4944 = vmul.f32 %v4929, %v4936
    %v4945 = vadd.f32 %v4943, %v4944
    %v4946 = vtanh.pop %v4945
    %v4947 = vmul.f32 %v4942, %v4946
    %s4948 = smul.u32 12, 4
    %s4949 = smul.addr %s4948, 8
    %s4950 = scalar_lea.vmem [#allocation2], %s4949
    %v4951 = vld [vmem:[%s4950] sm:$0xff]
    %v4952 = vld [vmem:[%s4950 + $0x8] sm:$0xff]
    %v4953 = vld [vmem:[%s4950 + $0x10] sm:$0xff]
    %v4954 = vld [vmem:[%s4950 + $0x18] sm:$0xff]
    %4955 = vmatprep.subr.mxu0 %v708
    %4956 = vmatpush1.msra.mxu0 %v707
    %4957 = vmatprep.subr.mxu0 %v704
    %4958 = vmatpush1.msra.mxu0 %v703
    %4959 = vmatprep.subr.mxu0 %v700
    %4960 = vmatpush1.msra.mxu0 %v699
    %4961 = vmatprep.subr.mxu0 %v696
    %4962 = vmatpush1.msra.mxu0 %v695
    %4963 = vmatprep.subr.mxu0 %v692
    %4964 = vmatpush1.msra.mxu0 %v691
    %4965 = vmatprep.subr.mxu0 %v688
    %4966 = vmatpush1.msra.mxu0 %v687
    %4967 = vmatprep.subr.mxu0 %v684
    %4968 = vmatpush1.msra.mxu0 %v683
    %4969 = vmatprep.subr.mxu0 %v680
    %4970 = vmatpush1.msra.mxu0 %v679
    %4971 = vmatprep.subr.mxu0 %v676
    %4972 = vmatpush1.msra.mxu0 %v675
    %4973 = vmatprep.subr.mxu0 %v672
    %4974 = vmatpush1.msra.mxu0 %v671
    %4975 = vmatprep.subr.mxu0 %v668
    %4976 = vmatpush1.msra.mxu0 %v667
    %4977 = vmatprep.subr.mxu0 %v664
    %4978 = vmatpush1.msra.mxu0 %v663
    %4979 = vmatprep.subr.mxu0 %v660
    %4980 = vmatpush1.msra.mxu0 %v659
    %4981 = vmatprep.subr.mxu0 %v656
    %4982 = vmatpush1.msra.mxu0 %v655
    %4983 = vmatprep.subr.mxu0 %v652
    %4984 = vmatpush1.msra.mxu0 %v651
    %4985 = vmatprep.subr.mxu0 %v648
    %4986 = vmatpush1.msra.mxu0 %v647
    %4987 = vmatprep.subr.mxu0 0.0
    %4988 = vmatpush2.msra.mxu0 0.0
    %4989 = vmatprep.subr.mxu0 0.0
    %4990 = vmatpush2.msra.mxu0 0.0
    %4991 = vmatprep.subr.mxu0 0.0
    %4992 = vmatpush2.msra.mxu0 0.0
    %4993 = vmatprep.subr.mxu0 0.0
    %4994 = vmatpush2.msra.mxu0 0.0
    %4995 = vmatprep.subr.mxu0 0.0
    %4996 = vmatpush2.msra.mxu0 0.0
    %4997 = vmatprep.subr.mxu0 0.0
    %4998 = vmatpush2.msra.mxu0 0.0
    %4999 = vmatprep.subr.mxu0 0.0
    %5000 = vmatpush2.msra.mxu0 0.0
    %5001 = vmatprep.subr.mxu0 0.0
    %5002 = vmatpush2.msra.mxu0 0.0
    %5003 = vmatprep.subr.mxu0 0.0
    %5004 = vmatpush2.msra.mxu0 0.0
    %5005 = vmatprep.subr.mxu0 0.0
    %5006 = vmatpush2.msra.mxu0 0.0
    %5007 = vmatprep.subr.mxu0 0.0
    %5008 = vmatpush2.msra.mxu0 0.0
    %5009 = vmatprep.subr.mxu0 0.0
    %5010 = vmatpush2.msra.mxu0 0.0
    %5011 = vmatprep.subr.mxu0 0.0
    %5012 = vmatpush2.msra.mxu0 0.0
    %5013 = vmatprep.subr.mxu0 0.0
    %5014 = vmatpush2.msra.mxu0 0.0
    %5015 = vmatprep.subr.mxu0 0.0
    %5016 = vmatpush2.msra.mxu0 0.0
    %5017 = vmatprep.subr.mxu0 0.0
    %5018 = vmatpush2.msra.mxu0 0.0
    %5019 = vmatprep.mubr.f32.mxu0 0.0
    %5020 = vmatmul.mubr.f32.gmra.mxu0 %v4781
    %v5021 = vpop.f32.mrf.mxu0
    %v5022 = vadd.f32 0.0, %v5021
    %v5023 = vpop.f32.mrf.mxu0
    %v5024 = vadd.f32 0.0, %v5023
    %5025 = vdwg.mxu0
    %5026 = vmatprep.subr.mxu0 %v710
    %5027 = vmatpush1.msra.mxu0 %v709
    %5028 = vmatprep.subr.mxu0 %v706
    %5029 = vmatpush1.msra.mxu0 %v705
    %5030 = vmatprep.subr.mxu0 %v702
    %5031 = vmatpush1.msra.mxu0 %v701
    %5032 = vmatprep.subr.mxu0 %v698
    %5033 = vmatpush1.msra.mxu0 %v697
    %5034 = vmatprep.subr.mxu0 %v694
    %5035 = vmatpush1.msra.mxu0 %v693
    %5036 = vmatprep.subr.mxu0 %v690
    %5037 = vmatpush1.msra.mxu0 %v689
    %5038 = vmatprep.subr.mxu0 %v686
    %5039 = vmatpush1.msra.mxu0 %v685
    %5040 = vmatprep.subr.mxu0 %v682
    %5041 = vmatpush1.msra.mxu0 %v681
    %5042 = vmatprep.subr.mxu0 %v678
    %5043 = vmatpush1.msra.mxu0 %v677
    %5044 = vmatprep.subr.mxu0 %v674
    %5045 = vmatpush1.msra.mxu0 %v673
    %5046 = vmatprep.subr.mxu0 %v670
    %5047 = vmatpush1.msra.mxu0 %v669
    %5048 = vmatprep.subr.mxu0 %v666
    %5049 = vmatpush1.msra.mxu0 %v665
    %5050 = vmatprep.subr.mxu0 %v662
    %5051 = vmatpush1.msra.mxu0 %v661
    %5052 = vmatprep.subr.mxu0 %v658
    %5053 = vmatpush1.msra.mxu0 %v657
    %5054 = vmatprep.subr.mxu0 %v654
    %5055 = vmatpush1.msra.mxu0 %v653
    %5056 = vmatprep.subr.mxu0 %v650
    %5057 = vmatpush1.msra.mxu0 %v649
    %5058 = vmatprep.subr.mxu0 0.0
    %5059 = vmatpush2.msra.mxu0 0.0
    %5060 = vmatprep.subr.mxu0 0.0
    %5061 = vmatpush2.msra.mxu0 0.0
    %5062 = vmatprep.subr.mxu0 0.0
    %5063 = vmatpush2.msra.mxu0 0.0
    %5064 = vmatprep.subr.mxu0 0.0
    %5065 = vmatpush2.msra.mxu0 0.0
    %5066 = vmatprep.subr.mxu0 0.0
    %5067 = vmatpush2.msra.mxu0 0.0
    %5068 = vmatprep.subr.mxu0 0.0
    %5069 = vmatpush2.msra.mxu0 0.0
    %5070 = vmatprep.subr.mxu0 0.0
    %5071 = vmatpush2.msra.mxu0 0.0
    %5072 = vmatprep.subr.mxu0 0.0
    %5073 = vmatpush2.msra.mxu0 0.0
    %5074 = vmatprep.subr.mxu0 0.0
    %5075 = vmatpush2.msra.mxu0 0.0
    %5076 = vmatprep.subr.mxu0 0.0
    %5077 = vmatpush2.msra.mxu0 0.0
    %5078 = vmatprep.subr.mxu0 0.0
    %5079 = vmatpush2.msra.mxu0 0.0
    %5080 = vmatprep.subr.mxu0 0.0
    %5081 = vmatpush2.msra.mxu0 0.0
    %5082 = vmatprep.subr.mxu0 0.0
    %5083 = vmatpush2.msra.mxu0 0.0
    %5084 = vmatprep.subr.mxu0 0.0
    %5085 = vmatpush2.msra.mxu0 0.0
    %5086 = vmatprep.subr.mxu0 0.0
    %5087 = vmatpush2.msra.mxu0 0.0
    %5088 = vmatprep.subr.mxu0 0.0
    %5089 = vmatpush2.msra.mxu0 0.0
    %5090 = vmatprep.mubr.f32.mxu0 0.0
    %5091 = vmatmul.mubr.f32.gmra.mxu0 %v4781
    %v5092 = vpop.f32.mrf.mxu0
    %v5093 = vadd.f32 0.0, %v5092
    %v5094 = vpop.f32.mrf.mxu0
    %v5095 = vadd.f32 0.0, %v5094
    %5096 = vdwg.mxu0
    %v5097 = vadd.f32 %v4951, %v5022
    %v5098 = vadd.f32 %v4952, %v5024
    %v5099 = vadd.f32 %v4953, %v5093
    %v5100 = vadd.f32 %v4954, %v5095
    %v5101 = vxor.u32 %v5097, 2147483648
    %v5102 = vmul.f32 %v5101, 1.442695
    %v5103 = vpow.pop %v5102
    %v5104 = vadd.f32 %v5103, 1.0
    %v5105 = vrcp.pop %v5104
    %v5106 = vmul.f32 1.0, %v5105
    %v5107 = vxor.u32 %v5098, 2147483648
    %v5108 = vmul.f32 %v5107, 1.442695
    %v5109 = vpow.pop %v5108
    %v5110 = vadd.f32 %v5109, 1.0
    %v5111 = vrcp.pop %v5110
    %v5112 = vmul.f32 1.0, %v5111
    %v5113 = vtanh.pop %v5099
    %v5114 = vxor.u32 %v5100, 2147483648
    %v5115 = vmul.f32 %v5114, 1.442695
    %v5116 = vpow.pop %v5115
    %v5117 = vadd.f32 %v5116, 1.0
    %v5118 = vrcp.pop %v5117
    %v5119 = vmul.f32 1.0, %v5118
    %v5120 = vmul.f32 %v5112, %v4779
    %v5121 = vmul.f32 %v5106, %v5113
    %v5122 = vadd.f32 %v5120, %v5121
    %v5123 = vtanh.pop %v5122
    %v5124 = vmul.f32 %v5119, %v5123
    %5125 = vmatprep.subr.mxu0 %v942
    %5126 = vmatpush1.msra.mxu0 %v941
    %5127 = vmatprep.subr.mxu0 %v938
    %5128 = vmatpush1.msra.mxu0 %v937
    %5129 = vmatprep.subr.mxu0 %v934
    %5130 = vmatpush1.msra.mxu0 %v933
    %5131 = vmatprep.subr.mxu0 %v930
    %5132 = vmatpush1.msra.mxu0 %v929
    %5133 = vmatprep.subr.mxu0 %v926
    %5134 = vmatpush1.msra.mxu0 %v925
    %5135 = vmatprep.subr.mxu0 %v922
    %5136 = vmatpush1.msra.mxu0 %v921
    %5137 = vmatprep.subr.mxu0 %v918
    %5138 = vmatpush1.msra.mxu0 %v917
    %5139 = vmatprep.subr.mxu0 %v914
    %5140 = vmatpush1.msra.mxu0 %v913
    %5141 = vmatprep.subr.mxu0 %v910
    %5142 = vmatpush1.msra.mxu0 %v909
    %5143 = vmatprep.subr.mxu0 %v906
    %5144 = vmatpush1.msra.mxu0 %v905
    %5145 = vmatprep.subr.mxu0 %v902
    %5146 = vmatpush1.msra.mxu0 %v901
    %5147 = vmatprep.subr.mxu0 %v898
    %5148 = vmatpush1.msra.mxu0 %v897
    %5149 = vmatprep.subr.mxu0 %v894
    %5150 = vmatpush1.msra.mxu0 %v893
    %5151 = vmatprep.subr.mxu0 %v890
    %5152 = vmatpush1.msra.mxu0 %v889
    %5153 = vmatprep.subr.mxu0 %v886
    %5154 = vmatpush1.msra.mxu0 %v885
    %5155 = vmatprep.subr.mxu0 %v882
    %5156 = vmatpush1.msra.mxu0 %v881
    %5157 = vmatprep.subr.mxu0 %v1006
    %5158 = vmatpush2.msra.mxu0 %v1005
    %5159 = vmatprep.subr.mxu0 %v1002
    %5160 = vmatpush2.msra.mxu0 %v1001
    %5161 = vmatprep.subr.mxu0 %v998
    %5162 = vmatpush2.msra.mxu0 %v997
    %5163 = vmatprep.subr.mxu0 %v994
    %5164 = vmatpush2.msra.mxu0 %v993
    %5165 = vmatprep.subr.mxu0 %v990
    %5166 = vmatpush2.msra.mxu0 %v989
    %5167 = vmatprep.subr.mxu0 %v986
    %5168 = vmatpush2.msra.mxu0 %v985
    %5169 = vmatprep.subr.mxu0 %v982
    %5170 = vmatpush2.msra.mxu0 %v981
    %5171 = vmatprep.subr.mxu0 %v978
    %5172 = vmatpush2.msra.mxu0 %v977
    %5173 = vmatprep.subr.mxu0 %v974
    %5174 = vmatpush2.msra.mxu0 %v973
    %5175 = vmatprep.subr.mxu0 %v970
    %5176 = vmatpush2.msra.mxu0 %v969
    %5177 = vmatprep.subr.mxu0 %v966
    %5178 = vmatpush2.msra.mxu0 %v965
    %5179 = vmatprep.subr.mxu0 %v962
    %5180 = vmatpush2.msra.mxu0 %v961
    %5181 = vmatprep.subr.mxu0 %v958
    %5182 = vmatpush2.msra.mxu0 %v957
    %5183 = vmatprep.subr.mxu0 %v954
    %5184 = vmatpush2.msra.mxu0 %v953
    %5185 = vmatprep.subr.mxu0 %v950
    %5186 = vmatpush2.msra.mxu0 %v949
    %5187 = vmatprep.subr.mxu0 %v946
    %5188 = vmatpush2.msra.mxu0 %v945
    %5189 = vmatprep.mubr.f32.mxu0 %v4947
    %5190 = vmatmul.mubr.f32.gmra.mxu0 %v5124
    %v5191 = vpop.f32.mrf.mxu0
    %v5192 = vadd.f32 %v617, %v5191
    %v5193 = vpop.f32.mrf.mxu0
    %v5194 = vadd.f32 %v621, %v5193
    %5195 = vdwg.mxu0
    %5196 = vmatprep.subr.mxu0 %v944
    %5197 = vmatpush1.msra.mxu0 %v943
    %5198 = vmatprep.subr.mxu0 %v940
    %5199 = vmatpush1.msra.mxu0 %v939
    %5200 = vmatprep.subr.mxu0 %v936
    %5201 = vmatpush1.msra.mxu0 %v935
    %5202 = vmatprep.subr.mxu0 %v932
    %5203 = vmatpush1.msra.mxu0 %v931
    %5204 = vmatprep.subr.mxu0 %v928
    %5205 = vmatpush1.msra.mxu0 %v927
    %5206 = vmatprep.subr.mxu0 %v924
    %5207 = vmatpush1.msra.mxu0 %v923
    %5208 = vmatprep.subr.mxu0 %v920
    %5209 = vmatpush1.msra.mxu0 %v919
    %5210 = vmatprep.subr.mxu0 %v916
    %5211 = vmatpush1.msra.mxu0 %v915
    %5212 = vmatprep.subr.mxu0 %v912
    %5213 = vmatpush1.msra.mxu0 %v911
    %5214 = vmatprep.subr.mxu0 %v908
    %5215 = vmatpush1.msra.mxu0 %v907
    %5216 = vmatprep.subr.mxu0 %v904
    %5217 = vmatpush1.msra.mxu0 %v903
    %5218 = vmatprep.subr.mxu0 %v900
    %5219 = vmatpush1.msra.mxu0 %v899
    %5220 = vmatprep.subr.mxu0 %v896
    %5221 = vmatpush1.msra.mxu0 %v895
    %5222 = vmatprep.subr.mxu0 %v892
    %5223 = vmatpush1.msra.mxu0 %v891
    %5224 = vmatprep.subr.mxu0 %v888
    %5225 = vmatpush1.msra.mxu0 %v887
    %5226 = vmatprep.subr.mxu0 %v884
    %5227 = vmatpush1.msra.mxu0 %v883
    %5228 = vmatprep.subr.mxu0 %v1008
    %5229 = vmatpush2.msra.mxu0 %v1007
    %5230 = vmatprep.subr.mxu0 %v1004
    %5231 = vmatpush2.msra.mxu0 %v1003
    %5232 = vmatprep.subr.mxu0 %v1000
    %5233 = vmatpush2.msra.mxu0 %v999
    %5234 = vmatprep.subr.mxu0 %v996
    %5235 = vmatpush2.msra.mxu0 %v995
    %5236 = vmatprep.subr.mxu0 %v992
    %5237 = vmatpush2.msra.mxu0 %v991
    %5238 = vmatprep.subr.mxu0 %v988
    %5239 = vmatpush2.msra.mxu0 %v987
    %5240 = vmatprep.subr.mxu0 %v984
    %5241 = vmatpush2.msra.mxu0 %v983
    %5242 = vmatprep.subr.mxu0 %v980
    %5243 = vmatpush2.msra.mxu0 %v979
    %5244 = vmatprep.subr.mxu0 %v976
    %5245 = vmatpush2.msra.mxu0 %v975
    %5246 = vmatprep.subr.mxu0 %v972
    %5247 = vmatpush2.msra.mxu0 %v971
    %5248 = vmatprep.subr.mxu0 %v968
    %5249 = vmatpush2.msra.mxu0 %v967
    %5250 = vmatprep.subr.mxu0 %v964
    %5251 = vmatpush2.msra.mxu0 %v963
    %5252 = vmatprep.subr.mxu0 %v960
    %5253 = vmatpush2.msra.mxu0 %v959
    %5254 = vmatprep.subr.mxu0 %v956
    %5255 = vmatpush2.msra.mxu0 %v955
    %5256 = vmatprep.subr.mxu0 %v952
    %5257 = vmatpush2.msra.mxu0 %v951
    %5258 = vmatprep.subr.mxu0 %v948
    %5259 = vmatpush2.msra.mxu0 %v947
    %5260 = vmatprep.mubr.f32.mxu0 %v4947
    %5261 = vmatmul.mubr.f32.gmra.mxu0 %v5124
    %v5262 = vpop.f32.mrf.mxu0
    %v5263 = vadd.f32 %v625, %v5262
    %v5264 = vpop.f32.mrf.mxu0
    %v5265 = vadd.f32 %v629, %v5264
    %5266 = vdwg.mxu0
    %v5267 = vxor.u32 %v5192, 2147483648
    %v5268 = vmul.f32 %v5267, 1.442695
    %v5269 = vpow.pop %v5268
    %v5270 = vadd.f32 %v5269, 1.0
    %v5271 = vrcp.pop %v5270
    %v5272 = vmul.f32 1.0, %v5271
    %v5273 = vxor.u32 %v5194, 2147483648
    %v5274 = vmul.f32 %v5273, 1.442695
    %v5275 = vpow.pop %v5274
    %v5276 = vadd.f32 %v5275, 1.0
    %v5277 = vrcp.pop %v5276
    %v5278 = vmul.f32 1.0, %v5277
    %v5279 = vtanh.pop %v5263
    %v5280 = vxor.u32 %v5265, 2147483648
    %v5281 = vmul.f32 %v5280, 1.442695
    %v5282 = vpow.pop %v5281
    %v5283 = vadd.f32 %v5282, 1.0
    %v5284 = vrcp.pop %v5283
    %v5285 = vmul.f32 1.0, %v5284
    %v5286 = vmul.f32 %v5278, %v4945
    %v5287 = vmul.f32 %v5272, %v5279
    %v5288 = vadd.f32 %v5286, %v5287
    %v5289 = vtanh.pop %v5288
    %v5290 = vmul.f32 %v5285, %v5289
    %s5291 = smul.u32 13, 4
    %s5292 = smul.addr %s5291, 8
    %s5293 = scalar_lea.vmem [#allocation2], %s5292
    %v5294 = vld [vmem:[%s5293] sm:$0xff]
    %v5295 = vld [vmem:[%s5293 + $0x8] sm:$0xff]
    %v5296 = vld [vmem:[%s5293 + $0x10] sm:$0xff]
    %v5297 = vld [vmem:[%s5293 + $0x18] sm:$0xff]
    %5298 = vmatprep.subr.mxu0 %v708
    %5299 = vmatpush1.msra.mxu0 %v707
    %5300 = vmatprep.subr.mxu0 %v704
    %5301 = vmatpush1.msra.mxu0 %v703
    %5302 = vmatprep.subr.mxu0 %v700
    %5303 = vmatpush1.msra.mxu0 %v699
    %5304 = vmatprep.subr.mxu0 %v696
    %5305 = vmatpush1.msra.mxu0 %v695
    %5306 = vmatprep.subr.mxu0 %v692
    %5307 = vmatpush1.msra.mxu0 %v691
    %5308 = vmatprep.subr.mxu0 %v688
    %5309 = vmatpush1.msra.mxu0 %v687
    %5310 = vmatprep.subr.mxu0 %v684
    %5311 = vmatpush1.msra.mxu0 %v683
    %5312 = vmatprep.subr.mxu0 %v680
    %5313 = vmatpush1.msra.mxu0 %v679
    %5314 = vmatprep.subr.mxu0 %v676
    %5315 = vmatpush1.msra.mxu0 %v675
    %5316 = vmatprep.subr.mxu0 %v672
    %5317 = vmatpush1.msra.mxu0 %v671
    %5318 = vmatprep.subr.mxu0 %v668
    %5319 = vmatpush1.msra.mxu0 %v667
    %5320 = vmatprep.subr.mxu0 %v664
    %5321 = vmatpush1.msra.mxu0 %v663
    %5322 = vmatprep.subr.mxu0 %v660
    %5323 = vmatpush1.msra.mxu0 %v659
    %5324 = vmatprep.subr.mxu0 %v656
    %5325 = vmatpush1.msra.mxu0 %v655
    %5326 = vmatprep.subr.mxu0 %v652
    %5327 = vmatpush1.msra.mxu0 %v651
    %5328 = vmatprep.subr.mxu0 %v648
    %5329 = vmatpush1.msra.mxu0 %v647
    %5330 = vmatprep.subr.mxu0 0.0
    %5331 = vmatpush2.msra.mxu0 0.0
    %5332 = vmatprep.subr.mxu0 0.0
    %5333 = vmatpush2.msra.mxu0 0.0
    %5334 = vmatprep.subr.mxu0 0.0
    %5335 = vmatpush2.msra.mxu0 0.0
    %5336 = vmatprep.subr.mxu0 0.0
    %5337 = vmatpush2.msra.mxu0 0.0
    %5338 = vmatprep.subr.mxu0 0.0
    %5339 = vmatpush2.msra.mxu0 0.0
    %5340 = vmatprep.subr.mxu0 0.0
    %5341 = vmatpush2.msra.mxu0 0.0
    %5342 = vmatprep.subr.mxu0 0.0
    %5343 = vmatpush2.msra.mxu0 0.0
    %5344 = vmatprep.subr.mxu0 0.0
    %5345 = vmatpush2.msra.mxu0 0.0
    %5346 = vmatprep.subr.mxu0 0.0
    %5347 = vmatpush2.msra.mxu0 0.0
    %5348 = vmatprep.subr.mxu0 0.0
    %5349 = vmatpush2.msra.mxu0 0.0
    %5350 = vmatprep.subr.mxu0 0.0
    %5351 = vmatpush2.msra.mxu0 0.0
    %5352 = vmatprep.subr.mxu0 0.0
    %5353 = vmatpush2.msra.mxu0 0.0
    %5354 = vmatprep.subr.mxu0 0.0
    %5355 = vmatpush2.msra.mxu0 0.0
    %5356 = vmatprep.subr.mxu0 0.0
    %5357 = vmatpush2.msra.mxu0 0.0
    %5358 = vmatprep.subr.mxu0 0.0
    %5359 = vmatpush2.msra.mxu0 0.0
    %5360 = vmatprep.subr.mxu0 0.0
    %5361 = vmatpush2.msra.mxu0 0.0
    %5362 = vmatprep.mubr.f32.mxu0 0.0
    %5363 = vmatmul.mubr.f32.gmra.mxu0 %v5124
    %v5364 = vpop.f32.mrf.mxu0
    %v5365 = vadd.f32 0.0, %v5364
    %v5366 = vpop.f32.mrf.mxu0
    %v5367 = vadd.f32 0.0, %v5366
    %5368 = vdwg.mxu0
    %5369 = vmatprep.subr.mxu0 %v710
    %5370 = vmatpush1.msra.mxu0 %v709
    %5371 = vmatprep.subr.mxu0 %v706
    %5372 = vmatpush1.msra.mxu0 %v705
    %5373 = vmatprep.subr.mxu0 %v702
    %5374 = vmatpush1.msra.mxu0 %v701
    %5375 = vmatprep.subr.mxu0 %v698
    %5376 = vmatpush1.msra.mxu0 %v697
    %5377 = vmatprep.subr.mxu0 %v694
    %5378 = vmatpush1.msra.mxu0 %v693
    %5379 = vmatprep.subr.mxu0 %v690
    %5380 = vmatpush1.msra.mxu0 %v689
    %5381 = vmatprep.subr.mxu0 %v686
    %5382 = vmatpush1.msra.mxu0 %v685
    %5383 = vmatprep.subr.mxu0 %v682
    %5384 = vmatpush1.msra.mxu0 %v681
    %5385 = vmatprep.subr.mxu0 %v678
    %5386 = vmatpush1.msra.mxu0 %v677
    %5387 = vmatprep.subr.mxu0 %v674
    %5388 = vmatpush1.msra.mxu0 %v673
    %5389 = vmatprep.subr.mxu0 %v670
    %5390 = vmatpush1.msra.mxu0 %v669
    %5391 = vmatprep.subr.mxu0 %v666
    %5392 = vmatpush1.msra.mxu0 %v665
    %5393 = vmatprep.subr.mxu0 %v662
    %5394 = vmatpush1.msra.mxu0 %v661
    %5395 = vmatprep.subr.mxu0 %v658
    %5396 = vmatpush1.msra.mxu0 %v657
    %5397 = vmatprep.subr.mxu0 %v654
    %5398 = vmatpush1.msra.mxu0 %v653
    %5399 = vmatprep.subr.mxu0 %v650
    %5400 = vmatpush1.msra.mxu0 %v649
    %5401 = vmatprep.subr.mxu0 0.0
    %5402 = vmatpush2.msra.mxu0 0.0
    %5403 = vmatprep.subr.mxu0 0.0
    %5404 = vmatpush2.msra.mxu0 0.0
    %5405 = vmatprep.subr.mxu0 0.0
    %5406 = vmatpush2.msra.mxu0 0.0
    %5407 = vmatprep.subr.mxu0 0.0
    %5408 = vmatpush2.msra.mxu0 0.0
    %5409 = vmatprep.subr.mxu0 0.0
    %5410 = vmatpush2.msra.mxu0 0.0
    %5411 = vmatprep.subr.mxu0 0.0
    %5412 = vmatpush2.msra.mxu0 0.0
    %5413 = vmatprep.subr.mxu0 0.0
    %5414 = vmatpush2.msra.mxu0 0.0
    %5415 = vmatprep.subr.mxu0 0.0
    %5416 = vmatpush2.msra.mxu0 0.0
    %5417 = vmatprep.subr.mxu0 0.0
    %5418 = vmatpush2.msra.mxu0 0.0
    %5419 = vmatprep.subr.mxu0 0.0
    %5420 = vmatpush2.msra.mxu0 0.0
    %5421 = vmatprep.subr.mxu0 0.0
    %5422 = vmatpush2.msra.mxu0 0.0
    %5423 = vmatprep.subr.mxu0 0.0
    %5424 = vmatpush2.msra.mxu0 0.0
    %5425 = vmatprep.subr.mxu0 0.0
    %5426 = vmatpush2.msra.mxu0 0.0
    %5427 = vmatprep.subr.mxu0 0.0
    %5428 = vmatpush2.msra.mxu0 0.0
    %5429 = vmatprep.subr.mxu0 0.0
    %5430 = vmatpush2.msra.mxu0 0.0
    %5431 = vmatprep.subr.mxu0 0.0
    %5432 = vmatpush2.msra.mxu0 0.0
    %5433 = vmatprep.mubr.f32.mxu0 0.0
    %5434 = vmatmul.mubr.f32.gmra.mxu0 %v5124
    %v5435 = vpop.f32.mrf.mxu0
    %v5436 = vadd.f32 0.0, %v5435
    %v5437 = vpop.f32.mrf.mxu0
    %v5438 = vadd.f32 0.0, %v5437
    %5439 = vdwg.mxu0
    %v5440 = vadd.f32 %v5294, %v5365
    %v5441 = vadd.f32 %v5295, %v5367
    %v5442 = vadd.f32 %v5296, %v5436
    %v5443 = vadd.f32 %v5297, %v5438
    %v5444 = vxor.u32 %v5440, 2147483648
    %v5445 = vmul.f32 %v5444, 1.442695
    %v5446 = vpow.pop %v5445
    %v5447 = vadd.f32 %v5446, 1.0
    %v5448 = vrcp.pop %v5447
    %v5449 = vmul.f32 1.0, %v5448
    %v5450 = vxor.u32 %v5441, 2147483648
    %v5451 = vmul.f32 %v5450, 1.442695
    %v5452 = vpow.pop %v5451
    %v5453 = vadd.f32 %v5452, 1.0
    %v5454 = vrcp.pop %v5453
    %v5455 = vmul.f32 1.0, %v5454
    %v5456 = vtanh.pop %v5442
    %v5457 = vxor.u32 %v5443, 2147483648
    %v5458 = vmul.f32 %v5457, 1.442695
    %v5459 = vpow.pop %v5458
    %v5460 = vadd.f32 %v5459, 1.0
    %v5461 = vrcp.pop %v5460
    %v5462 = vmul.f32 1.0, %v5461
    %v5463 = vmul.f32 %v5455, %v5122
    %v5464 = vmul.f32 %v5449, %v5456
    %v5465 = vadd.f32 %v5463, %v5464
    %v5466 = vtanh.pop %v5465
    %v5467 = vmul.f32 %v5462, %v5466
    %5468 = vmatprep.subr.mxu0 %v942
    %5469 = vmatpush1.msra.mxu0 %v941
    %5470 = vmatprep.subr.mxu0 %v938
    %5471 = vmatpush1.msra.mxu0 %v937
    %5472 = vmatprep.subr.mxu0 %v934
    %5473 = vmatpush1.msra.mxu0 %v933
    %5474 = vmatprep.subr.mxu0 %v930
    %5475 = vmatpush1.msra.mxu0 %v929
    %5476 = vmatprep.subr.mxu0 %v926
    %5477 = vmatpush1.msra.mxu0 %v925
    %5478 = vmatprep.subr.mxu0 %v922
    %5479 = vmatpush1.msra.mxu0 %v921
    %5480 = vmatprep.subr.mxu0 %v918
    %5481 = vmatpush1.msra.mxu0 %v917
    %5482 = vmatprep.subr.mxu0 %v914
    %5483 = vmatpush1.msra.mxu0 %v913
    %5484 = vmatprep.subr.mxu0 %v910
    %5485 = vmatpush1.msra.mxu0 %v909
    %5486 = vmatprep.subr.mxu0 %v906
    %5487 = vmatpush1.msra.mxu0 %v905
    %5488 = vmatprep.subr.mxu0 %v902
    %5489 = vmatpush1.msra.mxu0 %v901
    %5490 = vmatprep.subr.mxu0 %v898
    %5491 = vmatpush1.msra.mxu0 %v897
    %5492 = vmatprep.subr.mxu0 %v894
    %5493 = vmatpush1.msra.mxu0 %v893
    %5494 = vmatprep.subr.mxu0 %v890
    %5495 = vmatpush1.msra.mxu0 %v889
    %5496 = vmatprep.subr.mxu0 %v886
    %5497 = vmatpush1.msra.mxu0 %v885
    %5498 = vmatprep.subr.mxu0 %v882
    %5499 = vmatpush1.msra.mxu0 %v881
    %5500 = vmatprep.subr.mxu0 %v1006
    %5501 = vmatpush2.msra.mxu0 %v1005
    %5502 = vmatprep.subr.mxu0 %v1002
    %5503 = vmatpush2.msra.mxu0 %v1001
    %5504 = vmatprep.subr.mxu0 %v998
    %5505 = vmatpush2.msra.mxu0 %v997
    %5506 = vmatprep.subr.mxu0 %v994
    %5507 = vmatpush2.msra.mxu0 %v993
    %5508 = vmatprep.subr.mxu0 %v990
    %5509 = vmatpush2.msra.mxu0 %v989
    %5510 = vmatprep.subr.mxu0 %v986
    %5511 = vmatpush2.msra.mxu0 %v985
    %5512 = vmatprep.subr.mxu0 %v982
    %5513 = vmatpush2.msra.mxu0 %v981
    %5514 = vmatprep.subr.mxu0 %v978
    %5515 = vmatpush2.msra.mxu0 %v977
    %5516 = vmatprep.subr.mxu0 %v974
    %5517 = vmatpush2.msra.mxu0 %v973
    %5518 = vmatprep.subr.mxu0 %v970
    %5519 = vmatpush2.msra.mxu0 %v969
    %5520 = vmatprep.subr.mxu0 %v966
    %5521 = vmatpush2.msra.mxu0 %v965
    %5522 = vmatprep.subr.mxu0 %v962
    %5523 = vmatpush2.msra.mxu0 %v961
    %5524 = vmatprep.subr.mxu0 %v958
    %5525 = vmatpush2.msra.mxu0 %v957
    %5526 = vmatprep.subr.mxu0 %v954
    %5527 = vmatpush2.msra.mxu0 %v953
    %5528 = vmatprep.subr.mxu0 %v950
    %5529 = vmatpush2.msra.mxu0 %v949
    %5530 = vmatprep.subr.mxu0 %v946
    %5531 = vmatpush2.msra.mxu0 %v945
    %5532 = vmatprep.mubr.f32.mxu0 %v5290
    %5533 = vmatmul.mubr.f32.gmra.mxu0 %v5467
    %v5534 = vpop.f32.mrf.mxu0
    %v5535 = vadd.f32 %v617, %v5534
    %v5536 = vpop.f32.mrf.mxu0
    %v5537 = vadd.f32 %v621, %v5536
    %5538 = vdwg.mxu0
    %5539 = vmatprep.subr.mxu0 %v944
    %5540 = vmatpush1.msra.mxu0 %v943
    %5541 = vmatprep.subr.mxu0 %v940
    %5542 = vmatpush1.msra.mxu0 %v939
    %5543 = vmatprep.subr.mxu0 %v936
    %5544 = vmatpush1.msra.mxu0 %v935
    %5545 = vmatprep.subr.mxu0 %v932
    %5546 = vmatpush1.msra.mxu0 %v931
    %5547 = vmatprep.subr.mxu0 %v928
    %5548 = vmatpush1.msra.mxu0 %v927
    %5549 = vmatprep.subr.mxu0 %v924
    %5550 = vmatpush1.msra.mxu0 %v923
    %5551 = vmatprep.subr.mxu0 %v920
    %5552 = vmatpush1.msra.mxu0 %v919
    %5553 = vmatprep.subr.mxu0 %v916
    %5554 = vmatpush1.msra.mxu0 %v915
    %5555 = vmatprep.subr.mxu0 %v912
    %5556 = vmatpush1.msra.mxu0 %v911
    %5557 = vmatprep.subr.mxu0 %v908
    %5558 = vmatpush1.msra.mxu0 %v907
    %5559 = vmatprep.subr.mxu0 %v904
    %5560 = vmatpush1.msra.mxu0 %v903
    %5561 = vmatprep.subr.mxu0 %v900
    %5562 = vmatpush1.msra.mxu0 %v899
    %5563 = vmatprep.subr.mxu0 %v896
    %5564 = vmatpush1.msra.mxu0 %v895
    %5565 = vmatprep.subr.mxu0 %v892
    %5566 = vmatpush1.msra.mxu0 %v891
    %5567 = vmatprep.subr.mxu0 %v888
    %5568 = vmatpush1.msra.mxu0 %v887
    %5569 = vmatprep.subr.mxu0 %v884
    %5570 = vmatpush1.msra.mxu0 %v883
    %5571 = vmatprep.subr.mxu0 %v1008
    %5572 = vmatpush2.msra.mxu0 %v1007
    %5573 = vmatprep.subr.mxu0 %v1004
    %5574 = vmatpush2.msra.mxu0 %v1003
    %5575 = vmatprep.subr.mxu0 %v1000
    %5576 = vmatpush2.msra.mxu0 %v999
    %5577 = vmatprep.subr.mxu0 %v996
    %5578 = vmatpush2.msra.mxu0 %v995
    %5579 = vmatprep.subr.mxu0 %v992
    %5580 = vmatpush2.msra.mxu0 %v991
    %5581 = vmatprep.subr.mxu0 %v988
    %5582 = vmatpush2.msra.mxu0 %v987
    %5583 = vmatprep.subr.mxu0 %v984
    %5584 = vmatpush2.msra.mxu0 %v983
    %5585 = vmatprep.subr.mxu0 %v980
    %5586 = vmatpush2.msra.mxu0 %v979
    %5587 = vmatprep.subr.mxu0 %v976
    %5588 = vmatpush2.msra.mxu0 %v975
    %5589 = vmatprep.subr.mxu0 %v972
    %5590 = vmatpush2.msra.mxu0 %v971
    %5591 = vmatprep.subr.mxu0 %v968
    %5592 = vmatpush2.msra.mxu0 %v967
    %5593 = vmatprep.subr.mxu0 %v964
    %5594 = vmatpush2.msra.mxu0 %v963
    %5595 = vmatprep.subr.mxu0 %v960
    %5596 = vmatpush2.msra.mxu0 %v959
    %5597 = vmatprep.subr.mxu0 %v956
    %5598 = vmatpush2.msra.mxu0 %v955
    %5599 = vmatprep.subr.mxu0 %v952
    %5600 = vmatpush2.msra.mxu0 %v951
    %5601 = vmatprep.subr.mxu0 %v948
    %5602 = vmatpush2.msra.mxu0 %v947
    %5603 = vmatprep.mubr.f32.mxu0 %v5290
    %5604 = vmatmul.mubr.f32.gmra.mxu0 %v5467
    %v5605 = vpop.f32.mrf.mxu0
    %v5606 = vadd.f32 %v625, %v5605
    %v5607 = vpop.f32.mrf.mxu0
    %v5608 = vadd.f32 %v629, %v5607
    %5609 = vdwg.mxu0
    %v5610 = vxor.u32 %v5535, 2147483648
    %v5611 = vmul.f32 %v5610, 1.442695
    %v5612 = vpow.pop %v5611
    %v5613 = vadd.f32 %v5612, 1.0
    %v5614 = vrcp.pop %v5613
    %v5615 = vmul.f32 1.0, %v5614
    %v5616 = vxor.u32 %v5537, 2147483648
    %v5617 = vmul.f32 %v5616, 1.442695
    %v5618 = vpow.pop %v5617
    %v5619 = vadd.f32 %v5618, 1.0
    %v5620 = vrcp.pop %v5619
    %v5621 = vmul.f32 1.0, %v5620
    %v5622 = vtanh.pop %v5606
    %v5623 = vxor.u32 %v5608, 2147483648
    %v5624 = vmul.f32 %v5623, 1.442695
    %v5625 = vpow.pop %v5624
    %v5626 = vadd.f32 %v5625, 1.0
    %v5627 = vrcp.pop %v5626
    %v5628 = vmul.f32 1.0, %v5627
    %v5629 = vmul.f32 %v5621, %v5288
    %v5630 = vmul.f32 %v5615, %v5622
    %v5631 = vadd.f32 %v5629, %v5630
    %v5632 = vtanh.pop %v5631
    %v5633 = vmul.f32 %v5628, %v5632
    %s5634 = smul.u32 14, 4
    %s5635 = smul.addr %s5634, 8
    %s5636 = scalar_lea.vmem [#allocation2], %s5635
    %v5637 = vld [vmem:[%s5636] sm:$0xff]
    %v5638 = vld [vmem:[%s5636 + $0x8] sm:$0xff]
    %v5639 = vld [vmem:[%s5636 + $0x10] sm:$0xff]
    %v5640 = vld [vmem:[%s5636 + $0x18] sm:$0xff]
    %5641 = vmatprep.subr.mxu0 %v708
    %5642 = vmatpush1.msra.mxu0 %v707
    %5643 = vmatprep.subr.mxu0 %v704
    %5644 = vmatpush1.msra.mxu0 %v703
    %5645 = vmatprep.subr.mxu0 %v700
    %5646 = vmatpush1.msra.mxu0 %v699
    %5647 = vmatprep.subr.mxu0 %v696
    %5648 = vmatpush1.msra.mxu0 %v695
    %5649 = vmatprep.subr.mxu0 %v692
    %5650 = vmatpush1.msra.mxu0 %v691
    %5651 = vmatprep.subr.mxu0 %v688
    %5652 = vmatpush1.msra.mxu0 %v687
    %5653 = vmatprep.subr.mxu0 %v684
    %5654 = vmatpush1.msra.mxu0 %v683
    %5655 = vmatprep.subr.mxu0 %v680
    %5656 = vmatpush1.msra.mxu0 %v679
    %5657 = vmatprep.subr.mxu0 %v676
    %5658 = vmatpush1.msra.mxu0 %v675
    %5659 = vmatprep.subr.mxu0 %v672
    %5660 = vmatpush1.msra.mxu0 %v671
    %5661 = vmatprep.subr.mxu0 %v668
    %5662 = vmatpush1.msra.mxu0 %v667
    %5663 = vmatprep.subr.mxu0 %v664
    %5664 = vmatpush1.msra.mxu0 %v663
    %5665 = vmatprep.subr.mxu0 %v660
    %5666 = vmatpush1.msra.mxu0 %v659
    %5667 = vmatprep.subr.mxu0 %v656
    %5668 = vmatpush1.msra.mxu0 %v655
    %5669 = vmatprep.subr.mxu0 %v652
    %5670 = vmatpush1.msra.mxu0 %v651
    %5671 = vmatprep.subr.mxu0 %v648
    %5672 = vmatpush1.msra.mxu0 %v647
    %5673 = vmatprep.subr.mxu0 0.0
    %5674 = vmatpush2.msra.mxu0 0.0
    %5675 = vmatprep.subr.mxu0 0.0
    %5676 = vmatpush2.msra.mxu0 0.0
    %5677 = vmatprep.subr.mxu0 0.0
    %5678 = vmatpush2.msra.mxu0 0.0
    %5679 = vmatprep.subr.mxu0 0.0
    %5680 = vmatpush2.msra.mxu0 0.0
    %5681 = vmatprep.subr.mxu0 0.0
    %5682 = vmatpush2.msra.mxu0 0.0
    %5683 = vmatprep.subr.mxu0 0.0
    %5684 = vmatpush2.msra.mxu0 0.0
    %5685 = vmatprep.subr.mxu0 0.0
    %5686 = vmatpush2.msra.mxu0 0.0
    %5687 = vmatprep.subr.mxu0 0.0
    %5688 = vmatpush2.msra.mxu0 0.0
    %5689 = vmatprep.subr.mxu0 0.0
    %5690 = vmatpush2.msra.mxu0 0.0
    %5691 = vmatprep.subr.mxu0 0.0
    %5692 = vmatpush2.msra.mxu0 0.0
    %5693 = vmatprep.subr.mxu0 0.0
    %5694 = vmatpush2.msra.mxu0 0.0
    %5695 = vmatprep.subr.mxu0 0.0
    %5696 = vmatpush2.msra.mxu0 0.0
    %5697 = vmatprep.subr.mxu0 0.0
    %5698 = vmatpush2.msra.mxu0 0.0
    %5699 = vmatprep.subr.mxu0 0.0
    %5700 = vmatpush2.msra.mxu0 0.0
    %5701 = vmatprep.subr.mxu0 0.0
    %5702 = vmatpush2.msra.mxu0 0.0
    %5703 = vmatprep.subr.mxu0 0.0
    %5704 = vmatpush2.msra.mxu0 0.0
    %5705 = vmatprep.mubr.f32.mxu0 0.0
    %5706 = vmatmul.mubr.f32.gmra.mxu0 %v5467
    %v5707 = vpop.f32.mrf.mxu0
    %v5708 = vadd.f32 0.0, %v5707
    %v5709 = vpop.f32.mrf.mxu0
    %v5710 = vadd.f32 0.0, %v5709
    %5711 = vdwg.mxu0
    %5712 = vmatprep.subr.mxu0 %v710
    %5713 = vmatpush1.msra.mxu0 %v709
    %5714 = vmatprep.subr.mxu0 %v706
    %5715 = vmatpush1.msra.mxu0 %v705
    %5716 = vmatprep.subr.mxu0 %v702
    %5717 = vmatpush1.msra.mxu0 %v701
    %5718 = vmatprep.subr.mxu0 %v698
    %5719 = vmatpush1.msra.mxu0 %v697
    %5720 = vmatprep.subr.mxu0 %v694
    %5721 = vmatpush1.msra.mxu0 %v693
    %5722 = vmatprep.subr.mxu0 %v690
    %5723 = vmatpush1.msra.mxu0 %v689
    %5724 = vmatprep.subr.mxu0 %v686
    %5725 = vmatpush1.msra.mxu0 %v685
    %5726 = vmatprep.subr.mxu0 %v682
    %5727 = vmatpush1.msra.mxu0 %v681
    %5728 = vmatprep.subr.mxu0 %v678
    %5729 = vmatpush1.msra.mxu0 %v677
    %5730 = vmatprep.subr.mxu0 %v674
    %5731 = vmatpush1.msra.mxu0 %v673
    %5732 = vmatprep.subr.mxu0 %v670
    %5733 = vmatpush1.msra.mxu0 %v669
    %5734 = vmatprep.subr.mxu0 %v666
    %5735 = vmatpush1.msra.mxu0 %v665
    %5736 = vmatprep.subr.mxu0 %v662
    %5737 = vmatpush1.msra.mxu0 %v661
    %5738 = vmatprep.subr.mxu0 %v658
    %5739 = vmatpush1.msra.mxu0 %v657
    %5740 = vmatprep.subr.mxu0 %v654
    %5741 = vmatpush1.msra.mxu0 %v653
    %5742 = vmatprep.subr.mxu0 %v650
    %5743 = vmatpush1.msra.mxu0 %v649
    %5744 = vmatprep.subr.mxu0 0.0
    %5745 = vmatpush2.msra.mxu0 0.0
    %5746 = vmatprep.subr.mxu0 0.0
    %5747 = vmatpush2.msra.mxu0 0.0
    %5748 = vmatprep.subr.mxu0 0.0
    %5749 = vmatpush2.msra.mxu0 0.0
    %5750 = vmatprep.subr.mxu0 0.0
    %5751 = vmatpush2.msra.mxu0 0.0
    %5752 = vmatprep.subr.mxu0 0.0
    %5753 = vmatpush2.msra.mxu0 0.0
    %5754 = vmatprep.subr.mxu0 0.0
    %5755 = vmatpush2.msra.mxu0 0.0
    %5756 = vmatprep.subr.mxu0 0.0
    %5757 = vmatpush2.msra.mxu0 0.0
    %5758 = vmatprep.subr.mxu0 0.0
    %5759 = vmatpush2.msra.mxu0 0.0
    %5760 = vmatprep.subr.mxu0 0.0
    %5761 = vmatpush2.msra.mxu0 0.0
    %5762 = vmatprep.subr.mxu0 0.0
    %5763 = vmatpush2.msra.mxu0 0.0
    %5764 = vmatprep.subr.mxu0 0.0
    %5765 = vmatpush2.msra.mxu0 0.0
    %5766 = vmatprep.subr.mxu0 0.0
    %5767 = vmatpush2.msra.mxu0 0.0
    %5768 = vmatprep.subr.mxu0 0.0
    %5769 = vmatpush2.msra.mxu0 0.0
    %5770 = vmatprep.subr.mxu0 0.0
    %5771 = vmatpush2.msra.mxu0 0.0
    %5772 = vmatprep.subr.mxu0 0.0
    %5773 = vmatpush2.msra.mxu0 0.0
    %5774 = vmatprep.subr.mxu0 0.0
    %5775 = vmatpush2.msra.mxu0 0.0
    %5776 = vmatprep.mubr.f32.mxu0 0.0
    %5777 = vmatmul.mubr.f32.gmra.mxu0 %v5467
    %v5778 = vpop.f32.mrf.mxu0
    %v5779 = vadd.f32 0.0, %v5778
    %v5780 = vpop.f32.mrf.mxu0
    %v5781 = vadd.f32 0.0, %v5780
    %5782 = vdwg.mxu0
    %v5783 = vadd.f32 %v5637, %v5708
    %v5784 = vadd.f32 %v5638, %v5710
    %v5785 = vadd.f32 %v5639, %v5779
    %v5786 = vadd.f32 %v5640, %v5781
    %v5787 = vxor.u32 %v5783, 2147483648
    %v5788 = vmul.f32 %v5787, 1.442695
    %v5789 = vpow.pop %v5788
    %v5790 = vadd.f32 %v5789, 1.0
    %v5791 = vrcp.pop %v5790
    %v5792 = vmul.f32 1.0, %v5791
    %v5793 = vxor.u32 %v5784, 2147483648
    %v5794 = vmul.f32 %v5793, 1.442695
    %v5795 = vpow.pop %v5794
    %v5796 = vadd.f32 %v5795, 1.0
    %v5797 = vrcp.pop %v5796
    %v5798 = vmul.f32 1.0, %v5797
    %v5799 = vtanh.pop %v5785
    %v5800 = vxor.u32 %v5786, 2147483648
    %v5801 = vmul.f32 %v5800, 1.442695
    %v5802 = vpow.pop %v5801
    %v5803 = vadd.f32 %v5802, 1.0
    %v5804 = vrcp.pop %v5803
    %v5805 = vmul.f32 1.0, %v5804
    %v5806 = vmul.f32 %v5798, %v5465
    %v5807 = vmul.f32 %v5792, %v5799
    %v5808 = vadd.f32 %v5806, %v5807
    %v5809 = vtanh.pop %v5808
    %v5810 = vmul.f32 %v5805, %v5809
    %5811 = vmatprep.subr.mxu0 %v942
    %5812 = vmatpush1.msra.mxu0 %v941
    %5813 = vmatprep.subr.mxu0 %v938
    %5814 = vmatpush1.msra.mxu0 %v937
    %5815 = vmatprep.subr.mxu0 %v934
    %5816 = vmatpush1.msra.mxu0 %v933
    %5817 = vmatprep.subr.mxu0 %v930
    %5818 = vmatpush1.msra.mxu0 %v929
    %5819 = vmatprep.subr.mxu0 %v926
    %5820 = vmatpush1.msra.mxu0 %v925
    %5821 = vmatprep.subr.mxu0 %v922
    %5822 = vmatpush1.msra.mxu0 %v921
    %5823 = vmatprep.subr.mxu0 %v918
    %5824 = vmatpush1.msra.mxu0 %v917
    %5825 = vmatprep.subr.mxu0 %v914
    %5826 = vmatpush1.msra.mxu0 %v913
    %5827 = vmatprep.subr.mxu0 %v910
    %5828 = vmatpush1.msra.mxu0 %v909
    %5829 = vmatprep.subr.mxu0 %v906
    %5830 = vmatpush1.msra.mxu0 %v905
    %5831 = vmatprep.subr.mxu0 %v902
    %5832 = vmatpush1.msra.mxu0 %v901
    %5833 = vmatprep.subr.mxu0 %v898
    %5834 = vmatpush1.msra.mxu0 %v897
    %5835 = vmatprep.subr.mxu0 %v894
    %5836 = vmatpush1.msra.mxu0 %v893
    %5837 = vmatprep.subr.mxu0 %v890
    %5838 = vmatpush1.msra.mxu0 %v889
    %5839 = vmatprep.subr.mxu0 %v886
    %5840 = vmatpush1.msra.mxu0 %v885
    %5841 = vmatprep.subr.mxu0 %v882
    %5842 = vmatpush1.msra.mxu0 %v881
    %5843 = vmatprep.subr.mxu0 %v1006
    %5844 = vmatpush2.msra.mxu0 %v1005
    %5845 = vmatprep.subr.mxu0 %v1002
    %5846 = vmatpush2.msra.mxu0 %v1001
    %5847 = vmatprep.subr.mxu0 %v998
    %5848 = vmatpush2.msra.mxu0 %v997
    %5849 = vmatprep.subr.mxu0 %v994
    %5850 = vmatpush2.msra.mxu0 %v993
    %5851 = vmatprep.subr.mxu0 %v990
    %5852 = vmatpush2.msra.mxu0 %v989
    %5853 = vmatprep.subr.mxu0 %v986
    %5854 = vmatpush2.msra.mxu0 %v985
    %5855 = vmatprep.subr.mxu0 %v982
    %5856 = vmatpush2.msra.mxu0 %v981
    %5857 = vmatprep.subr.mxu0 %v978
    %5858 = vmatpush2.msra.mxu0 %v977
    %5859 = vmatprep.subr.mxu0 %v974
    %5860 = vmatpush2.msra.mxu0 %v973
    %5861 = vmatprep.subr.mxu0 %v970
    %5862 = vmatpush2.msra.mxu0 %v969
    %5863 = vmatprep.subr.mxu0 %v966
    %5864 = vmatpush2.msra.mxu0 %v965
    %5865 = vmatprep.subr.mxu0 %v962
    %5866 = vmatpush2.msra.mxu0 %v961
    %5867 = vmatprep.subr.mxu0 %v958
    %5868 = vmatpush2.msra.mxu0 %v957
    %5869 = vmatprep.subr.mxu0 %v954
    %5870 = vmatpush2.msra.mxu0 %v953
    %5871 = vmatprep.subr.mxu0 %v950
    %5872 = vmatpush2.msra.mxu0 %v949
    %5873 = vmatprep.subr.mxu0 %v946
    %5874 = vmatpush2.msra.mxu0 %v945
    %5875 = vmatprep.mubr.f32.mxu0 %v5633
    %5876 = vmatmul.mubr.f32.gmra.mxu0 %v5810
    %v5877 = vpop.f32.mrf.mxu0
    %v5878 = vadd.f32 %v617, %v5877
    %v5879 = vpop.f32.mrf.mxu0
    %v5880 = vadd.f32 %v621, %v5879
    %5881 = vdwg.mxu0
    %5882 = vmatprep.subr.mxu0 %v944
    %5883 = vmatpush1.msra.mxu0 %v943
    %5884 = vmatprep.subr.mxu0 %v940
    %5885 = vmatpush1.msra.mxu0 %v939
    %5886 = vmatprep.subr.mxu0 %v936
    %5887 = vmatpush1.msra.mxu0 %v935
    %5888 = vmatprep.subr.mxu0 %v932
    %5889 = vmatpush1.msra.mxu0 %v931
    %5890 = vmatprep.subr.mxu0 %v928
    %5891 = vmatpush1.msra.mxu0 %v927
    %5892 = vmatprep.subr.mxu0 %v924
    %5893 = vmatpush1.msra.mxu0 %v923
    %5894 = vmatprep.subr.mxu0 %v920
    %5895 = vmatpush1.msra.mxu0 %v919
    %5896 = vmatprep.subr.mxu0 %v916
    %5897 = vmatpush1.msra.mxu0 %v915
    %5898 = vmatprep.subr.mxu0 %v912
    %5899 = vmatpush1.msra.mxu0 %v911
    %5900 = vmatprep.subr.mxu0 %v908
    %5901 = vmatpush1.msra.mxu0 %v907
    %5902 = vmatprep.subr.mxu0 %v904
    %5903 = vmatpush1.msra.mxu0 %v903
    %5904 = vmatprep.subr.mxu0 %v900
    %5905 = vmatpush1.msra.mxu0 %v899
    %5906 = vmatprep.subr.mxu0 %v896
    %5907 = vmatpush1.msra.mxu0 %v895
    %5908 = vmatprep.subr.mxu0 %v892
    %5909 = vmatpush1.msra.mxu0 %v891
    %5910 = vmatprep.subr.mxu0 %v888
    %5911 = vmatpush1.msra.mxu0 %v887
    %5912 = vmatprep.subr.mxu0 %v884
    %5913 = vmatpush1.msra.mxu0 %v883
    %5914 = vmatprep.subr.mxu0 %v1008
    %5915 = vmatpush2.msra.mxu0 %v1007
    %5916 = vmatprep.subr.mxu0 %v1004
    %5917 = vmatpush2.msra.mxu0 %v1003
    %5918 = vmatprep.subr.mxu0 %v1000
    %5919 = vmatpush2.msra.mxu0 %v999
    %5920 = vmatprep.subr.mxu0 %v996
    %5921 = vmatpush2.msra.mxu0 %v995
    %5922 = vmatprep.subr.mxu0 %v992
    %5923 = vmatpush2.msra.mxu0 %v991
    %5924 = vmatprep.subr.mxu0 %v988
    %5925 = vmatpush2.msra.mxu0 %v987
    %5926 = vmatprep.subr.mxu0 %v984
    %5927 = vmatpush2.msra.mxu0 %v983
    %5928 = vmatprep.subr.mxu0 %v980
    %5929 = vmatpush2.msra.mxu0 %v979
    %5930 = vmatprep.subr.mxu0 %v976
    %5931 = vmatpush2.msra.mxu0 %v975
    %5932 = vmatprep.subr.mxu0 %v972
    %5933 = vmatpush2.msra.mxu0 %v971
    %5934 = vmatprep.subr.mxu0 %v968
    %5935 = vmatpush2.msra.mxu0 %v967
    %5936 = vmatprep.subr.mxu0 %v964
    %5937 = vmatpush2.msra.mxu0 %v963
    %5938 = vmatprep.subr.mxu0 %v960
    %5939 = vmatpush2.msra.mxu0 %v959
    %5940 = vmatprep.subr.mxu0 %v956
    %5941 = vmatpush2.msra.mxu0 %v955
    %5942 = vmatprep.subr.mxu0 %v952
    %5943 = vmatpush2.msra.mxu0 %v951
    %5944 = vmatprep.subr.mxu0 %v948
    %5945 = vmatpush2.msra.mxu0 %v947
    %5946 = vmatprep.mubr.f32.mxu0 %v5633
    %5947 = vmatmul.mubr.f32.gmra.mxu0 %v5810
    %v5948 = vpop.f32.mrf.mxu0
    %v5949 = vadd.f32 %v625, %v5948
    %v5950 = vpop.f32.mrf.mxu0
    %v5951 = vadd.f32 %v629, %v5950
    %5952 = vdwg.mxu0
    %v5953 = vxor.u32 %v5878, 2147483648
    %v5954 = vmul.f32 %v5953, 1.442695
    %v5955 = vpow.pop %v5954
    %v5956 = vadd.f32 %v5955, 1.0
    %v5957 = vrcp.pop %v5956
    %v5958 = vmul.f32 1.0, %v5957
    %v5959 = vxor.u32 %v5880, 2147483648
    %v5960 = vmul.f32 %v5959, 1.442695
    %v5961 = vpow.pop %v5960
    %v5962 = vadd.f32 %v5961, 1.0
    %v5963 = vrcp.pop %v5962
    %v5964 = vmul.f32 1.0, %v5963
    %v5965 = vtanh.pop %v5949
    %v5966 = vxor.u32 %v5951, 2147483648
    %v5967 = vmul.f32 %v5966, 1.442695
    %v5968 = vpow.pop %v5967
    %v5969 = vadd.f32 %v5968, 1.0
    %v5970 = vrcp.pop %v5969
    %v5971 = vmul.f32 1.0, %v5970
    %v5972 = vmul.f32 %v5964, %v5631
    %v5973 = vmul.f32 %v5958, %v5965
    %v5974 = vadd.f32 %v5972, %v5973
    %v5975 = vtanh.pop %v5974
    %v5976 = vmul.f32 %v5971, %v5975
    %s5977 = smul.u32 15, 4
    %s5978 = smul.addr %s5977, 8
    %s5979 = scalar_lea.vmem [#allocation2], %s5978
    %v5980 = vld [vmem:[%s5979] sm:$0xff]
    %v5981 = vld [vmem:[%s5979 + $0x8] sm:$0xff]
    %v5982 = vld [vmem:[%s5979 + $0x10] sm:$0xff]
    %v5983 = vld [vmem:[%s5979 + $0x18] sm:$0xff]
    %5984 = vmatprep.subr.mxu0 %v708
    %5985 = vmatpush1.msra.mxu0 %v707
    %5986 = vmatprep.subr.mxu0 %v704
    %5987 = vmatpush1.msra.mxu0 %v703
    %5988 = vmatprep.subr.mxu0 %v700
    %5989 = vmatpush1.msra.mxu0 %v699
    %5990 = vmatprep.subr.mxu0 %v696
    %5991 = vmatpush1.msra.mxu0 %v695
    %5992 = vmatprep.subr.mxu0 %v692
    %5993 = vmatpush1.msra.mxu0 %v691
    %5994 = vmatprep.subr.mxu0 %v688
    %5995 = vmatpush1.msra.mxu0 %v687
    %5996 = vmatprep.subr.mxu0 %v684
    %5997 = vmatpush1.msra.mxu0 %v683
    %5998 = vmatprep.subr.mxu0 %v680
    %5999 = vmatpush1.msra.mxu0 %v679
    %6000 = vmatprep.subr.mxu0 %v676
    %6001 = vmatpush1.msra.mxu0 %v675
    %6002 = vmatprep.subr.mxu0 %v672
    %6003 = vmatpush1.msra.mxu0 %v671
    %6004 = vmatprep.subr.mxu0 %v668
    %6005 = vmatpush1.msra.mxu0 %v667
    %6006 = vmatprep.subr.mxu0 %v664
    %6007 = vmatpush1.msra.mxu0 %v663
    %6008 = vmatprep.subr.mxu0 %v660
    %6009 = vmatpush1.msra.mxu0 %v659
    %6010 = vmatprep.subr.mxu0 %v656
    %6011 = vmatpush1.msra.mxu0 %v655
    %6012 = vmatprep.subr.mxu0 %v652
    %6013 = vmatpush1.msra.mxu0 %v651
    %6014 = vmatprep.subr.mxu0 %v648
    %6015 = vmatpush1.msra.mxu0 %v647
    %6016 = vmatprep.subr.mxu0 0.0
    %6017 = vmatpush2.msra.mxu0 0.0
    %6018 = vmatprep.subr.mxu0 0.0
    %6019 = vmatpush2.msra.mxu0 0.0
    %6020 = vmatprep.subr.mxu0 0.0
    %6021 = vmatpush2.msra.mxu0 0.0
    %6022 = vmatprep.subr.mxu0 0.0
    %6023 = vmatpush2.msra.mxu0 0.0
    %6024 = vmatprep.subr.mxu0 0.0
    %6025 = vmatpush2.msra.mxu0 0.0
    %6026 = vmatprep.subr.mxu0 0.0
    %6027 = vmatpush2.msra.mxu0 0.0
    %6028 = vmatprep.subr.mxu0 0.0
    %6029 = vmatpush2.msra.mxu0 0.0
    %6030 = vmatprep.subr.mxu0 0.0
    %6031 = vmatpush2.msra.mxu0 0.0
    %6032 = vmatprep.subr.mxu0 0.0
    %6033 = vmatpush2.msra.mxu0 0.0
    %6034 = vmatprep.subr.mxu0 0.0
    %6035 = vmatpush2.msra.mxu0 0.0
    %6036 = vmatprep.subr.mxu0 0.0
    %6037 = vmatpush2.msra.mxu0 0.0
    %6038 = vmatprep.subr.mxu0 0.0
    %6039 = vmatpush2.msra.mxu0 0.0
    %6040 = vmatprep.subr.mxu0 0.0
    %6041 = vmatpush2.msra.mxu0 0.0
    %6042 = vmatprep.subr.mxu0 0.0
    %6043 = vmatpush2.msra.mxu0 0.0
    %6044 = vmatprep.subr.mxu0 0.0
    %6045 = vmatpush2.msra.mxu0 0.0
    %6046 = vmatprep.subr.mxu0 0.0
    %6047 = vmatpush2.msra.mxu0 0.0
    %6048 = vmatprep.mubr.f32.mxu0 0.0
    %6049 = vmatmul.mubr.f32.gmra.mxu0 %v5810
    %v6050 = vpop.f32.mrf.mxu0
    %v6051 = vadd.f32 0.0, %v6050
    %v6052 = vpop.f32.mrf.mxu0
    %v6053 = vadd.f32 0.0, %v6052
    %6054 = vdwg.mxu0
    %6055 = vmatprep.subr.mxu0 %v710
    %6056 = vmatpush1.msra.mxu0 %v709
    %6057 = vmatprep.subr.mxu0 %v706
    %6058 = vmatpush1.msra.mxu0 %v705
    %6059 = vmatprep.subr.mxu0 %v702
    %6060 = vmatpush1.msra.mxu0 %v701
    %6061 = vmatprep.subr.mxu0 %v698
    %6062 = vmatpush1.msra.mxu0 %v697
    %6063 = vmatprep.subr.mxu0 %v694
    %6064 = vmatpush1.msra.mxu0 %v693
    %6065 = vmatprep.subr.mxu0 %v690
    %6066 = vmatpush1.msra.mxu0 %v689
    %6067 = vmatprep.subr.mxu0 %v686
    %6068 = vmatpush1.msra.mxu0 %v685
    %6069 = vmatprep.subr.mxu0 %v682
    %6070 = vmatpush1.msra.mxu0 %v681
    %6071 = vmatprep.subr.mxu0 %v678
    %6072 = vmatpush1.msra.mxu0 %v677
    %6073 = vmatprep.subr.mxu0 %v674
    %6074 = vmatpush1.msra.mxu0 %v673
    %6075 = vmatprep.subr.mxu0 %v670
    %6076 = vmatpush1.msra.mxu0 %v669
    %6077 = vmatprep.subr.mxu0 %v666
    %6078 = vmatpush1.msra.mxu0 %v665
    %6079 = vmatprep.subr.mxu0 %v662
    %6080 = vmatpush1.msra.mxu0 %v661
    %6081 = vmatprep.subr.mxu0 %v658
    %6082 = vmatpush1.msra.mxu0 %v657
    %6083 = vmatprep.subr.mxu0 %v654
    %6084 = vmatpush1.msra.mxu0 %v653
    %6085 = vmatprep.subr.mxu0 %v650
    %6086 = vmatpush1.msra.mxu0 %v649
    %6087 = vmatprep.subr.mxu0 0.0
    %6088 = vmatpush2.msra.mxu0 0.0
    %6089 = vmatprep.subr.mxu0 0.0
    %6090 = vmatpush2.msra.mxu0 0.0
    %6091 = vmatprep.subr.mxu0 0.0
    %6092 = vmatpush2.msra.mxu0 0.0
    %6093 = vmatprep.subr.mxu0 0.0
    %6094 = vmatpush2.msra.mxu0 0.0
    %6095 = vmatprep.subr.mxu0 0.0
    %6096 = vmatpush2.msra.mxu0 0.0
    %6097 = vmatprep.subr.mxu0 0.0
    %6098 = vmatpush2.msra.mxu0 0.0
    %6099 = vmatprep.subr.mxu0 0.0
    %6100 = vmatpush2.msra.mxu0 0.0
    %6101 = vmatprep.subr.mxu0 0.0
    %6102 = vmatpush2.msra.mxu0 0.0
    %6103 = vmatprep.subr.mxu0 0.0
    %6104 = vmatpush2.msra.mxu0 0.0
    %6105 = vmatprep.subr.mxu0 0.0
    %6106 = vmatpush2.msra.mxu0 0.0
    %6107 = vmatprep.subr.mxu0 0.0
    %6108 = vmatpush2.msra.mxu0 0.0
    %6109 = vmatprep.subr.mxu0 0.0
    %6110 = vmatpush2.msra.mxu0 0.0
    %6111 = vmatprep.subr.mxu0 0.0
    %6112 = vmatpush2.msra.mxu0 0.0
    %6113 = vmatprep.subr.mxu0 0.0
    %6114 = vmatpush2.msra.mxu0 0.0
    %6115 = vmatprep.subr.mxu0 0.0
    %6116 = vmatpush2.msra.mxu0 0.0
    %6117 = vmatprep.subr.mxu0 0.0
    %6118 = vmatpush2.msra.mxu0 0.0
    %6119 = vmatprep.mubr.f32.mxu0 0.0
    %6120 = vmatmul.mubr.f32.gmra.mxu0 %v5810
    %v6121 = vpop.f32.mrf.mxu0
    %v6122 = vadd.f32 0.0, %v6121
    %v6123 = vpop.f32.mrf.mxu0
    %v6124 = vadd.f32 0.0, %v6123
    %6125 = vdwg.mxu0
    %v6126 = vadd.f32 %v5980, %v6051
    %v6127 = vadd.f32 %v5981, %v6053
    %v6128 = vadd.f32 %v5982, %v6122
    %v6129 = vadd.f32 %v5983, %v6124
    %v6130 = vxor.u32 %v6126, 2147483648
    %v6131 = vmul.f32 %v6130, 1.442695
    %v6132 = vpow.pop %v6131
    %v6133 = vadd.f32 %v6132, 1.0
    %v6134 = vrcp.pop %v6133
    %v6135 = vmul.f32 1.0, %v6134
    %v6136 = vxor.u32 %v6127, 2147483648
    %v6137 = vmul.f32 %v6136, 1.442695
    %v6138 = vpow.pop %v6137
    %v6139 = vadd.f32 %v6138, 1.0
    %v6140 = vrcp.pop %v6139
    %v6141 = vmul.f32 1.0, %v6140
    %v6142 = vtanh.pop %v6128
    %v6143 = vxor.u32 %v6129, 2147483648
    %v6144 = vmul.f32 %v6143, 1.442695
    %v6145 = vpow.pop %v6144
    %v6146 = vadd.f32 %v6145, 1.0
    %v6147 = vrcp.pop %v6146
    %v6148 = vmul.f32 1.0, %v6147
    %v6149 = vmul.f32 %v6141, %v5808
    %v6150 = vmul.f32 %v6135, %v6142
    %v6151 = vadd.f32 %v6149, %v6150
    %v6152 = vtanh.pop %v6151
    %v6153 = vmul.f32 %v6148, %v6152
    %6154 = vmatprep.subr.mxu0 %v942
    %6155 = vmatpush1.msra.mxu0 %v941
    %6156 = vmatprep.subr.mxu0 %v938
    %6157 = vmatpush1.msra.mxu0 %v937
    %6158 = vmatprep.subr.mxu0 %v934
    %6159 = vmatpush1.msra.mxu0 %v933
    %6160 = vmatprep.subr.mxu0 %v930
    %6161 = vmatpush1.msra.mxu0 %v929
    %6162 = vmatprep.subr.mxu0 %v926
    %6163 = vmatpush1.msra.mxu0 %v925
    %6164 = vmatprep.subr.mxu0 %v922
    %6165 = vmatpush1.msra.mxu0 %v921
    %6166 = vmatprep.subr.mxu0 %v918
    %6167 = vmatpush1.msra.mxu0 %v917
    %6168 = vmatprep.subr.mxu0 %v914
    %6169 = vmatpush1.msra.mxu0 %v913
    %6170 = vmatprep.subr.mxu0 %v910
    %6171 = vmatpush1.msra.mxu0 %v909
    %6172 = vmatprep.subr.mxu0 %v906
    %6173 = vmatpush1.msra.mxu0 %v905
    %6174 = vmatprep.subr.mxu0 %v902
    %6175 = vmatpush1.msra.mxu0 %v901
    %6176 = vmatprep.subr.mxu0 %v898
    %6177 = vmatpush1.msra.mxu0 %v897
    %6178 = vmatprep.subr.mxu0 %v894
    %6179 = vmatpush1.msra.mxu0 %v893
    %6180 = vmatprep.subr.mxu0 %v890
    %6181 = vmatpush1.msra.mxu0 %v889
    %6182 = vmatprep.subr.mxu0 %v886
    %6183 = vmatpush1.msra.mxu0 %v885
    %6184 = vmatprep.subr.mxu0 %v882
    %6185 = vmatpush1.msra.mxu0 %v881
    %6186 = vmatprep.subr.mxu0 %v1006
    %6187 = vmatpush2.msra.mxu0 %v1005
    %6188 = vmatprep.subr.mxu0 %v1002
    %6189 = vmatpush2.msra.mxu0 %v1001
    %6190 = vmatprep.subr.mxu0 %v998
    %6191 = vmatpush2.msra.mxu0 %v997
    %6192 = vmatprep.subr.mxu0 %v994
    %6193 = vmatpush2.msra.mxu0 %v993
    %6194 = vmatprep.subr.mxu0 %v990
    %6195 = vmatpush2.msra.mxu0 %v989
    %6196 = vmatprep.subr.mxu0 %v986
    %6197 = vmatpush2.msra.mxu0 %v985
    %6198 = vmatprep.subr.mxu0 %v982
    %6199 = vmatpush2.msra.mxu0 %v981
    %6200 = vmatprep.subr.mxu0 %v978
    %6201 = vmatpush2.msra.mxu0 %v977
    %6202 = vmatprep.subr.mxu0 %v974
    %6203 = vmatpush2.msra.mxu0 %v973
    %6204 = vmatprep.subr.mxu0 %v970
    %6205 = vmatpush2.msra.mxu0 %v969
    %6206 = vmatprep.subr.mxu0 %v966
    %6207 = vmatpush2.msra.mxu0 %v965
    %6208 = vmatprep.subr.mxu0 %v962
    %6209 = vmatpush2.msra.mxu0 %v961
    %6210 = vmatprep.subr.mxu0 %v958
    %6211 = vmatpush2.msra.mxu0 %v957
    %6212 = vmatprep.subr.mxu0 %v954
    %6213 = vmatpush2.msra.mxu0 %v953
    %6214 = vmatprep.subr.mxu0 %v950
    %6215 = vmatpush2.msra.mxu0 %v949
    %6216 = vmatprep.subr.mxu0 %v946
    %6217 = vmatpush2.msra.mxu0 %v945
    %6218 = vmatprep.mubr.f32.mxu0 %v5976
    %6219 = vmatmul.mubr.f32.gmra.mxu0 %v6153
    %v6220 = vpop.f32.mrf.mxu0
    %v6221 = vadd.f32 %v617, %v6220
    %v6222 = vpop.f32.mrf.mxu0
    %v6223 = vadd.f32 %v621, %v6222
    %6224 = vdwg.mxu0
    %6225 = vmatprep.subr.mxu0 %v944
    %6226 = vmatpush1.msra.mxu0 %v943
    %6227 = vmatprep.subr.mxu0 %v940
    %6228 = vmatpush1.msra.mxu0 %v939
    %6229 = vmatprep.subr.mxu0 %v936
    %6230 = vmatpush1.msra.mxu0 %v935
    %6231 = vmatprep.subr.mxu0 %v932
    %6232 = vmatpush1.msra.mxu0 %v931
    %6233 = vmatprep.subr.mxu0 %v928
    %6234 = vmatpush1.msra.mxu0 %v927
    %6235 = vmatprep.subr.mxu0 %v924
    %6236 = vmatpush1.msra.mxu0 %v923
    %6237 = vmatprep.subr.mxu0 %v920
    %6238 = vmatpush1.msra.mxu0 %v919
    %6239 = vmatprep.subr.mxu0 %v916
    %6240 = vmatpush1.msra.mxu0 %v915
    %6241 = vmatprep.subr.mxu0 %v912
    %6242 = vmatpush1.msra.mxu0 %v911
    %6243 = vmatprep.subr.mxu0 %v908
    %6244 = vmatpush1.msra.mxu0 %v907
    %6245 = vmatprep.subr.mxu0 %v904
    %6246 = vmatpush1.msra.mxu0 %v903
    %6247 = vmatprep.subr.mxu0 %v900
    %6248 = vmatpush1.msra.mxu0 %v899
    %6249 = vmatprep.subr.mxu0 %v896
    %6250 = vmatpush1.msra.mxu0 %v895
    %6251 = vmatprep.subr.mxu0 %v892
    %6252 = vmatpush1.msra.mxu0 %v891
    %6253 = vmatprep.subr.mxu0 %v888
    %6254 = vmatpush1.msra.mxu0 %v887
    %6255 = vmatprep.subr.mxu0 %v884
    %6256 = vmatpush1.msra.mxu0 %v883
    %6257 = vmatprep.subr.mxu0 %v1008
    %6258 = vmatpush2.msra.mxu0 %v1007
    %6259 = vmatprep.subr.mxu0 %v1004
    %6260 = vmatpush2.msra.mxu0 %v1003
    %6261 = vmatprep.subr.mxu0 %v1000
    %6262 = vmatpush2.msra.mxu0 %v999
    %6263 = vmatprep.subr.mxu0 %v996
    %6264 = vmatpush2.msra.mxu0 %v995
    %6265 = vmatprep.subr.mxu0 %v992
    %6266 = vmatpush2.msra.mxu0 %v991
    %6267 = vmatprep.subr.mxu0 %v988
    %6268 = vmatpush2.msra.mxu0 %v987
    %6269 = vmatprep.subr.mxu0 %v984
    %6270 = vmatpush2.msra.mxu0 %v983
    %6271 = vmatprep.subr.mxu0 %v980
    %6272 = vmatpush2.msra.mxu0 %v979
    %6273 = vmatprep.subr.mxu0 %v976
    %6274 = vmatpush2.msra.mxu0 %v975
    %6275 = vmatprep.subr.mxu0 %v972
    %6276 = vmatpush2.msra.mxu0 %v971
    %6277 = vmatprep.subr.mxu0 %v968
    %6278 = vmatpush2.msra.mxu0 %v967
    %6279 = vmatprep.subr.mxu0 %v964
    %6280 = vmatpush2.msra.mxu0 %v963
    %6281 = vmatprep.subr.mxu0 %v960
    %6282 = vmatpush2.msra.mxu0 %v959
    %6283 = vmatprep.subr.mxu0 %v956
    %6284 = vmatpush2.msra.mxu0 %v955
    %6285 = vmatprep.subr.mxu0 %v952
    %6286 = vmatpush2.msra.mxu0 %v951
    %6287 = vmatprep.subr.mxu0 %v948
    %6288 = vmatpush2.msra.mxu0 %v947
    %6289 = vmatprep.mubr.f32.mxu0 %v5976
    %6290 = vmatmul.mubr.f32.gmra.mxu0 %v6153
    %v6291 = vpop.f32.mrf.mxu0
    %v6292 = vadd.f32 %v625, %v6291
    %v6293 = vpop.f32.mrf.mxu0
    %v6294 = vadd.f32 %v629, %v6293
    %6295 = vdwg.mxu0
    %v6296 = vxor.u32 %v6221, 2147483648
    %v6297 = vmul.f32 %v6296, 1.442695
    %v6298 = vpow.pop %v6297
    %v6299 = vadd.f32 %v6298, 1.0
    %v6300 = vrcp.pop %v6299
    %v6301 = vmul.f32 1.0, %v6300
    %v6302 = vxor.u32 %v6223, 2147483648
    %v6303 = vmul.f32 %v6302, 1.442695
    %v6304 = vpow.pop %v6303
    %v6305 = vadd.f32 %v6304, 1.0
    %v6306 = vrcp.pop %v6305
    %v6307 = vmul.f32 1.0, %v6306
    %v6308 = vtanh.pop %v6292
    %v6309 = vxor.u32 %v6294, 2147483648
    %v6310 = vmul.f32 %v6309, 1.442695
    %v6311 = vpow.pop %v6310
    %v6312 = vadd.f32 %v6311, 1.0
    %v6313 = vrcp.pop %v6312
    %v6314 = vmul.f32 1.0, %v6313
    %v6315 = vmul.f32 %v6307, %v5974
    %v6316 = vmul.f32 %v6301, %v6308
    %v6317 = vadd.f32 %v6315, %v6316
    %v6318 = vtanh.pop %v6317
    %v6319 = vmul.f32 %v6314, %v6318
    %6320 = vst [vmem:[#allocation15] sm:$0xff] %v6153
    %s6321 = scalar_lea.vmem [#allocation15], 8
    %6322 = vst [vmem:[%s6321] sm:$0xff] %v6319
    %6323 = vst [vmem:[#allocation16] sm:$0xff] %v6151
    %s6324 = scalar_lea.vmem [#allocation16], 8
    %6325 = vst [vmem:[%s6324] sm:$0xff] %v6317
    %v6326 = vld [vmem:[%s8] sm:$0x1]
    %v6328 = vlaneseq
    %v6329 = vshrl.u32 %v6328, 7
    %v6330 = vsub.s32 0, %v6329
    %v6331 = vrot.slane %v6326, %v6330
    %v6333 = vmul.f32 %v6319, %v6331
    %6334 = vadd.xlane.f32.xlu0 %v6333
    %v6335 = vpop.xlane.xlu0 %6334
    %v6336 = vld [vmem:[#allocation3] sm:$0x1]
    %v6338 = vlaneseq
    %v6339 = vshrl.u32 %v6338, 7
    %v6340 = vsub.s32 0, %v6339
    %v6341 = vrot.slane %v6336, %v6340
    %v6343 = vadd.f32 %v6335, %v6341
    %v6344 = vxor.u32 %v6343, 2147483648
    %v6345 = vmul.f32 %v6344, 1.442695
    %v6346 = vpow.pop %v6345
    %v6347 = vadd.f32 %v6346, 1.0
    %v6348 = vrcp.pop %v6347
    %v6349 = vmul.f32 1.0, %v6348
    %vm6350 = vcmask 7168
    %6351 = vst.msk [vmem:[%s10] sm:$0xff] %vm6350, %v6349
    // Predicated region
    $region66: #{tpu_custom_call.1} parent=1 // pred_check
      _
    $region67: #{tpu_custom_call.1} parent=1 // pred_check_branch
      %6353 = sbr.rel (0) target = $region69
    $region68: #{tpu_custom_call.1} parent=1 // pred_region
      _
    $region69: #{tpu_custom_call.1} parent=1 // pred_fallthru
      _
    // Predicated region
    $region70: #{tpu_custom_call.1} parent=1 // pred_check
      _
    $region71: #{tpu_custom_call.1} parent=1 // pred_check_branch
      %6355 = sbr.rel (0) target = $region73
    $region72: #{tpu_custom_call.1} parent=1 // pred_region
      %s6357 = ssub.s32 256, 256
      %6358 = vsyncadd [#allocation6], %s6357
      %s6359 = sshll.u32 [#allocation15], 4
      %s6360 = int_to_ptr.vmem [resolvable:$true] %s6359
      %6365 = dma.vmem_to_hbm [thread:$0]  %s6360, 256, %s11, [#allocation6], 128, 128, 8
    $region73: #{tpu_custom_call.1} parent=1 // pred_fallthru
      _
    // Predicated region
    $region74: #{tpu_custom_call.1} parent=1 // pred_check
      _
    $region75: #{tpu_custom_call.1} parent=1 // pred_check_branch
      %6367 = sbr.rel (0) target = $region77
    $region76: #{tpu_custom_call.1} parent=1 // pred_region
      %s6369 = ssub.s32 256, 256
      %6370 = vsyncadd [#allocation17], %s6369
      %s6371 = sshll.u32 [#allocation16], 4
      %s6372 = int_to_ptr.vmem [resolvable:$true] %s6371
      %6377 = dma.vmem_to_hbm [thread:$0]  %s6372, 256, %s12, [#allocation17], 128, 128, 8
    $region77: #{tpu_custom_call.1} parent=1 // pred_fallthru
      _
    // Predicated region
    $region78: #{tpu_custom_call.1} parent=1 // pred_check
      _
    $region79: #{tpu_custom_call.1} parent=1 // pred_check_branch
      %6379 = sbr.rel (0) target = $region81
    $region80: #{tpu_custom_call.1} parent=1 // pred_region
      _
    $region81: #{tpu_custom_call.1} parent=1 // pred_fallthru
      _
    // Predicated region
    $region82: #{tpu_custom_call.1} parent=1 // pred_check
      _
    $region83: #{tpu_custom_call.1} parent=1 // pred_check_branch
      %6381 = sbr.rel (0) target = $region85
    $region84: #{tpu_custom_call.1} parent=1 // pred_region
      %6382 = dma.done [#allocation6], 256
    $region85: #{tpu_custom_call.1} parent=1 // pred_fallthru
      _
    // Predicated region
    $region86: #{tpu_custom_call.1} parent=1 // pred_check
      _
    $region87: #{tpu_custom_call.1} parent=1 // pred_check_branch
      %6384 = sbr.rel (0) target = $region89
    $region88: #{tpu_custom_call.1} parent=1 // pred_region
      %6385 = dma.done [#allocation17], 256
    $region89: #{tpu_custom_call.1} parent=1 // pred_fallthru
      _
    %6386 = vsyncpa [#allocation5], 1
    %6387 = vsyncpa [#allocation8], 1
    %6388 = vsyncpa [#allocation11], 1
    %6389 = vsyncpa [#allocation14], 1
    %6390 = vsyncpa [#allocation6], 1
    %6391 = vsyncpa [#allocation17], 1

</llo_original>
